<compile_context>
chip_gen: v5e
topology: v5e:2x2
jax: 0.10.0
libtpu: 0.0.40
codegen_flags: <defaults>
</compile_context>

<pallas_src>
import functools

import jax
import jax.numpy as jnp
from jax.experimental import pallas as pl
from jax.experimental.pallas import tpu as pltpu

# Architecture constants fixed by the torch module (84x84x4 observations).
C_IN, H_IN, W_IN = 4, 84, 84
C1, K1, S1 = 16, 8, 4            # conv1: 4 -> 16, 8x8, stride 4  -> 20x20
C2, K2, S2 = 32, 4, 2            # conv2: 16 -> 32, 4x4, stride 2 -> 9x9
H1 = (H_IN - K1) // S1 + 1       # 20
H2 = (H1 - K2) // S2 + 1         # 9
M2 = H2 * H2                     # 81   conv2 output positions (lane axis)
KP1 = C_IN * K1 * K1             # 256  conv1 im2col depth
NIJ = K2 * K2                    # 16   conv2 kernel offsets
FC1_OUT = 256
LANE = 128
FLAT_PAD = C2 * LANE             # 4096 flatten with each channel lane-aligned


# ----------------------------------------------------------------------------
# Fused kernel: conv1 + ReLU + conv2 + ReLU + flatten + fc1 + ReLU + fc2
# ----------------------------------------------------------------------------
def _qnet_kernel(x8_ref, w1_ref, b1_ref, w2_ref, b2_ref,
                 wf1_ref, bf1_ref, wf2_ref, bf2_ref,
                 out_ref, flat_ref):
    # Zero the flatten scratch so its padding lanes meet the zero rows of the
    # padded fc1 weight (avoids NaN * 0 from uninitialized VMEM).
    flat_ref[...] = jnp.zeros_like(flat_ref)

    w1 = w1_ref[...]                                   # (16, 256) bf16
    b1 = b1_ref[...]                                   # (16, 1)   f32
    b2 = b2_ref[...]                                   # (32, 1)   f32

    # conv1 + conv2 fused: for each conv2 kernel offset (i, j), x8[ij] holds the
    # conv1 im2col columns at exactly the conv1 output positions
    # (2*oh2 + i, 2*ow2 + j) that conv2 output (oh2, ow2) needs.
    acc2 = jnp.zeros((C2, M2), jnp.float32)
    for ij in range(NIJ):
        h = jnp.dot(w1, x8_ref[0, ij],
                    preferred_element_type=jnp.float32)        # (16, 81)
        h = jnp.maximum(h + b1, 0.0).astype(jnp.bfloat16)       # ReLU(conv1)
        acc2 = acc2 + jnp.dot(w2_ref[ij], h,
                              preferred_element_type=jnp.float32)  # (32, 81)
    a2 = jnp.maximum(acc2 + b2, 0.0).astype(jnp.bfloat16)       # ReLU(conv2)

    # Channel-major flatten (torch .view order (C, H, W)): each channel's 81
    # values land at a 128-aligned lane offset; fc1 weights are packed to match.
    for c in range(C2):
        flat_ref[:, pl.ds(c * LANE, M2)] = a2[c:c + 1, :]
    flat = flat_ref[...]                                        # (1, 4096) bf16

    h1 = jnp.dot(flat, wf1_ref[...],
                 preferred_element_type=jnp.float32) + bf1_ref[...]   # (1, 256)
    h1 = jnp.maximum(h1, 0.0).astype(jnp.bfloat16)
    q = jnp.dot(h1, wf2_ref[...],
                preferred_element_type=jnp.float32) + bf2_ref[...]    # (1, OUT_PAD)
    out_ref[0] = q


# ----------------------------------------------------------------------------
# Wrapper-side patch extraction (single XLA gather fusion on the raw obs)
# ----------------------------------------------------------------------------
def _build_conv_patches(obs):
    """obs (B, 4, 84, 84) f32 -> x8 (B, 16, 256, 81) bf16 with

    x8[b, i*4+j, c*64 + a*8 + d, oh*9 + ow] = obs[b, c, 8*oh + 4*i + a, 8*ow + 4*j + d]
    """
    B = obs.shape[0]
    step = S1 * S2                       # 8
    span = step * (H2 - 1) + 1           # 65
    rows = jnp.stack([obs[:, :, u:u + span:step, :] for u in range(H1)],
                     axis=2)                                   # (B, 4, 20, 9, 84)
    cols = jnp.stack([rows[..., v:v + span:step] for v in range(H1)],
                     axis=4)                                   # (B, 4, 20, 9, 20, 9)
    p = cols.transpose(0, 1, 2, 4, 3, 5)                       # (B, 4, 20, 20, 9, 9)
    blocks = jnp.stack(
        [p[:, :, S1 * i:S1 * i + K1, S1 * j:S1 * j + K1]
         for i in range(K2) for j in range(K2)], axis=1)       # (B, 16, 4, 8, 8, 9, 9)
    x8 = blocks.reshape(B, NIJ, KP1, M2)
    return x8.astype(jnp.bfloat16)


# ----------------------------------------------------------------------------
# One-time weight packing (matmul-ready, padded, bf16)
# ----------------------------------------------------------------------------
def pack_params(params):
    bf16 = lambda x: x.astype(jnp.bfloat16)
    num_actions = params["fc2_w"].shape[0]
    out_pad = ((num_actions + LANE - 1) // LANE) * LANE

    w2p = jnp.stack([params["conv2_w"][:, :, i, j]
                     for i in range(K2) for j in range(K2)], axis=0)   # (16, 32, 16)

    wf1 = params["fc1_w"].T.reshape(C2, M2, FC1_OUT)                   # (32, 81, 256)
    wf1 = jnp.pad(wf1, ((0, 0), (0, LANE - M2), (0, 0))).reshape(FLAT_PAD, FC1_OUT)

    wf2 = jnp.pad(params["fc2_w"].T, ((0, 0), (0, out_pad - num_actions)))
    bf2 = jnp.pad(params["fc2_b"], (0, out_pad - num_actions)).reshape(1, out_pad)

    return {
        "w1": bf16(params["conv1_w"].reshape(C1, KP1)),
        "b1": params["conv1_b"].reshape(C1, 1).astype(jnp.float32),
        "w2": bf16(w2p),
        "b2": params["conv2_b"].reshape(C2, 1).astype(jnp.float32),
        "wf1": bf16(wf1),
        "bf1": params["fc1_b"].reshape(1, FC1_OUT).astype(jnp.float32),
        "wf2": bf16(wf2),
        "bf2": bf2.astype(jnp.float32),
    }


# ----------------------------------------------------------------------------
# Forward pass
# ----------------------------------------------------------------------------
def qnetwork_forward(packed, obs, *, num_actions):
    """obs: (B, 4, 84, 84) f32 NCHW -> (B, num_actions) f32."""
    B = obs.shape[0]
    out_pad = packed["wf2"].shape[1]
    x8 = _build_conv_patches(obs)                      # (B, 16, 256, 81) bf16

    out = pl.pallas_call(
        _qnet_kernel,
        out_shape=jax.ShapeDtypeStruct((B, 1, out_pad), jnp.float32),
        grid_spec=pltpu.PrefetchScalarGridSpec(
            num_scalar_prefetch=0,
            grid=(B,),
            in_specs=[
                pl.BlockSpec((1, NIJ, KP1, M2), lambda b: (b, 0, 0, 0)),   # patches
                pl.BlockSpec((C1, KP1), lambda b: (0, 0)),                 # w1
                pl.BlockSpec((C1, 1), lambda b: (0, 0)),                   # b1
                pl.BlockSpec((NIJ, C2, C1), lambda b: (0, 0, 0)),          # w2
                pl.BlockSpec((C2, 1), lambda b: (0, 0)),                   # b2
                pl.BlockSpec((FLAT_PAD, FC1_OUT), lambda b: (0, 0)),       # fc1 w
                pl.BlockSpec((1, FC1_OUT), lambda b: (0, 0)),              # fc1 b
                pl.BlockSpec((FC1_OUT, out_pad), lambda b: (0, 0)),        # fc2 w
                pl.BlockSpec((1, out_pad), lambda b: (0, 0)),              # fc2 b
            ],
            out_specs=pl.BlockSpec((1, 1, out_pad), lambda b: (b, 0, 0)),
            scratch_shapes=[pltpu.VMEM((1, FLAT_PAD), jnp.bfloat16)],
        ),
        compiler_params=pltpu.CompilerParams(
            dimension_semantics=("parallel",)),
    )(x8, packed["w1"], packed["b1"], packed["w2"], packed["b2"],
      packed["wf1"], packed["bf1"], packed["wf2"], packed["bf2"])

    return out.reshape(B, out_pad)[:, :num_actions]


# ----------------------------------------------------------------------------
# Synthetic init matching the torch module's shapes
# ----------------------------------------------------------------------------
def init_qnetwork_params(key, num_actions):
    ks = jax.random.split(key, 8)

    def uniform(k, shape, fan_in):
        bound = 1.0 / jnp.sqrt(fan_in)
        return jax.random.uniform(k, shape, jnp.float32, -bound, bound)

    return {
        "conv1_w": uniform(ks[0], (C1, C_IN, K1, K1), C_IN * K1 * K1),
        "conv1_b": uniform(ks[1], (C1,), C_IN * K1 * K1),
        "conv2_w": uniform(ks[2], (C2, C1, K2, K2), C1 * K2 * K2),
        "conv2_b": uniform(ks[3], (C2,), C1 * K2 * K2),
        "fc1_w": uniform(ks[4], (FC1_OUT, C2 * M2), C2 * M2),
        "fc1_b": uniform(ks[5], (FC1_OUT,), C2 * M2),
        "fc2_w": uniform(ks[6], (num_actions, FC1_OUT), FC1_OUT),
        "fc2_b": uniform(ks[7], (num_actions,), FC1_OUT),
    }


# ----------------------------------------------------------------------------
# Pure-JAX references (correctness checks only)
# ----------------------------------------------------------------------------
def qnetwork_forward_ref(params, obs, *, bf16=False):
    """bf16=True mirrors the kernel's precision policy (bf16 operands, f32 acc)."""
    if bf16:
        cast = lambda x: x.astype(jnp.bfloat16).astype(jnp.float32)
        prec = None
    else:
        cast = lambda x: x
        prec = jax.lax.Precision.HIGHEST
    dn = ("NCHW", "OIHW", "NCHW")
    x = jax.lax.conv_general_dilated(cast(obs), cast(params["conv1_w"]), (S1, S1),
                                     "VALID", dimension_numbers=dn, precision=prec)
    x = jax.nn.relu(x + params["conv1_b"][None, :, None, None])
    x = jax.lax.conv_general_dilated(cast(x), cast(params["conv2_w"]), (S2, S2),
                                     "VALID", dimension_numbers=dn, precision=prec)
    x = jax.nn.relu(x + params["conv2_b"][None, :, None, None])
    x = cast(x).reshape(x.shape[0], -1)
    x = jax.nn.relu(jnp.matmul(x, cast(params["fc1_w"]).T, precision=prec)
                    + params["fc1_b"])
    x = jnp.matmul(cast(x), cast(params["fc2_w"]).T, precision=prec) + params["fc2_b"]
    return x


if __name__ == "__main__":
    num_actions = 6
    batch = 2

    key = jax.random.PRNGKey(0)
    k_params, k_obs = jax.random.split(key)
    params = init_qnetwork_params(k_params, num_actions)
    packed = pack_params(params)

    # Spatial size must be 84x84: the module's .view(-1, 9*9*32) hard-codes it.
    obs = jax.random.uniform(k_obs, (batch, C_IN, H_IN, W_IN), jnp.float32)

    fwd = jax.jit(functools.partial(qnetwork_forward, num_actions=num_actions))
    out = jax.block_until_ready(fwd(packed, obs))
    assert out.shape == (batch, num_actions), out.shape

    ref_bf16 = jax.block_until_ready(qnetwork_forward_ref(params, obs, bf16=True))
    ref_f32 = jax.block_until_ready(qnetwork_forward_ref(params, obs, bf16=False))

    # Tight check against a reference mirroring the kernel's bf16/f32 policy.
    assert jnp.allclose(out, ref_bf16, atol=2e-3, rtol=1e-2), (
        "kernel vs bf16-mirrored ref", float(jnp.max(jnp.abs(out - ref_bf16))))
    # Loose check against the full-f32 reference (bf16 operand rounding only).
    assert jnp.allclose(out, ref_f32, atol=3e-2, rtol=3e-2), (
        "kernel vs f32 ref", float(jnp.max(jnp.abs(out - ref_f32))))

    print("KERNEL_OK")
</pallas_src>

<mosaic_0001>
module attributes {stable_mosaic.version = 11 : i64} {
  func.func @_qnet_kernel(%arg0: i32, %arg1: memref<1x16x256x81xbf16, #tpu.memory_space<vmem>>, %arg2: memref<16x256xbf16, #tpu.memory_space<vmem>>, %arg3: memref<16x1xf32, #tpu.memory_space<vmem>>, %arg4: memref<16x32x16xbf16, #tpu.memory_space<vmem>>, %arg5: memref<32x1xf32, #tpu.memory_space<vmem>>, %arg6: memref<4096x256xbf16, #tpu.memory_space<vmem>>, %arg7: memref<1x256xf32, #tpu.memory_space<vmem>>, %arg8: memref<256x128xbf16, #tpu.memory_space<vmem>>, %arg9: memref<1x128xf32, #tpu.memory_space<vmem>>, %arg10: memref<1x1x128xf32, #tpu.memory_space<vmem>>, %arg11: memref<1x4096xbf16, #tpu.memory_space<vmem>>) attributes {dimension_semantics = [#tpu.dimension_semantics<parallel>], iteration_bounds = array<i64: 2>, scalar_prefetch = 0 : i64, scratch_operands = 1 : i64, tpu.core_type = #tpu.core_type<tc>, window_params = [{transform_indices = @transform_0, window_bounds = array<i64: 1, 16, 256, 81>}, {pipeline_mode = #tpu.pipeline_mode<synchronous>, transform_indices = @transform_1, window_bounds = array<i64: 16, 256>}, {pipeline_mode = #tpu.pipeline_mode<synchronous>, transform_indices = @transform_2, window_bounds = array<i64: 16, 1>}, {pipeline_mode = #tpu.pipeline_mode<synchronous>, transform_indices = @transform_3, window_bounds = array<i64: 16, 32, 16>}, {pipeline_mode = #tpu.pipeline_mode<synchronous>, transform_indices = @transform_4, window_bounds = array<i64: 32, 1>}, {pipeline_mode = #tpu.pipeline_mode<synchronous>, transform_indices = @transform_5, window_bounds = array<i64: 4096, 256>}, {pipeline_mode = #tpu.pipeline_mode<synchronous>, transform_indices = @transform_6, window_bounds = array<i64: 1, 256>}, {pipeline_mode = #tpu.pipeline_mode<synchronous>, transform_indices = @transform_7, window_bounds = array<i64: 256, 128>}, {pipeline_mode = #tpu.pipeline_mode<synchronous>, transform_indices = @transform_8, window_bounds = array<i64: 1, 128>}, {transform_indices = @transform_9, window_bounds = array<i64: 1, 1, 128>}]} {
    %cst = arith.constant 0.000000e+00 : bf16
    %0 = vector.broadcast %cst : bf16 to vector<1x4096xbf16>
    %c0 = arith.constant 0 : index
    %c0_0 = arith.constant 0 : index
    %1 = vector.load %arg11[%c0, %c0_0] : memref<1x4096xbf16, #tpu.memory_space<vmem>>, vector<1x4096xbf16>
    tpu.vector_store %arg11[%c0, %c0_0], %0 {strides = array<i32>} : memref<1x4096xbf16, #tpu.memory_space<vmem>>, vector<1x4096xbf16>,
    %c0_1 = arith.constant 0 : index
    %c0_2 = arith.constant 0 : index
    %2 = vector.load %arg2[%c0_1, %c0_2] : memref<16x256xbf16, #tpu.memory_space<vmem>>, vector<16x256xbf16>
    %c0_3 = arith.constant 0 : index
    %c0_4 = arith.constant 0 : index
    %3 = vector.load %arg3[%c0_3, %c0_4] : memref<16x1xf32, #tpu.memory_space<vmem>>, vector<16x1xf32>
    %c0_5 = arith.constant 0 : index
    %c0_6 = arith.constant 0 : index
    %4 = vector.load %arg5[%c0_5, %c0_6] : memref<32x1xf32, #tpu.memory_space<vmem>>, vector<32x1xf32>
    %cst_7 = arith.constant 0.000000e+00 : f32
    %5 = vector.broadcast %cst_7 : f32 to vector<32x81xf32>
    %c0_8 = arith.constant 0 : index
    %c0_9 = arith.constant 0 : index
    %c0_10 = arith.constant 0 : index
    %c0_11 = arith.constant 0 : index
    %6 = vector.load %arg1[%c0_8, %c0_9, %c0_10, %c0_11] : memref<1x16x256x81xbf16, #tpu.memory_space<vmem>>, vector<1x1x256x81xbf16>
    %7 = vector.shape_cast %6 : vector<1x1x256x81xbf16> to vector<256x81xbf16>
    %cst_12 = arith.constant dense<0.000000e+00> : vector<16x81xf32>
    %8 = tpu.matmul %2, %7, %cst_12 {dimension_numbers = #tpu.dot_dimension_numbers<[1], [0], [0], [1], [0, 0, 1, 1], [], []>} : vector<16x256xbf16>, vector<256x81xbf16>, vector<16x81xf32> -> vector<16x81xf32>
    %9 = vector.broadcast %3 : vector<16x1xf32> to vector<16x81xf32>
    %10 = arith.addf %8, %9 : vector<16x81xf32>
    %cst_13 = arith.constant 0.000000e+00 : f32
    %11 = vector.broadcast %cst_13 : f32 to vector<16x81xf32>
    %12 = arith.maximumf %10, %11 : vector<16x81xf32>
    %13 = arith.truncf %12 : vector<16x81xf32> to vector<16x81xbf16>
    %c0_14 = arith.constant 0 : index
    %c0_15 = arith.constant 0 : index
    %c0_16 = arith.constant 0 : index
    %14 = vector.load %arg4[%c0_14, %c0_15, %c0_16] : memref<16x32x16xbf16, #tpu.memory_space<vmem>>, vector<1x32x16xbf16>
    %15 = vector.shape_cast %14 : vector<1x32x16xbf16> to vector<32x16xbf16>
    %cst_17 = arith.constant dense<0.000000e+00> : vector<32x81xf32>
    %16 = tpu.matmul %15, %13, %cst_17 {dimension_numbers = #tpu.dot_dimension_numbers<[1], [0], [0], [1], [0, 0, 1, 1], [], []>} : vector<32x16xbf16>, vector<16x81xbf16>, vector<32x81xf32> -> vector<32x81xf32>
    %17 = arith.addf %5, %16 : vector<32x81xf32>
    %c0_18 = arith.constant 0 : index
    %c1 = arith.constant 1 : index
    %c0_19 = arith.constant 0 : index
    %c0_20 = arith.constant 0 : index
    %18 = vector.load %arg1[%c0_18, %c1, %c0_19, %c0_20] : memref<1x16x256x81xbf16, #tpu.memory_space<vmem>>, vector<1x1x256x81xbf16>
    %19 = vector.shape_cast %18 : vector<1x1x256x81xbf16> to vector<256x81xbf16>
    %cst_21 = arith.constant dense<0.000000e+00> : vector<16x81xf32>
    %20 = tpu.matmul %2, %19, %cst_21 {dimension_numbers = #tpu.dot_dimension_numbers<[1], [0], [0], [1], [0, 0, 1, 1], [], []>} : vector<16x256xbf16>, vector<256x81xbf16>, vector<16x81xf32> -> vector<16x81xf32>
    %21 = vector.broadcast %3 : vector<16x1xf32> to vector<16x81xf32>
    %22 = arith.addf %20, %21 : vector<16x81xf32>
    %cst_22 = arith.constant 0.000000e+00 : f32
    %23 = vector.broadcast %cst_22 : f32 to vector<16x81xf32>
    %24 = arith.maximumf %22, %23 : vector<16x81xf32>
    %25 = arith.truncf %24 : vector<16x81xf32> to vector<16x81xbf16>
    %c1_23 = arith.constant 1 : index
    %c0_24 = arith.constant 0 : index
    %c0_25 = arith.constant 0 : index
    %26 = vector.load %arg4[%c1_23, %c0_24, %c0_25] : memref<16x32x16xbf16, #tpu.memory_space<vmem>>, vector<1x32x16xbf16>
    %27 = vector.shape_cast %26 : vector<1x32x16xbf16> to vector<32x16xbf16>
    %cst_26 = arith.constant dense<0.000000e+00> : vector<32x81xf32>
    %28 = tpu.matmul %27, %25, %cst_26 {dimension_numbers = #tpu.dot_dimension_numbers<[1], [0], [0], [1], [0, 0, 1, 1], [], []>} : vector<32x16xbf16>, vector<16x81xbf16>, vector<32x81xf32> -> vector<32x81xf32>
    %29 = arith.addf %17, %28 : vector<32x81xf32>
    %c0_27 = arith.constant 0 : index
    %c2 = arith.constant 2 : index
    %c0_28 = arith.constant 0 : index
    %c0_29 = arith.constant 0 : index
    %30 = vector.load %arg1[%c0_27, %c2, %c0_28, %c0_29] : memref<1x16x256x81xbf16, #tpu.memory_space<vmem>>, vector<1x1x256x81xbf16>
    %31 = vector.shape_cast %30 : vector<1x1x256x81xbf16> to vector<256x81xbf16>
    %cst_30 = arith.constant dense<0.000000e+00> : vector<16x81xf32>
    %32 = tpu.matmul %2, %31, %cst_30 {dimension_numbers = #tpu.dot_dimension_numbers<[1], [0], [0], [1], [0, 0, 1, 1], [], []>} : vector<16x256xbf16>, vector<256x81xbf16>, vector<16x81xf32> -> vector<16x81xf32>
    %33 = vector.broadcast %3 : vector<16x1xf32> to vector<16x81xf32>
    %34 = arith.addf %32, %33 : vector<16x81xf32>
    %cst_31 = arith.constant 0.000000e+00 : f32
    %35 = vector.broadcast %cst_31 : f32 to vector<16x81xf32>
    %36 = arith.maximumf %34, %35 : vector<16x81xf32>
    %37 = arith.truncf %36 : vector<16x81xf32> to vector<16x81xbf16>
    %c2_32 = arith.constant 2 : index
    %c0_33 = arith.constant 0 : index
    %c0_34 = arith.constant 0 : index
    %38 = vector.load %arg4[%c2_32, %c0_33, %c0_34] : memref<16x32x16xbf16, #tpu.memory_space<vmem>>, vector<1x32x16xbf16>
    %39 = vector.shape_cast %38 : vector<1x32x16xbf16> to vector<32x16xbf16>
    %cst_35 = arith.constant dense<0.000000e+00> : vector<32x81xf32>
    %40 = tpu.matmul %39, %37, %cst_35 {dimension_numbers = #tpu.dot_dimension_numbers<[1], [0], [0], [1], [0, 0, 1, 1], [], []>} : vector<32x16xbf16>, vector<16x81xbf16>, vector<32x81xf32> -> vector<32x81xf32>
    %41 = arith.addf %29, %40 : vector<32x81xf32>
    %c0_36 = arith.constant 0 : index
    %c3 = arith.constant 3 : index
    %c0_37 = arith.constant 0 : index
    %c0_38 = arith.constant 0 : index
    %42 = vector.load %arg1[%c0_36, %c3, %c0_37, %c0_38] : memref<1x16x256x81xbf16, #tpu.memory_space<vmem>>, vector<1x1x256x81xbf16>
    %43 = vector.shape_cast %42 : vector<1x1x256x81xbf16> to vector<256x81xbf16>
    %cst_39 = arith.constant dense<0.000000e+00> : vector<16x81xf32>
    %44 = tpu.matmul %2, %43, %cst_39 {dimension_numbers = #tpu.dot_dimension_numbers<[1], [0], [0], [1], [0, 0, 1, 1], [], []>} : vector<16x256xbf16>, vector<256x81xbf16>, vector<16x81xf32> -> vector<16x81xf32>
    %45 = vector.broadcast %3 : vector<16x1xf32> to vector<16x81xf32>
    %46 = arith.addf %44, %45 : vector<16x81xf32>
    %cst_40 = arith.constant 0.000000e+00 : f32
    %47 = vector.broadcast %cst_40 : f32 to vector<16x81xf32>
    %48 = arith.maximumf %46, %47 : vector<16x81xf32>
    %49 = arith.truncf %48 : vector<16x81xf32> to vector<16x81xbf16>
    %c3_41 = arith.constant 3 : index
    %c0_42 = arith.constant 0 : index
    %c0_43 = arith.constant 0 : index
    %50 = vector.load %arg4[%c3_41, %c0_42, %c0_43] : memref<16x32x16xbf16, #tpu.memory_space<vmem>>, vector<1x32x16xbf16>
    %51 = vector.shape_cast %50 : vector<1x32x16xbf16> to vector<32x16xbf16>
    %cst_44 = arith.constant dense<0.000000e+00> : vector<32x81xf32>
    %52 = tpu.matmul %51, %49, %cst_44 {dimension_numbers = #tpu.dot_dimension_numbers<[1], [0], [0], [1], [0, 0, 1, 1], [], []>} : vector<32x16xbf16>, vector<16x81xbf16>, vector<32x81xf32> -> vector<32x81xf32>
    %53 = arith.addf %41, %52 : vector<32x81xf32>
    %c0_45 = arith.constant 0 : index
    %c4 = arith.constant 4 : index
    %c0_46 = arith.constant 0 : index
    %c0_47 = arith.constant 0 : index
    %54 = vector.load %arg1[%c0_45, %c4, %c0_46, %c0_47] : memref<1x16x256x81xbf16, #tpu.memory_space<vmem>>, vector<1x1x256x81xbf16>
    %55 = vector.shape_cast %54 : vector<1x1x256x81xbf16> to vector<256x81xbf16>
    %cst_48 = arith.constant dense<0.000000e+00> : vector<16x81xf32>
    %56 = tpu.matmul %2, %55, %cst_48 {dimension_numbers = #tpu.dot_dimension_numbers<[1], [0], [0], [1], [0, 0, 1, 1], [], []>} : vector<16x256xbf16>, vector<256x81xbf16>, vector<16x81xf32> -> vector<16x81xf32>
    %57 = vector.broadcast %3 : vector<16x1xf32> to vector<16x81xf32>
    %58 = arith.addf %56, %57 : vector<16x81xf32>
    %cst_49 = arith.constant 0.000000e+00 : f32
    %59 = vector.broadcast %cst_49 : f32 to vector<16x81xf32>
    %60 = arith.maximumf %58, %59 : vector<16x81xf32>
    %61 = arith.truncf %60 : vector<16x81xf32> to vector<16x81xbf16>
    %c4_50 = arith.constant 4 : index
    %c0_51 = arith.constant 0 : index
    %c0_52 = arith.constant 0 : index
    %62 = vector.load %arg4[%c4_50, %c0_51, %c0_52] : memref<16x32x16xbf16, #tpu.memory_space<vmem>>, vector<1x32x16xbf16>
    %63 = vector.shape_cast %62 : vector<1x32x16xbf16> to vector<32x16xbf16>
    %cst_53 = arith.constant dense<0.000000e+00> : vector<32x81xf32>
    %64 = tpu.matmul %63, %61, %cst_53 {dimension_numbers = #tpu.dot_dimension_numbers<[1], [0], [0], [1], [0, 0, 1, 1], [], []>} : vector<32x16xbf16>, vector<16x81xbf16>, vector<32x81xf32> -> vector<32x81xf32>
    %65 = arith.addf %53, %64 : vector<32x81xf32>
    %c0_54 = arith.constant 0 : index
    %c5 = arith.constant 5 : index
    %c0_55 = arith.constant 0 : index
    %c0_56 = arith.constant 0 : index
    %66 = vector.load %arg1[%c0_54, %c5, %c0_55, %c0_56] : memref<1x16x256x81xbf16, #tpu.memory_space<vmem>>, vector<1x1x256x81xbf16>
    %67 = vector.shape_cast %66 : vector<1x1x256x81xbf16> to vector<256x81xbf16>
    %cst_57 = arith.constant dense<0.000000e+00> : vector<16x81xf32>
    %68 = tpu.matmul %2, %67, %cst_57 {dimension_numbers = #tpu.dot_dimension_numbers<[1], [0], [0], [1], [0, 0, 1, 1], [], []>} : vector<16x256xbf16>, vector<256x81xbf16>, vector<16x81xf32> -> vector<16x81xf32>
    %69 = vector.broadcast %3 : vector<16x1xf32> to vector<16x81xf32>
    %70 = arith.addf %68, %69 : vector<16x81xf32>
    %cst_58 = arith.constant 0.000000e+00 : f32
    %71 = vector.broadcast %cst_58 : f32 to vector<16x81xf32>
    %72 = arith.maximumf %70, %71 : vector<16x81xf32>
    %73 = arith.truncf %72 : vector<16x81xf32> to vector<16x81xbf16>
    %c5_59 = arith.constant 5 : index
    %c0_60 = arith.constant 0 : index
    %c0_61 = arith.constant 0 : index
    %74 = vector.load %arg4[%c5_59, %c0_60, %c0_61] : memref<16x32x16xbf16, #tpu.memory_space<vmem>>, vector<1x32x16xbf16>
    %75 = vector.shape_cast %74 : vector<1x32x16xbf16> to vector<32x16xbf16>
    %cst_62 = arith.constant dense<0.000000e+00> : vector<32x81xf32>
    %76 = tpu.matmul %75, %73, %cst_62 {dimension_numbers = #tpu.dot_dimension_numbers<[1], [0], [0], [1], [0, 0, 1, 1], [], []>} : vector<32x16xbf16>, vector<16x81xbf16>, vector<32x81xf32> -> vector<32x81xf32>
    %77 = arith.addf %65, %76 : vector<32x81xf32>
    %c0_63 = arith.constant 0 : index
    %c6 = arith.constant 6 : index
    %c0_64 = arith.constant 0 : index
    %c0_65 = arith.constant 0 : index
    %78 = vector.load %arg1[%c0_63, %c6, %c0_64, %c0_65] : memref<1x16x256x81xbf16, #tpu.memory_space<vmem>>, vector<1x1x256x81xbf16>
    %79 = vector.shape_cast %78 : vector<1x1x256x81xbf16> to vector<256x81xbf16>
    %cst_66 = arith.constant dense<0.000000e+00> : vector<16x81xf32>
    %80 = tpu.matmul %2, %79, %cst_66 {dimension_numbers = #tpu.dot_dimension_numbers<[1], [0], [0], [1], [0, 0, 1, 1], [], []>} : vector<16x256xbf16>, vector<256x81xbf16>, vector<16x81xf32> -> vector<16x81xf32>
    %81 = vector.broadcast %3 : vector<16x1xf32> to vector<16x81xf32>
    %82 = arith.addf %80, %81 : vector<16x81xf32>
    %cst_67 = arith.constant 0.000000e+00 : f32
    %83 = vector.broadcast %cst_67 : f32 to vector<16x81xf32>
    %84 = arith.maximumf %82, %83 : vector<16x81xf32>
    %85 = arith.truncf %84 : vector<16x81xf32> to vector<16x81xbf16>
    %c6_68 = arith.constant 6 : index
    %c0_69 = arith.constant 0 : index
    %c0_70 = arith.constant 0 : index
    %86 = vector.load %arg4[%c6_68, %c0_69, %c0_70] : memref<16x32x16xbf16, #tpu.memory_space<vmem>>, vector<1x32x16xbf16>
    %87 = vector.shape_cast %86 : vector<1x32x16xbf16> to vector<32x16xbf16>
    %cst_71 = arith.constant dense<0.000000e+00> : vector<32x81xf32>
    %88 = tpu.matmul %87, %85, %cst_71 {dimension_numbers = #tpu.dot_dimension_numbers<[1], [0], [0], [1], [0, 0, 1, 1], [], []>} : vector<32x16xbf16>, vector<16x81xbf16>, vector<32x81xf32> -> vector<32x81xf32>
    %89 = arith.addf %77, %88 : vector<32x81xf32>
    %c0_72 = arith.constant 0 : index
    %c7 = arith.constant 7 : index
    %c0_73 = arith.constant 0 : index
    %c0_74 = arith.constant 0 : index
    %90 = vector.load %arg1[%c0_72, %c7, %c0_73, %c0_74] : memref<1x16x256x81xbf16, #tpu.memory_space<vmem>>, vector<1x1x256x81xbf16>
    %91 = vector.shape_cast %90 : vector<1x1x256x81xbf16> to vector<256x81xbf16>
    %cst_75 = arith.constant dense<0.000000e+00> : vector<16x81xf32>
    %92 = tpu.matmul %2, %91, %cst_75 {dimension_numbers = #tpu.dot_dimension_numbers<[1], [0], [0], [1], [0, 0, 1, 1], [], []>} : vector<16x256xbf16>, vector<256x81xbf16>, vector<16x81xf32> -> vector<16x81xf32>
    %93 = vector.broadcast %3 : vector<16x1xf32> to vector<16x81xf32>
    %94 = arith.addf %92, %93 : vector<16x81xf32>
    %cst_76 = arith.constant 0.000000e+00 : f32
    %95 = vector.broadcast %cst_76 : f32 to vector<16x81xf32>
    %96 = arith.maximumf %94, %95 : vector<16x81xf32>
    %97 = arith.truncf %96 : vector<16x81xf32> to vector<16x81xbf16>
    %c7_77 = arith.constant 7 : index
    %c0_78 = arith.constant 0 : index
    %c0_79 = arith.constant 0 : index
    %98 = vector.load %arg4[%c7_77, %c0_78, %c0_79] : memref<16x32x16xbf16, #tpu.memory_space<vmem>>, vector<1x32x16xbf16>
    %99 = vector.shape_cast %98 : vector<1x32x16xbf16> to vector<32x16xbf16>
    %cst_80 = arith.constant dense<0.000000e+00> : vector<32x81xf32>
    %100 = tpu.matmul %99, %97, %cst_80 {dimension_numbers = #tpu.dot_dimension_numbers<[1], [0], [0], [1], [0, 0, 1, 1], [], []>} : vector<32x16xbf16>, vector<16x81xbf16>, vector<32x81xf32> -> vector<32x81xf32>
    %101 = arith.addf %89, %100 : vector<32x81xf32>
    %c0_81 = arith.constant 0 : index
    %c8 = arith.constant 8 : index
    %c0_82 = arith.constant 0 : index
    %c0_83 = arith.constant 0 : index
    %102 = vector.load %arg1[%c0_81, %c8, %c0_82, %c0_83] : memref<1x16x256x81xbf16, #tpu.memory_space<vmem>>, vector<1x1x256x81xbf16>
    %103 = vector.shape_cast %102 : vector<1x1x256x81xbf16> to vector<256x81xbf16>
    %cst_84 = arith.constant dense<0.000000e+00> : vector<16x81xf32>
    %104 = tpu.matmul %2, %103, %cst_84 {dimension_numbers = #tpu.dot_dimension_numbers<[1], [0], [0], [1], [0, 0, 1, 1], [], []>} : vector<16x256xbf16>, vector<256x81xbf16>, vector<16x81xf32> -> vector<16x81xf32>
    %105 = vector.broadcast %3 : vector<16x1xf32> to vector<16x81xf32>
    %106 = arith.addf %104, %105 : vector<16x81xf32>
    %cst_85 = arith.constant 0.000000e+00 : f32
    %107 = vector.broadcast %cst_85 : f32 to vector<16x81xf32>
    %108 = arith.maximumf %106, %107 : vector<16x81xf32>
    %109 = arith.truncf %108 : vector<16x81xf32> to vector<16x81xbf16>
    %c8_86 = arith.constant 8 : index
    %c0_87 = arith.constant 0 : index
    %c0_88 = arith.constant 0 : index
    %110 = vector.load %arg4[%c8_86, %c0_87, %c0_88] : memref<16x32x16xbf16, #tpu.memory_space<vmem>>, vector<1x32x16xbf16>
    %111 = vector.shape_cast %110 : vector<1x32x16xbf16> to vector<32x16xbf16>
    %cst_89 = arith.constant dense<0.000000e+00> : vector<32x81xf32>
    %112 = tpu.matmul %111, %109, %cst_89 {dimension_numbers = #tpu.dot_dimension_numbers<[1], [0], [0], [1], [0, 0, 1, 1], [], []>} : vector<32x16xbf16>, vector<16x81xbf16>, vector<32x81xf32> -> vector<32x81xf32>
    %113 = arith.addf %101, %112 : vector<32x81xf32>
    %c0_90 = arith.constant 0 : index
    %c9 = arith.constant 9 : index
    %c0_91 = arith.constant 0 : index
    %c0_92 = arith.constant 0 : index
    %114 = vector.load %arg1[%c0_90, %c9, %c0_91, %c0_92] : memref<1x16x256x81xbf16, #tpu.memory_space<vmem>>, vector<1x1x256x81xbf16>
    %115 = vector.shape_cast %114 : vector<1x1x256x81xbf16> to vector<256x81xbf16>
    %cst_93 = arith.constant dense<0.000000e+00> : vector<16x81xf32>
    %116 = tpu.matmul %2, %115, %cst_93 {dimension_numbers = #tpu.dot_dimension_numbers<[1], [0], [0], [1], [0, 0, 1, 1], [], []>} : vector<16x256xbf16>, vector<256x81xbf16>, vector<16x81xf32> -> vector<16x81xf32>
    %117 = vector.broadcast %3 : vector<16x1xf32> to vector<16x81xf32>
    %118 = arith.addf %116, %117 : vector<16x81xf32>
    %cst_94 = arith.constant 0.000000e+00 : f32
    %119 = vector.broadcast %cst_94 : f32 to vector<16x81xf32>
    %120 = arith.maximumf %118, %119 : vector<16x81xf32>
    %121 = arith.truncf %120 : vector<16x81xf32> to vector<16x81xbf16>
    %c9_95 = arith.constant 9 : index
    %c0_96 = arith.constant 0 : index
    %c0_97 = arith.constant 0 : index
    %122 = vector.load %arg4[%c9_95, %c0_96, %c0_97] : memref<16x32x16xbf16, #tpu.memory_space<vmem>>, vector<1x32x16xbf16>
    %123 = vector.shape_cast %122 : vector<1x32x16xbf16> to vector<32x16xbf16>
    %cst_98 = arith.constant dense<0.000000e+00> : vector<32x81xf32>
    %124 = tpu.matmul %123, %121, %cst_98 {dimension_numbers = #tpu.dot_dimension_numbers<[1], [0], [0], [1], [0, 0, 1, 1], [], []>} : vector<32x16xbf16>, vector<16x81xbf16>, vector<32x81xf32> -> vector<32x81xf32>
    %125 = arith.addf %113, %124 : vector<32x81xf32>
    %c0_99 = arith.constant 0 : index
    %c10 = arith.constant 10 : index
    %c0_100 = arith.constant 0 : index
    %c0_101 = arith.constant 0 : index
    %126 = vector.load %arg1[%c0_99, %c10, %c0_100, %c0_101] : memref<1x16x256x81xbf16, #tpu.memory_space<vmem>>, vector<1x1x256x81xbf16>
    %127 = vector.shape_cast %126 : vector<1x1x256x81xbf16> to vector<256x81xbf16>
    %cst_102 = arith.constant dense<0.000000e+00> : vector<16x81xf32>
    %128 = tpu.matmul %2, %127, %cst_102 {dimension_numbers = #tpu.dot_dimension_numbers<[1], [0], [0], [1], [0, 0, 1, 1], [], []>} : vector<16x256xbf16>, vector<256x81xbf16>, vector<16x81xf32> -> vector<16x81xf32>
    %129 = vector.broadcast %3 : vector<16x1xf32> to vector<16x81xf32>
    %130 = arith.addf %128, %129 : vector<16x81xf32>
    %cst_103 = arith.constant 0.000000e+00 : f32
    %131 = vector.broadcast %cst_103 : f32 to vector<16x81xf32>
    %132 = arith.maximumf %130, %131 : vector<16x81xf32>
    %133 = arith.truncf %132 : vector<16x81xf32> to vector<16x81xbf16>
    %c10_104 = arith.constant 10 : index
    %c0_105 = arith.constant 0 : index
    %c0_106 = arith.constant 0 : index
    %134 = vector.load %arg4[%c10_104, %c0_105, %c0_106] : memref<16x32x16xbf16, #tpu.memory_space<vmem>>, vector<1x32x16xbf16>
    %135 = vector.shape_cast %134 : vector<1x32x16xbf16> to vector<32x16xbf16>
    %cst_107 = arith.constant dense<0.000000e+00> : vector<32x81xf32>
    %136 = tpu.matmul %135, %133, %cst_107 {dimension_numbers = #tpu.dot_dimension_numbers<[1], [0], [0], [1], [0, 0, 1, 1], [], []>} : vector<32x16xbf16>, vector<16x81xbf16>, vector<32x81xf32> -> vector<32x81xf32>
    %137 = arith.addf %125, %136 : vector<32x81xf32>
    %c0_108 = arith.constant 0 : index
    %c11 = arith.constant 11 : index
    %c0_109 = arith.constant 0 : index
    %c0_110 = arith.constant 0 : index
    %138 = vector.load %arg1[%c0_108, %c11, %c0_109, %c0_110] : memref<1x16x256x81xbf16, #tpu.memory_space<vmem>>, vector<1x1x256x81xbf16>
    %139 = vector.shape_cast %138 : vector<1x1x256x81xbf16> to vector<256x81xbf16>
    %cst_111 = arith.constant dense<0.000000e+00> : vector<16x81xf32>
    %140 = tpu.matmul %2, %139, %cst_111 {dimension_numbers = #tpu.dot_dimension_numbers<[1], [0], [0], [1], [0, 0, 1, 1], [], []>} : vector<16x256xbf16>, vector<256x81xbf16>, vector<16x81xf32> -> vector<16x81xf32>
    %141 = vector.broadcast %3 : vector<16x1xf32> to vector<16x81xf32>
    %142 = arith.addf %140, %141 : vector<16x81xf32>
    %cst_112 = arith.constant 0.000000e+00 : f32
    %143 = vector.broadcast %cst_112 : f32 to vector<16x81xf32>
    %144 = arith.maximumf %142, %143 : vector<16x81xf32>
    %145 = arith.truncf %144 : vector<16x81xf32> to vector<16x81xbf16>
    %c11_113 = arith.constant 11 : index
    %c0_114 = arith.constant 0 : index
    %c0_115 = arith.constant 0 : index
    %146 = vector.load %arg4[%c11_113, %c0_114, %c0_115] : memref<16x32x16xbf16, #tpu.memory_space<vmem>>, vector<1x32x16xbf16>
    %147 = vector.shape_cast %146 : vector<1x32x16xbf16> to vector<32x16xbf16>
    %cst_116 = arith.constant dense<0.000000e+00> : vector<32x81xf32>
    %148 = tpu.matmul %147, %145, %cst_116 {dimension_numbers = #tpu.dot_dimension_numbers<[1], [0], [0], [1], [0, 0, 1, 1], [], []>} : vector<32x16xbf16>, vector<16x81xbf16>, vector<32x81xf32> -> vector<32x81xf32>
    %149 = arith.addf %137, %148 : vector<32x81xf32>
    %c0_117 = arith.constant 0 : index
    %c12 = arith.constant 12 : index
    %c0_118 = arith.constant 0 : index
    %c0_119 = arith.constant 0 : index
    %150 = vector.load %arg1[%c0_117, %c12, %c0_118, %c0_119] : memref<1x16x256x81xbf16, #tpu.memory_space<vmem>>, vector<1x1x256x81xbf16>
    %151 = vector.shape_cast %150 : vector<1x1x256x81xbf16> to vector<256x81xbf16>
    %cst_120 = arith.constant dense<0.000000e+00> : vector<16x81xf32>
    %152 = tpu.matmul %2, %151, %cst_120 {dimension_numbers = #tpu.dot_dimension_numbers<[1], [0], [0], [1], [0, 0, 1, 1], [], []>} : vector<16x256xbf16>, vector<256x81xbf16>, vector<16x81xf32> -> vector<16x81xf32>
    %153 = vector.broadcast %3 : vector<16x1xf32> to vector<16x81xf32>
    %154 = arith.addf %152, %153 : vector<16x81xf32>
    %cst_121 = arith.constant 0.000000e+00 : f32
    %155 = vector.broadcast %cst_121 : f32 to vector<16x81xf32>
    %156 = arith.maximumf %154, %155 : vector<16x81xf32>
    %157 = arith.truncf %156 : vector<16x81xf32> to vector<16x81xbf16>
    %c12_122 = arith.constant 12 : index
    %c0_123 = arith.constant 0 : index
    %c0_124 = arith.constant 0 : index
    %158 = vector.load %arg4[%c12_122, %c0_123, %c0_124] : memref<16x32x16xbf16, #tpu.memory_space<vmem>>, vector<1x32x16xbf16>
    %159 = vector.shape_cast %158 : vector<1x32x16xbf16> to vector<32x16xbf16>
    %cst_125 = arith.constant dense<0.000000e+00> : vector<32x81xf32>
    %160 = tpu.matmul %159, %157, %cst_125 {dimension_numbers = #tpu.dot_dimension_numbers<[1], [0], [0], [1], [0, 0, 1, 1], [], []>} : vector<32x16xbf16>, vector<16x81xbf16>, vector<32x81xf32> -> vector<32x81xf32>
    %161 = arith.addf %149, %160 : vector<32x81xf32>
    %c0_126 = arith.constant 0 : index
    %c13 = arith.constant 13 : index
    %c0_127 = arith.constant 0 : index
    %c0_128 = arith.constant 0 : index
    %162 = vector.load %arg1[%c0_126, %c13, %c0_127, %c0_128] : memref<1x16x256x81xbf16, #tpu.memory_space<vmem>>, vector<1x1x256x81xbf16>
    %163 = vector.shape_cast %162 : vector<1x1x256x81xbf16> to vector<256x81xbf16>
    %cst_129 = arith.constant dense<0.000000e+00> : vector<16x81xf32>
    %164 = tpu.matmul %2, %163, %cst_129 {dimension_numbers = #tpu.dot_dimension_numbers<[1], [0], [0], [1], [0, 0, 1, 1], [], []>} : vector<16x256xbf16>, vector<256x81xbf16>, vector<16x81xf32> -> vector<16x81xf32>
    %165 = vector.broadcast %3 : vector<16x1xf32> to vector<16x81xf32>
    %166 = arith.addf %164, %165 : vector<16x81xf32>
    %cst_130 = arith.constant 0.000000e+00 : f32
    %167 = vector.broadcast %cst_130 : f32 to vector<16x81xf32>
    %168 = arith.maximumf %166, %167 : vector<16x81xf32>
    %169 = arith.truncf %168 : vector<16x81xf32> to vector<16x81xbf16>
    %c13_131 = arith.constant 13 : index
    %c0_132 = arith.constant 0 : index
    %c0_133 = arith.constant 0 : index
    %170 = vector.load %arg4[%c13_131, %c0_132, %c0_133] : memref<16x32x16xbf16, #tpu.memory_space<vmem>>, vector<1x32x16xbf16>
    %171 = vector.shape_cast %170 : vector<1x32x16xbf16> to vector<32x16xbf16>
    %cst_134 = arith.constant dense<0.000000e+00> : vector<32x81xf32>
    %172 = tpu.matmul %171, %169, %cst_134 {dimension_numbers = #tpu.dot_dimension_numbers<[1], [0], [0], [1], [0, 0, 1, 1], [], []>} : vector<32x16xbf16>, vector<16x81xbf16>, vector<32x81xf32> -> vector<32x81xf32>
    %173 = arith.addf %161, %172 : vector<32x81xf32>
    %c0_135 = arith.constant 0 : index
    %c14 = arith.constant 14 : index
    %c0_136 = arith.constant 0 : index
    %c0_137 = arith.constant 0 : index
    %174 = vector.load %arg1[%c0_135, %c14, %c0_136, %c0_137] : memref<1x16x256x81xbf16, #tpu.memory_space<vmem>>, vector<1x1x256x81xbf16>
    %175 = vector.shape_cast %174 : vector<1x1x256x81xbf16> to vector<256x81xbf16>
    %cst_138 = arith.constant dense<0.000000e+00> : vector<16x81xf32>
    %176 = tpu.matmul %2, %175, %cst_138 {dimension_numbers = #tpu.dot_dimension_numbers<[1], [0], [0], [1], [0, 0, 1, 1], [], []>} : vector<16x256xbf16>, vector<256x81xbf16>, vector<16x81xf32> -> vector<16x81xf32>
    %177 = vector.broadcast %3 : vector<16x1xf32> to vector<16x81xf32>
    %178 = arith.addf %176, %177 : vector<16x81xf32>
    %cst_139 = arith.constant 0.000000e+00 : f32
    %179 = vector.broadcast %cst_139 : f32 to vector<16x81xf32>
    %180 = arith.maximumf %178, %179 : vector<16x81xf32>
    %181 = arith.truncf %180 : vector<16x81xf32> to vector<16x81xbf16>
    %c14_140 = arith.constant 14 : index
    %c0_141 = arith.constant 0 : index
    %c0_142 = arith.constant 0 : index
    %182 = vector.load %arg4[%c14_140, %c0_141, %c0_142] : memref<16x32x16xbf16, #tpu.memory_space<vmem>>, vector<1x32x16xbf16>
    %183 = vector.shape_cast %182 : vector<1x32x16xbf16> to vector<32x16xbf16>
    %cst_143 = arith.constant dense<0.000000e+00> : vector<32x81xf32>
    %184 = tpu.matmul %183, %181, %cst_143 {dimension_numbers = #tpu.dot_dimension_numbers<[1], [0], [0], [1], [0, 0, 1, 1], [], []>} : vector<32x16xbf16>, vector<16x81xbf16>, vector<32x81xf32> -> vector<32x81xf32>
    %185 = arith.addf %173, %184 : vector<32x81xf32>
    %c0_144 = arith.constant 0 : index
    %c15 = arith.constant 15 : index
    %c0_145 = arith.constant 0 : index
    %c0_146 = arith.constant 0 : index
    %186 = vector.load %arg1[%c0_144, %c15, %c0_145, %c0_146] : memref<1x16x256x81xbf16, #tpu.memory_space<vmem>>, vector<1x1x256x81xbf16>
    %187 = vector.shape_cast %186 : vector<1x1x256x81xbf16> to vector<256x81xbf16>
    %cst_147 = arith.constant dense<0.000000e+00> : vector<16x81xf32>
    %188 = tpu.matmul %2, %187, %cst_147 {dimension_numbers = #tpu.dot_dimension_numbers<[1], [0], [0], [1], [0, 0, 1, 1], [], []>} : vector<16x256xbf16>, vector<256x81xbf16>, vector<16x81xf32> -> vector<16x81xf32>
    %189 = vector.broadcast %3 : vector<16x1xf32> to vector<16x81xf32>
    %190 = arith.addf %188, %189 : vector<16x81xf32>
    %cst_148 = arith.constant 0.000000e+00 : f32
    %191 = vector.broadcast %cst_148 : f32 to vector<16x81xf32>
    %192 = arith.maximumf %190, %191 : vector<16x81xf32>
    %193 = arith.truncf %192 : vector<16x81xf32> to vector<16x81xbf16>
    %c15_149 = arith.constant 15 : index
    %c0_150 = arith.constant 0 : index
    %c0_151 = arith.constant 0 : index
    %194 = vector.load %arg4[%c15_149, %c0_150, %c0_151] : memref<16x32x16xbf16, #tpu.memory_space<vmem>>, vector<1x32x16xbf16>
    %195 = vector.shape_cast %194 : vector<1x32x16xbf16> to vector<32x16xbf16>
    %cst_152 = arith.constant dense<0.000000e+00> : vector<32x81xf32>
    %196 = tpu.matmul %195, %193, %cst_152 {dimension_numbers = #tpu.dot_dimension_numbers<[1], [0], [0], [1], [0, 0, 1, 1], [], []>} : vector<32x16xbf16>, vector<16x81xbf16>, vector<32x81xf32> -> vector<32x81xf32>
    %197 = arith.addf %185, %196 : vector<32x81xf32>
    %198 = vector.broadcast %4 : vector<32x1xf32> to vector<32x81xf32>
    %199 = arith.addf %197, %198 : vector<32x81xf32>
    %cst_153 = arith.constant 0.000000e+00 : f32
    %200 = vector.broadcast %cst_153 : f32 to vector<32x81xf32>
    %201 = arith.maximumf %199, %200 : vector<32x81xf32>
    %202 = arith.truncf %201 : vector<32x81xf32> to vector<32x81xbf16>
    %203 = vector.extract_strided_slice %202 {offsets = [0, 0], sizes = [1, 81], strides = [1, 1]} : vector<32x81xbf16> to vector<1x81xbf16>
    %c0_154 = arith.constant 0 : index
    %c0_155 = arith.constant 0 : index
    %204 = vector.load %arg11[%c0_154, %c0_155] : memref<1x4096xbf16, #tpu.memory_space<vmem>>, vector<1x81xbf16>
    tpu.vector_store %arg11[%c0_154, %c0_155], %203 {strides = array<i32>} : memref<1x4096xbf16, #tpu.memory_space<vmem>>, vector<1x81xbf16>,
    %205 = vector.extract_strided_slice %202 {offsets = [1, 0], sizes = [1, 81], strides = [1, 1]} : vector<32x81xbf16> to vector<1x81xbf16>
    %c0_156 = arith.constant 0 : index
    %c128 = arith.constant 128 : index
    %206 = vector.load %arg11[%c0_156, %c128] : memref<1x4096xbf16, #tpu.memory_space<vmem>>, vector<1x81xbf16>
    tpu.vector_store %arg11[%c0_156, %c128], %205 {strides = array<i32>} : memref<1x4096xbf16, #tpu.memory_space<vmem>>, vector<1x81xbf16>,
    %207 = vector.extract_strided_slice %202 {offsets = [2, 0], sizes = [1, 81], strides = [1, 1]} : vector<32x81xbf16> to vector<1x81xbf16>
    %c0_157 = arith.constant 0 : index
    %c256 = arith.constant 256 : index
    %208 = vector.load %arg11[%c0_157, %c256] : memref<1x4096xbf16, #tpu.memory_space<vmem>>, vector<1x81xbf16>
    tpu.vector_store %arg11[%c0_157, %c256], %207 {strides = array<i32>} : memref<1x4096xbf16, #tpu.memory_space<vmem>>, vector<1x81xbf16>,
    %209 = vector.extract_strided_slice %202 {offsets = [3, 0], sizes = [1, 81], strides = [1, 1]} : vector<32x81xbf16> to vector<1x81xbf16>
    %c0_158 = arith.constant 0 : index
    %c384 = arith.constant 384 : index
    %210 = vector.load %arg11[%c0_158, %c384] : memref<1x4096xbf16, #tpu.memory_space<vmem>>, vector<1x81xbf16>
    tpu.vector_store %arg11[%c0_158, %c384], %209 {strides = array<i32>} : memref<1x4096xbf16, #tpu.memory_space<vmem>>, vector<1x81xbf16>,
    %211 = vector.extract_strided_slice %202 {offsets = [4, 0], sizes = [1, 81], strides = [1, 1]} : vector<32x81xbf16> to vector<1x81xbf16>
    %c0_159 = arith.constant 0 : index
    %c512 = arith.constant 512 : index
    %212 = vector.load %arg11[%c0_159, %c512] : memref<1x4096xbf16, #tpu.memory_space<vmem>>, vector<1x81xbf16>
    tpu.vector_store %arg11[%c0_159, %c512], %211 {strides = array<i32>} : memref<1x4096xbf16, #tpu.memory_space<vmem>>, vector<1x81xbf16>,
    %213 = vector.extract_strided_slice %202 {offsets = [5, 0], sizes = [1, 81], strides = [1, 1]} : vector<32x81xbf16> to vector<1x81xbf16>
    %c0_160 = arith.constant 0 : index
    %c640 = arith.constant 640 : index
    %214 = vector.load %arg11[%c0_160, %c640] : memref<1x4096xbf16, #tpu.memory_space<vmem>>, vector<1x81xbf16>
    tpu.vector_store %arg11[%c0_160, %c640], %213 {strides = array<i32>} : memref<1x4096xbf16, #tpu.memory_space<vmem>>, vector<1x81xbf16>,
    %215 = vector.extract_strided_slice %202 {offsets = [6, 0], sizes = [1, 81], strides = [1, 1]} : vector<32x81xbf16> to vector<1x81xbf16>
    %c0_161 = arith.constant 0 : index
    %c768 = arith.constant 768 : index
    %216 = vector.load %arg11[%c0_161, %c768] : memref<1x4096xbf16, #tpu.memory_space<vmem>>, vector<1x81xbf16>
    tpu.vector_store %arg11[%c0_161, %c768], %215 {strides = array<i32>} : memref<1x4096xbf16, #tpu.memory_space<vmem>>, vector<1x81xbf16>,
    %217 = vector.extract_strided_slice %202 {offsets = [7, 0], sizes = [1, 81], strides = [1, 1]} : vector<32x81xbf16> to vector<1x81xbf16>
    %c0_162 = arith.constant 0 : index
    %c896 = arith.constant 896 : index
    %218 = vector.load %arg11[%c0_162, %c896] : memref<1x4096xbf16, #tpu.memory_space<vmem>>, vector<1x81xbf16>
    tpu.vector_store %arg11[%c0_162, %c896], %217 {strides = array<i32>} : memref<1x4096xbf16, #tpu.memory_space<vmem>>, vector<1x81xbf16>,
    %219 = vector.extract_strided_slice %202 {offsets = [8, 0], sizes = [1, 81], strides = [1, 1]} : vector<32x81xbf16> to vector<1x81xbf16>
    %c0_163 = arith.constant 0 : index
    %c1024 = arith.constant 1024 : index
    %220 = vector.load %arg11[%c0_163, %c1024] : memref<1x4096xbf16, #tpu.memory_space<vmem>>, vector<1x81xbf16>
    tpu.vector_store %arg11[%c0_163, %c1024], %219 {strides = array<i32>} : memref<1x4096xbf16, #tpu.memory_space<vmem>>, vector<1x81xbf16>,
    %221 = vector.extract_strided_slice %202 {offsets = [9, 0], sizes = [1, 81], strides = [1, 1]} : vector<32x81xbf16> to vector<1x81xbf16>
    %c0_164 = arith.constant 0 : index
    %c1152 = arith.constant 1152 : index
    %222 = vector.load %arg11[%c0_164, %c1152] : memref<1x4096xbf16, #tpu.memory_space<vmem>>, vector<1x81xbf16>
    tpu.vector_store %arg11[%c0_164, %c1152], %221 {strides = array<i32>} : memref<1x4096xbf16, #tpu.memory_space<vmem>>, vector<1x81xbf16>,
    %223 = vector.extract_strided_slice %202 {offsets = [10, 0], sizes = [1, 81], strides = [1, 1]} : vector<32x81xbf16> to vector<1x81xbf16>
    %c0_165 = arith.constant 0 : index
    %c1280 = arith.constant 1280 : index
    %224 = vector.load %arg11[%c0_165, %c1280] : memref<1x4096xbf16, #tpu.memory_space<vmem>>, vector<1x81xbf16>
    tpu.vector_store %arg11[%c0_165, %c1280], %223 {strides = array<i32>} : memref<1x4096xbf16, #tpu.memory_space<vmem>>, vector<1x81xbf16>,
    %225 = vector.extract_strided_slice %202 {offsets = [11, 0], sizes = [1, 81], strides = [1, 1]} : vector<32x81xbf16> to vector<1x81xbf16>
    %c0_166 = arith.constant 0 : index
    %c1408 = arith.constant 1408 : index
    %226 = vector.load %arg11[%c0_166, %c1408] : memref<1x4096xbf16, #tpu.memory_space<vmem>>, vector<1x81xbf16>
    tpu.vector_store %arg11[%c0_166, %c1408], %225 {strides = array<i32>} : memref<1x4096xbf16, #tpu.memory_space<vmem>>, vector<1x81xbf16>,
    %227 = vector.extract_strided_slice %202 {offsets = [12, 0], sizes = [1, 81], strides = [1, 1]} : vector<32x81xbf16> to vector<1x81xbf16>
    %c0_167 = arith.constant 0 : index
    %c1536 = arith.constant 1536 : index
    %228 = vector.load %arg11[%c0_167, %c1536] : memref<1x4096xbf16, #tpu.memory_space<vmem>>, vector<1x81xbf16>
    tpu.vector_store %arg11[%c0_167, %c1536], %227 {strides = array<i32>} : memref<1x4096xbf16, #tpu.memory_space<vmem>>, vector<1x81xbf16>,
    %229 = vector.extract_strided_slice %202 {offsets = [13, 0], sizes = [1, 81], strides = [1, 1]} : vector<32x81xbf16> to vector<1x81xbf16>
    %c0_168 = arith.constant 0 : index
    %c1664 = arith.constant 1664 : index
    %230 = vector.load %arg11[%c0_168, %c1664] : memref<1x4096xbf16, #tpu.memory_space<vmem>>, vector<1x81xbf16>
    tpu.vector_store %arg11[%c0_168, %c1664], %229 {strides = array<i32>} : memref<1x4096xbf16, #tpu.memory_space<vmem>>, vector<1x81xbf16>,
    %231 = vector.extract_strided_slice %202 {offsets = [14, 0], sizes = [1, 81], strides = [1, 1]} : vector<32x81xbf16> to vector<1x81xbf16>
    %c0_169 = arith.constant 0 : index
    %c1792 = arith.constant 1792 : index
    %232 = vector.load %arg11[%c0_169, %c1792] : memref<1x4096xbf16, #tpu.memory_space<vmem>>, vector<1x81xbf16>
    tpu.vector_store %arg11[%c0_169, %c1792], %231 {strides = array<i32>} : memref<1x4096xbf16, #tpu.memory_space<vmem>>, vector<1x81xbf16>,
    %233 = vector.extract_strided_slice %202 {offsets = [15, 0], sizes = [1, 81], strides = [1, 1]} : vector<32x81xbf16> to vector<1x81xbf16>
    %c0_170 = arith.constant 0 : index
    %c1920 = arith.constant 1920 : index
    %234 = vector.load %arg11[%c0_170, %c1920] : memref<1x4096xbf16, #tpu.memory_space<vmem>>, vector<1x81xbf16>
    tpu.vector_store %arg11[%c0_170, %c1920], %233 {strides = array<i32>} : memref<1x4096xbf16, #tpu.memory_space<vmem>>, vector<1x81xbf16>,
    %235 = vector.extract_strided_slice %202 {offsets = [16, 0], sizes = [1, 81], strides = [1, 1]} : vector<32x81xbf16> to vector<1x81xbf16>
    %c0_171 = arith.constant 0 : index
    %c2048 = arith.constant 2048 : index
    %236 = vector.load %arg11[%c0_171, %c2048] : memref<1x4096xbf16, #tpu.memory_space<vmem>>, vector<1x81xbf16>
    tpu.vector_store %arg11[%c0_171, %c2048], %235 {strides = array<i32>} : memref<1x4096xbf16, #tpu.memory_space<vmem>>, vector<1x81xbf16>,
    %237 = vector.extract_strided_slice %202 {offsets = [17, 0], sizes = [1, 81], strides = [1, 1]} : vector<32x81xbf16> to vector<1x81xbf16>
    %c0_172 = arith.constant 0 : index
    %c2176 = arith.constant 2176 : index
    %238 = vector.load %arg11[%c0_172, %c2176] : memref<1x4096xbf16, #tpu.memory_space<vmem>>, vector<1x81xbf16>
    tpu.vector_store %arg11[%c0_172, %c2176], %237 {strides = array<i32>} : memref<1x4096xbf16, #tpu.memory_space<vmem>>, vector<1x81xbf16>,
    %239 = vector.extract_strided_slice %202 {offsets = [18, 0], sizes = [1, 81], strides = [1, 1]} : vector<32x81xbf16> to vector<1x81xbf16>
    %c0_173 = arith.constant 0 : index
    %c2304 = arith.constant 2304 : index
    %240 = vector.load %arg11[%c0_173, %c2304] : memref<1x4096xbf16, #tpu.memory_space<vmem>>, vector<1x81xbf16>
    tpu.vector_store %arg11[%c0_173, %c2304], %239 {strides = array<i32>} : memref<1x4096xbf16, #tpu.memory_space<vmem>>, vector<1x81xbf16>,
    %241 = vector.extract_strided_slice %202 {offsets = [19, 0], sizes = [1, 81], strides = [1, 1]} : vector<32x81xbf16> to vector<1x81xbf16>
    %c0_174 = arith.constant 0 : index
    %c2432 = arith.constant 2432 : index
    %242 = vector.load %arg11[%c0_174, %c2432] : memref<1x4096xbf16, #tpu.memory_space<vmem>>, vector<1x81xbf16>
    tpu.vector_store %arg11[%c0_174, %c2432], %241 {strides = array<i32>} : memref<1x4096xbf16, #tpu.memory_space<vmem>>, vector<1x81xbf16>,
    %243 = vector.extract_strided_slice %202 {offsets = [20, 0], sizes = [1, 81], strides = [1, 1]} : vector<32x81xbf16> to vector<1x81xbf16>
    %c0_175 = arith.constant 0 : index
    %c2560 = arith.constant 2560 : index
    %244 = vector.load %arg11[%c0_175, %c2560] : memref<1x4096xbf16, #tpu.memory_space<vmem>>, vector<1x81xbf16>
    tpu.vector_store %arg11[%c0_175, %c2560], %243 {strides = array<i32>} : memref<1x4096xbf16, #tpu.memory_space<vmem>>, vector<1x81xbf16>,
    %245 = vector.extract_strided_slice %202 {offsets = [21, 0], sizes = [1, 81], strides = [1, 1]} : vector<32x81xbf16> to vector<1x81xbf16>
    %c0_176 = arith.constant 0 : index
    %c2688 = arith.constant 2688 : index
    %246 = vector.load %arg11[%c0_176, %c2688] : memref<1x4096xbf16, #tpu.memory_space<vmem>>, vector<1x81xbf16>
    tpu.vector_store %arg11[%c0_176, %c2688], %245 {strides = array<i32>} : memref<1x4096xbf16, #tpu.memory_space<vmem>>, vector<1x81xbf16>,
    %247 = vector.extract_strided_slice %202 {offsets = [22, 0], sizes = [1, 81], strides = [1, 1]} : vector<32x81xbf16> to vector<1x81xbf16>
    %c0_177 = arith.constant 0 : index
    %c2816 = arith.constant 2816 : index
    %248 = vector.load %arg11[%c0_177, %c2816] : memref<1x4096xbf16, #tpu.memory_space<vmem>>, vector<1x81xbf16>
    tpu.vector_store %arg11[%c0_177, %c2816], %247 {strides = array<i32>} : memref<1x4096xbf16, #tpu.memory_space<vmem>>, vector<1x81xbf16>,
    %249 = vector.extract_strided_slice %202 {offsets = [23, 0], sizes = [1, 81], strides = [1, 1]} : vector<32x81xbf16> to vector<1x81xbf16>
    %c0_178 = arith.constant 0 : index
    %c2944 = arith.constant 2944 : index
    %250 = vector.load %arg11[%c0_178, %c2944] : memref<1x4096xbf16, #tpu.memory_space<vmem>>, vector<1x81xbf16>
    tpu.vector_store %arg11[%c0_178, %c2944], %249 {strides = array<i32>} : memref<1x4096xbf16, #tpu.memory_space<vmem>>, vector<1x81xbf16>,
    %251 = vector.extract_strided_slice %202 {offsets = [24, 0], sizes = [1, 81], strides = [1, 1]} : vector<32x81xbf16> to vector<1x81xbf16>
    %c0_179 = arith.constant 0 : index
    %c3072 = arith.constant 3072 : index
    %252 = vector.load %arg11[%c0_179, %c3072] : memref<1x4096xbf16, #tpu.memory_space<vmem>>, vector<1x81xbf16>
    tpu.vector_store %arg11[%c0_179, %c3072], %251 {strides = array<i32>} : memref<1x4096xbf16, #tpu.memory_space<vmem>>, vector<1x81xbf16>,
    %253 = vector.extract_strided_slice %202 {offsets = [25, 0], sizes = [1, 81], strides = [1, 1]} : vector<32x81xbf16> to vector<1x81xbf16>
    %c0_180 = arith.constant 0 : index
    %c3200 = arith.constant 3200 : index
    %254 = vector.load %arg11[%c0_180, %c3200] : memref<1x4096xbf16, #tpu.memory_space<vmem>>, vector<1x81xbf16>
    tpu.vector_store %arg11[%c0_180, %c3200], %253 {strides = array<i32>} : memref<1x4096xbf16, #tpu.memory_space<vmem>>, vector<1x81xbf16>,
    %255 = vector.extract_strided_slice %202 {offsets = [26, 0], sizes = [1, 81], strides = [1, 1]} : vector<32x81xbf16> to vector<1x81xbf16>
    %c0_181 = arith.constant 0 : index
    %c3328 = arith.constant 3328 : index
    %256 = vector.load %arg11[%c0_181, %c3328] : memref<1x4096xbf16, #tpu.memory_space<vmem>>, vector<1x81xbf16>
    tpu.vector_store %arg11[%c0_181, %c3328], %255 {strides = array<i32>} : memref<1x4096xbf16, #tpu.memory_space<vmem>>, vector<1x81xbf16>,
    %257 = vector.extract_strided_slice %202 {offsets = [27, 0], sizes = [1, 81], strides = [1, 1]} : vector<32x81xbf16> to vector<1x81xbf16>
    %c0_182 = arith.constant 0 : index
    %c3456 = arith.constant 3456 : index
    %258 = vector.load %arg11[%c0_182, %c3456] : memref<1x4096xbf16, #tpu.memory_space<vmem>>, vector<1x81xbf16>
    tpu.vector_store %arg11[%c0_182, %c3456], %257 {strides = array<i32>} : memref<1x4096xbf16, #tpu.memory_space<vmem>>, vector<1x81xbf16>,
    %259 = vector.extract_strided_slice %202 {offsets = [28, 0], sizes = [1, 81], strides = [1, 1]} : vector<32x81xbf16> to vector<1x81xbf16>
    %c0_183 = arith.constant 0 : index
    %c3584 = arith.constant 3584 : index
    %260 = vector.load %arg11[%c0_183, %c3584] : memref<1x4096xbf16, #tpu.memory_space<vmem>>, vector<1x81xbf16>
    tpu.vector_store %arg11[%c0_183, %c3584], %259 {strides = array<i32>} : memref<1x4096xbf16, #tpu.memory_space<vmem>>, vector<1x81xbf16>,
    %261 = vector.extract_strided_slice %202 {offsets = [29, 0], sizes = [1, 81], strides = [1, 1]} : vector<32x81xbf16> to vector<1x81xbf16>
    %c0_184 = arith.constant 0 : index
    %c3712 = arith.constant 3712 : index
    %262 = vector.load %arg11[%c0_184, %c3712] : memref<1x4096xbf16, #tpu.memory_space<vmem>>, vector<1x81xbf16>
    tpu.vector_store %arg11[%c0_184, %c3712], %261 {strides = array<i32>} : memref<1x4096xbf16, #tpu.memory_space<vmem>>, vector<1x81xbf16>,
    %263 = vector.extract_strided_slice %202 {offsets = [30, 0], sizes = [1, 81], strides = [1, 1]} : vector<32x81xbf16> to vector<1x81xbf16>
    %c0_185 = arith.constant 0 : index
    %c3840 = arith.constant 3840 : index
    %264 = vector.load %arg11[%c0_185, %c3840] : memref<1x4096xbf16, #tpu.memory_space<vmem>>, vector<1x81xbf16>
    tpu.vector_store %arg11[%c0_185, %c3840], %263 {strides = array<i32>} : memref<1x4096xbf16, #tpu.memory_space<vmem>>, vector<1x81xbf16>,
    %265 = vector.extract_strided_slice %202 {offsets = [31, 0], sizes = [1, 81], strides = [1, 1]} : vector<32x81xbf16> to vector<1x81xbf16>
    %c0_186 = arith.constant 0 : index
    %c3968 = arith.constant 3968 : index
    %266 = vector.load %arg11[%c0_186, %c3968] : memref<1x4096xbf16, #tpu.memory_space<vmem>>, vector<1x81xbf16>
    tpu.vector_store %arg11[%c0_186, %c3968], %265 {strides = array<i32>} : memref<1x4096xbf16, #tpu.memory_space<vmem>>, vector<1x81xbf16>,
    %c0_187 = arith.constant 0 : index
    %c0_188 = arith.constant 0 : index
    %267 = vector.load %arg11[%c0_187, %c0_188] : memref<1x4096xbf16, #tpu.memory_space<vmem>>, vector<1x4096xbf16>
    %c0_189 = arith.constant 0 : index
    %c0_190 = arith.constant 0 : index
    %268 = vector.load %arg6[%c0_189, %c0_190] : memref<4096x256xbf16, #tpu.memory_space<vmem>>, vector<4096x256xbf16>
    %cst_191 = arith.constant dense<0.000000e+00> : vector<1x256xf32>
    %269 = tpu.matmul %267, %268, %cst_191 {dimension_numbers = #tpu.dot_dimension_numbers<[1], [0], [0], [1], [0, 0, 1, 1], [], []>} : vector<1x4096xbf16>, vector<4096x256xbf16>, vector<1x256xf32> -> vector<1x256xf32>
    %c0_192 = arith.constant 0 : index
    %c0_193 = arith.constant 0 : index
    %270 = vector.load %arg7[%c0_192, %c0_193] : memref<1x256xf32, #tpu.memory_space<vmem>>, vector<1x256xf32>
    %271 = arith.addf %269, %270 : vector<1x256xf32>
    %cst_194 = arith.constant 0.000000e+00 : f32
    %272 = vector.broadcast %cst_194 : f32 to vector<1x256xf32>
    %273 = arith.maximumf %271, %272 : vector<1x256xf32>
    %274 = arith.truncf %273 : vector<1x256xf32> to vector<1x256xbf16>
    %c0_195 = arith.constant 0 : index
    %c0_196 = arith.constant 0 : index
    %275 = vector.load %arg8[%c0_195, %c0_196] : memref<256x128xbf16, #tpu.memory_space<vmem>>, vector<256x128xbf16>
    %cst_197 = arith.constant dense<0.000000e+00> : vector<1x128xf32>
    %276 = tpu.matmul %274, %275, %cst_197 {dimension_numbers = #tpu.dot_dimension_numbers<[1], [0], [0], [1], [0, 0, 1, 1], [], []>} : vector<1x256xbf16>, vector<256x128xbf16>, vector<1x128xf32> -> vector<1x128xf32>
    %c0_198 = arith.constant 0 : index
    %c0_199 = arith.constant 0 : index
    %277 = vector.load %arg9[%c0_198, %c0_199] : memref<1x128xf32, #tpu.memory_space<vmem>>, vector<1x128xf32>
    %278 = arith.addf %276, %277 : vector<1x128xf32>
    %c0_200 = arith.constant 0 : index
    %c0_201 = arith.constant 0 : index
    %c0_202 = arith.constant 0 : index
    %279 = vector.load %arg10[%c0_200, %c0_201, %c0_202] : memref<1x1x128xf32, #tpu.memory_space<vmem>>, vector<1x1x128xf32>
    %280 = vector.shape_cast %279 : vector<1x1x128xf32> to vector<1x128xf32>
    %281 = vector.shape_cast %278 : vector<1x128xf32> to vector<1x1x128xf32>
    tpu.vector_store %arg10[%c0_200, %c0_201, %c0_202], %281 {strides = array<i32>} : memref<1x1x128xf32, #tpu.memory_space<vmem>>, vector<1x1x128xf32>,
    return
  }
  func.func @transform_0(%arg0: i32) -> (i32, i32, i32, i32) {
    %c0_i32 = arith.constant 0 : i32
    %c0_i32_0 = arith.constant 0 : i32
    %c0_i32_1 = arith.constant 0 : i32
    %c0_i32_2 = arith.constant 0 : i32
    return %arg0, %c0_i32, %c0_i32_0, %c0_i32_1 : i32, i32, i32, i32
  }
  func.func @transform_1(%arg0: i32) -> (i32, i32) {
    %c0_i32 = arith.constant 0 : i32
    %c0_i32_0 = arith.constant 0 : i32
    %c0_i32_1 = arith.constant 0 : i32
    return %c0_i32, %c0_i32_0 : i32, i32
  }
  func.func @transform_2(%arg0: i32) -> (i32, i32) {
    %c0_i32 = arith.constant 0 : i32
    %c0_i32_0 = arith.constant 0 : i32
    %c0_i32_1 = arith.constant 0 : i32
    return %c0_i32, %c0_i32_0 : i32, i32
  }
  func.func @transform_3(%arg0: i32) -> (i32, i32, i32) {
    %c0_i32 = arith.constant 0 : i32
    %c0_i32_0 = arith.constant 0 : i32
    %c0_i32_1 = arith.constant 0 : i32
    %c0_i32_2 = arith.constant 0 : i32
    return %c0_i32, %c0_i32_0, %c0_i32_1 : i32, i32, i32
  }
  func.func @transform_4(%arg0: i32) -> (i32, i32) {
    %c0_i32 = arith.constant 0 : i32
    %c0_i32_0 = arith.constant 0 : i32
    %c0_i32_1 = arith.constant 0 : i32
    return %c0_i32, %c0_i32_0 : i32, i32
  }
  func.func @transform_5(%arg0: i32) -> (i32, i32) {
    %c0_i32 = arith.constant 0 : i32
    %c0_i32_0 = arith.constant 0 : i32
    %c0_i32_1 = arith.constant 0 : i32
    return %c0_i32, %c0_i32_0 : i32, i32
  }
  func.func @transform_6(%arg0: i32) -> (i32, i32) {
    %c0_i32 = arith.constant 0 : i32
    %c0_i32_0 = arith.constant 0 : i32
    %c0_i32_1 = arith.constant 0 : i32
    return %c0_i32, %c0_i32_0 : i32, i32
  }
  func.func @transform_7(%arg0: i32) -> (i32, i32) {
    %c0_i32 = arith.constant 0 : i32
    %c0_i32_0 = arith.constant 0 : i32
    %c0_i32_1 = arith.constant 0 : i32
    return %c0_i32, %c0_i32_0 : i32, i32
  }
  func.func @transform_8(%arg0: i32) -> (i32, i32) {
    %c0_i32 = arith.constant 0 : i32
    %c0_i32_0 = arith.constant 0 : i32
    %c0_i32_1 = arith.constant 0 : i32
    return %c0_i32, %c0_i32_0 : i32, i32
  }
  func.func @transform_9(%arg0: i32) -> (i32, i32, i32) {
    %c0_i32 = arith.constant 0 : i32
    %c0_i32_0 = arith.constant 0 : i32
    %c0_i32_1 = arith.constant 0 : i32
    return %arg0, %c0_i32, %c0_i32_0 : i32, i32, i32
  }
}

</mosaic_0001>

<llo_original>
// kernel: qnetwork_forward.1
$region0: #{qnetwork_forward.1}
  #allocation0 [shape = 'u32[]', space=smem, size = 0x4, offset = 0x4, fixed_abs, tag = 'smem constant byte address 0x4 - core index']
  #allocation1 [shape = 'u32[72,128]{1,0:T(1,128)}', space=vmem, size = 0x9000, scoped, tag = 'internal scratch']
  #allocation2 [shape = 'bf16[1,4096]{1,0:T(2,128)(2,1)}', space=vmem, size = 0x4000, scoped, tag = 'scratch operand']
  %s0 = inlined_call_operand.vmem [shape: bf16[2,16,256,81], index: 0, kind: input, shape index: {}]
  %s1 = inlined_call_operand.vmem [shape: bf16[16,256], index: 1, kind: input, shape index: {}]
  %s2 = inlined_call_operand.vmem [shape: f32[16,1], index: 2, kind: input, shape index: {}]
  %s3 = inlined_call_operand.vmem [shape: bf16[16,32,16], index: 3, kind: input, shape index: {}]
  %s4 = inlined_call_operand.vmem [shape: f32[32,1], index: 4, kind: input, shape index: {}]
  %s5 = inlined_call_operand.vmem [shape: bf16[4096,256], index: 5, kind: input, shape index: {}]
  %s6 = inlined_call_operand.vmem [shape: f32[1,256], index: 6, kind: input, shape index: {}]
  %s7 = inlined_call_operand.vmem [shape: bf16[256,128], index: 7, kind: input, shape index: {}]
  %s8 = inlined_call_operand.vmem [shape: f32[1,128], index: 8, kind: input, shape index: {}]
  %s9 = inlined_call_operand.hbm [shape: f32[2,1,128], index: 9, kind: output, shape index: {}]
  %s10 = sld [smem:[#allocation0]]
  $region69: #{qnetwork_forward.1} parent=0
    _
  %s12 = ssub.s32 1, %s10
  %s13 = scalar_select 0, %s12, %s10
  $region1: #{qnetwork_forward.1} parent=0
    #allocation3 [shape = 'u8[1024]{0}', space=vmem, size = 0x400, scoped, tag = 'output window, operand 0']
    #allocation4 [shape = 's32[2]{0}', space=sflag, size = 0x8, scoped, tag = 'scoped memory for qnetwork_forward.1']
    %14 = vsyncpa [#allocation4], 0
    %s15 = scalar_lea.sflag [#allocation4], 1
    %16 = vsyncpa %s15, 0
    loop: start=0, step=1, limit=4
    $region2: #{qnetwork_forward.1} parent=1 // loop_pre_header
      _
    $region3: #{qnetwork_forward.1} parent=1 // loop_header
      %s18 = sphi 0, %s22
      %p19 = scmp.ge.s32.totalorder %s18, 4
      %s28 = sphi 0, %s30
      %s31 = sphi 0, %s28
      %s32 = sphi 0, %s31
      %s48 = sphi 0, %s32
      %s52 = sphi 0, %s52
      %s54 = sphi 0, %s52
      %s55 = sphi 0, %s54
      %s69 = sphi 0, %s55
      %s73 = sphi 0, %s73
      %s75 = sphi 0, %s73
      %s76 = sphi 0, %s75
      %s90 = sphi 0, %s76
      %s94 = sphi 0, %s94
      %s96 = sphi 0, %s94
      %s97 = sphi 0, %s96
      %s111 = sphi 0, %s97
      %s115 = sphi 0, %s115
      %s117 = sphi 0, %s115
      %s118 = sphi 0, %s117
      %s132 = sphi 0, %s118
      %s136 = sphi 0, %s136
      %s138 = sphi 0, %s136
      %s139 = sphi 0, %s138
      %s153 = sphi 0, %s139
      %s157 = sphi 0, %s157
      %s159 = sphi 0, %s157
      %s160 = sphi 0, %s159
      %s174 = sphi 0, %s160
      %s178 = sphi 0, %s178
      %s180 = sphi 0, %s178
      %s181 = sphi 0, %s180
      %s195 = sphi 0, %s181
      %s199 = sphi 0, %s199
      %s201 = sphi 0, %s199
      %s202 = sphi 0, %s201
      %s216 = sphi 0, %s202
      %s222 = sphi 0, %s224
      %s225 = sphi 0, %s222
      %s226 = sphi 0, %s225
      %s242 = sphi 0, %s226
    $region4: #{qnetwork_forward.1} parent=1 // loop_header_branch
      %21 = sbr.rel (%p19) target = $region8
    $region5: #{qnetwork_forward.1} parent=1 // loop_body
      %s23 = ssub.s32 %s18, 1
      %s24 = ssub.s32 %s18, 2
      %s25 = sadd.s32 %s18, 1
      %s26 = ssub.s32 %s18, %s25
      %p27 = scmp.eq.s32.totalorder %s26, 0
      %s29 = sadd.s32 %s28, 1
      %s30 = scalar_select %p27, %s28, %s29
      %p33 = pneg %p27
      %p34 = scmp.eq.s32.totalorder %s18, 1
      %p35 = por %p33, %p34
      %p36 = scmp.ne.s32.totalorder %s28, %s31
      %p37 = scmp.eq.s32.totalorder %s18, 0
      %p38 = por %p36, %p37
      %p39 = scmp.ne.s32.totalorder %s28, %s31
      %p40 = scmp.eq.s32.totalorder %s23, 1
      %p41 = por %p39, %p40
      %p42 = scmp.ne.s32.totalorder %s31, %s32
      %p43 = scmp.eq.s32.totalorder %s23, 0
      %p44 = por %p42, %p43
      %p45 = scmp.ne.s32.totalorder %s31, %s32
      %p46 = scmp.eq.s32.totalorder %s24, 1
      %p47 = por %p45, %p46
      %p49 = scmp.ne.s32.totalorder %s32, %s48
      %p50 = scmp.eq.s32.totalorder %s24, 0
      %p51 = por %p49, %p50
      %s53 = sadd.s32 %s52, 1
      %p56 = scmp.eq.s32.totalorder %s18, 1
      %p57 = scmp.ne.s32.totalorder %s52, %s54
      %p58 = scmp.eq.s32.totalorder %s18, 0
      %p59 = por %p57, %p58
      %p60 = scmp.ne.s32.totalorder %s52, %s54
      %p61 = scmp.eq.s32.totalorder %s23, 1
      %p62 = por %p60, %p61
      %p63 = scmp.ne.s32.totalorder %s54, %s55
      %p64 = scmp.eq.s32.totalorder %s23, 0
      %p65 = por %p63, %p64
      %p66 = scmp.ne.s32.totalorder %s54, %s55
      %p67 = scmp.eq.s32.totalorder %s24, 1
      %p68 = por %p66, %p67
      %p70 = scmp.ne.s32.totalorder %s55, %s69
      %p71 = scmp.eq.s32.totalorder %s24, 0
      %p72 = por %p70, %p71
      %s74 = sadd.s32 %s73, 1
      %p77 = scmp.eq.s32.totalorder %s18, 1
      %p78 = scmp.ne.s32.totalorder %s73, %s75
      %p79 = scmp.eq.s32.totalorder %s18, 0
      %p80 = por %p78, %p79
      %p81 = scmp.ne.s32.totalorder %s73, %s75
      %p82 = scmp.eq.s32.totalorder %s23, 1
      %p83 = por %p81, %p82
      %p84 = scmp.ne.s32.totalorder %s75, %s76
      %p85 = scmp.eq.s32.totalorder %s23, 0
      %p86 = por %p84, %p85
      %p87 = scmp.ne.s32.totalorder %s75, %s76
      %p88 = scmp.eq.s32.totalorder %s24, 1
      %p89 = por %p87, %p88
      %p91 = scmp.ne.s32.totalorder %s76, %s90
      %p92 = scmp.eq.s32.totalorder %s24, 0
      %p93 = por %p91, %p92
      %s95 = sadd.s32 %s94, 1
      %p98 = scmp.eq.s32.totalorder %s18, 1
      %p99 = scmp.ne.s32.totalorder %s94, %s96
      %p100 = scmp.eq.s32.totalorder %s18, 0
      %p101 = por %p99, %p100
      %p102 = scmp.ne.s32.totalorder %s94, %s96
      %p103 = scmp.eq.s32.totalorder %s23, 1
      %p104 = por %p102, %p103
      %p105 = scmp.ne.s32.totalorder %s96, %s97
      %p106 = scmp.eq.s32.totalorder %s23, 0
      %p107 = por %p105, %p106
      %p108 = scmp.ne.s32.totalorder %s96, %s97
      %p109 = scmp.eq.s32.totalorder %s24, 1
      %p110 = por %p108, %p109
      %p112 = scmp.ne.s32.totalorder %s97, %s111
      %p113 = scmp.eq.s32.totalorder %s24, 0
      %p114 = por %p112, %p113
      %s116 = sadd.s32 %s115, 1
      %p119 = scmp.eq.s32.totalorder %s18, 1
      %p120 = scmp.ne.s32.totalorder %s115, %s117
      %p121 = scmp.eq.s32.totalorder %s18, 0
      %p122 = por %p120, %p121
      %p123 = scmp.ne.s32.totalorder %s115, %s117
      %p124 = scmp.eq.s32.totalorder %s23, 1
      %p125 = por %p123, %p124
      %p126 = scmp.ne.s32.totalorder %s117, %s118
      %p127 = scmp.eq.s32.totalorder %s23, 0
      %p128 = por %p126, %p127
      %p129 = scmp.ne.s32.totalorder %s117, %s118
      %p130 = scmp.eq.s32.totalorder %s24, 1
      %p131 = por %p129, %p130
      %p133 = scmp.ne.s32.totalorder %s118, %s132
      %p134 = scmp.eq.s32.totalorder %s24, 0
      %p135 = por %p133, %p134
      %s137 = sadd.s32 %s136, 1
      %p140 = scmp.eq.s32.totalorder %s18, 1
      %p141 = scmp.ne.s32.totalorder %s136, %s138
      %p142 = scmp.eq.s32.totalorder %s18, 0
      %p143 = por %p141, %p142
      %p144 = scmp.ne.s32.totalorder %s136, %s138
      %p145 = scmp.eq.s32.totalorder %s23, 1
      %p146 = por %p144, %p145
      %p147 = scmp.ne.s32.totalorder %s138, %s139
      %p148 = scmp.eq.s32.totalorder %s23, 0
      %p149 = por %p147, %p148
      %p150 = scmp.ne.s32.totalorder %s138, %s139
      %p151 = scmp.eq.s32.totalorder %s24, 1
      %p152 = por %p150, %p151
      %p154 = scmp.ne.s32.totalorder %s139, %s153
      %p155 = scmp.eq.s32.totalorder %s24, 0
      %p156 = por %p154, %p155
      %s158 = sadd.s32 %s157, 1
      %p161 = scmp.eq.s32.totalorder %s18, 1
      %p162 = scmp.ne.s32.totalorder %s157, %s159
      %p163 = scmp.eq.s32.totalorder %s18, 0
      %p164 = por %p162, %p163
      %p165 = scmp.ne.s32.totalorder %s157, %s159
      %p166 = scmp.eq.s32.totalorder %s23, 1
      %p167 = por %p165, %p166
      %p168 = scmp.ne.s32.totalorder %s159, %s160
      %p169 = scmp.eq.s32.totalorder %s23, 0
      %p170 = por %p168, %p169
      %p171 = scmp.ne.s32.totalorder %s159, %s160
      %p172 = scmp.eq.s32.totalorder %s24, 1
      %p173 = por %p171, %p172
      %p175 = scmp.ne.s32.totalorder %s160, %s174
      %p176 = scmp.eq.s32.totalorder %s24, 0
      %p177 = por %p175, %p176
      %s179 = sadd.s32 %s178, 1
      %p182 = scmp.eq.s32.totalorder %s18, 1
      %p183 = scmp.ne.s32.totalorder %s178, %s180
      %p184 = scmp.eq.s32.totalorder %s18, 0
      %p185 = por %p183, %p184
      %p186 = scmp.ne.s32.totalorder %s178, %s180
      %p187 = scmp.eq.s32.totalorder %s23, 1
      %p188 = por %p186, %p187
      %p189 = scmp.ne.s32.totalorder %s180, %s181
      %p190 = scmp.eq.s32.totalorder %s23, 0
      %p191 = por %p189, %p190
      %p192 = scmp.ne.s32.totalorder %s180, %s181
      %p193 = scmp.eq.s32.totalorder %s24, 1
      %p194 = por %p192, %p193
      %p196 = scmp.ne.s32.totalorder %s181, %s195
      %p197 = scmp.eq.s32.totalorder %s24, 0
      %p198 = por %p196, %p197
      %s200 = sadd.s32 %s199, 1
      %p203 = scmp.eq.s32.totalorder %s18, 1
      %p204 = scmp.ne.s32.totalorder %s199, %s201
      %p205 = scmp.eq.s32.totalorder %s18, 0
      %p206 = por %p204, %p205
      %p207 = scmp.ne.s32.totalorder %s199, %s201
      %p208 = scmp.eq.s32.totalorder %s23, 1
      %p209 = por %p207, %p208
      %p210 = scmp.ne.s32.totalorder %s201, %s202
      %p211 = scmp.eq.s32.totalorder %s23, 0
      %p212 = por %p210, %p211
      %p213 = scmp.ne.s32.totalorder %s201, %s202
      %p214 = scmp.eq.s32.totalorder %s24, 1
      %p215 = por %p213, %p214
      %p217 = scmp.ne.s32.totalorder %s202, %s216
      %p218 = scmp.eq.s32.totalorder %s24, 0
      %p219 = por %p217, %p218
      %s220 = ssub.s32 %s18, %s25
      %p221 = scmp.eq.s32.totalorder %s220, 0
      %s223 = sadd.s32 %s222, 1
      %s224 = scalar_select %p221, %s222, %s223
      %p227 = pneg %p221
      %p228 = scmp.eq.s32.totalorder %s18, 1
      %p229 = por %p227, %p228
      %p230 = scmp.ne.s32.totalorder %s222, %s225
      %p231 = scmp.eq.s32.totalorder %s18, 0
      %p232 = por %p230, %p231
      %p233 = scmp.ne.s32.totalorder %s222, %s225
      %p234 = scmp.eq.s32.totalorder %s23, 1
      %p235 = por %p233, %p234
      %p236 = scmp.ne.s32.totalorder %s225, %s226
      %p237 = scmp.eq.s32.totalorder %s23, 0
      %p238 = por %p236, %p237
      %p239 = scmp.ne.s32.totalorder %s225, %s226
      %p240 = scmp.eq.s32.totalorder %s24, 1
      %p241 = por %p239, %p240
      %p243 = scmp.ne.s32.totalorder %s226, %s242
      %p244 = scmp.eq.s32.totalorder %s24, 0
      %p245 = por %p243, %p244
      %p246 = scmp.le.s32.totalorder 1, %s18
      %p247 = scmp.lt.s32.totalorder %s18, 3
      %p248 = pnand %p246, %p247
      %p249 = pneg %p248
      // Predicated region
      $region9: #{qnetwork_forward.1} parent=5 // pred_check
        _
      $region10: #{qnetwork_forward.1} parent=5 // pred_check_branch
        %251 = sbr.rel (%p248) target = $region12
      $region11: #{qnetwork_forward.1} parent=5 // pred_region
        %s252 = ssub.s32 %s18, 1
        // Predicated region
        $region13: #{qnetwork_forward.1} parent=11 // pred_check
          %p253 = pneg %p65
        $region14: #{qnetwork_forward.1} parent=11 // pred_check_branch
          %255 = sbr.rel (%p253) target = $region16
        $region15: #{qnetwork_forward.1} parent=11 // pred_region
          _
        $region16: #{qnetwork_forward.1} parent=11 // pred_fallthru
          _
        // Predicated region
        $region17: #{qnetwork_forward.1} parent=11 // pred_check
          %p256 = pneg %p86
        $region18: #{qnetwork_forward.1} parent=11 // pred_check_branch
          %258 = sbr.rel (%p256) target = $region20
        $region19: #{qnetwork_forward.1} parent=11 // pred_region
          _
        $region20: #{qnetwork_forward.1} parent=11 // pred_fallthru
          _
        // Predicated region
        $region21: #{qnetwork_forward.1} parent=11 // pred_check
          %p259 = pneg %p107
        $region22: #{qnetwork_forward.1} parent=11 // pred_check_branch
          %261 = sbr.rel (%p259) target = $region24
        $region23: #{qnetwork_forward.1} parent=11 // pred_region
          _
        $region24: #{qnetwork_forward.1} parent=11 // pred_fallthru
          _
        // Predicated region
        $region25: #{qnetwork_forward.1} parent=11 // pred_check
          %p262 = pneg %p128
        $region26: #{qnetwork_forward.1} parent=11 // pred_check_branch
          %264 = sbr.rel (%p262) target = $region28
        $region27: #{qnetwork_forward.1} parent=11 // pred_region
          _
        $region28: #{qnetwork_forward.1} parent=11 // pred_fallthru
          _
        // Predicated region
        $region29: #{qnetwork_forward.1} parent=11 // pred_check
          %p265 = pneg %p149
        $region30: #{qnetwork_forward.1} parent=11 // pred_check_branch
          %267 = sbr.rel (%p265) target = $region32
        $region31: #{qnetwork_forward.1} parent=11 // pred_region
          _
        $region32: #{qnetwork_forward.1} parent=11 // pred_fallthru
          _
        // Predicated region
        $region33: #{qnetwork_forward.1} parent=11 // pred_check
          %p268 = pneg %p170
        $region34: #{qnetwork_forward.1} parent=11 // pred_check_branch
          %270 = sbr.rel (%p268) target = $region36
        $region35: #{qnetwork_forward.1} parent=11 // pred_region
          _
        $region36: #{qnetwork_forward.1} parent=11 // pred_fallthru
          _
        // Predicated region
        $region37: #{qnetwork_forward.1} parent=11 // pred_check
          %p271 = pneg %p191
        $region38: #{qnetwork_forward.1} parent=11 // pred_check_branch
          %273 = sbr.rel (%p271) target = $region40
        $region39: #{qnetwork_forward.1} parent=11 // pred_region
          _
        $region40: #{qnetwork_forward.1} parent=11 // pred_fallthru
          _
        // Predicated region
        $region41: #{qnetwork_forward.1} parent=11 // pred_check
          %p274 = pneg %p212
        $region42: #{qnetwork_forward.1} parent=11 // pred_check_branch
          %276 = sbr.rel (%p274) target = $region44
        $region43: #{qnetwork_forward.1} parent=11 // pred_region
          _
        $region44: #{qnetwork_forward.1} parent=11 // pred_fallthru
          _
      $region12: #{qnetwork_forward.1} parent=5 // pred_fallthru
        _
      %p277 = scmp.lt.s32.totalorder %s18, 2
      // Predicated region
      $region45: #{qnetwork_forward.1} parent=5 // pred_check
        %p278 = pneg %p277
      $region46: #{qnetwork_forward.1} parent=5 // pred_check_branch
        %280 = sbr.rel (%p278) target = $region48
      $region47: #{qnetwork_forward.1} parent=5 // pred_region
        // Predicated region
        $region49: #{qnetwork_forward.1} parent=47 // pred_check
          %p281 = pneg %p38
        $region50: #{qnetwork_forward.1} parent=47 // pred_check_branch
          %283 = sbr.rel (%p281) target = $region52
        $region51: #{qnetwork_forward.1} parent=47 // pred_region
          %p284 = scmp.lt.s32.totalorder %s18, 1
          %s285 = scalar_select %p284, %s18, 1
          %s286 = smul.addr %s285, 512
          %s287 = smul.addr %s286, 4
          %s288 = scalar_lea.vmem %s0, %s287
        $region52: #{qnetwork_forward.1} parent=47 // pred_fallthru
          _
      $region48: #{qnetwork_forward.1} parent=5 // pred_fallthru
        _
      %p289 = scmp.le.s32.totalorder 1, %s18
      %p290 = scmp.lt.s32.totalorder %s18, 3
      %p291 = pnand %p289, %p290
      %p292 = pneg %p291
      // Predicated region
      $region53: #{qnetwork_forward.1} parent=5 // pred_check
        _
      $region54: #{qnetwork_forward.1} parent=5 // pred_check_branch
        %294 = sbr.rel (%p291) target = $region56
      $region55: #{qnetwork_forward.1} parent=5 // pred_region
        %s295 = ssub.s32 %s18, 1
        %p296 = scmp.lt.s32.totalorder %s23, 1
        %s297 = scalar_select %p296, %s23, 1
        %s298 = smul.addr %s297, 512
        %s299 = smul.addr %s298, 4
        %s300 = scalar_lea.vmem %s0, %s299
        %p301 = pneg %p44
        %p302 = pneg %p41
        %p303 = pneg %p65
        %p304 = pneg %p62
        %p305 = pneg %p86
        %p306 = pneg %p83
        %p307 = pneg %p107
        %p308 = pneg %p104
        %p309 = pneg %p128
        %p310 = pneg %p125
        %p311 = pneg %p149
        %p312 = pneg %p146
        %p313 = pneg %p170
        %p314 = pneg %p167
        %p315 = pneg %p191
        %p316 = pneg %p188
        %p317 = pneg %p212
        %p318 = pneg %p209
        %p319 = pneg %p238
        %p320 = pneg %p235
        %s321 = sand.u32 %s225, 1
        %s322 = scalar_lea.sflag [#allocation4], %s321
        %s323 = sand.u32 %s225, 1
        %s324 = scalar_lea.vmem [#allocation3], %s323
        %p325 = scmp.lt.s32.totalorder %s23, 1
        %s326 = scalar_select %p325, %s23, 1
        %s327 = smul.addr %s326, 512
        %s328 = smul.addr %s327, 4
        %s329 = scalar_lea.vmem %s0, %s328
        %vm331 = vcmask 1040384
        %vm332 = vsmask.f32 256
        %vm333 = vmand %vm331, %vm332
        %vm334 = vcmask 1041409
        %vm335 = vsmask.f32 1280
        %vm336 = vmand %vm334, %vm335
        %vm337 = vmor %vm336, %vm333
        %vm338 = vcmask 1042434
        %vm339 = vsmask.f32 2304
        %vm340 = vmand %vm338, %vm339
        %vm341 = vmor %vm340, %vm337
        %vm342 = vcmask 1043459
        %vm343 = vsmask.f32 3328
        %vm344 = vmand %vm342, %vm343
        %vm345 = vmor %vm344, %vm341
        %vm346 = vcmask 1044484
        %vm347 = vsmask.f32 4352
        %vm348 = vmand %vm346, %vm347
        %vm349 = vmor %vm348, %vm345
        %vm350 = vcmask 1045509
        %vm351 = vsmask.f32 5376
        %vm352 = vmand %vm350, %vm351
        %vm353 = vmor %vm352, %vm349
        %vm354 = vcmask 1046534
        %vm355 = vsmask.f32 6400
        %vm356 = vmand %vm354, %vm355
        %vm357 = vmor %vm356, %vm353
        %vm358 = vcmask 1047559
        %vm359 = vsmask.f32 7424
        %vm360 = vmand %vm358, %vm359
        %vm361 = vmor %vm360, %vm357
        %v362 = vld [vmem:[#allocation2] sm:$0xff]
        %v363 = vsel %vm361, 0, %v362
        %364 = vst [vmem:[#allocation2] sm:$0xff] %v363
        %v365 = vld [vmem:[#allocation2 + $0x8] sm:$0xff]
        %v366 = vsel %vm361, 0, %v365
        %367 = vst [vmem:[#allocation2 + $0x8] sm:$0xff] %v366
        %v368 = vld [vmem:[#allocation2 + $0x10] sm:$0xff]
        %v369 = vsel %vm361, 0, %v368
        %370 = vst [vmem:[#allocation2 + $0x10] sm:$0xff] %v369
        %v371 = vld [vmem:[#allocation2 + $0x18] sm:$0xff]
        %v372 = vsel %vm361, 0, %v371
        %373 = vst [vmem:[#allocation2 + $0x18] sm:$0xff] %v372
        %v374 = vld [vmem:[%s1] sm:$0xff]
        %v375 = vld [vmem:[%s1 + $0x8] sm:$0xff]
        %v376 = vld [vmem:[%s2] sm:$0xff]
        %v377 = vld [vmem:[%s2 + $0x8] sm:$0xff]
        %v378 = vld [vmem:[%s4] sm:$0xff]
        %v379 = vld [vmem:[%s4 + $0x8] sm:$0xff]
        %v380 = vld [vmem:[%s4 + $0x10] sm:$0xff]
        %v381 = vld [vmem:[%s4 + $0x18] sm:$0xff]
        %v382 = vld [vmem:[%s329] sm:$0xf]
        %v383 = vld [vmem:[%s329 + $0x4] sm:$0xf]
        %v384 = vld [vmem:[%s329 + $0x8] sm:$0xf]
        %v385 = vld [vmem:[%s329 + $0xc] sm:$0xf]
        %v386 = vld [vmem:[%s329 + $0x10] sm:$0xf]
        %v387 = vld [vmem:[%s329 + $0x14] sm:$0xf]
        %v388 = vld [vmem:[%s329 + $0x18] sm:$0xf]
        %v389 = vld [vmem:[%s329 + $0x1c] sm:$0xf]
        %v390 = vld [vmem:[%s329 + $0x20] sm:$0xf]
        %v391 = vld [vmem:[%s329 + $0x24] sm:$0xf]
        %v392 = vld [vmem:[%s329 + $0x28] sm:$0xf]
        %v393 = vld [vmem:[%s329 + $0x2c] sm:$0xf]
        %v394 = vld [vmem:[%s329 + $0x30] sm:$0xf]
        %v395 = vld [vmem:[%s329 + $0x34] sm:$0xf]
        %v396 = vld [vmem:[%s329 + $0x38] sm:$0xf]
        %v397 = vld [vmem:[%s329 + $0x3c] sm:$0xf]
        %v398 = vld [vmem:[%s329 + $0x40] sm:$0xf]
        %v399 = vld [vmem:[%s329 + $0x44] sm:$0xf]
        %v400 = vld [vmem:[%s329 + $0x48] sm:$0xf]
        %v401 = vld [vmem:[%s329 + $0x4c] sm:$0xf]
        %v402 = vld [vmem:[%s329 + $0x50] sm:$0xf]
        %v403 = vld [vmem:[%s329 + $0x54] sm:$0xf]
        %v404 = vld [vmem:[%s329 + $0x58] sm:$0xf]
        %v405 = vld [vmem:[%s329 + $0x5c] sm:$0xf]
        %v406 = vld [vmem:[%s329 + $0x60] sm:$0xf]
        %v407 = vld [vmem:[%s329 + $0x64] sm:$0xf]
        %v408 = vld [vmem:[%s329 + $0x68] sm:$0xf]
        %v409 = vld [vmem:[%s329 + $0x6c] sm:$0xf]
        %v410 = vld [vmem:[%s329 + $0x70] sm:$0xf]
        %v411 = vld [vmem:[%s329 + $0x74] sm:$0xf]
        %v412 = vld [vmem:[%s329 + $0x78] sm:$0xf]
        %v413 = vld [vmem:[%s329 + $0x7c] sm:$0xf]
        %415 = vset.pattern.permute.xlu0 0
        %416 = vperm.xlu0 %415, %v376
        %v417 = vpop.permute.xlu0 %416
        %420 = vset.pattern.permute.xlu0 0
        %421 = vperm.xlu0 %420, %v377
        %v422 = vpop.permute.xlu0 %421
        %v426 = vunpack.c.l.b16 %v374
        %v427 = vunpack.c.h.b16 %v374
        %v428 = vunpack.c.l.b16 %v375
        %v429 = vunpack.c.h.b16 %v375
        %v430 = vpack.c.b16 %v428, %v426
        %v431 = vpack.c.b16 %v429, %v427
        %v466 = vunpack.c.l.b16 %v382
        %v467 = vunpack.c.l.b16 %v383
        %v468 = vunpack.c.l.b16 %v384
        %v469 = vunpack.c.l.b16 %v385
        %v470 = vunpack.c.l.b16 %v386
        %v471 = vunpack.c.l.b16 %v387
        %v472 = vunpack.c.l.b16 %v388
        %v473 = vunpack.c.l.b16 %v389
        %v474 = vunpack.c.l.b16 %v390
        %v475 = vunpack.c.l.b16 %v391
        %v476 = vunpack.c.l.b16 %v392
        %v477 = vunpack.c.l.b16 %v393
        %v478 = vunpack.c.l.b16 %v394
        %v479 = vunpack.c.l.b16 %v395
        %v480 = vunpack.c.l.b16 %v396
        %v481 = vunpack.c.l.b16 %v397
        %v482 = vunpack.c.l.b16 %v398
        %v483 = vunpack.c.l.b16 %v399
        %v484 = vunpack.c.l.b16 %v400
        %v485 = vunpack.c.l.b16 %v401
        %v486 = vunpack.c.l.b16 %v402
        %v487 = vunpack.c.l.b16 %v403
        %v488 = vunpack.c.l.b16 %v404
        %v489 = vunpack.c.l.b16 %v405
        %v490 = vunpack.c.l.b16 %v406
        %v491 = vunpack.c.l.b16 %v407
        %v492 = vunpack.c.l.b16 %v408
        %v493 = vunpack.c.l.b16 %v409
        %v494 = vunpack.c.l.b16 %v410
        %v495 = vunpack.c.l.b16 %v411
        %v496 = vunpack.c.l.b16 %v412
        %v497 = vunpack.c.l.b16 %v413
        %v498 = vpack.c.b16 %v467, %v466
        %v499 = vpack.c.b16 %v469, %v468
        %v500 = vpack.c.b16 %v471, %v470
        %v501 = vpack.c.b16 %v473, %v472
        %v502 = vpack.c.b16 %v475, %v474
        %v503 = vpack.c.b16 %v477, %v476
        %v504 = vpack.c.b16 %v479, %v478
        %v505 = vpack.c.b16 %v481, %v480
        %v506 = vpack.c.b16 %v483, %v482
        %v507 = vpack.c.b16 %v485, %v484
        %v508 = vpack.c.b16 %v487, %v486
        %v509 = vpack.c.b16 %v489, %v488
        %v510 = vpack.c.b16 %v491, %v490
        %v511 = vpack.c.b16 %v493, %v492
        %v512 = vpack.c.b16 %v495, %v494
        %v513 = vpack.c.b16 %v497, %v496
        %530 = vmatpush.bf16.msra.mxu0 %v505
        %531 = vmatpush.bf16.msra.mxu0 %v504
        %532 = vmatpush.bf16.msra.mxu0 %v503
        %533 = vmatpush.bf16.msra.mxu0 %v502
        %534 = vmatpush.bf16.msra.mxu0 %v501
        %535 = vmatpush.bf16.msra.mxu0 %v500
        %536 = vmatpush.bf16.msra.mxu0 %v499
        %537 = vmatpush.bf16.msra.mxu0 %v498
        %538 = vmatmul.bf16.gmra.mxu0 %v430
        %v539 = vpop.f32.mrf.mxu0
        %v540 = vadd.f32 %v417, %v539
        %v541 = vpop.f32.mrf.mxu0
        %v542 = vadd.f32 %v422, %v541
        %543 = vdwg.mxu0
        %544 = vmatpush.bf16.msra.mxu0 %v513
        %545 = vmatpush.bf16.msra.mxu0 %v512
        %546 = vmatpush.bf16.msra.mxu0 %v511
        %547 = vmatpush.bf16.msra.mxu0 %v510
        %548 = vmatpush.bf16.msra.mxu0 %v509
        %549 = vmatpush.bf16.msra.mxu0 %v508
        %550 = vmatpush.bf16.msra.mxu0 %v507
        %551 = vmatpush.bf16.msra.mxu0 %v506
        %552 = vmatmul.bf16.gmra.mxu0 %v431
        %v553 = vpop.f32.mrf.mxu0
        %v554 = vadd.f32 %v540, %v553
        %v555 = vpop.f32.mrf.mxu0
        %v556 = vadd.f32 %v542, %v555
        %557 = vdwg.mxu0
        %v558 = vmax.f32 %v554, 0.0
        %v559 = vmax.f32 %v556, 0.0
        %v560 = vpack.c.bf16 %v559, %v558
        %v561 = vld [vmem:[%s3] sm:$0xf]
        %v562 = vld [vmem:[%s3 + $0x4] sm:$0xf]
        %v563 = vld [vmem:[%s3 + $0x8] sm:$0xf]
        %v564 = vld [vmem:[%s3 + $0xc] sm:$0xf]
        %s565 = scalar_lea.vmem %s329, 128
        %v566 = vld [vmem:[%s565] sm:$0xf]
        %v567 = vld [vmem:[%s565 + $0x4] sm:$0xf]
        %v568 = vld [vmem:[%s565 + $0x8] sm:$0xf]
        %v569 = vld [vmem:[%s565 + $0xc] sm:$0xf]
        %v570 = vld [vmem:[%s565 + $0x10] sm:$0xf]
        %v571 = vld [vmem:[%s565 + $0x14] sm:$0xf]
        %v572 = vld [vmem:[%s565 + $0x18] sm:$0xf]
        %v573 = vld [vmem:[%s565 + $0x1c] sm:$0xf]
        %v574 = vld [vmem:[%s565 + $0x20] sm:$0xf]
        %v575 = vld [vmem:[%s565 + $0x24] sm:$0xf]
        %v576 = vld [vmem:[%s565 + $0x28] sm:$0xf]
        %v577 = vld [vmem:[%s565 + $0x2c] sm:$0xf]
        %v578 = vld [vmem:[%s565 + $0x30] sm:$0xf]
        %v579 = vld [vmem:[%s565 + $0x34] sm:$0xf]
        %v580 = vld [vmem:[%s565 + $0x38] sm:$0xf]
        %v581 = vld [vmem:[%s565 + $0x3c] sm:$0xf]
        %v582 = vld [vmem:[%s565 + $0x40] sm:$0xf]
        %v583 = vld [vmem:[%s565 + $0x44] sm:$0xf]
        %v584 = vld [vmem:[%s565 + $0x48] sm:$0xf]
        %v585 = vld [vmem:[%s565 + $0x4c] sm:$0xf]
        %v586 = vld [vmem:[%s565 + $0x50] sm:$0xf]
        %v587 = vld [vmem:[%s565 + $0x54] sm:$0xf]
        %v588 = vld [vmem:[%s565 + $0x58] sm:$0xf]
        %v589 = vld [vmem:[%s565 + $0x5c] sm:$0xf]
        %v590 = vld [vmem:[%s565 + $0x60] sm:$0xf]
        %v591 = vld [vmem:[%s565 + $0x64] sm:$0xf]
        %v592 = vld [vmem:[%s565 + $0x68] sm:$0xf]
        %v593 = vld [vmem:[%s565 + $0x6c] sm:$0xf]
        %v594 = vld [vmem:[%s565 + $0x70] sm:$0xf]
        %v595 = vld [vmem:[%s565 + $0x74] sm:$0xf]
        %v596 = vld [vmem:[%s565 + $0x78] sm:$0xf]
        %v597 = vld [vmem:[%s565 + $0x7c] sm:$0xf]
        %v630 = vunpack.c.l.b16 %v566
        %v631 = vunpack.c.l.b16 %v567
        %v632 = vunpack.c.l.b16 %v568
        %v633 = vunpack.c.l.b16 %v569
        %v634 = vunpack.c.l.b16 %v570
        %v635 = vunpack.c.l.b16 %v571
        %v636 = vunpack.c.l.b16 %v572
        %v637 = vunpack.c.l.b16 %v573
        %v638 = vunpack.c.l.b16 %v574
        %v639 = vunpack.c.l.b16 %v575
        %v640 = vunpack.c.l.b16 %v576
        %v641 = vunpack.c.l.b16 %v577
        %v642 = vunpack.c.l.b16 %v578
        %v643 = vunpack.c.l.b16 %v579
        %v644 = vunpack.c.l.b16 %v580
        %v645 = vunpack.c.l.b16 %v581
        %v646 = vunpack.c.l.b16 %v582
        %v647 = vunpack.c.l.b16 %v583
        %v648 = vunpack.c.l.b16 %v584
        %v649 = vunpack.c.l.b16 %v585
        %v650 = vunpack.c.l.b16 %v586
        %v651 = vunpack.c.l.b16 %v587
        %v652 = vunpack.c.l.b16 %v588
        %v653 = vunpack.c.l.b16 %v589
        %v654 = vunpack.c.l.b16 %v590
        %v655 = vunpack.c.l.b16 %v591
        %v656 = vunpack.c.l.b16 %v592
        %v657 = vunpack.c.l.b16 %v593
        %v658 = vunpack.c.l.b16 %v594
        %v659 = vunpack.c.l.b16 %v595
        %v660 = vunpack.c.l.b16 %v596
        %v661 = vunpack.c.l.b16 %v597
        %v662 = vpack.c.b16 %v631, %v630
        %v663 = vpack.c.b16 %v633, %v632
        %v664 = vpack.c.b16 %v635, %v634
        %v665 = vpack.c.b16 %v637, %v636
        %v666 = vpack.c.b16 %v639, %v638
        %v667 = vpack.c.b16 %v641, %v640
        %v668 = vpack.c.b16 %v643, %v642
        %v669 = vpack.c.b16 %v645, %v644
        %v670 = vpack.c.b16 %v647, %v646
        %v671 = vpack.c.b16 %v649, %v648
        %v672 = vpack.c.b16 %v651, %v650
        %v673 = vpack.c.b16 %v653, %v652
        %v674 = vpack.c.b16 %v655, %v654
        %v675 = vpack.c.b16 %v657, %v656
        %v676 = vpack.c.b16 %v659, %v658
        %v677 = vpack.c.b16 %v661, %v660
        %694 = vmatpush.bf16.msra.mxu0 %v669
        %695 = vmatpush.bf16.msra.mxu0 %v668
        %696 = vmatpush.bf16.msra.mxu0 %v667
        %697 = vmatpush.bf16.msra.mxu0 %v666
        %698 = vmatpush.bf16.msra.mxu0 %v665
        %699 = vmatpush.bf16.msra.mxu0 %v664
        %700 = vmatpush.bf16.msra.mxu0 %v663
        %701 = vmatpush.bf16.msra.mxu0 %v662
        %702 = vmatmul.bf16.gmra.mxu0 %v430
        %v703 = vpop.f32.mrf.mxu0
        %v704 = vadd.f32 %v417, %v703
        %v705 = vpop.f32.mrf.mxu0
        %v706 = vadd.f32 %v422, %v705
        %707 = vdwg.mxu0
        %708 = vmatpush.bf16.msra.mxu0 %v677
        %709 = vmatpush.bf16.msra.mxu0 %v676
        %710 = vmatpush.bf16.msra.mxu0 %v675
        %711 = vmatpush.bf16.msra.mxu0 %v674
        %712 = vmatpush.bf16.msra.mxu0 %v673
        %713 = vmatpush.bf16.msra.mxu0 %v672
        %714 = vmatpush.bf16.msra.mxu0 %v671
        %715 = vmatpush.bf16.msra.mxu0 %v670
        %716 = vmatmul.bf16.gmra.mxu0 %v431
        %v717 = vpop.f32.mrf.mxu0
        %v718 = vadd.f32 %v704, %v717
        %v719 = vpop.f32.mrf.mxu0
        %v720 = vadd.f32 %v706, %v719
        %721 = vdwg.mxu0
        %v722 = vmax.f32 %v718, 0.0
        %v723 = vmax.f32 %v720, 0.0
        %v724 = vpack.c.bf16 %v723, %v722
        %s725 = scalar_lea.vmem %s3, 16
        %v726 = vld [vmem:[%s725] sm:$0xf]
        %v727 = vld [vmem:[%s725 + $0x4] sm:$0xf]
        %v728 = vld [vmem:[%s725 + $0x8] sm:$0xf]
        %v729 = vld [vmem:[%s725 + $0xc] sm:$0xf]
        %v734 = vunpack.c.l.b16 %v726
        %v735 = vunpack.c.l.b16 %v727
        %v736 = vunpack.c.l.b16 %v728
        %v737 = vunpack.c.l.b16 %v729
        %v738 = vpack.c.b16 %v735, %v734
        %v739 = vpack.c.b16 %v737, %v736
        %vm740 = vcmask 130048
        %v742 = vsel %vm740, %v738, 0
        %v745 = vsel %vm740, %v739, 0
        %747 = vmatpush.bf16.msra.mxu0 0
        %748 = vmatpush.bf16.msra.mxu0 0
        %749 = vmatpush.bf16.msra.mxu0 0
        %750 = vmatpush.bf16.msra.mxu0 0
        %751 = vmatpush.bf16.msra.mxu0 0
        %752 = vmatpush.bf16.msra.mxu0 0
        %753 = vmatpush.bf16.msra.mxu0 0
        %754 = vmatpush.bf16.msra.mxu0 %v724
        %755 = vmatmul.bf16.gmra.mxu0 %v742
        %v756 = vpop.f32.mrf.mxu0
        %v757 = vadd.f32 0.0, %v756
        %v758 = vpop.f32.mrf.mxu0
        %v759 = vadd.f32 0.0, %v758
        %760 = vmatmul.bf16.gmra.mxu0 %v745
        %v761 = vpop.f32.mrf.mxu0
        %v762 = vadd.f32 0.0, %v761
        %v763 = vpop.f32.mrf.mxu0
        %v764 = vadd.f32 0.0, %v763
        %765 = vdwg.mxu0
        %v770 = vunpack.c.l.b16 %v561
        %v771 = vunpack.c.l.b16 %v562
        %v772 = vunpack.c.l.b16 %v563
        %v773 = vunpack.c.l.b16 %v564
        %v774 = vpack.c.b16 %v771, %v770
        %v775 = vpack.c.b16 %v773, %v772
        %v777 = vsel %vm740, %v774, 0
        %v780 = vsel %vm740, %v775, 0
        %782 = vmatpush.bf16.msra.mxu0 0
        %783 = vmatpush.bf16.msra.mxu0 0
        %784 = vmatpush.bf16.msra.mxu0 0
        %785 = vmatpush.bf16.msra.mxu0 0
        %786 = vmatpush.bf16.msra.mxu0 0
        %787 = vmatpush.bf16.msra.mxu0 0
        %788 = vmatpush.bf16.msra.mxu0 0
        %789 = vmatpush.bf16.msra.mxu0 %v560
        %790 = vmatmul.bf16.gmra.mxu0 %v777
        %v791 = vpop.f32.mrf.mxu0
        %v792 = vadd.f32 %v757, %v791
        %v793 = vpop.f32.mrf.mxu0
        %v794 = vadd.f32 %v759, %v793
        %795 = vmatmul.bf16.gmra.mxu0 %v780
        %v796 = vpop.f32.mrf.mxu0
        %v797 = vadd.f32 %v762, %v796
        %v798 = vpop.f32.mrf.mxu0
        %v799 = vadd.f32 %v764, %v798
        %800 = vdwg.mxu0
        %s801 = scalar_lea.vmem %s329, 256
        %v802 = vld [vmem:[%s801] sm:$0xf]
        %v803 = vld [vmem:[%s801 + $0x4] sm:$0xf]
        %v804 = vld [vmem:[%s801 + $0x8] sm:$0xf]
        %v805 = vld [vmem:[%s801 + $0xc] sm:$0xf]
        %v806 = vld [vmem:[%s801 + $0x10] sm:$0xf]
        %v807 = vld [vmem:[%s801 + $0x14] sm:$0xf]
        %v808 = vld [vmem:[%s801 + $0x18] sm:$0xf]
        %v809 = vld [vmem:[%s801 + $0x1c] sm:$0xf]
        %v810 = vld [vmem:[%s801 + $0x20] sm:$0xf]
        %v811 = vld [vmem:[%s801 + $0x24] sm:$0xf]
        %v812 = vld [vmem:[%s801 + $0x28] sm:$0xf]
        %v813 = vld [vmem:[%s801 + $0x2c] sm:$0xf]
        %v814 = vld [vmem:[%s801 + $0x30] sm:$0xf]
        %v815 = vld [vmem:[%s801 + $0x34] sm:$0xf]
        %v816 = vld [vmem:[%s801 + $0x38] sm:$0xf]
        %v817 = vld [vmem:[%s801 + $0x3c] sm:$0xf]
        %v818 = vld [vmem:[%s801 + $0x40] sm:$0xf]
        %v819 = vld [vmem:[%s801 + $0x44] sm:$0xf]
        %v820 = vld [vmem:[%s801 + $0x48] sm:$0xf]
        %v821 = vld [vmem:[%s801 + $0x4c] sm:$0xf]
        %v822 = vld [vmem:[%s801 + $0x50] sm:$0xf]
        %v823 = vld [vmem:[%s801 + $0x54] sm:$0xf]
        %v824 = vld [vmem:[%s801 + $0x58] sm:$0xf]
        %v825 = vld [vmem:[%s801 + $0x5c] sm:$0xf]
        %v826 = vld [vmem:[%s801 + $0x60] sm:$0xf]
        %v827 = vld [vmem:[%s801 + $0x64] sm:$0xf]
        %v828 = vld [vmem:[%s801 + $0x68] sm:$0xf]
        %v829 = vld [vmem:[%s801 + $0x6c] sm:$0xf]
        %v830 = vld [vmem:[%s801 + $0x70] sm:$0xf]
        %v831 = vld [vmem:[%s801 + $0x74] sm:$0xf]
        %v832 = vld [vmem:[%s801 + $0x78] sm:$0xf]
        %v833 = vld [vmem:[%s801 + $0x7c] sm:$0xf]
        %v866 = vunpack.c.l.b16 %v802
        %v867 = vunpack.c.l.b16 %v803
        %v868 = vunpack.c.l.b16 %v804
        %v869 = vunpack.c.l.b16 %v805
        %v870 = vunpack.c.l.b16 %v806
        %v871 = vunpack.c.l.b16 %v807
        %v872 = vunpack.c.l.b16 %v808
        %v873 = vunpack.c.l.b16 %v809
        %v874 = vunpack.c.l.b16 %v810
        %v875 = vunpack.c.l.b16 %v811
        %v876 = vunpack.c.l.b16 %v812
        %v877 = vunpack.c.l.b16 %v813
        %v878 = vunpack.c.l.b16 %v814
        %v879 = vunpack.c.l.b16 %v815
        %v880 = vunpack.c.l.b16 %v816
        %v881 = vunpack.c.l.b16 %v817
        %v882 = vunpack.c.l.b16 %v818
        %v883 = vunpack.c.l.b16 %v819
        %v884 = vunpack.c.l.b16 %v820
        %v885 = vunpack.c.l.b16 %v821
        %v886 = vunpack.c.l.b16 %v822
        %v887 = vunpack.c.l.b16 %v823
        %v888 = vunpack.c.l.b16 %v824
        %v889 = vunpack.c.l.b16 %v825
        %v890 = vunpack.c.l.b16 %v826
        %v891 = vunpack.c.l.b16 %v827
        %v892 = vunpack.c.l.b16 %v828
        %v893 = vunpack.c.l.b16 %v829
        %v894 = vunpack.c.l.b16 %v830
        %v895 = vunpack.c.l.b16 %v831
        %v896 = vunpack.c.l.b16 %v832
        %v897 = vunpack.c.l.b16 %v833
        %v898 = vpack.c.b16 %v867, %v866
        %v899 = vpack.c.b16 %v869, %v868
        %v900 = vpack.c.b16 %v871, %v870
        %v901 = vpack.c.b16 %v873, %v872
        %v902 = vpack.c.b16 %v875, %v874
        %v903 = vpack.c.b16 %v877, %v876
        %v904 = vpack.c.b16 %v879, %v878
        %v905 = vpack.c.b16 %v881, %v880
        %v906 = vpack.c.b16 %v883, %v882
        %v907 = vpack.c.b16 %v885, %v884
        %v908 = vpack.c.b16 %v887, %v886
        %v909 = vpack.c.b16 %v889, %v888
        %v910 = vpack.c.b16 %v891, %v890
        %v911 = vpack.c.b16 %v893, %v892
        %v912 = vpack.c.b16 %v895, %v894
        %v913 = vpack.c.b16 %v897, %v896
        %930 = vmatpush.bf16.msra.mxu0 %v905
        %931 = vmatpush.bf16.msra.mxu0 %v904
        %932 = vmatpush.bf16.msra.mxu0 %v903
        %933 = vmatpush.bf16.msra.mxu0 %v902
        %934 = vmatpush.bf16.msra.mxu0 %v901
        %935 = vmatpush.bf16.msra.mxu0 %v900
        %936 = vmatpush.bf16.msra.mxu0 %v899
        %937 = vmatpush.bf16.msra.mxu0 %v898
        %938 = vmatmul.bf16.gmra.mxu0 %v430
        %v939 = vpop.f32.mrf.mxu0
        %v940 = vadd.f32 %v417, %v939
        %v941 = vpop.f32.mrf.mxu0
        %v942 = vadd.f32 %v422, %v941
        %943 = vdwg.mxu0
        %944 = vmatpush.bf16.msra.mxu0 %v913
        %945 = vmatpush.bf16.msra.mxu0 %v912
        %946 = vmatpush.bf16.msra.mxu0 %v911
        %947 = vmatpush.bf16.msra.mxu0 %v910
        %948 = vmatpush.bf16.msra.mxu0 %v909
        %949 = vmatpush.bf16.msra.mxu0 %v908
        %950 = vmatpush.bf16.msra.mxu0 %v907
        %951 = vmatpush.bf16.msra.mxu0 %v906
        %952 = vmatmul.bf16.gmra.mxu0 %v431
        %v953 = vpop.f32.mrf.mxu0
        %v954 = vadd.f32 %v940, %v953
        %v955 = vpop.f32.mrf.mxu0
        %v956 = vadd.f32 %v942, %v955
        %957 = vdwg.mxu0
        %v958 = vmax.f32 %v954, 0.0
        %v959 = vmax.f32 %v956, 0.0
        %v960 = vpack.c.bf16 %v959, %v958
        %s961 = scalar_lea.vmem %s3, 32
        %v962 = vld [vmem:[%s961] sm:$0xf]
        %v963 = vld [vmem:[%s961 + $0x4] sm:$0xf]
        %v964 = vld [vmem:[%s961 + $0x8] sm:$0xf]
        %v965 = vld [vmem:[%s961 + $0xc] sm:$0xf]
        %v970 = vunpack.c.l.b16 %v962
        %v971 = vunpack.c.l.b16 %v963
        %v972 = vunpack.c.l.b16 %v964
        %v973 = vunpack.c.l.b16 %v965
        %v974 = vpack.c.b16 %v971, %v970
        %v975 = vpack.c.b16 %v973, %v972
        %v977 = vsel %vm740, %v974, 0
        %v980 = vsel %vm740, %v975, 0
        %982 = vmatpush.bf16.msra.mxu0 0
        %983 = vmatpush.bf16.msra.mxu0 0
        %984 = vmatpush.bf16.msra.mxu0 0
        %985 = vmatpush.bf16.msra.mxu0 0
        %986 = vmatpush.bf16.msra.mxu0 0
        %987 = vmatpush.bf16.msra.mxu0 0
        %988 = vmatpush.bf16.msra.mxu0 0
        %989 = vmatpush.bf16.msra.mxu0 %v960
        %990 = vmatmul.bf16.gmra.mxu0 %v977
        %v991 = vpop.f32.mrf.mxu0
        %v992 = vadd.f32 0.0, %v991
        %v993 = vpop.f32.mrf.mxu0
        %v994 = vadd.f32 0.0, %v993
        %995 = vmatmul.bf16.gmra.mxu0 %v980
        %v996 = vpop.f32.mrf.mxu0
        %v997 = vadd.f32 0.0, %v996
        %v998 = vpop.f32.mrf.mxu0
        %v999 = vadd.f32 0.0, %v998
        %1000 = vdwg.mxu0
        %v1001 = vadd.f32 %v792, %v992
        %v1002 = vadd.f32 %v794, %v994
        %v1003 = vadd.f32 %v797, %v997
        %v1004 = vadd.f32 %v799, %v999
        %s1005 = scalar_lea.vmem %s329, 384
        %v1006 = vld [vmem:[%s1005] sm:$0xf]
        %v1007 = vld [vmem:[%s1005 + $0x4] sm:$0xf]
        %v1008 = vld [vmem:[%s1005 + $0x8] sm:$0xf]
        %v1009 = vld [vmem:[%s1005 + $0xc] sm:$0xf]
        %v1010 = vld [vmem:[%s1005 + $0x10] sm:$0xf]
        %v1011 = vld [vmem:[%s1005 + $0x14] sm:$0xf]
        %v1012 = vld [vmem:[%s1005 + $0x18] sm:$0xf]
        %v1013 = vld [vmem:[%s1005 + $0x1c] sm:$0xf]
        %v1014 = vld [vmem:[%s1005 + $0x20] sm:$0xf]
        %v1015 = vld [vmem:[%s1005 + $0x24] sm:$0xf]
        %v1016 = vld [vmem:[%s1005 + $0x28] sm:$0xf]
        %v1017 = vld [vmem:[%s1005 + $0x2c] sm:$0xf]
        %v1018 = vld [vmem:[%s1005 + $0x30] sm:$0xf]
        %v1019 = vld [vmem:[%s1005 + $0x34] sm:$0xf]
        %v1020 = vld [vmem:[%s1005 + $0x38] sm:$0xf]
        %v1021 = vld [vmem:[%s1005 + $0x3c] sm:$0xf]
        %v1022 = vld [vmem:[%s1005 + $0x40] sm:$0xf]
        %v1023 = vld [vmem:[%s1005 + $0x44] sm:$0xf]
        %v1024 = vld [vmem:[%s1005 + $0x48] sm:$0xf]
        %v1025 = vld [vmem:[%s1005 + $0x4c] sm:$0xf]
        %v1026 = vld [vmem:[%s1005 + $0x50] sm:$0xf]
        %v1027 = vld [vmem:[%s1005 + $0x54] sm:$0xf]
        %v1028 = vld [vmem:[%s1005 + $0x58] sm:$0xf]
        %v1029 = vld [vmem:[%s1005 + $0x5c] sm:$0xf]
        %v1030 = vld [vmem:[%s1005 + $0x60] sm:$0xf]
        %v1031 = vld [vmem:[%s1005 + $0x64] sm:$0xf]
        %v1032 = vld [vmem:[%s1005 + $0x68] sm:$0xf]
        %v1033 = vld [vmem:[%s1005 + $0x6c] sm:$0xf]
        %v1034 = vld [vmem:[%s1005 + $0x70] sm:$0xf]
        %v1035 = vld [vmem:[%s1005 + $0x74] sm:$0xf]
        %v1036 = vld [vmem:[%s1005 + $0x78] sm:$0xf]
        %v1037 = vld [vmem:[%s1005 + $0x7c] sm:$0xf]
        %v1070 = vunpack.c.l.b16 %v1006
        %v1071 = vunpack.c.l.b16 %v1007
        %v1072 = vunpack.c.l.b16 %v1008
        %v1073 = vunpack.c.l.b16 %v1009
        %v1074 = vunpack.c.l.b16 %v1010
        %v1075 = vunpack.c.l.b16 %v1011
        %v1076 = vunpack.c.l.b16 %v1012
        %v1077 = vunpack.c.l.b16 %v1013
        %v1078 = vunpack.c.l.b16 %v1014
        %v1079 = vunpack.c.l.b16 %v1015
        %v1080 = vunpack.c.l.b16 %v1016
        %v1081 = vunpack.c.l.b16 %v1017
        %v1082 = vunpack.c.l.b16 %v1018
        %v1083 = vunpack.c.l.b16 %v1019
        %v1084 = vunpack.c.l.b16 %v1020
        %v1085 = vunpack.c.l.b16 %v1021
        %v1086 = vunpack.c.l.b16 %v1022
        %v1087 = vunpack.c.l.b16 %v1023
        %v1088 = vunpack.c.l.b16 %v1024
        %v1089 = vunpack.c.l.b16 %v1025
        %v1090 = vunpack.c.l.b16 %v1026
        %v1091 = vunpack.c.l.b16 %v1027
        %v1092 = vunpack.c.l.b16 %v1028
        %v1093 = vunpack.c.l.b16 %v1029
        %v1094 = vunpack.c.l.b16 %v1030
        %v1095 = vunpack.c.l.b16 %v1031
        %v1096 = vunpack.c.l.b16 %v1032
        %v1097 = vunpack.c.l.b16 %v1033
        %v1098 = vunpack.c.l.b16 %v1034
        %v1099 = vunpack.c.l.b16 %v1035
        %v1100 = vunpack.c.l.b16 %v1036
        %v1101 = vunpack.c.l.b16 %v1037
        %v1102 = vpack.c.b16 %v1071, %v1070
        %v1103 = vpack.c.b16 %v1073, %v1072
        %v1104 = vpack.c.b16 %v1075, %v1074
        %v1105 = vpack.c.b16 %v1077, %v1076
        %v1106 = vpack.c.b16 %v1079, %v1078
        %v1107 = vpack.c.b16 %v1081, %v1080
        %v1108 = vpack.c.b16 %v1083, %v1082
        %v1109 = vpack.c.b16 %v1085, %v1084
        %v1110 = vpack.c.b16 %v1087, %v1086
        %v1111 = vpack.c.b16 %v1089, %v1088
        %v1112 = vpack.c.b16 %v1091, %v1090
        %v1113 = vpack.c.b16 %v1093, %v1092
        %v1114 = vpack.c.b16 %v1095, %v1094
        %v1115 = vpack.c.b16 %v1097, %v1096
        %v1116 = vpack.c.b16 %v1099, %v1098
        %v1117 = vpack.c.b16 %v1101, %v1100
        %1134 = vmatpush.bf16.msra.mxu0 %v1109
        %1135 = vmatpush.bf16.msra.mxu0 %v1108
        %1136 = vmatpush.bf16.msra.mxu0 %v1107
        %1137 = vmatpush.bf16.msra.mxu0 %v1106
        %1138 = vmatpush.bf16.msra.mxu0 %v1105
        %1139 = vmatpush.bf16.msra.mxu0 %v1104
        %1140 = vmatpush.bf16.msra.mxu0 %v1103
        %1141 = vmatpush.bf16.msra.mxu0 %v1102
        %1142 = vmatmul.bf16.gmra.mxu0 %v430
        %v1143 = vpop.f32.mrf.mxu0
        %v1144 = vadd.f32 %v417, %v1143
        %v1145 = vpop.f32.mrf.mxu0
        %v1146 = vadd.f32 %v422, %v1145
        %1147 = vdwg.mxu0
        %1148 = vmatpush.bf16.msra.mxu0 %v1117
        %1149 = vmatpush.bf16.msra.mxu0 %v1116
        %1150 = vmatpush.bf16.msra.mxu0 %v1115
        %1151 = vmatpush.bf16.msra.mxu0 %v1114
        %1152 = vmatpush.bf16.msra.mxu0 %v1113
        %1153 = vmatpush.bf16.msra.mxu0 %v1112
        %1154 = vmatpush.bf16.msra.mxu0 %v1111
        %1155 = vmatpush.bf16.msra.mxu0 %v1110
        %1156 = vmatmul.bf16.gmra.mxu0 %v431
        %v1157 = vpop.f32.mrf.mxu0
        %v1158 = vadd.f32 %v1144, %v1157
        %v1159 = vpop.f32.mrf.mxu0
        %v1160 = vadd.f32 %v1146, %v1159
        %1161 = vdwg.mxu0
        %v1162 = vmax.f32 %v1158, 0.0
        %v1163 = vmax.f32 %v1160, 0.0
        %v1164 = vpack.c.bf16 %v1163, %v1162
        %s1165 = scalar_lea.vmem %s3, 48
        %v1166 = vld [vmem:[%s1165] sm:$0xf]
        %v1167 = vld [vmem:[%s1165 + $0x4] sm:$0xf]
        %v1168 = vld [vmem:[%s1165 + $0x8] sm:$0xf]
        %v1169 = vld [vmem:[%s1165 + $0xc] sm:$0xf]
        %v1174 = vunpack.c.l.b16 %v1166
        %v1175 = vunpack.c.l.b16 %v1167
        %v1176 = vunpack.c.l.b16 %v1168
        %v1177 = vunpack.c.l.b16 %v1169
        %v1178 = vpack.c.b16 %v1175, %v1174
        %v1179 = vpack.c.b16 %v1177, %v1176
        %v1181 = vsel %vm740, %v1178, 0
        %v1184 = vsel %vm740, %v1179, 0
        %1186 = vmatpush.bf16.msra.mxu0 0
        %1187 = vmatpush.bf16.msra.mxu0 0
        %1188 = vmatpush.bf16.msra.mxu0 0
        %1189 = vmatpush.bf16.msra.mxu0 0
        %1190 = vmatpush.bf16.msra.mxu0 0
        %1191 = vmatpush.bf16.msra.mxu0 0
        %1192 = vmatpush.bf16.msra.mxu0 0
        %1193 = vmatpush.bf16.msra.mxu0 %v1164
        %1194 = vmatmul.bf16.gmra.mxu0 %v1181
        %v1195 = vpop.f32.mrf.mxu0
        %v1196 = vadd.f32 0.0, %v1195
        %v1197 = vpop.f32.mrf.mxu0
        %v1198 = vadd.f32 0.0, %v1197
        %1199 = vmatmul.bf16.gmra.mxu0 %v1184
        %v1200 = vpop.f32.mrf.mxu0
        %v1201 = vadd.f32 0.0, %v1200
        %v1202 = vpop.f32.mrf.mxu0
        %v1203 = vadd.f32 0.0, %v1202
        %1204 = vdwg.mxu0
        %v1205 = vadd.f32 %v1001, %v1196
        %v1206 = vadd.f32 %v1002, %v1198
        %v1207 = vadd.f32 %v1003, %v1201
        %v1208 = vadd.f32 %v1004, %v1203
        %s1209 = scalar_lea.vmem %s329, 512
        %v1210 = vld [vmem:[%s1209] sm:$0xf]
        %v1211 = vld [vmem:[%s1209 + $0x4] sm:$0xf]
        %v1212 = vld [vmem:[%s1209 + $0x8] sm:$0xf]
        %v1213 = vld [vmem:[%s1209 + $0xc] sm:$0xf]
        %v1214 = vld [vmem:[%s1209 + $0x10] sm:$0xf]
        %v1215 = vld [vmem:[%s1209 + $0x14] sm:$0xf]
        %v1216 = vld [vmem:[%s1209 + $0x18] sm:$0xf]
        %v1217 = vld [vmem:[%s1209 + $0x1c] sm:$0xf]
        %v1218 = vld [vmem:[%s1209 + $0x20] sm:$0xf]
        %v1219 = vld [vmem:[%s1209 + $0x24] sm:$0xf]
        %v1220 = vld [vmem:[%s1209 + $0x28] sm:$0xf]
        %v1221 = vld [vmem:[%s1209 + $0x2c] sm:$0xf]
        %v1222 = vld [vmem:[%s1209 + $0x30] sm:$0xf]
        %v1223 = vld [vmem:[%s1209 + $0x34] sm:$0xf]
        %v1224 = vld [vmem:[%s1209 + $0x38] sm:$0xf]
        %v1225 = vld [vmem:[%s1209 + $0x3c] sm:$0xf]
        %v1226 = vld [vmem:[%s1209 + $0x40] sm:$0xf]
        %v1227 = vld [vmem:[%s1209 + $0x44] sm:$0xf]
        %v1228 = vld [vmem:[%s1209 + $0x48] sm:$0xf]
        %v1229 = vld [vmem:[%s1209 + $0x4c] sm:$0xf]
        %v1230 = vld [vmem:[%s1209 + $0x50] sm:$0xf]
        %v1231 = vld [vmem:[%s1209 + $0x54] sm:$0xf]
        %v1232 = vld [vmem:[%s1209 + $0x58] sm:$0xf]
        %v1233 = vld [vmem:[%s1209 + $0x5c] sm:$0xf]
        %v1234 = vld [vmem:[%s1209 + $0x60] sm:$0xf]
        %v1235 = vld [vmem:[%s1209 + $0x64] sm:$0xf]
        %v1236 = vld [vmem:[%s1209 + $0x68] sm:$0xf]
        %v1237 = vld [vmem:[%s1209 + $0x6c] sm:$0xf]
        %v1238 = vld [vmem:[%s1209 + $0x70] sm:$0xf]
        %v1239 = vld [vmem:[%s1209 + $0x74] sm:$0xf]
        %v1240 = vld [vmem:[%s1209 + $0x78] sm:$0xf]
        %v1241 = vld [vmem:[%s1209 + $0x7c] sm:$0xf]
        %v1274 = vunpack.c.l.b16 %v1210
        %v1275 = vunpack.c.l.b16 %v1211
        %v1276 = vunpack.c.l.b16 %v1212
        %v1277 = vunpack.c.l.b16 %v1213
        %v1278 = vunpack.c.l.b16 %v1214
        %v1279 = vunpack.c.l.b16 %v1215
        %v1280 = vunpack.c.l.b16 %v1216
        %v1281 = vunpack.c.l.b16 %v1217
        %v1282 = vunpack.c.l.b16 %v1218
        %v1283 = vunpack.c.l.b16 %v1219
        %v1284 = vunpack.c.l.b16 %v1220
        %v1285 = vunpack.c.l.b16 %v1221
        %v1286 = vunpack.c.l.b16 %v1222
        %v1287 = vunpack.c.l.b16 %v1223
        %v1288 = vunpack.c.l.b16 %v1224
        %v1289 = vunpack.c.l.b16 %v1225
        %v1290 = vunpack.c.l.b16 %v1226
        %v1291 = vunpack.c.l.b16 %v1227
        %v1292 = vunpack.c.l.b16 %v1228
        %v1293 = vunpack.c.l.b16 %v1229
        %v1294 = vunpack.c.l.b16 %v1230
        %v1295 = vunpack.c.l.b16 %v1231
        %v1296 = vunpack.c.l.b16 %v1232
        %v1297 = vunpack.c.l.b16 %v1233
        %v1298 = vunpack.c.l.b16 %v1234
        %v1299 = vunpack.c.l.b16 %v1235
        %v1300 = vunpack.c.l.b16 %v1236
        %v1301 = vunpack.c.l.b16 %v1237
        %v1302 = vunpack.c.l.b16 %v1238
        %v1303 = vunpack.c.l.b16 %v1239
        %v1304 = vunpack.c.l.b16 %v1240
        %v1305 = vunpack.c.l.b16 %v1241
        %v1306 = vpack.c.b16 %v1275, %v1274
        %v1307 = vpack.c.b16 %v1277, %v1276
        %v1308 = vpack.c.b16 %v1279, %v1278
        %v1309 = vpack.c.b16 %v1281, %v1280
        %v1310 = vpack.c.b16 %v1283, %v1282
        %v1311 = vpack.c.b16 %v1285, %v1284
        %v1312 = vpack.c.b16 %v1287, %v1286
        %v1313 = vpack.c.b16 %v1289, %v1288
        %v1314 = vpack.c.b16 %v1291, %v1290
        %v1315 = vpack.c.b16 %v1293, %v1292
        %v1316 = vpack.c.b16 %v1295, %v1294
        %v1317 = vpack.c.b16 %v1297, %v1296
        %v1318 = vpack.c.b16 %v1299, %v1298
        %v1319 = vpack.c.b16 %v1301, %v1300
        %v1320 = vpack.c.b16 %v1303, %v1302
        %v1321 = vpack.c.b16 %v1305, %v1304
        %1338 = vmatpush.bf16.msra.mxu0 %v1313
        %1339 = vmatpush.bf16.msra.mxu0 %v1312
        %1340 = vmatpush.bf16.msra.mxu0 %v1311
        %1341 = vmatpush.bf16.msra.mxu0 %v1310
        %1342 = vmatpush.bf16.msra.mxu0 %v1309
        %1343 = vmatpush.bf16.msra.mxu0 %v1308
        %1344 = vmatpush.bf16.msra.mxu0 %v1307
        %1345 = vmatpush.bf16.msra.mxu0 %v1306
        %1346 = vmatmul.bf16.gmra.mxu0 %v430
        %v1347 = vpop.f32.mrf.mxu0
        %v1348 = vadd.f32 %v417, %v1347
        %v1349 = vpop.f32.mrf.mxu0
        %v1350 = vadd.f32 %v422, %v1349
        %1351 = vdwg.mxu0
        %1352 = vmatpush.bf16.msra.mxu0 %v1321
        %1353 = vmatpush.bf16.msra.mxu0 %v1320
        %1354 = vmatpush.bf16.msra.mxu0 %v1319
        %1355 = vmatpush.bf16.msra.mxu0 %v1318
        %1356 = vmatpush.bf16.msra.mxu0 %v1317
        %1357 = vmatpush.bf16.msra.mxu0 %v1316
        %1358 = vmatpush.bf16.msra.mxu0 %v1315
        %1359 = vmatpush.bf16.msra.mxu0 %v1314
        %1360 = vmatmul.bf16.gmra.mxu0 %v431
        %v1361 = vpop.f32.mrf.mxu0
        %v1362 = vadd.f32 %v1348, %v1361
        %v1363 = vpop.f32.mrf.mxu0
        %v1364 = vadd.f32 %v1350, %v1363
        %1365 = vdwg.mxu0
        %v1366 = vmax.f32 %v1362, 0.0
        %v1367 = vmax.f32 %v1364, 0.0
        %v1368 = vpack.c.bf16 %v1367, %v1366
        %s1369 = scalar_lea.vmem %s3, 64
        %v1370 = vld [vmem:[%s1369] sm:$0xf]
        %v1371 = vld [vmem:[%s1369 + $0x4] sm:$0xf]
        %v1372 = vld [vmem:[%s1369 + $0x8] sm:$0xf]
        %v1373 = vld [vmem:[%s1369 + $0xc] sm:$0xf]
        %v1378 = vunpack.c.l.b16 %v1370
        %v1379 = vunpack.c.l.b16 %v1371
        %v1380 = vunpack.c.l.b16 %v1372
        %v1381 = vunpack.c.l.b16 %v1373
        %v1382 = vpack.c.b16 %v1379, %v1378
        %v1383 = vpack.c.b16 %v1381, %v1380
        %v1385 = vsel %vm740, %v1382, 0
        %v1388 = vsel %vm740, %v1383, 0
        %1390 = vmatpush.bf16.msra.mxu0 0
        %1391 = vmatpush.bf16.msra.mxu0 0
        %1392 = vmatpush.bf16.msra.mxu0 0
        %1393 = vmatpush.bf16.msra.mxu0 0
        %1394 = vmatpush.bf16.msra.mxu0 0
        %1395 = vmatpush.bf16.msra.mxu0 0
        %1396 = vmatpush.bf16.msra.mxu0 0
        %1397 = vmatpush.bf16.msra.mxu0 %v1368
        %1398 = vmatmul.bf16.gmra.mxu0 %v1385
        %v1399 = vpop.f32.mrf.mxu0
        %v1400 = vadd.f32 0.0, %v1399
        %v1401 = vpop.f32.mrf.mxu0
        %v1402 = vadd.f32 0.0, %v1401
        %1403 = vmatmul.bf16.gmra.mxu0 %v1388
        %v1404 = vpop.f32.mrf.mxu0
        %v1405 = vadd.f32 0.0, %v1404
        %v1406 = vpop.f32.mrf.mxu0
        %v1407 = vadd.f32 0.0, %v1406
        %1408 = vdwg.mxu0
        %v1409 = vadd.f32 %v1205, %v1400
        %v1410 = vadd.f32 %v1206, %v1402
        %v1411 = vadd.f32 %v1207, %v1405
        %v1412 = vadd.f32 %v1208, %v1407
        %s1413 = scalar_lea.vmem %s329, 640
        %v1414 = vld [vmem:[%s1413] sm:$0xf]
        %v1415 = vld [vmem:[%s1413 + $0x4] sm:$0xf]
        %v1416 = vld [vmem:[%s1413 + $0x8] sm:$0xf]
        %v1417 = vld [vmem:[%s1413 + $0xc] sm:$0xf]
        %v1418 = vld [vmem:[%s1413 + $0x10] sm:$0xf]
        %v1419 = vld [vmem:[%s1413 + $0x14] sm:$0xf]
        %v1420 = vld [vmem:[%s1413 + $0x18] sm:$0xf]
        %v1421 = vld [vmem:[%s1413 + $0x1c] sm:$0xf]
        %v1422 = vld [vmem:[%s1413 + $0x20] sm:$0xf]
        %v1423 = vld [vmem:[%s1413 + $0x24] sm:$0xf]
        %v1424 = vld [vmem:[%s1413 + $0x28] sm:$0xf]
        %v1425 = vld [vmem:[%s1413 + $0x2c] sm:$0xf]
        %v1426 = vld [vmem:[%s1413 + $0x30] sm:$0xf]
        %v1427 = vld [vmem:[%s1413 + $0x34] sm:$0xf]
        %v1428 = vld [vmem:[%s1413 + $0x38] sm:$0xf]
        %v1429 = vld [vmem:[%s1413 + $0x3c] sm:$0xf]
        %v1430 = vld [vmem:[%s1413 + $0x40] sm:$0xf]
        %v1431 = vld [vmem:[%s1413 + $0x44] sm:$0xf]
        %v1432 = vld [vmem:[%s1413 + $0x48] sm:$0xf]
        %v1433 = vld [vmem:[%s1413 + $0x4c] sm:$0xf]
        %v1434 = vld [vmem:[%s1413 + $0x50] sm:$0xf]
        %v1435 = vld [vmem:[%s1413 + $0x54] sm:$0xf]
        %v1436 = vld [vmem:[%s1413 + $0x58] sm:$0xf]
        %v1437 = vld [vmem:[%s1413 + $0x5c] sm:$0xf]
        %v1438 = vld [vmem:[%s1413 + $0x60] sm:$0xf]
        %v1439 = vld [vmem:[%s1413 + $0x64] sm:$0xf]
        %v1440 = vld [vmem:[%s1413 + $0x68] sm:$0xf]
        %v1441 = vld [vmem:[%s1413 + $0x6c] sm:$0xf]
        %v1442 = vld [vmem:[%s1413 + $0x70] sm:$0xf]
        %v1443 = vld [vmem:[%s1413 + $0x74] sm:$0xf]
        %v1444 = vld [vmem:[%s1413 + $0x78] sm:$0xf]
        %v1445 = vld [vmem:[%s1413 + $0x7c] sm:$0xf]
        %v1478 = vunpack.c.l.b16 %v1414
        %v1479 = vunpack.c.l.b16 %v1415
        %v1480 = vunpack.c.l.b16 %v1416
        %v1481 = vunpack.c.l.b16 %v1417
        %v1482 = vunpack.c.l.b16 %v1418
        %v1483 = vunpack.c.l.b16 %v1419
        %v1484 = vunpack.c.l.b16 %v1420
        %v1485 = vunpack.c.l.b16 %v1421
        %v1486 = vunpack.c.l.b16 %v1422
        %v1487 = vunpack.c.l.b16 %v1423
        %v1488 = vunpack.c.l.b16 %v1424
        %v1489 = vunpack.c.l.b16 %v1425
        %v1490 = vunpack.c.l.b16 %v1426
        %v1491 = vunpack.c.l.b16 %v1427
        %v1492 = vunpack.c.l.b16 %v1428
        %v1493 = vunpack.c.l.b16 %v1429
        %v1494 = vunpack.c.l.b16 %v1430
        %v1495 = vunpack.c.l.b16 %v1431
        %v1496 = vunpack.c.l.b16 %v1432
        %v1497 = vunpack.c.l.b16 %v1433
        %v1498 = vunpack.c.l.b16 %v1434
        %v1499 = vunpack.c.l.b16 %v1435
        %v1500 = vunpack.c.l.b16 %v1436
        %v1501 = vunpack.c.l.b16 %v1437
        %v1502 = vunpack.c.l.b16 %v1438
        %v1503 = vunpack.c.l.b16 %v1439
        %v1504 = vunpack.c.l.b16 %v1440
        %v1505 = vunpack.c.l.b16 %v1441
        %v1506 = vunpack.c.l.b16 %v1442
        %v1507 = vunpack.c.l.b16 %v1443
        %v1508 = vunpack.c.l.b16 %v1444
        %v1509 = vunpack.c.l.b16 %v1445
        %v1510 = vpack.c.b16 %v1479, %v1478
        %v1511 = vpack.c.b16 %v1481, %v1480
        %v1512 = vpack.c.b16 %v1483, %v1482
        %v1513 = vpack.c.b16 %v1485, %v1484
        %v1514 = vpack.c.b16 %v1487, %v1486
        %v1515 = vpack.c.b16 %v1489, %v1488
        %v1516 = vpack.c.b16 %v1491, %v1490
        %v1517 = vpack.c.b16 %v1493, %v1492
        %v1518 = vpack.c.b16 %v1495, %v1494
        %v1519 = vpack.c.b16 %v1497, %v1496
        %v1520 = vpack.c.b16 %v1499, %v1498
        %v1521 = vpack.c.b16 %v1501, %v1500
        %v1522 = vpack.c.b16 %v1503, %v1502
        %v1523 = vpack.c.b16 %v1505, %v1504
        %v1524 = vpack.c.b16 %v1507, %v1506
        %v1525 = vpack.c.b16 %v1509, %v1508
        %1542 = vmatpush.bf16.msra.mxu0 %v1517
        %1543 = vmatpush.bf16.msra.mxu0 %v1516
        %1544 = vmatpush.bf16.msra.mxu0 %v1515
        %1545 = vmatpush.bf16.msra.mxu0 %v1514
        %1546 = vmatpush.bf16.msra.mxu0 %v1513
        %1547 = vmatpush.bf16.msra.mxu0 %v1512
        %1548 = vmatpush.bf16.msra.mxu0 %v1511
        %1549 = vmatpush.bf16.msra.mxu0 %v1510
        %1550 = vmatmul.bf16.gmra.mxu0 %v430
        %v1551 = vpop.f32.mrf.mxu0
        %v1552 = vadd.f32 %v417, %v1551
        %v1553 = vpop.f32.mrf.mxu0
        %v1554 = vadd.f32 %v422, %v1553
        %1555 = vdwg.mxu0
        %1556 = vmatpush.bf16.msra.mxu0 %v1525
        %1557 = vmatpush.bf16.msra.mxu0 %v1524
        %1558 = vmatpush.bf16.msra.mxu0 %v1523
        %1559 = vmatpush.bf16.msra.mxu0 %v1522
        %1560 = vmatpush.bf16.msra.mxu0 %v1521
        %1561 = vmatpush.bf16.msra.mxu0 %v1520
        %1562 = vmatpush.bf16.msra.mxu0 %v1519
        %1563 = vmatpush.bf16.msra.mxu0 %v1518
        %1564 = vmatmul.bf16.gmra.mxu0 %v431
        %v1565 = vpop.f32.mrf.mxu0
        %v1566 = vadd.f32 %v1552, %v1565
        %v1567 = vpop.f32.mrf.mxu0
        %v1568 = vadd.f32 %v1554, %v1567
        %1569 = vdwg.mxu0
        %v1570 = vmax.f32 %v1566, 0.0
        %v1571 = vmax.f32 %v1568, 0.0
        %v1572 = vpack.c.bf16 %v1571, %v1570
        %s1573 = scalar_lea.vmem %s3, 80
        %v1574 = vld [vmem:[%s1573] sm:$0xf]
        %v1575 = vld [vmem:[%s1573 + $0x4] sm:$0xf]
        %v1576 = vld [vmem:[%s1573 + $0x8] sm:$0xf]
        %v1577 = vld [vmem:[%s1573 + $0xc] sm:$0xf]
        %v1582 = vunpack.c.l.b16 %v1574
        %v1583 = vunpack.c.l.b16 %v1575
        %v1584 = vunpack.c.l.b16 %v1576
        %v1585 = vunpack.c.l.b16 %v1577
        %v1586 = vpack.c.b16 %v1583, %v1582
        %v1587 = vpack.c.b16 %v1585, %v1584
        %v1589 = vsel %vm740, %v1586, 0
        %v1592 = vsel %vm740, %v1587, 0
        %1594 = vmatpush.bf16.msra.mxu0 0
        %1595 = vmatpush.bf16.msra.mxu0 0
        %1596 = vmatpush.bf16.msra.mxu0 0
        %1597 = vmatpush.bf16.msra.mxu0 0
        %1598 = vmatpush.bf16.msra.mxu0 0
        %1599 = vmatpush.bf16.msra.mxu0 0
        %1600 = vmatpush.bf16.msra.mxu0 0
        %1601 = vmatpush.bf16.msra.mxu0 %v1572
        %1602 = vmatmul.bf16.gmra.mxu0 %v1589
        %v1603 = vpop.f32.mrf.mxu0
        %v1604 = vadd.f32 0.0, %v1603
        %v1605 = vpop.f32.mrf.mxu0
        %v1606 = vadd.f32 0.0, %v1605
        %1607 = vmatmul.bf16.gmra.mxu0 %v1592
        %v1608 = vpop.f32.mrf.mxu0
        %v1609 = vadd.f32 0.0, %v1608
        %v1610 = vpop.f32.mrf.mxu0
        %v1611 = vadd.f32 0.0, %v1610
        %1612 = vdwg.mxu0
        %v1613 = vadd.f32 %v1409, %v1604
        %v1614 = vadd.f32 %v1410, %v1606
        %v1615 = vadd.f32 %v1411, %v1609
        %v1616 = vadd.f32 %v1412, %v1611
        %s1617 = scalar_lea.vmem %s329, 768
        %v1618 = vld [vmem:[%s1617] sm:$0xf]
        %v1619 = vld [vmem:[%s1617 + $0x4] sm:$0xf]
        %v1620 = vld [vmem:[%s1617 + $0x8] sm:$0xf]
        %v1621 = vld [vmem:[%s1617 + $0xc] sm:$0xf]
        %v1622 = vld [vmem:[%s1617 + $0x10] sm:$0xf]
        %v1623 = vld [vmem:[%s1617 + $0x14] sm:$0xf]
        %v1624 = vld [vmem:[%s1617 + $0x18] sm:$0xf]
        %v1625 = vld [vmem:[%s1617 + $0x1c] sm:$0xf]
        %v1626 = vld [vmem:[%s1617 + $0x20] sm:$0xf]
        %v1627 = vld [vmem:[%s1617 + $0x24] sm:$0xf]
        %v1628 = vld [vmem:[%s1617 + $0x28] sm:$0xf]
        %v1629 = vld [vmem:[%s1617 + $0x2c] sm:$0xf]
        %v1630 = vld [vmem:[%s1617 + $0x30] sm:$0xf]
        %v1631 = vld [vmem:[%s1617 + $0x34] sm:$0xf]
        %v1632 = vld [vmem:[%s1617 + $0x38] sm:$0xf]
        %v1633 = vld [vmem:[%s1617 + $0x3c] sm:$0xf]
        %v1634 = vld [vmem:[%s1617 + $0x40] sm:$0xf]
        %v1635 = vld [vmem:[%s1617 + $0x44] sm:$0xf]
        %v1636 = vld [vmem:[%s1617 + $0x48] sm:$0xf]
        %v1637 = vld [vmem:[%s1617 + $0x4c] sm:$0xf]
        %v1638 = vld [vmem:[%s1617 + $0x50] sm:$0xf]
        %v1639 = vld [vmem:[%s1617 + $0x54] sm:$0xf]
        %v1640 = vld [vmem:[%s1617 + $0x58] sm:$0xf]
        %v1641 = vld [vmem:[%s1617 + $0x5c] sm:$0xf]
        %v1642 = vld [vmem:[%s1617 + $0x60] sm:$0xf]
        %v1643 = vld [vmem:[%s1617 + $0x64] sm:$0xf]
        %v1644 = vld [vmem:[%s1617 + $0x68] sm:$0xf]
        %v1645 = vld [vmem:[%s1617 + $0x6c] sm:$0xf]
        %v1646 = vld [vmem:[%s1617 + $0x70] sm:$0xf]
        %v1647 = vld [vmem:[%s1617 + $0x74] sm:$0xf]
        %v1648 = vld [vmem:[%s1617 + $0x78] sm:$0xf]
        %v1649 = vld [vmem:[%s1617 + $0x7c] sm:$0xf]
        %v1682 = vunpack.c.l.b16 %v1618
        %v1683 = vunpack.c.l.b16 %v1619
        %v1684 = vunpack.c.l.b16 %v1620
        %v1685 = vunpack.c.l.b16 %v1621
        %v1686 = vunpack.c.l.b16 %v1622
        %v1687 = vunpack.c.l.b16 %v1623
        %v1688 = vunpack.c.l.b16 %v1624
        %v1689 = vunpack.c.l.b16 %v1625
        %v1690 = vunpack.c.l.b16 %v1626
        %v1691 = vunpack.c.l.b16 %v1627
        %v1692 = vunpack.c.l.b16 %v1628
        %v1693 = vunpack.c.l.b16 %v1629
        %v1694 = vunpack.c.l.b16 %v1630
        %v1695 = vunpack.c.l.b16 %v1631
        %v1696 = vunpack.c.l.b16 %v1632
        %v1697 = vunpack.c.l.b16 %v1633
        %v1698 = vunpack.c.l.b16 %v1634
        %v1699 = vunpack.c.l.b16 %v1635
        %v1700 = vunpack.c.l.b16 %v1636
        %v1701 = vunpack.c.l.b16 %v1637
        %v1702 = vunpack.c.l.b16 %v1638
        %v1703 = vunpack.c.l.b16 %v1639
        %v1704 = vunpack.c.l.b16 %v1640
        %v1705 = vunpack.c.l.b16 %v1641
        %v1706 = vunpack.c.l.b16 %v1642
        %v1707 = vunpack.c.l.b16 %v1643
        %v1708 = vunpack.c.l.b16 %v1644
        %v1709 = vunpack.c.l.b16 %v1645
        %v1710 = vunpack.c.l.b16 %v1646
        %v1711 = vunpack.c.l.b16 %v1647
        %v1712 = vunpack.c.l.b16 %v1648
        %v1713 = vunpack.c.l.b16 %v1649
        %v1714 = vpack.c.b16 %v1683, %v1682
        %v1715 = vpack.c.b16 %v1685, %v1684
        %v1716 = vpack.c.b16 %v1687, %v1686
        %v1717 = vpack.c.b16 %v1689, %v1688
        %v1718 = vpack.c.b16 %v1691, %v1690
        %v1719 = vpack.c.b16 %v1693, %v1692
        %v1720 = vpack.c.b16 %v1695, %v1694
        %v1721 = vpack.c.b16 %v1697, %v1696
        %v1722 = vpack.c.b16 %v1699, %v1698
        %v1723 = vpack.c.b16 %v1701, %v1700
        %v1724 = vpack.c.b16 %v1703, %v1702
        %v1725 = vpack.c.b16 %v1705, %v1704
        %v1726 = vpack.c.b16 %v1707, %v1706
        %v1727 = vpack.c.b16 %v1709, %v1708
        %v1728 = vpack.c.b16 %v1711, %v1710
        %v1729 = vpack.c.b16 %v1713, %v1712
        %1746 = vmatpush.bf16.msra.mxu0 %v1721
        %1747 = vmatpush.bf16.msra.mxu0 %v1720
        %1748 = vmatpush.bf16.msra.mxu0 %v1719
        %1749 = vmatpush.bf16.msra.mxu0 %v1718
        %1750 = vmatpush.bf16.msra.mxu0 %v1717
        %1751 = vmatpush.bf16.msra.mxu0 %v1716
        %1752 = vmatpush.bf16.msra.mxu0 %v1715
        %1753 = vmatpush.bf16.msra.mxu0 %v1714
        %1754 = vmatmul.bf16.gmra.mxu0 %v430
        %v1755 = vpop.f32.mrf.mxu0
        %v1756 = vadd.f32 %v417, %v1755
        %v1757 = vpop.f32.mrf.mxu0
        %v1758 = vadd.f32 %v422, %v1757
        %1759 = vdwg.mxu0
        %1760 = vmatpush.bf16.msra.mxu0 %v1729
        %1761 = vmatpush.bf16.msra.mxu0 %v1728
        %1762 = vmatpush.bf16.msra.mxu0 %v1727
        %1763 = vmatpush.bf16.msra.mxu0 %v1726
        %1764 = vmatpush.bf16.msra.mxu0 %v1725
        %1765 = vmatpush.bf16.msra.mxu0 %v1724
        %1766 = vmatpush.bf16.msra.mxu0 %v1723
        %1767 = vmatpush.bf16.msra.mxu0 %v1722
        %1768 = vmatmul.bf16.gmra.mxu0 %v431
        %v1769 = vpop.f32.mrf.mxu0
        %v1770 = vadd.f32 %v1756, %v1769
        %v1771 = vpop.f32.mrf.mxu0
        %v1772 = vadd.f32 %v1758, %v1771
        %1773 = vdwg.mxu0
        %v1774 = vmax.f32 %v1770, 0.0
        %v1775 = vmax.f32 %v1772, 0.0
        %v1776 = vpack.c.bf16 %v1775, %v1774
        %s1777 = scalar_lea.vmem %s3, 96
        %v1778 = vld [vmem:[%s1777] sm:$0xf]
        %v1779 = vld [vmem:[%s1777 + $0x4] sm:$0xf]
        %v1780 = vld [vmem:[%s1777 + $0x8] sm:$0xf]
        %v1781 = vld [vmem:[%s1777 + $0xc] sm:$0xf]
        %v1786 = vunpack.c.l.b16 %v1778
        %v1787 = vunpack.c.l.b16 %v1779
        %v1788 = vunpack.c.l.b16 %v1780
        %v1789 = vunpack.c.l.b16 %v1781
        %v1790 = vpack.c.b16 %v1787, %v1786
        %v1791 = vpack.c.b16 %v1789, %v1788
        %v1793 = vsel %vm740, %v1790, 0
        %v1796 = vsel %vm740, %v1791, 0
        %1798 = vmatpush.bf16.msra.mxu0 0
        %1799 = vmatpush.bf16.msra.mxu0 0
        %1800 = vmatpush.bf16.msra.mxu0 0
        %1801 = vmatpush.bf16.msra.mxu0 0
        %1802 = vmatpush.bf16.msra.mxu0 0
        %1803 = vmatpush.bf16.msra.mxu0 0
        %1804 = vmatpush.bf16.msra.mxu0 0
        %1805 = vmatpush.bf16.msra.mxu0 %v1776
        %1806 = vmatmul.bf16.gmra.mxu0 %v1793
        %v1807 = vpop.f32.mrf.mxu0
        %v1808 = vadd.f32 0.0, %v1807
        %v1809 = vpop.f32.mrf.mxu0
        %v1810 = vadd.f32 0.0, %v1809
        %1811 = vmatmul.bf16.gmra.mxu0 %v1796
        %v1812 = vpop.f32.mrf.mxu0
        %v1813 = vadd.f32 0.0, %v1812
        %v1814 = vpop.f32.mrf.mxu0
        %v1815 = vadd.f32 0.0, %v1814
        %1816 = vdwg.mxu0
        %v1817 = vadd.f32 %v1613, %v1808
        %v1818 = vadd.f32 %v1614, %v1810
        %v1819 = vadd.f32 %v1615, %v1813
        %v1820 = vadd.f32 %v1616, %v1815
        %s1821 = scalar_lea.vmem %s329, 896
        %v1822 = vld [vmem:[%s1821] sm:$0xf]
        %v1823 = vld [vmem:[%s1821 + $0x4] sm:$0xf]
        %v1824 = vld [vmem:[%s1821 + $0x8] sm:$0xf]
        %v1825 = vld [vmem:[%s1821 + $0xc] sm:$0xf]
        %v1826 = vld [vmem:[%s1821 + $0x10] sm:$0xf]
        %v1827 = vld [vmem:[%s1821 + $0x14] sm:$0xf]
        %v1828 = vld [vmem:[%s1821 + $0x18] sm:$0xf]
        %v1829 = vld [vmem:[%s1821 + $0x1c] sm:$0xf]
        %v1830 = vld [vmem:[%s1821 + $0x20] sm:$0xf]
        %v1831 = vld [vmem:[%s1821 + $0x24] sm:$0xf]
        %v1832 = vld [vmem:[%s1821 + $0x28] sm:$0xf]
        %v1833 = vld [vmem:[%s1821 + $0x2c] sm:$0xf]
        %v1834 = vld [vmem:[%s1821 + $0x30] sm:$0xf]
        %v1835 = vld [vmem:[%s1821 + $0x34] sm:$0xf]
        %v1836 = vld [vmem:[%s1821 + $0x38] sm:$0xf]
        %v1837 = vld [vmem:[%s1821 + $0x3c] sm:$0xf]
        %v1838 = vld [vmem:[%s1821 + $0x40] sm:$0xf]
        %v1839 = vld [vmem:[%s1821 + $0x44] sm:$0xf]
        %v1840 = vld [vmem:[%s1821 + $0x48] sm:$0xf]
        %v1841 = vld [vmem:[%s1821 + $0x4c] sm:$0xf]
        %v1842 = vld [vmem:[%s1821 + $0x50] sm:$0xf]
        %v1843 = vld [vmem:[%s1821 + $0x54] sm:$0xf]
        %v1844 = vld [vmem:[%s1821 + $0x58] sm:$0xf]
        %v1845 = vld [vmem:[%s1821 + $0x5c] sm:$0xf]
        %v1846 = vld [vmem:[%s1821 + $0x60] sm:$0xf]
        %v1847 = vld [vmem:[%s1821 + $0x64] sm:$0xf]
        %v1848 = vld [vmem:[%s1821 + $0x68] sm:$0xf]
        %v1849 = vld [vmem:[%s1821 + $0x6c] sm:$0xf]
        %v1850 = vld [vmem:[%s1821 + $0x70] sm:$0xf]
        %v1851 = vld [vmem:[%s1821 + $0x74] sm:$0xf]
        %v1852 = vld [vmem:[%s1821 + $0x78] sm:$0xf]
        %v1853 = vld [vmem:[%s1821 + $0x7c] sm:$0xf]
        %v1886 = vunpack.c.l.b16 %v1822
        %v1887 = vunpack.c.l.b16 %v1823
        %v1888 = vunpack.c.l.b16 %v1824
        %v1889 = vunpack.c.l.b16 %v1825
        %v1890 = vunpack.c.l.b16 %v1826
        %v1891 = vunpack.c.l.b16 %v1827
        %v1892 = vunpack.c.l.b16 %v1828
        %v1893 = vunpack.c.l.b16 %v1829
        %v1894 = vunpack.c.l.b16 %v1830
        %v1895 = vunpack.c.l.b16 %v1831
        %v1896 = vunpack.c.l.b16 %v1832
        %v1897 = vunpack.c.l.b16 %v1833
        %v1898 = vunpack.c.l.b16 %v1834
        %v1899 = vunpack.c.l.b16 %v1835
        %v1900 = vunpack.c.l.b16 %v1836
        %v1901 = vunpack.c.l.b16 %v1837
        %v1902 = vunpack.c.l.b16 %v1838
        %v1903 = vunpack.c.l.b16 %v1839
        %v1904 = vunpack.c.l.b16 %v1840
        %v1905 = vunpack.c.l.b16 %v1841
        %v1906 = vunpack.c.l.b16 %v1842
        %v1907 = vunpack.c.l.b16 %v1843
        %v1908 = vunpack.c.l.b16 %v1844
        %v1909 = vunpack.c.l.b16 %v1845
        %v1910 = vunpack.c.l.b16 %v1846
        %v1911 = vunpack.c.l.b16 %v1847
        %v1912 = vunpack.c.l.b16 %v1848
        %v1913 = vunpack.c.l.b16 %v1849
        %v1914 = vunpack.c.l.b16 %v1850
        %v1915 = vunpack.c.l.b16 %v1851
        %v1916 = vunpack.c.l.b16 %v1852
        %v1917 = vunpack.c.l.b16 %v1853
        %v1918 = vpack.c.b16 %v1887, %v1886
        %v1919 = vpack.c.b16 %v1889, %v1888
        %v1920 = vpack.c.b16 %v1891, %v1890
        %v1921 = vpack.c.b16 %v1893, %v1892
        %v1922 = vpack.c.b16 %v1895, %v1894
        %v1923 = vpack.c.b16 %v1897, %v1896
        %v1924 = vpack.c.b16 %v1899, %v1898
        %v1925 = vpack.c.b16 %v1901, %v1900
        %v1926 = vpack.c.b16 %v1903, %v1902
        %v1927 = vpack.c.b16 %v1905, %v1904
        %v1928 = vpack.c.b16 %v1907, %v1906
        %v1929 = vpack.c.b16 %v1909, %v1908
        %v1930 = vpack.c.b16 %v1911, %v1910
        %v1931 = vpack.c.b16 %v1913, %v1912
        %v1932 = vpack.c.b16 %v1915, %v1914
        %v1933 = vpack.c.b16 %v1917, %v1916
        %1950 = vmatpush.bf16.msra.mxu0 %v1925
        %1951 = vmatpush.bf16.msra.mxu0 %v1924
        %1952 = vmatpush.bf16.msra.mxu0 %v1923
        %1953 = vmatpush.bf16.msra.mxu0 %v1922
        %1954 = vmatpush.bf16.msra.mxu0 %v1921
        %1955 = vmatpush.bf16.msra.mxu0 %v1920
        %1956 = vmatpush.bf16.msra.mxu0 %v1919
        %1957 = vmatpush.bf16.msra.mxu0 %v1918
        %1958 = vmatmul.bf16.gmra.mxu0 %v430
        %v1959 = vpop.f32.mrf.mxu0
        %v1960 = vadd.f32 %v417, %v1959
        %v1961 = vpop.f32.mrf.mxu0
        %v1962 = vadd.f32 %v422, %v1961
        %1963 = vdwg.mxu0
        %1964 = vmatpush.bf16.msra.mxu0 %v1933
        %1965 = vmatpush.bf16.msra.mxu0 %v1932
        %1966 = vmatpush.bf16.msra.mxu0 %v1931
        %1967 = vmatpush.bf16.msra.mxu0 %v1930
        %1968 = vmatpush.bf16.msra.mxu0 %v1929
        %1969 = vmatpush.bf16.msra.mxu0 %v1928
        %1970 = vmatpush.bf16.msra.mxu0 %v1927
        %1971 = vmatpush.bf16.msra.mxu0 %v1926
        %1972 = vmatmul.bf16.gmra.mxu0 %v431
        %v1973 = vpop.f32.mrf.mxu0
        %v1974 = vadd.f32 %v1960, %v1973
        %v1975 = vpop.f32.mrf.mxu0
        %v1976 = vadd.f32 %v1962, %v1975
        %1977 = vdwg.mxu0
        %v1978 = vmax.f32 %v1974, 0.0
        %v1979 = vmax.f32 %v1976, 0.0
        %v1980 = vpack.c.bf16 %v1979, %v1978
        %s1981 = scalar_lea.vmem %s3, 112
        %v1982 = vld [vmem:[%s1981] sm:$0xf]
        %v1983 = vld [vmem:[%s1981 + $0x4] sm:$0xf]
        %v1984 = vld [vmem:[%s1981 + $0x8] sm:$0xf]
        %v1985 = vld [vmem:[%s1981 + $0xc] sm:$0xf]
        %v1990 = vunpack.c.l.b16 %v1982
        %v1991 = vunpack.c.l.b16 %v1983
        %v1992 = vunpack.c.l.b16 %v1984
        %v1993 = vunpack.c.l.b16 %v1985
        %v1994 = vpack.c.b16 %v1991, %v1990
        %v1995 = vpack.c.b16 %v1993, %v1992
        %v1997 = vsel %vm740, %v1994, 0
        %v2000 = vsel %vm740, %v1995, 0
        %2002 = vmatpush.bf16.msra.mxu0 0
        %2003 = vmatpush.bf16.msra.mxu0 0
        %2004 = vmatpush.bf16.msra.mxu0 0
        %2005 = vmatpush.bf16.msra.mxu0 0
        %2006 = vmatpush.bf16.msra.mxu0 0
        %2007 = vmatpush.bf16.msra.mxu0 0
        %2008 = vmatpush.bf16.msra.mxu0 0
        %2009 = vmatpush.bf16.msra.mxu0 %v1980
        %2010 = vmatmul.bf16.gmra.mxu0 %v1997
        %v2011 = vpop.f32.mrf.mxu0
        %v2012 = vadd.f32 0.0, %v2011
        %v2013 = vpop.f32.mrf.mxu0
        %v2014 = vadd.f32 0.0, %v2013
        %2015 = vmatmul.bf16.gmra.mxu0 %v2000
        %v2016 = vpop.f32.mrf.mxu0
        %v2017 = vadd.f32 0.0, %v2016
        %v2018 = vpop.f32.mrf.mxu0
        %v2019 = vadd.f32 0.0, %v2018
        %2020 = vdwg.mxu0
        %v2021 = vadd.f32 %v1817, %v2012
        %v2022 = vadd.f32 %v1818, %v2014
        %v2023 = vadd.f32 %v1819, %v2017
        %v2024 = vadd.f32 %v1820, %v2019
        %s2025 = scalar_lea.vmem %s329, 1024
        %v2026 = vld [vmem:[%s2025] sm:$0xf]
        %v2027 = vld [vmem:[%s2025 + $0x4] sm:$0xf]
        %v2028 = vld [vmem:[%s2025 + $0x8] sm:$0xf]
        %v2029 = vld [vmem:[%s2025 + $0xc] sm:$0xf]
        %v2030 = vld [vmem:[%s2025 + $0x10] sm:$0xf]
        %v2031 = vld [vmem:[%s2025 + $0x14] sm:$0xf]
        %v2032 = vld [vmem:[%s2025 + $0x18] sm:$0xf]
        %v2033 = vld [vmem:[%s2025 + $0x1c] sm:$0xf]
        %v2034 = vld [vmem:[%s2025 + $0x20] sm:$0xf]
        %v2035 = vld [vmem:[%s2025 + $0x24] sm:$0xf]
        %v2036 = vld [vmem:[%s2025 + $0x28] sm:$0xf]
        %v2037 = vld [vmem:[%s2025 + $0x2c] sm:$0xf]
        %v2038 = vld [vmem:[%s2025 + $0x30] sm:$0xf]
        %v2039 = vld [vmem:[%s2025 + $0x34] sm:$0xf]
        %v2040 = vld [vmem:[%s2025 + $0x38] sm:$0xf]
        %v2041 = vld [vmem:[%s2025 + $0x3c] sm:$0xf]
        %v2042 = vld [vmem:[%s2025 + $0x40] sm:$0xf]
        %v2043 = vld [vmem:[%s2025 + $0x44] sm:$0xf]
        %v2044 = vld [vmem:[%s2025 + $0x48] sm:$0xf]
        %v2045 = vld [vmem:[%s2025 + $0x4c] sm:$0xf]
        %v2046 = vld [vmem:[%s2025 + $0x50] sm:$0xf]
        %v2047 = vld [vmem:[%s2025 + $0x54] sm:$0xf]
        %v2048 = vld [vmem:[%s2025 + $0x58] sm:$0xf]
        %v2049 = vld [vmem:[%s2025 + $0x5c] sm:$0xf]
        %v2050 = vld [vmem:[%s2025 + $0x60] sm:$0xf]
        %v2051 = vld [vmem:[%s2025 + $0x64] sm:$0xf]
        %v2052 = vld [vmem:[%s2025 + $0x68] sm:$0xf]
        %v2053 = vld [vmem:[%s2025 + $0x6c] sm:$0xf]
        %v2054 = vld [vmem:[%s2025 + $0x70] sm:$0xf]
        %v2055 = vld [vmem:[%s2025 + $0x74] sm:$0xf]
        %v2056 = vld [vmem:[%s2025 + $0x78] sm:$0xf]
        %v2057 = vld [vmem:[%s2025 + $0x7c] sm:$0xf]
        %v2090 = vunpack.c.l.b16 %v2026
        %v2091 = vunpack.c.l.b16 %v2027
        %v2092 = vunpack.c.l.b16 %v2028
        %v2093 = vunpack.c.l.b16 %v2029
        %v2094 = vunpack.c.l.b16 %v2030
        %v2095 = vunpack.c.l.b16 %v2031
        %v2096 = vunpack.c.l.b16 %v2032
        %v2097 = vunpack.c.l.b16 %v2033
        %v2098 = vunpack.c.l.b16 %v2034
        %v2099 = vunpack.c.l.b16 %v2035
        %v2100 = vunpack.c.l.b16 %v2036
        %v2101 = vunpack.c.l.b16 %v2037
        %v2102 = vunpack.c.l.b16 %v2038
        %v2103 = vunpack.c.l.b16 %v2039
        %v2104 = vunpack.c.l.b16 %v2040
        %v2105 = vunpack.c.l.b16 %v2041
        %v2106 = vunpack.c.l.b16 %v2042
        %v2107 = vunpack.c.l.b16 %v2043
        %v2108 = vunpack.c.l.b16 %v2044
        %v2109 = vunpack.c.l.b16 %v2045
        %v2110 = vunpack.c.l.b16 %v2046
        %v2111 = vunpack.c.l.b16 %v2047
        %v2112 = vunpack.c.l.b16 %v2048
        %v2113 = vunpack.c.l.b16 %v2049
        %v2114 = vunpack.c.l.b16 %v2050
        %v2115 = vunpack.c.l.b16 %v2051
        %v2116 = vunpack.c.l.b16 %v2052
        %v2117 = vunpack.c.l.b16 %v2053
        %v2118 = vunpack.c.l.b16 %v2054
        %v2119 = vunpack.c.l.b16 %v2055
        %v2120 = vunpack.c.l.b16 %v2056
        %v2121 = vunpack.c.l.b16 %v2057
        %v2122 = vpack.c.b16 %v2091, %v2090
        %v2123 = vpack.c.b16 %v2093, %v2092
        %v2124 = vpack.c.b16 %v2095, %v2094
        %v2125 = vpack.c.b16 %v2097, %v2096
        %v2126 = vpack.c.b16 %v2099, %v2098
        %v2127 = vpack.c.b16 %v2101, %v2100
        %v2128 = vpack.c.b16 %v2103, %v2102
        %v2129 = vpack.c.b16 %v2105, %v2104
        %v2130 = vpack.c.b16 %v2107, %v2106
        %v2131 = vpack.c.b16 %v2109, %v2108
        %v2132 = vpack.c.b16 %v2111, %v2110
        %v2133 = vpack.c.b16 %v2113, %v2112
        %v2134 = vpack.c.b16 %v2115, %v2114
        %v2135 = vpack.c.b16 %v2117, %v2116
        %v2136 = vpack.c.b16 %v2119, %v2118
        %v2137 = vpack.c.b16 %v2121, %v2120
        %2154 = vmatpush.bf16.msra.mxu0 %v2129
        %2155 = vmatpush.bf16.msra.mxu0 %v2128
        %2156 = vmatpush.bf16.msra.mxu0 %v2127
        %2157 = vmatpush.bf16.msra.mxu0 %v2126
        %2158 = vmatpush.bf16.msra.mxu0 %v2125
        %2159 = vmatpush.bf16.msra.mxu0 %v2124
        %2160 = vmatpush.bf16.msra.mxu0 %v2123
        %2161 = vmatpush.bf16.msra.mxu0 %v2122
        %2162 = vmatmul.bf16.gmra.mxu0 %v430
        %v2163 = vpop.f32.mrf.mxu0
        %v2164 = vadd.f32 %v417, %v2163
        %v2165 = vpop.f32.mrf.mxu0
        %v2166 = vadd.f32 %v422, %v2165
        %2167 = vdwg.mxu0
        %2168 = vmatpush.bf16.msra.mxu0 %v2137
        %2169 = vmatpush.bf16.msra.mxu0 %v2136
        %2170 = vmatpush.bf16.msra.mxu0 %v2135
        %2171 = vmatpush.bf16.msra.mxu0 %v2134
        %2172 = vmatpush.bf16.msra.mxu0 %v2133
        %2173 = vmatpush.bf16.msra.mxu0 %v2132
        %2174 = vmatpush.bf16.msra.mxu0 %v2131
        %2175 = vmatpush.bf16.msra.mxu0 %v2130
        %2176 = vmatmul.bf16.gmra.mxu0 %v431
        %v2177 = vpop.f32.mrf.mxu0
        %v2178 = vadd.f32 %v2164, %v2177
        %v2179 = vpop.f32.mrf.mxu0
        %v2180 = vadd.f32 %v2166, %v2179
        %2181 = vdwg.mxu0
        %v2182 = vmax.f32 %v2178, 0.0
        %v2183 = vmax.f32 %v2180, 0.0
        %v2184 = vpack.c.bf16 %v2183, %v2182
        %s2185 = scalar_lea.vmem %s3, 128
        %v2186 = vld [vmem:[%s2185] sm:$0xf]
        %v2187 = vld [vmem:[%s2185 + $0x4] sm:$0xf]
        %v2188 = vld [vmem:[%s2185 + $0x8] sm:$0xf]
        %v2189 = vld [vmem:[%s2185 + $0xc] sm:$0xf]
        %v2194 = vunpack.c.l.b16 %v2186
        %v2195 = vunpack.c.l.b16 %v2187
        %v2196 = vunpack.c.l.b16 %v2188
        %v2197 = vunpack.c.l.b16 %v2189
        %v2198 = vpack.c.b16 %v2195, %v2194
        %v2199 = vpack.c.b16 %v2197, %v2196
        %v2201 = vsel %vm740, %v2198, 0
        %v2204 = vsel %vm740, %v2199, 0
        %2206 = vmatpush.bf16.msra.mxu0 0
        %2207 = vmatpush.bf16.msra.mxu0 0
        %2208 = vmatpush.bf16.msra.mxu0 0
        %2209 = vmatpush.bf16.msra.mxu0 0
        %2210 = vmatpush.bf16.msra.mxu0 0
        %2211 = vmatpush.bf16.msra.mxu0 0
        %2212 = vmatpush.bf16.msra.mxu0 0
        %2213 = vmatpush.bf16.msra.mxu0 %v2184
        %2214 = vmatmul.bf16.gmra.mxu0 %v2201
        %v2215 = vpop.f32.mrf.mxu0
        %v2216 = vadd.f32 0.0, %v2215
        %v2217 = vpop.f32.mrf.mxu0
        %v2218 = vadd.f32 0.0, %v2217
        %2219 = vmatmul.bf16.gmra.mxu0 %v2204
        %v2220 = vpop.f32.mrf.mxu0
        %v2221 = vadd.f32 0.0, %v2220
        %v2222 = vpop.f32.mrf.mxu0
        %v2223 = vadd.f32 0.0, %v2222
        %2224 = vdwg.mxu0
        %v2225 = vadd.f32 %v2021, %v2216
        %v2226 = vadd.f32 %v2022, %v2218
        %v2227 = vadd.f32 %v2023, %v2221
        %v2228 = vadd.f32 %v2024, %v2223
        %s2229 = scalar_lea.vmem %s329, 1152
        %v2230 = vld [vmem:[%s2229] sm:$0xf]
        %v2231 = vld [vmem:[%s2229 + $0x4] sm:$0xf]
        %v2232 = vld [vmem:[%s2229 + $0x8] sm:$0xf]
        %v2233 = vld [vmem:[%s2229 + $0xc] sm:$0xf]
        %v2234 = vld [vmem:[%s2229 + $0x10] sm:$0xf]
        %v2235 = vld [vmem:[%s2229 + $0x14] sm:$0xf]
        %v2236 = vld [vmem:[%s2229 + $0x18] sm:$0xf]
        %v2237 = vld [vmem:[%s2229 + $0x1c] sm:$0xf]
        %v2238 = vld [vmem:[%s2229 + $0x20] sm:$0xf]
        %v2239 = vld [vmem:[%s2229 + $0x24] sm:$0xf]
        %v2240 = vld [vmem:[%s2229 + $0x28] sm:$0xf]
        %v2241 = vld [vmem:[%s2229 + $0x2c] sm:$0xf]
        %v2242 = vld [vmem:[%s2229 + $0x30] sm:$0xf]
        %v2243 = vld [vmem:[%s2229 + $0x34] sm:$0xf]
        %v2244 = vld [vmem:[%s2229 + $0x38] sm:$0xf]
        %v2245 = vld [vmem:[%s2229 + $0x3c] sm:$0xf]
        %v2246 = vld [vmem:[%s2229 + $0x40] sm:$0xf]
        %v2247 = vld [vmem:[%s2229 + $0x44] sm:$0xf]
        %v2248 = vld [vmem:[%s2229 + $0x48] sm:$0xf]
        %v2249 = vld [vmem:[%s2229 + $0x4c] sm:$0xf]
        %v2250 = vld [vmem:[%s2229 + $0x50] sm:$0xf]
        %v2251 = vld [vmem:[%s2229 + $0x54] sm:$0xf]
        %v2252 = vld [vmem:[%s2229 + $0x58] sm:$0xf]
        %v2253 = vld [vmem:[%s2229 + $0x5c] sm:$0xf]
        %v2254 = vld [vmem:[%s2229 + $0x60] sm:$0xf]
        %v2255 = vld [vmem:[%s2229 + $0x64] sm:$0xf]
        %v2256 = vld [vmem:[%s2229 + $0x68] sm:$0xf]
        %v2257 = vld [vmem:[%s2229 + $0x6c] sm:$0xf]
        %v2258 = vld [vmem:[%s2229 + $0x70] sm:$0xf]
        %v2259 = vld [vmem:[%s2229 + $0x74] sm:$0xf]
        %v2260 = vld [vmem:[%s2229 + $0x78] sm:$0xf]
        %v2261 = vld [vmem:[%s2229 + $0x7c] sm:$0xf]
        %v2294 = vunpack.c.l.b16 %v2230
        %v2295 = vunpack.c.l.b16 %v2231
        %v2296 = vunpack.c.l.b16 %v2232
        %v2297 = vunpack.c.l.b16 %v2233
        %v2298 = vunpack.c.l.b16 %v2234
        %v2299 = vunpack.c.l.b16 %v2235
        %v2300 = vunpack.c.l.b16 %v2236
        %v2301 = vunpack.c.l.b16 %v2237
        %v2302 = vunpack.c.l.b16 %v2238
        %v2303 = vunpack.c.l.b16 %v2239
        %v2304 = vunpack.c.l.b16 %v2240
        %v2305 = vunpack.c.l.b16 %v2241
        %v2306 = vunpack.c.l.b16 %v2242
        %v2307 = vunpack.c.l.b16 %v2243
        %v2308 = vunpack.c.l.b16 %v2244
        %v2309 = vunpack.c.l.b16 %v2245
        %v2310 = vunpack.c.l.b16 %v2246
        %v2311 = vunpack.c.l.b16 %v2247
        %v2312 = vunpack.c.l.b16 %v2248
        %v2313 = vunpack.c.l.b16 %v2249
        %v2314 = vunpack.c.l.b16 %v2250
        %v2315 = vunpack.c.l.b16 %v2251
        %v2316 = vunpack.c.l.b16 %v2252
        %v2317 = vunpack.c.l.b16 %v2253
        %v2318 = vunpack.c.l.b16 %v2254
        %v2319 = vunpack.c.l.b16 %v2255
        %v2320 = vunpack.c.l.b16 %v2256
        %v2321 = vunpack.c.l.b16 %v2257
        %v2322 = vunpack.c.l.b16 %v2258
        %v2323 = vunpack.c.l.b16 %v2259
        %v2324 = vunpack.c.l.b16 %v2260
        %v2325 = vunpack.c.l.b16 %v2261
        %v2326 = vpack.c.b16 %v2295, %v2294
        %v2327 = vpack.c.b16 %v2297, %v2296
        %v2328 = vpack.c.b16 %v2299, %v2298
        %v2329 = vpack.c.b16 %v2301, %v2300
        %v2330 = vpack.c.b16 %v2303, %v2302
        %v2331 = vpack.c.b16 %v2305, %v2304
        %v2332 = vpack.c.b16 %v2307, %v2306
        %v2333 = vpack.c.b16 %v2309, %v2308
        %v2334 = vpack.c.b16 %v2311, %v2310
        %v2335 = vpack.c.b16 %v2313, %v2312
        %v2336 = vpack.c.b16 %v2315, %v2314
        %v2337 = vpack.c.b16 %v2317, %v2316
        %v2338 = vpack.c.b16 %v2319, %v2318
        %v2339 = vpack.c.b16 %v2321, %v2320
        %v2340 = vpack.c.b16 %v2323, %v2322
        %v2341 = vpack.c.b16 %v2325, %v2324
        %2358 = vmatpush.bf16.msra.mxu0 %v2333
        %2359 = vmatpush.bf16.msra.mxu0 %v2332
        %2360 = vmatpush.bf16.msra.mxu0 %v2331
        %2361 = vmatpush.bf16.msra.mxu0 %v2330
        %2362 = vmatpush.bf16.msra.mxu0 %v2329
        %2363 = vmatpush.bf16.msra.mxu0 %v2328
        %2364 = vmatpush.bf16.msra.mxu0 %v2327
        %2365 = vmatpush.bf16.msra.mxu0 %v2326
        %2366 = vmatmul.bf16.gmra.mxu0 %v430
        %v2367 = vpop.f32.mrf.mxu0
        %v2368 = vadd.f32 %v417, %v2367
        %v2369 = vpop.f32.mrf.mxu0
        %v2370 = vadd.f32 %v422, %v2369
        %2371 = vdwg.mxu0
        %2372 = vmatpush.bf16.msra.mxu0 %v2341
        %2373 = vmatpush.bf16.msra.mxu0 %v2340
        %2374 = vmatpush.bf16.msra.mxu0 %v2339
        %2375 = vmatpush.bf16.msra.mxu0 %v2338
        %2376 = vmatpush.bf16.msra.mxu0 %v2337
        %2377 = vmatpush.bf16.msra.mxu0 %v2336
        %2378 = vmatpush.bf16.msra.mxu0 %v2335
        %2379 = vmatpush.bf16.msra.mxu0 %v2334
        %2380 = vmatmul.bf16.gmra.mxu0 %v431
        %v2381 = vpop.f32.mrf.mxu0
        %v2382 = vadd.f32 %v2368, %v2381
        %v2383 = vpop.f32.mrf.mxu0
        %v2384 = vadd.f32 %v2370, %v2383
        %2385 = vdwg.mxu0
        %v2386 = vmax.f32 %v2382, 0.0
        %v2387 = vmax.f32 %v2384, 0.0
        %v2388 = vpack.c.bf16 %v2387, %v2386
        %s2389 = scalar_lea.vmem %s3, 144
        %v2390 = vld [vmem:[%s2389] sm:$0xf]
        %v2391 = vld [vmem:[%s2389 + $0x4] sm:$0xf]
        %v2392 = vld [vmem:[%s2389 + $0x8] sm:$0xf]
        %v2393 = vld [vmem:[%s2389 + $0xc] sm:$0xf]
        %v2398 = vunpack.c.l.b16 %v2390
        %v2399 = vunpack.c.l.b16 %v2391
        %v2400 = vunpack.c.l.b16 %v2392
        %v2401 = vunpack.c.l.b16 %v2393
        %v2402 = vpack.c.b16 %v2399, %v2398
        %v2403 = vpack.c.b16 %v2401, %v2400
        %v2405 = vsel %vm740, %v2402, 0
        %v2408 = vsel %vm740, %v2403, 0
        %2410 = vmatpush.bf16.msra.mxu0 0
        %2411 = vmatpush.bf16.msra.mxu0 0
        %2412 = vmatpush.bf16.msra.mxu0 0
        %2413 = vmatpush.bf16.msra.mxu0 0
        %2414 = vmatpush.bf16.msra.mxu0 0
        %2415 = vmatpush.bf16.msra.mxu0 0
        %2416 = vmatpush.bf16.msra.mxu0 0
        %2417 = vmatpush.bf16.msra.mxu0 %v2388
        %2418 = vmatmul.bf16.gmra.mxu0 %v2405
        %v2419 = vpop.f32.mrf.mxu0
        %v2420 = vadd.f32 0.0, %v2419
        %v2421 = vpop.f32.mrf.mxu0
        %v2422 = vadd.f32 0.0, %v2421
        %2423 = vmatmul.bf16.gmra.mxu0 %v2408
        %v2424 = vpop.f32.mrf.mxu0
        %v2425 = vadd.f32 0.0, %v2424
        %v2426 = vpop.f32.mrf.mxu0
        %v2427 = vadd.f32 0.0, %v2426
        %2428 = vdwg.mxu0
        %v2429 = vadd.f32 %v2225, %v2420
        %v2430 = vadd.f32 %v2226, %v2422
        %v2431 = vadd.f32 %v2227, %v2425
        %v2432 = vadd.f32 %v2228, %v2427
        %s2433 = scalar_lea.vmem %s329, 1280
        %v2434 = vld [vmem:[%s2433] sm:$0xf]
        %v2435 = vld [vmem:[%s2433 + $0x4] sm:$0xf]
        %v2436 = vld [vmem:[%s2433 + $0x8] sm:$0xf]
        %v2437 = vld [vmem:[%s2433 + $0xc] sm:$0xf]
        %v2438 = vld [vmem:[%s2433 + $0x10] sm:$0xf]
        %v2439 = vld [vmem:[%s2433 + $0x14] sm:$0xf]
        %v2440 = vld [vmem:[%s2433 + $0x18] sm:$0xf]
        %v2441 = vld [vmem:[%s2433 + $0x1c] sm:$0xf]
        %v2442 = vld [vmem:[%s2433 + $0x20] sm:$0xf]
        %v2443 = vld [vmem:[%s2433 + $0x24] sm:$0xf]
        %v2444 = vld [vmem:[%s2433 + $0x28] sm:$0xf]
        %v2445 = vld [vmem:[%s2433 + $0x2c] sm:$0xf]
        %v2446 = vld [vmem:[%s2433 + $0x30] sm:$0xf]
        %v2447 = vld [vmem:[%s2433 + $0x34] sm:$0xf]
        %v2448 = vld [vmem:[%s2433 + $0x38] sm:$0xf]
        %v2449 = vld [vmem:[%s2433 + $0x3c] sm:$0xf]
        %v2450 = vld [vmem:[%s2433 + $0x40] sm:$0xf]
        %v2451 = vld [vmem:[%s2433 + $0x44] sm:$0xf]
        %v2452 = vld [vmem:[%s2433 + $0x48] sm:$0xf]
        %v2453 = vld [vmem:[%s2433 + $0x4c] sm:$0xf]
        %v2454 = vld [vmem:[%s2433 + $0x50] sm:$0xf]
        %v2455 = vld [vmem:[%s2433 + $0x54] sm:$0xf]
        %v2456 = vld [vmem:[%s2433 + $0x58] sm:$0xf]
        %v2457 = vld [vmem:[%s2433 + $0x5c] sm:$0xf]
        %v2458 = vld [vmem:[%s2433 + $0x60] sm:$0xf]
        %v2459 = vld [vmem:[%s2433 + $0x64] sm:$0xf]
        %v2460 = vld [vmem:[%s2433 + $0x68] sm:$0xf]
        %v2461 = vld [vmem:[%s2433 + $0x6c] sm:$0xf]
        %v2462 = vld [vmem:[%s2433 + $0x70] sm:$0xf]
        %v2463 = vld [vmem:[%s2433 + $0x74] sm:$0xf]
        %v2464 = vld [vmem:[%s2433 + $0x78] sm:$0xf]
        %v2465 = vld [vmem:[%s2433 + $0x7c] sm:$0xf]
        %v2498 = vunpack.c.l.b16 %v2434
        %v2499 = vunpack.c.l.b16 %v2435
        %v2500 = vunpack.c.l.b16 %v2436
        %v2501 = vunpack.c.l.b16 %v2437
        %v2502 = vunpack.c.l.b16 %v2438
        %v2503 = vunpack.c.l.b16 %v2439
        %v2504 = vunpack.c.l.b16 %v2440
        %v2505 = vunpack.c.l.b16 %v2441
        %v2506 = vunpack.c.l.b16 %v2442
        %v2507 = vunpack.c.l.b16 %v2443
        %v2508 = vunpack.c.l.b16 %v2444
        %v2509 = vunpack.c.l.b16 %v2445
        %v2510 = vunpack.c.l.b16 %v2446
        %v2511 = vunpack.c.l.b16 %v2447
        %v2512 = vunpack.c.l.b16 %v2448
        %v2513 = vunpack.c.l.b16 %v2449
        %v2514 = vunpack.c.l.b16 %v2450
        %v2515 = vunpack.c.l.b16 %v2451
        %v2516 = vunpack.c.l.b16 %v2452
        %v2517 = vunpack.c.l.b16 %v2453
        %v2518 = vunpack.c.l.b16 %v2454
        %v2519 = vunpack.c.l.b16 %v2455
        %v2520 = vunpack.c.l.b16 %v2456
        %v2521 = vunpack.c.l.b16 %v2457
        %v2522 = vunpack.c.l.b16 %v2458
        %v2523 = vunpack.c.l.b16 %v2459
        %v2524 = vunpack.c.l.b16 %v2460
        %v2525 = vunpack.c.l.b16 %v2461
        %v2526 = vunpack.c.l.b16 %v2462
        %v2527 = vunpack.c.l.b16 %v2463
        %v2528 = vunpack.c.l.b16 %v2464
        %v2529 = vunpack.c.l.b16 %v2465
        %v2530 = vpack.c.b16 %v2499, %v2498
        %v2531 = vpack.c.b16 %v2501, %v2500
        %v2532 = vpack.c.b16 %v2503, %v2502
        %v2533 = vpack.c.b16 %v2505, %v2504
        %v2534 = vpack.c.b16 %v2507, %v2506
        %v2535 = vpack.c.b16 %v2509, %v2508
        %v2536 = vpack.c.b16 %v2511, %v2510
        %v2537 = vpack.c.b16 %v2513, %v2512
        %v2538 = vpack.c.b16 %v2515, %v2514
        %v2539 = vpack.c.b16 %v2517, %v2516
        %v2540 = vpack.c.b16 %v2519, %v2518
        %v2541 = vpack.c.b16 %v2521, %v2520
        %v2542 = vpack.c.b16 %v2523, %v2522
        %v2543 = vpack.c.b16 %v2525, %v2524
        %v2544 = vpack.c.b16 %v2527, %v2526
        %v2545 = vpack.c.b16 %v2529, %v2528
        %2562 = vmatpush.bf16.msra.mxu0 %v2537
        %2563 = vmatpush.bf16.msra.mxu0 %v2536
        %2564 = vmatpush.bf16.msra.mxu0 %v2535
        %2565 = vmatpush.bf16.msra.mxu0 %v2534
        %2566 = vmatpush.bf16.msra.mxu0 %v2533
        %2567 = vmatpush.bf16.msra.mxu0 %v2532
        %2568 = vmatpush.bf16.msra.mxu0 %v2531
        %2569 = vmatpush.bf16.msra.mxu0 %v2530
        %2570 = vmatmul.bf16.gmra.mxu0 %v430
        %v2571 = vpop.f32.mrf.mxu0
        %v2572 = vadd.f32 %v417, %v2571
        %v2573 = vpop.f32.mrf.mxu0
        %v2574 = vadd.f32 %v422, %v2573
        %2575 = vdwg.mxu0
        %2576 = vmatpush.bf16.msra.mxu0 %v2545
        %2577 = vmatpush.bf16.msra.mxu0 %v2544
        %2578 = vmatpush.bf16.msra.mxu0 %v2543
        %2579 = vmatpush.bf16.msra.mxu0 %v2542
        %2580 = vmatpush.bf16.msra.mxu0 %v2541
        %2581 = vmatpush.bf16.msra.mxu0 %v2540
        %2582 = vmatpush.bf16.msra.mxu0 %v2539
        %2583 = vmatpush.bf16.msra.mxu0 %v2538
        %2584 = vmatmul.bf16.gmra.mxu0 %v431
        %v2585 = vpop.f32.mrf.mxu0
        %v2586 = vadd.f32 %v2572, %v2585
        %v2587 = vpop.f32.mrf.mxu0
        %v2588 = vadd.f32 %v2574, %v2587
        %2589 = vdwg.mxu0
        %v2590 = vmax.f32 %v2586, 0.0
        %v2591 = vmax.f32 %v2588, 0.0
        %v2592 = vpack.c.bf16 %v2591, %v2590
        %s2593 = scalar_lea.vmem %s3, 160
        %v2594 = vld [vmem:[%s2593] sm:$0xf]
        %v2595 = vld [vmem:[%s2593 + $0x4] sm:$0xf]
        %v2596 = vld [vmem:[%s2593 + $0x8] sm:$0xf]
        %v2597 = vld [vmem:[%s2593 + $0xc] sm:$0xf]
        %v2602 = vunpack.c.l.b16 %v2594
        %v2603 = vunpack.c.l.b16 %v2595
        %v2604 = vunpack.c.l.b16 %v2596
        %v2605 = vunpack.c.l.b16 %v2597
        %v2606 = vpack.c.b16 %v2603, %v2602
        %v2607 = vpack.c.b16 %v2605, %v2604
        %v2609 = vsel %vm740, %v2606, 0
        %v2612 = vsel %vm740, %v2607, 0
        %2614 = vmatpush.bf16.msra.mxu0 0
        %2615 = vmatpush.bf16.msra.mxu0 0
        %2616 = vmatpush.bf16.msra.mxu0 0
        %2617 = vmatpush.bf16.msra.mxu0 0
        %2618 = vmatpush.bf16.msra.mxu0 0
        %2619 = vmatpush.bf16.msra.mxu0 0
        %2620 = vmatpush.bf16.msra.mxu0 0
        %2621 = vmatpush.bf16.msra.mxu0 %v2592
        %2622 = vmatmul.bf16.gmra.mxu0 %v2609
        %v2623 = vpop.f32.mrf.mxu0
        %v2624 = vadd.f32 0.0, %v2623
        %v2625 = vpop.f32.mrf.mxu0
        %v2626 = vadd.f32 0.0, %v2625
        %2627 = vmatmul.bf16.gmra.mxu0 %v2612
        %v2628 = vpop.f32.mrf.mxu0
        %v2629 = vadd.f32 0.0, %v2628
        %v2630 = vpop.f32.mrf.mxu0
        %v2631 = vadd.f32 0.0, %v2630
        %2632 = vdwg.mxu0
        %v2633 = vadd.f32 %v2429, %v2624
        %v2634 = vadd.f32 %v2430, %v2626
        %v2635 = vadd.f32 %v2431, %v2629
        %v2636 = vadd.f32 %v2432, %v2631
        %s2637 = scalar_lea.vmem %s329, 1408
        %v2638 = vld [vmem:[%s2637] sm:$0xf]
        %v2639 = vld [vmem:[%s2637 + $0x4] sm:$0xf]
        %v2640 = vld [vmem:[%s2637 + $0x8] sm:$0xf]
        %v2641 = vld [vmem:[%s2637 + $0xc] sm:$0xf]
        %v2642 = vld [vmem:[%s2637 + $0x10] sm:$0xf]
        %v2643 = vld [vmem:[%s2637 + $0x14] sm:$0xf]
        %v2644 = vld [vmem:[%s2637 + $0x18] sm:$0xf]
        %v2645 = vld [vmem:[%s2637 + $0x1c] sm:$0xf]
        %v2646 = vld [vmem:[%s2637 + $0x20] sm:$0xf]
        %v2647 = vld [vmem:[%s2637 + $0x24] sm:$0xf]
        %v2648 = vld [vmem:[%s2637 + $0x28] sm:$0xf]
        %v2649 = vld [vmem:[%s2637 + $0x2c] sm:$0xf]
        %v2650 = vld [vmem:[%s2637 + $0x30] sm:$0xf]
        %v2651 = vld [vmem:[%s2637 + $0x34] sm:$0xf]
        %v2652 = vld [vmem:[%s2637 + $0x38] sm:$0xf]
        %v2653 = vld [vmem:[%s2637 + $0x3c] sm:$0xf]
        %v2654 = vld [vmem:[%s2637 + $0x40] sm:$0xf]
        %v2655 = vld [vmem:[%s2637 + $0x44] sm:$0xf]
        %v2656 = vld [vmem:[%s2637 + $0x48] sm:$0xf]
        %v2657 = vld [vmem:[%s2637 + $0x4c] sm:$0xf]
        %v2658 = vld [vmem:[%s2637 + $0x50] sm:$0xf]
        %v2659 = vld [vmem:[%s2637 + $0x54] sm:$0xf]
        %v2660 = vld [vmem:[%s2637 + $0x58] sm:$0xf]
        %v2661 = vld [vmem:[%s2637 + $0x5c] sm:$0xf]
        %v2662 = vld [vmem:[%s2637 + $0x60] sm:$0xf]
        %v2663 = vld [vmem:[%s2637 + $0x64] sm:$0xf]
        %v2664 = vld [vmem:[%s2637 + $0x68] sm:$0xf]
        %v2665 = vld [vmem:[%s2637 + $0x6c] sm:$0xf]
        %v2666 = vld [vmem:[%s2637 + $0x70] sm:$0xf]
        %v2667 = vld [vmem:[%s2637 + $0x74] sm:$0xf]
        %v2668 = vld [vmem:[%s2637 + $0x78] sm:$0xf]
        %v2669 = vld [vmem:[%s2637 + $0x7c] sm:$0xf]
        %v2702 = vunpack.c.l.b16 %v2638
        %v2703 = vunpack.c.l.b16 %v2639
        %v2704 = vunpack.c.l.b16 %v2640
        %v2705 = vunpack.c.l.b16 %v2641
        %v2706 = vunpack.c.l.b16 %v2642
        %v2707 = vunpack.c.l.b16 %v2643
        %v2708 = vunpack.c.l.b16 %v2644
        %v2709 = vunpack.c.l.b16 %v2645
        %v2710 = vunpack.c.l.b16 %v2646
        %v2711 = vunpack.c.l.b16 %v2647
        %v2712 = vunpack.c.l.b16 %v2648
        %v2713 = vunpack.c.l.b16 %v2649
        %v2714 = vunpack.c.l.b16 %v2650
        %v2715 = vunpack.c.l.b16 %v2651
        %v2716 = vunpack.c.l.b16 %v2652
        %v2717 = vunpack.c.l.b16 %v2653
        %v2718 = vunpack.c.l.b16 %v2654
        %v2719 = vunpack.c.l.b16 %v2655
        %v2720 = vunpack.c.l.b16 %v2656
        %v2721 = vunpack.c.l.b16 %v2657
        %v2722 = vunpack.c.l.b16 %v2658
        %v2723 = vunpack.c.l.b16 %v2659
        %v2724 = vunpack.c.l.b16 %v2660
        %v2725 = vunpack.c.l.b16 %v2661
        %v2726 = vunpack.c.l.b16 %v2662
        %v2727 = vunpack.c.l.b16 %v2663
        %v2728 = vunpack.c.l.b16 %v2664
        %v2729 = vunpack.c.l.b16 %v2665
        %v2730 = vunpack.c.l.b16 %v2666
        %v2731 = vunpack.c.l.b16 %v2667
        %v2732 = vunpack.c.l.b16 %v2668
        %v2733 = vunpack.c.l.b16 %v2669
        %v2734 = vpack.c.b16 %v2703, %v2702
        %v2735 = vpack.c.b16 %v2705, %v2704
        %v2736 = vpack.c.b16 %v2707, %v2706
        %v2737 = vpack.c.b16 %v2709, %v2708
        %v2738 = vpack.c.b16 %v2711, %v2710
        %v2739 = vpack.c.b16 %v2713, %v2712
        %v2740 = vpack.c.b16 %v2715, %v2714
        %v2741 = vpack.c.b16 %v2717, %v2716
        %v2742 = vpack.c.b16 %v2719, %v2718
        %v2743 = vpack.c.b16 %v2721, %v2720
        %v2744 = vpack.c.b16 %v2723, %v2722
        %v2745 = vpack.c.b16 %v2725, %v2724
        %v2746 = vpack.c.b16 %v2727, %v2726
        %v2747 = vpack.c.b16 %v2729, %v2728
        %v2748 = vpack.c.b16 %v2731, %v2730
        %v2749 = vpack.c.b16 %v2733, %v2732
        %2766 = vmatpush.bf16.msra.mxu0 %v2741
        %2767 = vmatpush.bf16.msra.mxu0 %v2740
        %2768 = vmatpush.bf16.msra.mxu0 %v2739
        %2769 = vmatpush.bf16.msra.mxu0 %v2738
        %2770 = vmatpush.bf16.msra.mxu0 %v2737
        %2771 = vmatpush.bf16.msra.mxu0 %v2736
        %2772 = vmatpush.bf16.msra.mxu0 %v2735
        %2773 = vmatpush.bf16.msra.mxu0 %v2734
        %2774 = vmatmul.bf16.gmra.mxu0 %v430
        %v2775 = vpop.f32.mrf.mxu0
        %v2776 = vadd.f32 %v417, %v2775
        %v2777 = vpop.f32.mrf.mxu0
        %v2778 = vadd.f32 %v422, %v2777
        %2779 = vdwg.mxu0
        %2780 = vmatpush.bf16.msra.mxu0 %v2749
        %2781 = vmatpush.bf16.msra.mxu0 %v2748
        %2782 = vmatpush.bf16.msra.mxu0 %v2747
        %2783 = vmatpush.bf16.msra.mxu0 %v2746
        %2784 = vmatpush.bf16.msra.mxu0 %v2745
        %2785 = vmatpush.bf16.msra.mxu0 %v2744
        %2786 = vmatpush.bf16.msra.mxu0 %v2743
        %2787 = vmatpush.bf16.msra.mxu0 %v2742
        %2788 = vmatmul.bf16.gmra.mxu0 %v431
        %v2789 = vpop.f32.mrf.mxu0
        %v2790 = vadd.f32 %v2776, %v2789
        %v2791 = vpop.f32.mrf.mxu0
        %v2792 = vadd.f32 %v2778, %v2791
        %2793 = vdwg.mxu0
        %v2794 = vmax.f32 %v2790, 0.0
        %v2795 = vmax.f32 %v2792, 0.0
        %v2796 = vpack.c.bf16 %v2795, %v2794
        %s2797 = scalar_lea.vmem %s3, 176
        %v2798 = vld [vmem:[%s2797] sm:$0xf]
        %v2799 = vld [vmem:[%s2797 + $0x4] sm:$0xf]
        %v2800 = vld [vmem:[%s2797 + $0x8] sm:$0xf]
        %v2801 = vld [vmem:[%s2797 + $0xc] sm:$0xf]
        %v2806 = vunpack.c.l.b16 %v2798
        %v2807 = vunpack.c.l.b16 %v2799
        %v2808 = vunpack.c.l.b16 %v2800
        %v2809 = vunpack.c.l.b16 %v2801
        %v2810 = vpack.c.b16 %v2807, %v2806
        %v2811 = vpack.c.b16 %v2809, %v2808
        %v2813 = vsel %vm740, %v2810, 0
        %v2816 = vsel %vm740, %v2811, 0
        %2818 = vmatpush.bf16.msra.mxu0 0
        %2819 = vmatpush.bf16.msra.mxu0 0
        %2820 = vmatpush.bf16.msra.mxu0 0
        %2821 = vmatpush.bf16.msra.mxu0 0
        %2822 = vmatpush.bf16.msra.mxu0 0
        %2823 = vmatpush.bf16.msra.mxu0 0
        %2824 = vmatpush.bf16.msra.mxu0 0
        %2825 = vmatpush.bf16.msra.mxu0 %v2796
        %2826 = vmatmul.bf16.gmra.mxu0 %v2813
        %v2827 = vpop.f32.mrf.mxu0
        %v2828 = vadd.f32 0.0, %v2827
        %v2829 = vpop.f32.mrf.mxu0
        %v2830 = vadd.f32 0.0, %v2829
        %2831 = vmatmul.bf16.gmra.mxu0 %v2816
        %v2832 = vpop.f32.mrf.mxu0
        %v2833 = vadd.f32 0.0, %v2832
        %v2834 = vpop.f32.mrf.mxu0
        %v2835 = vadd.f32 0.0, %v2834
        %2836 = vdwg.mxu0
        %v2837 = vadd.f32 %v2633, %v2828
        %v2838 = vadd.f32 %v2634, %v2830
        %v2839 = vadd.f32 %v2635, %v2833
        %v2840 = vadd.f32 %v2636, %v2835
        %s2841 = scalar_lea.vmem %s329, 1536
        %v2842 = vld [vmem:[%s2841] sm:$0xf]
        %v2843 = vld [vmem:[%s2841 + $0x4] sm:$0xf]
        %v2844 = vld [vmem:[%s2841 + $0x8] sm:$0xf]
        %v2845 = vld [vmem:[%s2841 + $0xc] sm:$0xf]
        %v2846 = vld [vmem:[%s2841 + $0x10] sm:$0xf]
        %v2847 = vld [vmem:[%s2841 + $0x14] sm:$0xf]
        %v2848 = vld [vmem:[%s2841 + $0x18] sm:$0xf]
        %v2849 = vld [vmem:[%s2841 + $0x1c] sm:$0xf]
        %v2850 = vld [vmem:[%s2841 + $0x20] sm:$0xf]
        %v2851 = vld [vmem:[%s2841 + $0x24] sm:$0xf]
        %v2852 = vld [vmem:[%s2841 + $0x28] sm:$0xf]
        %v2853 = vld [vmem:[%s2841 + $0x2c] sm:$0xf]
        %v2854 = vld [vmem:[%s2841 + $0x30] sm:$0xf]
        %v2855 = vld [vmem:[%s2841 + $0x34] sm:$0xf]
        %v2856 = vld [vmem:[%s2841 + $0x38] sm:$0xf]
        %v2857 = vld [vmem:[%s2841 + $0x3c] sm:$0xf]
        %v2858 = vld [vmem:[%s2841 + $0x40] sm:$0xf]
        %v2859 = vld [vmem:[%s2841 + $0x44] sm:$0xf]
        %v2860 = vld [vmem:[%s2841 + $0x48] sm:$0xf]
        %v2861 = vld [vmem:[%s2841 + $0x4c] sm:$0xf]
        %v2862 = vld [vmem:[%s2841 + $0x50] sm:$0xf]
        %v2863 = vld [vmem:[%s2841 + $0x54] sm:$0xf]
        %v2864 = vld [vmem:[%s2841 + $0x58] sm:$0xf]
        %v2865 = vld [vmem:[%s2841 + $0x5c] sm:$0xf]
        %v2866 = vld [vmem:[%s2841 + $0x60] sm:$0xf]
        %v2867 = vld [vmem:[%s2841 + $0x64] sm:$0xf]
        %v2868 = vld [vmem:[%s2841 + $0x68] sm:$0xf]
        %v2869 = vld [vmem:[%s2841 + $0x6c] sm:$0xf]
        %v2870 = vld [vmem:[%s2841 + $0x70] sm:$0xf]
        %v2871 = vld [vmem:[%s2841 + $0x74] sm:$0xf]
        %v2872 = vld [vmem:[%s2841 + $0x78] sm:$0xf]
        %v2873 = vld [vmem:[%s2841 + $0x7c] sm:$0xf]
        %v2906 = vunpack.c.l.b16 %v2842
        %v2907 = vunpack.c.l.b16 %v2843
        %v2908 = vunpack.c.l.b16 %v2844
        %v2909 = vunpack.c.l.b16 %v2845
        %v2910 = vunpack.c.l.b16 %v2846
        %v2911 = vunpack.c.l.b16 %v2847
        %v2912 = vunpack.c.l.b16 %v2848
        %v2913 = vunpack.c.l.b16 %v2849
        %v2914 = vunpack.c.l.b16 %v2850
        %v2915 = vunpack.c.l.b16 %v2851
        %v2916 = vunpack.c.l.b16 %v2852
        %v2917 = vunpack.c.l.b16 %v2853
        %v2918 = vunpack.c.l.b16 %v2854
        %v2919 = vunpack.c.l.b16 %v2855
        %v2920 = vunpack.c.l.b16 %v2856
        %v2921 = vunpack.c.l.b16 %v2857
        %v2922 = vunpack.c.l.b16 %v2858
        %v2923 = vunpack.c.l.b16 %v2859
        %v2924 = vunpack.c.l.b16 %v2860
        %v2925 = vunpack.c.l.b16 %v2861
        %v2926 = vunpack.c.l.b16 %v2862
        %v2927 = vunpack.c.l.b16 %v2863
        %v2928 = vunpack.c.l.b16 %v2864
        %v2929 = vunpack.c.l.b16 %v2865
        %v2930 = vunpack.c.l.b16 %v2866
        %v2931 = vunpack.c.l.b16 %v2867
        %v2932 = vunpack.c.l.b16 %v2868
        %v2933 = vunpack.c.l.b16 %v2869
        %v2934 = vunpack.c.l.b16 %v2870
        %v2935 = vunpack.c.l.b16 %v2871
        %v2936 = vunpack.c.l.b16 %v2872
        %v2937 = vunpack.c.l.b16 %v2873
        %v2938 = vpack.c.b16 %v2907, %v2906
        %v2939 = vpack.c.b16 %v2909, %v2908
        %v2940 = vpack.c.b16 %v2911, %v2910
        %v2941 = vpack.c.b16 %v2913, %v2912
        %v2942 = vpack.c.b16 %v2915, %v2914
        %v2943 = vpack.c.b16 %v2917, %v2916
        %v2944 = vpack.c.b16 %v2919, %v2918
        %v2945 = vpack.c.b16 %v2921, %v2920
        %v2946 = vpack.c.b16 %v2923, %v2922
        %v2947 = vpack.c.b16 %v2925, %v2924
        %v2948 = vpack.c.b16 %v2927, %v2926
        %v2949 = vpack.c.b16 %v2929, %v2928
        %v2950 = vpack.c.b16 %v2931, %v2930
        %v2951 = vpack.c.b16 %v2933, %v2932
        %v2952 = vpack.c.b16 %v2935, %v2934
        %v2953 = vpack.c.b16 %v2937, %v2936
        %2970 = vmatpush.bf16.msra.mxu0 %v2945
        %2971 = vmatpush.bf16.msra.mxu0 %v2944
        %2972 = vmatpush.bf16.msra.mxu0 %v2943
        %2973 = vmatpush.bf16.msra.mxu0 %v2942
        %2974 = vmatpush.bf16.msra.mxu0 %v2941
        %2975 = vmatpush.bf16.msra.mxu0 %v2940
        %2976 = vmatpush.bf16.msra.mxu0 %v2939
        %2977 = vmatpush.bf16.msra.mxu0 %v2938
        %2978 = vmatmul.bf16.gmra.mxu0 %v430
        %v2979 = vpop.f32.mrf.mxu0
        %v2980 = vadd.f32 %v417, %v2979
        %v2981 = vpop.f32.mrf.mxu0
        %v2982 = vadd.f32 %v422, %v2981
        %2983 = vdwg.mxu0
        %2984 = vmatpush.bf16.msra.mxu0 %v2953
        %2985 = vmatpush.bf16.msra.mxu0 %v2952
        %2986 = vmatpush.bf16.msra.mxu0 %v2951
        %2987 = vmatpush.bf16.msra.mxu0 %v2950
        %2988 = vmatpush.bf16.msra.mxu0 %v2949
        %2989 = vmatpush.bf16.msra.mxu0 %v2948
        %2990 = vmatpush.bf16.msra.mxu0 %v2947
        %2991 = vmatpush.bf16.msra.mxu0 %v2946
        %2992 = vmatmul.bf16.gmra.mxu0 %v431
        %v2993 = vpop.f32.mrf.mxu0
        %v2994 = vadd.f32 %v2980, %v2993
        %v2995 = vpop.f32.mrf.mxu0
        %v2996 = vadd.f32 %v2982, %v2995
        %2997 = vdwg.mxu0
        %v2998 = vmax.f32 %v2994, 0.0
        %v2999 = vmax.f32 %v2996, 0.0
        %v3000 = vpack.c.bf16 %v2999, %v2998
        %s3001 = scalar_lea.vmem %s3, 192
        %v3002 = vld [vmem:[%s3001] sm:$0xf]
        %v3003 = vld [vmem:[%s3001 + $0x4] sm:$0xf]
        %v3004 = vld [vmem:[%s3001 + $0x8] sm:$0xf]
        %v3005 = vld [vmem:[%s3001 + $0xc] sm:$0xf]
        %v3010 = vunpack.c.l.b16 %v3002
        %v3011 = vunpack.c.l.b16 %v3003
        %v3012 = vunpack.c.l.b16 %v3004
        %v3013 = vunpack.c.l.b16 %v3005
        %v3014 = vpack.c.b16 %v3011, %v3010
        %v3015 = vpack.c.b16 %v3013, %v3012
        %v3017 = vsel %vm740, %v3014, 0
        %v3020 = vsel %vm740, %v3015, 0
        %3022 = vmatpush.bf16.msra.mxu0 0
        %3023 = vmatpush.bf16.msra.mxu0 0
        %3024 = vmatpush.bf16.msra.mxu0 0
        %3025 = vmatpush.bf16.msra.mxu0 0
        %3026 = vmatpush.bf16.msra.mxu0 0
        %3027 = vmatpush.bf16.msra.mxu0 0
        %3028 = vmatpush.bf16.msra.mxu0 0
        %3029 = vmatpush.bf16.msra.mxu0 %v3000
        %3030 = vmatmul.bf16.gmra.mxu0 %v3017
        %v3031 = vpop.f32.mrf.mxu0
        %v3032 = vadd.f32 0.0, %v3031
        %v3033 = vpop.f32.mrf.mxu0
        %v3034 = vadd.f32 0.0, %v3033
        %3035 = vmatmul.bf16.gmra.mxu0 %v3020
        %v3036 = vpop.f32.mrf.mxu0
        %v3037 = vadd.f32 0.0, %v3036
        %v3038 = vpop.f32.mrf.mxu0
        %v3039 = vadd.f32 0.0, %v3038
        %3040 = vdwg.mxu0
        %v3041 = vadd.f32 %v2837, %v3032
        %v3042 = vadd.f32 %v2838, %v3034
        %v3043 = vadd.f32 %v2839, %v3037
        %v3044 = vadd.f32 %v2840, %v3039
        %s3045 = scalar_lea.vmem %s329, 1664
        %v3046 = vld [vmem:[%s3045] sm:$0xf]
        %v3047 = vld [vmem:[%s3045 + $0x4] sm:$0xf]
        %v3048 = vld [vmem:[%s3045 + $0x8] sm:$0xf]
        %v3049 = vld [vmem:[%s3045 + $0xc] sm:$0xf]
        %v3050 = vld [vmem:[%s3045 + $0x10] sm:$0xf]
        %v3051 = vld [vmem:[%s3045 + $0x14] sm:$0xf]
        %v3052 = vld [vmem:[%s3045 + $0x18] sm:$0xf]
        %v3053 = vld [vmem:[%s3045 + $0x1c] sm:$0xf]
        %v3054 = vld [vmem:[%s3045 + $0x20] sm:$0xf]
        %v3055 = vld [vmem:[%s3045 + $0x24] sm:$0xf]
        %v3056 = vld [vmem:[%s3045 + $0x28] sm:$0xf]
        %v3057 = vld [vmem:[%s3045 + $0x2c] sm:$0xf]
        %v3058 = vld [vmem:[%s3045 + $0x30] sm:$0xf]
        %v3059 = vld [vmem:[%s3045 + $0x34] sm:$0xf]
        %v3060 = vld [vmem:[%s3045 + $0x38] sm:$0xf]
        %v3061 = vld [vmem:[%s3045 + $0x3c] sm:$0xf]
        %v3062 = vld [vmem:[%s3045 + $0x40] sm:$0xf]
        %v3063 = vld [vmem:[%s3045 + $0x44] sm:$0xf]
        %v3064 = vld [vmem:[%s3045 + $0x48] sm:$0xf]
        %v3065 = vld [vmem:[%s3045 + $0x4c] sm:$0xf]
        %v3066 = vld [vmem:[%s3045 + $0x50] sm:$0xf]
        %v3067 = vld [vmem:[%s3045 + $0x54] sm:$0xf]
        %v3068 = vld [vmem:[%s3045 + $0x58] sm:$0xf]
        %v3069 = vld [vmem:[%s3045 + $0x5c] sm:$0xf]
        %v3070 = vld [vmem:[%s3045 + $0x60] sm:$0xf]
        %v3071 = vld [vmem:[%s3045 + $0x64] sm:$0xf]
        %v3072 = vld [vmem:[%s3045 + $0x68] sm:$0xf]
        %v3073 = vld [vmem:[%s3045 + $0x6c] sm:$0xf]
        %v3074 = vld [vmem:[%s3045 + $0x70] sm:$0xf]
        %v3075 = vld [vmem:[%s3045 + $0x74] sm:$0xf]
        %v3076 = vld [vmem:[%s3045 + $0x78] sm:$0xf]
        %v3077 = vld [vmem:[%s3045 + $0x7c] sm:$0xf]
        %v3110 = vunpack.c.l.b16 %v3046
        %v3111 = vunpack.c.l.b16 %v3047
        %v3112 = vunpack.c.l.b16 %v3048
        %v3113 = vunpack.c.l.b16 %v3049
        %v3114 = vunpack.c.l.b16 %v3050
        %v3115 = vunpack.c.l.b16 %v3051
        %v3116 = vunpack.c.l.b16 %v3052
        %v3117 = vunpack.c.l.b16 %v3053
        %v3118 = vunpack.c.l.b16 %v3054
        %v3119 = vunpack.c.l.b16 %v3055
        %v3120 = vunpack.c.l.b16 %v3056
        %v3121 = vunpack.c.l.b16 %v3057
        %v3122 = vunpack.c.l.b16 %v3058
        %v3123 = vunpack.c.l.b16 %v3059
        %v3124 = vunpack.c.l.b16 %v3060
        %v3125 = vunpack.c.l.b16 %v3061
        %v3126 = vunpack.c.l.b16 %v3062
        %v3127 = vunpack.c.l.b16 %v3063
        %v3128 = vunpack.c.l.b16 %v3064
        %v3129 = vunpack.c.l.b16 %v3065
        %v3130 = vunpack.c.l.b16 %v3066
        %v3131 = vunpack.c.l.b16 %v3067
        %v3132 = vunpack.c.l.b16 %v3068
        %v3133 = vunpack.c.l.b16 %v3069
        %v3134 = vunpack.c.l.b16 %v3070
        %v3135 = vunpack.c.l.b16 %v3071
        %v3136 = vunpack.c.l.b16 %v3072
        %v3137 = vunpack.c.l.b16 %v3073
        %v3138 = vunpack.c.l.b16 %v3074
        %v3139 = vunpack.c.l.b16 %v3075
        %v3140 = vunpack.c.l.b16 %v3076
        %v3141 = vunpack.c.l.b16 %v3077
        %v3142 = vpack.c.b16 %v3111, %v3110
        %v3143 = vpack.c.b16 %v3113, %v3112
        %v3144 = vpack.c.b16 %v3115, %v3114
        %v3145 = vpack.c.b16 %v3117, %v3116
        %v3146 = vpack.c.b16 %v3119, %v3118
        %v3147 = vpack.c.b16 %v3121, %v3120
        %v3148 = vpack.c.b16 %v3123, %v3122
        %v3149 = vpack.c.b16 %v3125, %v3124
        %v3150 = vpack.c.b16 %v3127, %v3126
        %v3151 = vpack.c.b16 %v3129, %v3128
        %v3152 = vpack.c.b16 %v3131, %v3130
        %v3153 = vpack.c.b16 %v3133, %v3132
        %v3154 = vpack.c.b16 %v3135, %v3134
        %v3155 = vpack.c.b16 %v3137, %v3136
        %v3156 = vpack.c.b16 %v3139, %v3138
        %v3157 = vpack.c.b16 %v3141, %v3140
        %3174 = vmatpush.bf16.msra.mxu0 %v3149
        %3175 = vmatpush.bf16.msra.mxu0 %v3148
        %3176 = vmatpush.bf16.msra.mxu0 %v3147
        %3177 = vmatpush.bf16.msra.mxu0 %v3146
        %3178 = vmatpush.bf16.msra.mxu0 %v3145
        %3179 = vmatpush.bf16.msra.mxu0 %v3144
        %3180 = vmatpush.bf16.msra.mxu0 %v3143
        %3181 = vmatpush.bf16.msra.mxu0 %v3142
        %3182 = vmatmul.bf16.gmra.mxu0 %v430
        %v3183 = vpop.f32.mrf.mxu0
        %v3184 = vadd.f32 %v417, %v3183
        %v3185 = vpop.f32.mrf.mxu0
        %v3186 = vadd.f32 %v422, %v3185
        %3187 = vdwg.mxu0
        %3188 = vmatpush.bf16.msra.mxu0 %v3157
        %3189 = vmatpush.bf16.msra.mxu0 %v3156
        %3190 = vmatpush.bf16.msra.mxu0 %v3155
        %3191 = vmatpush.bf16.msra.mxu0 %v3154
        %3192 = vmatpush.bf16.msra.mxu0 %v3153
        %3193 = vmatpush.bf16.msra.mxu0 %v3152
        %3194 = vmatpush.bf16.msra.mxu0 %v3151
        %3195 = vmatpush.bf16.msra.mxu0 %v3150
        %3196 = vmatmul.bf16.gmra.mxu0 %v431
        %v3197 = vpop.f32.mrf.mxu0
        %v3198 = vadd.f32 %v3184, %v3197
        %v3199 = vpop.f32.mrf.mxu0
        %v3200 = vadd.f32 %v3186, %v3199
        %3201 = vdwg.mxu0
        %v3202 = vmax.f32 %v3198, 0.0
        %v3203 = vmax.f32 %v3200, 0.0
        %v3204 = vpack.c.bf16 %v3203, %v3202
        %s3205 = scalar_lea.vmem %s3, 208
        %v3206 = vld [vmem:[%s3205] sm:$0xf]
        %v3207 = vld [vmem:[%s3205 + $0x4] sm:$0xf]
        %v3208 = vld [vmem:[%s3205 + $0x8] sm:$0xf]
        %v3209 = vld [vmem:[%s3205 + $0xc] sm:$0xf]
        %v3214 = vunpack.c.l.b16 %v3206
        %v3215 = vunpack.c.l.b16 %v3207
        %v3216 = vunpack.c.l.b16 %v3208
        %v3217 = vunpack.c.l.b16 %v3209
        %v3218 = vpack.c.b16 %v3215, %v3214
        %v3219 = vpack.c.b16 %v3217, %v3216
        %v3221 = vsel %vm740, %v3218, 0
        %v3224 = vsel %vm740, %v3219, 0
        %3226 = vmatpush.bf16.msra.mxu0 0
        %3227 = vmatpush.bf16.msra.mxu0 0
        %3228 = vmatpush.bf16.msra.mxu0 0
        %3229 = vmatpush.bf16.msra.mxu0 0
        %3230 = vmatpush.bf16.msra.mxu0 0
        %3231 = vmatpush.bf16.msra.mxu0 0
        %3232 = vmatpush.bf16.msra.mxu0 0
        %3233 = vmatpush.bf16.msra.mxu0 %v3204
        %3234 = vmatmul.bf16.gmra.mxu0 %v3221
        %v3235 = vpop.f32.mrf.mxu0
        %v3236 = vadd.f32 0.0, %v3235
        %v3237 = vpop.f32.mrf.mxu0
        %v3238 = vadd.f32 0.0, %v3237
        %3239 = vmatmul.bf16.gmra.mxu0 %v3224
        %v3240 = vpop.f32.mrf.mxu0
        %v3241 = vadd.f32 0.0, %v3240
        %v3242 = vpop.f32.mrf.mxu0
        %v3243 = vadd.f32 0.0, %v3242
        %3244 = vdwg.mxu0
        %v3245 = vadd.f32 %v3041, %v3236
        %v3246 = vadd.f32 %v3042, %v3238
        %v3247 = vadd.f32 %v3043, %v3241
        %v3248 = vadd.f32 %v3044, %v3243
        %s3249 = scalar_lea.vmem %s329, 1792
        %v3250 = vld [vmem:[%s3249] sm:$0xf]
        %v3251 = vld [vmem:[%s3249 + $0x4] sm:$0xf]
        %v3252 = vld [vmem:[%s3249 + $0x8] sm:$0xf]
        %v3253 = vld [vmem:[%s3249 + $0xc] sm:$0xf]
        %v3254 = vld [vmem:[%s3249 + $0x10] sm:$0xf]
        %v3255 = vld [vmem:[%s3249 + $0x14] sm:$0xf]
        %v3256 = vld [vmem:[%s3249 + $0x18] sm:$0xf]
        %v3257 = vld [vmem:[%s3249 + $0x1c] sm:$0xf]
        %v3258 = vld [vmem:[%s3249 + $0x20] sm:$0xf]
        %v3259 = vld [vmem:[%s3249 + $0x24] sm:$0xf]
        %v3260 = vld [vmem:[%s3249 + $0x28] sm:$0xf]
        %v3261 = vld [vmem:[%s3249 + $0x2c] sm:$0xf]
        %v3262 = vld [vmem:[%s3249 + $0x30] sm:$0xf]
        %v3263 = vld [vmem:[%s3249 + $0x34] sm:$0xf]
        %v3264 = vld [vmem:[%s3249 + $0x38] sm:$0xf]
        %v3265 = vld [vmem:[%s3249 + $0x3c] sm:$0xf]
        %v3266 = vld [vmem:[%s3249 + $0x40] sm:$0xf]
        %v3267 = vld [vmem:[%s3249 + $0x44] sm:$0xf]
        %v3268 = vld [vmem:[%s3249 + $0x48] sm:$0xf]
        %v3269 = vld [vmem:[%s3249 + $0x4c] sm:$0xf]
        %v3270 = vld [vmem:[%s3249 + $0x50] sm:$0xf]
        %v3271 = vld [vmem:[%s3249 + $0x54] sm:$0xf]
        %v3272 = vld [vmem:[%s3249 + $0x58] sm:$0xf]
        %v3273 = vld [vmem:[%s3249 + $0x5c] sm:$0xf]
        %v3274 = vld [vmem:[%s3249 + $0x60] sm:$0xf]
        %v3275 = vld [vmem:[%s3249 + $0x64] sm:$0xf]
        %v3276 = vld [vmem:[%s3249 + $0x68] sm:$0xf]
        %v3277 = vld [vmem:[%s3249 + $0x6c] sm:$0xf]
        %v3278 = vld [vmem:[%s3249 + $0x70] sm:$0xf]
        %v3279 = vld [vmem:[%s3249 + $0x74] sm:$0xf]
        %v3280 = vld [vmem:[%s3249 + $0x78] sm:$0xf]
        %v3281 = vld [vmem:[%s3249 + $0x7c] sm:$0xf]
        %v3314 = vunpack.c.l.b16 %v3250
        %v3315 = vunpack.c.l.b16 %v3251
        %v3316 = vunpack.c.l.b16 %v3252
        %v3317 = vunpack.c.l.b16 %v3253
        %v3318 = vunpack.c.l.b16 %v3254
        %v3319 = vunpack.c.l.b16 %v3255
        %v3320 = vunpack.c.l.b16 %v3256
        %v3321 = vunpack.c.l.b16 %v3257
        %v3322 = vunpack.c.l.b16 %v3258
        %v3323 = vunpack.c.l.b16 %v3259
        %v3324 = vunpack.c.l.b16 %v3260
        %v3325 = vunpack.c.l.b16 %v3261
        %v3326 = vunpack.c.l.b16 %v3262
        %v3327 = vunpack.c.l.b16 %v3263
        %v3328 = vunpack.c.l.b16 %v3264
        %v3329 = vunpack.c.l.b16 %v3265
        %v3330 = vunpack.c.l.b16 %v3266
        %v3331 = vunpack.c.l.b16 %v3267
        %v3332 = vunpack.c.l.b16 %v3268
        %v3333 = vunpack.c.l.b16 %v3269
        %v3334 = vunpack.c.l.b16 %v3270
        %v3335 = vunpack.c.l.b16 %v3271
        %v3336 = vunpack.c.l.b16 %v3272
        %v3337 = vunpack.c.l.b16 %v3273
        %v3338 = vunpack.c.l.b16 %v3274
        %v3339 = vunpack.c.l.b16 %v3275
        %v3340 = vunpack.c.l.b16 %v3276
        %v3341 = vunpack.c.l.b16 %v3277
        %v3342 = vunpack.c.l.b16 %v3278
        %v3343 = vunpack.c.l.b16 %v3279
        %v3344 = vunpack.c.l.b16 %v3280
        %v3345 = vunpack.c.l.b16 %v3281
        %v3346 = vpack.c.b16 %v3315, %v3314
        %v3347 = vpack.c.b16 %v3317, %v3316
        %v3348 = vpack.c.b16 %v3319, %v3318
        %v3349 = vpack.c.b16 %v3321, %v3320
        %v3350 = vpack.c.b16 %v3323, %v3322
        %v3351 = vpack.c.b16 %v3325, %v3324
        %v3352 = vpack.c.b16 %v3327, %v3326
        %v3353 = vpack.c.b16 %v3329, %v3328
        %v3354 = vpack.c.b16 %v3331, %v3330
        %v3355 = vpack.c.b16 %v3333, %v3332
        %v3356 = vpack.c.b16 %v3335, %v3334
        %v3357 = vpack.c.b16 %v3337, %v3336
        %v3358 = vpack.c.b16 %v3339, %v3338
        %v3359 = vpack.c.b16 %v3341, %v3340
        %v3360 = vpack.c.b16 %v3343, %v3342
        %v3361 = vpack.c.b16 %v3345, %v3344
        %3378 = vmatpush.bf16.msra.mxu0 %v3353
        %3379 = vmatpush.bf16.msra.mxu0 %v3352
        %3380 = vmatpush.bf16.msra.mxu0 %v3351
        %3381 = vmatpush.bf16.msra.mxu0 %v3350
        %3382 = vmatpush.bf16.msra.mxu0 %v3349
        %3383 = vmatpush.bf16.msra.mxu0 %v3348
        %3384 = vmatpush.bf16.msra.mxu0 %v3347
        %3385 = vmatpush.bf16.msra.mxu0 %v3346
        %3386 = vmatmul.bf16.gmra.mxu0 %v430
        %v3387 = vpop.f32.mrf.mxu0
        %v3388 = vadd.f32 %v417, %v3387
        %v3389 = vpop.f32.mrf.mxu0
        %v3390 = vadd.f32 %v422, %v3389
        %3391 = vdwg.mxu0
        %3392 = vmatpush.bf16.msra.mxu0 %v3361
        %3393 = vmatpush.bf16.msra.mxu0 %v3360
        %3394 = vmatpush.bf16.msra.mxu0 %v3359
        %3395 = vmatpush.bf16.msra.mxu0 %v3358
        %3396 = vmatpush.bf16.msra.mxu0 %v3357
        %3397 = vmatpush.bf16.msra.mxu0 %v3356
        %3398 = vmatpush.bf16.msra.mxu0 %v3355
        %3399 = vmatpush.bf16.msra.mxu0 %v3354
        %3400 = vmatmul.bf16.gmra.mxu0 %v431
        %v3401 = vpop.f32.mrf.mxu0
        %v3402 = vadd.f32 %v3388, %v3401
        %v3403 = vpop.f32.mrf.mxu0
        %v3404 = vadd.f32 %v3390, %v3403
        %3405 = vdwg.mxu0
        %v3406 = vmax.f32 %v3402, 0.0
        %v3407 = vmax.f32 %v3404, 0.0
        %v3408 = vpack.c.bf16 %v3407, %v3406
        %s3409 = scalar_lea.vmem %s3, 224
        %v3410 = vld [vmem:[%s3409] sm:$0xf]
        %v3411 = vld [vmem:[%s3409 + $0x4] sm:$0xf]
        %v3412 = vld [vmem:[%s3409 + $0x8] sm:$0xf]
        %v3413 = vld [vmem:[%s3409 + $0xc] sm:$0xf]
        %v3418 = vunpack.c.l.b16 %v3410
        %v3419 = vunpack.c.l.b16 %v3411
        %v3420 = vunpack.c.l.b16 %v3412
        %v3421 = vunpack.c.l.b16 %v3413
        %v3422 = vpack.c.b16 %v3419, %v3418
        %v3423 = vpack.c.b16 %v3421, %v3420
        %v3425 = vsel %vm740, %v3422, 0
        %v3428 = vsel %vm740, %v3423, 0
        %3430 = vmatpush.bf16.msra.mxu0 0
        %3431 = vmatpush.bf16.msra.mxu0 0
        %3432 = vmatpush.bf16.msra.mxu0 0
        %3433 = vmatpush.bf16.msra.mxu0 0
        %3434 = vmatpush.bf16.msra.mxu0 0
        %3435 = vmatpush.bf16.msra.mxu0 0
        %3436 = vmatpush.bf16.msra.mxu0 0
        %3437 = vmatpush.bf16.msra.mxu0 %v3408
        %3438 = vmatmul.bf16.gmra.mxu0 %v3425
        %v3439 = vpop.f32.mrf.mxu0
        %v3440 = vadd.f32 0.0, %v3439
        %v3441 = vpop.f32.mrf.mxu0
        %v3442 = vadd.f32 0.0, %v3441
        %3443 = vmatmul.bf16.gmra.mxu0 %v3428
        %v3444 = vpop.f32.mrf.mxu0
        %v3445 = vadd.f32 0.0, %v3444
        %v3446 = vpop.f32.mrf.mxu0
        %v3447 = vadd.f32 0.0, %v3446
        %3448 = vdwg.mxu0
        %v3449 = vadd.f32 %v3245, %v3440
        %v3450 = vadd.f32 %v3246, %v3442
        %v3451 = vadd.f32 %v3247, %v3445
        %v3452 = vadd.f32 %v3248, %v3447
        %s3453 = scalar_lea.vmem %s329, 1920
        %v3454 = vld [vmem:[%s3453] sm:$0xf]
        %v3455 = vld [vmem:[%s3453 + $0x4] sm:$0xf]
        %v3456 = vld [vmem:[%s3453 + $0x8] sm:$0xf]
        %v3457 = vld [vmem:[%s3453 + $0xc] sm:$0xf]
        %v3458 = vld [vmem:[%s3453 + $0x10] sm:$0xf]
        %v3459 = vld [vmem:[%s3453 + $0x14] sm:$0xf]
        %v3460 = vld [vmem:[%s3453 + $0x18] sm:$0xf]
        %v3461 = vld [vmem:[%s3453 + $0x1c] sm:$0xf]
        %v3462 = vld [vmem:[%s3453 + $0x20] sm:$0xf]
        %v3463 = vld [vmem:[%s3453 + $0x24] sm:$0xf]
        %v3464 = vld [vmem:[%s3453 + $0x28] sm:$0xf]
        %v3465 = vld [vmem:[%s3453 + $0x2c] sm:$0xf]
        %v3466 = vld [vmem:[%s3453 + $0x30] sm:$0xf]
        %v3467 = vld [vmem:[%s3453 + $0x34] sm:$0xf]
        %v3468 = vld [vmem:[%s3453 + $0x38] sm:$0xf]
        %v3469 = vld [vmem:[%s3453 + $0x3c] sm:$0xf]
        %v3470 = vld [vmem:[%s3453 + $0x40] sm:$0xf]
        %v3471 = vld [vmem:[%s3453 + $0x44] sm:$0xf]
        %v3472 = vld [vmem:[%s3453 + $0x48] sm:$0xf]
        %v3473 = vld [vmem:[%s3453 + $0x4c] sm:$0xf]
        %v3474 = vld [vmem:[%s3453 + $0x50] sm:$0xf]
        %v3475 = vld [vmem:[%s3453 + $0x54] sm:$0xf]
        %v3476 = vld [vmem:[%s3453 + $0x58] sm:$0xf]
        %v3477 = vld [vmem:[%s3453 + $0x5c] sm:$0xf]
        %v3478 = vld [vmem:[%s3453 + $0x60] sm:$0xf]
        %v3479 = vld [vmem:[%s3453 + $0x64] sm:$0xf]
        %v3480 = vld [vmem:[%s3453 + $0x68] sm:$0xf]
        %v3481 = vld [vmem:[%s3453 + $0x6c] sm:$0xf]
        %v3482 = vld [vmem:[%s3453 + $0x70] sm:$0xf]
        %v3483 = vld [vmem:[%s3453 + $0x74] sm:$0xf]
        %v3484 = vld [vmem:[%s3453 + $0x78] sm:$0xf]
        %v3485 = vld [vmem:[%s3453 + $0x7c] sm:$0xf]
        %v3518 = vunpack.c.l.b16 %v3454
        %v3519 = vunpack.c.l.b16 %v3455
        %v3520 = vunpack.c.l.b16 %v3456
        %v3521 = vunpack.c.l.b16 %v3457
        %v3522 = vunpack.c.l.b16 %v3458
        %v3523 = vunpack.c.l.b16 %v3459
        %v3524 = vunpack.c.l.b16 %v3460
        %v3525 = vunpack.c.l.b16 %v3461
        %v3526 = vunpack.c.l.b16 %v3462
        %v3527 = vunpack.c.l.b16 %v3463
        %v3528 = vunpack.c.l.b16 %v3464
        %v3529 = vunpack.c.l.b16 %v3465
        %v3530 = vunpack.c.l.b16 %v3466
        %v3531 = vunpack.c.l.b16 %v3467
        %v3532 = vunpack.c.l.b16 %v3468
        %v3533 = vunpack.c.l.b16 %v3469
        %v3534 = vunpack.c.l.b16 %v3470
        %v3535 = vunpack.c.l.b16 %v3471
        %v3536 = vunpack.c.l.b16 %v3472
        %v3537 = vunpack.c.l.b16 %v3473
        %v3538 = vunpack.c.l.b16 %v3474
        %v3539 = vunpack.c.l.b16 %v3475
        %v3540 = vunpack.c.l.b16 %v3476
        %v3541 = vunpack.c.l.b16 %v3477
        %v3542 = vunpack.c.l.b16 %v3478
        %v3543 = vunpack.c.l.b16 %v3479
        %v3544 = vunpack.c.l.b16 %v3480
        %v3545 = vunpack.c.l.b16 %v3481
        %v3546 = vunpack.c.l.b16 %v3482
        %v3547 = vunpack.c.l.b16 %v3483
        %v3548 = vunpack.c.l.b16 %v3484
        %v3549 = vunpack.c.l.b16 %v3485
        %v3550 = vpack.c.b16 %v3519, %v3518
        %v3551 = vpack.c.b16 %v3521, %v3520
        %v3552 = vpack.c.b16 %v3523, %v3522
        %v3553 = vpack.c.b16 %v3525, %v3524
        %v3554 = vpack.c.b16 %v3527, %v3526
        %v3555 = vpack.c.b16 %v3529, %v3528
        %v3556 = vpack.c.b16 %v3531, %v3530
        %v3557 = vpack.c.b16 %v3533, %v3532
        %v3558 = vpack.c.b16 %v3535, %v3534
        %v3559 = vpack.c.b16 %v3537, %v3536
        %v3560 = vpack.c.b16 %v3539, %v3538
        %v3561 = vpack.c.b16 %v3541, %v3540
        %v3562 = vpack.c.b16 %v3543, %v3542
        %v3563 = vpack.c.b16 %v3545, %v3544
        %v3564 = vpack.c.b16 %v3547, %v3546
        %v3565 = vpack.c.b16 %v3549, %v3548
        %3582 = vmatpush.bf16.msra.mxu0 %v3557
        %3583 = vmatpush.bf16.msra.mxu0 %v3556
        %3584 = vmatpush.bf16.msra.mxu0 %v3555
        %3585 = vmatpush.bf16.msra.mxu0 %v3554
        %3586 = vmatpush.bf16.msra.mxu0 %v3553
        %3587 = vmatpush.bf16.msra.mxu0 %v3552
        %3588 = vmatpush.bf16.msra.mxu0 %v3551
        %3589 = vmatpush.bf16.msra.mxu0 %v3550
        %3590 = vmatmul.bf16.gmra.mxu0 %v430
        %v3591 = vpop.f32.mrf.mxu0
        %v3592 = vadd.f32 %v417, %v3591
        %v3593 = vpop.f32.mrf.mxu0
        %v3594 = vadd.f32 %v422, %v3593
        %3595 = vdwg.mxu0
        %3596 = vmatpush.bf16.msra.mxu0 %v3565
        %3597 = vmatpush.bf16.msra.mxu0 %v3564
        %3598 = vmatpush.bf16.msra.mxu0 %v3563
        %3599 = vmatpush.bf16.msra.mxu0 %v3562
        %3600 = vmatpush.bf16.msra.mxu0 %v3561
        %3601 = vmatpush.bf16.msra.mxu0 %v3560
        %3602 = vmatpush.bf16.msra.mxu0 %v3559
        %3603 = vmatpush.bf16.msra.mxu0 %v3558
        %3604 = vmatmul.bf16.gmra.mxu0 %v431
        %v3605 = vpop.f32.mrf.mxu0
        %v3606 = vadd.f32 %v3592, %v3605
        %v3607 = vpop.f32.mrf.mxu0
        %v3608 = vadd.f32 %v3594, %v3607
        %3609 = vdwg.mxu0
        %v3610 = vmax.f32 %v3606, 0.0
        %v3611 = vmax.f32 %v3608, 0.0
        %v3612 = vpack.c.bf16 %v3611, %v3610
        %s3613 = scalar_lea.vmem %s3, 240
        %v3614 = vld [vmem:[%s3613] sm:$0xf]
        %v3615 = vld [vmem:[%s3613 + $0x4] sm:$0xf]
        %v3616 = vld [vmem:[%s3613 + $0x8] sm:$0xf]
        %v3617 = vld [vmem:[%s3613 + $0xc] sm:$0xf]
        %v3622 = vunpack.c.l.b16 %v3614
        %v3623 = vunpack.c.l.b16 %v3615
        %v3624 = vunpack.c.l.b16 %v3616
        %v3625 = vunpack.c.l.b16 %v3617
        %v3626 = vpack.c.b16 %v3623, %v3622
        %v3627 = vpack.c.b16 %v3625, %v3624
        %v3629 = vsel %vm740, %v3626, 0
        %v3632 = vsel %vm740, %v3627, 0
        %3634 = vmatpush.bf16.msra.mxu0 0
        %3635 = vmatpush.bf16.msra.mxu0 0
        %3636 = vmatpush.bf16.msra.mxu0 0
        %3637 = vmatpush.bf16.msra.mxu0 0
        %3638 = vmatpush.bf16.msra.mxu0 0
        %3639 = vmatpush.bf16.msra.mxu0 0
        %3640 = vmatpush.bf16.msra.mxu0 0
        %3641 = vmatpush.bf16.msra.mxu0 %v3612
        %3642 = vmatmul.bf16.gmra.mxu0 %v3629
        %v3643 = vpop.f32.mrf.mxu0
        %v3644 = vadd.f32 0.0, %v3643
        %v3645 = vpop.f32.mrf.mxu0
        %v3646 = vadd.f32 0.0, %v3645
        %3647 = vmatmul.bf16.gmra.mxu0 %v3632
        %v3648 = vpop.f32.mrf.mxu0
        %v3649 = vadd.f32 0.0, %v3648
        %v3650 = vpop.f32.mrf.mxu0
        %v3651 = vadd.f32 0.0, %v3650
        %3652 = vdwg.mxu0
        %v3653 = vadd.f32 %v3449, %v3644
        %v3654 = vadd.f32 %v3450, %v3646
        %v3655 = vadd.f32 %v3451, %v3649
        %v3656 = vadd.f32 %v3452, %v3651
        %3658 = vset.pattern.permute.xlu0 0
        %3659 = vperm.xlu0 %3658, %v378
        %v3660 = vpop.permute.xlu0 %3659
        %3663 = vset.pattern.permute.xlu0 0
        %3664 = vperm.xlu0 %3663, %v379
        %v3665 = vpop.permute.xlu0 %3664
        %3668 = vset.pattern.permute.xlu0 0
        %3669 = vperm.xlu0 %3668, %v380
        %v3670 = vpop.permute.xlu0 %3669
        %3673 = vset.pattern.permute.xlu0 0
        %3674 = vperm.xlu0 %3673, %v381
        %v3675 = vpop.permute.xlu0 %3674
        %v3677 = vadd.f32 %v3653, %v3660
        %v3678 = vadd.f32 %v3654, %v3665
        %v3679 = vadd.f32 %v3655, %v3670
        %v3680 = vadd.f32 %v3656, %v3675
        %v3681 = vmax.f32 %v3677, 0.0
        %v3682 = vmax.f32 %v3678, 0.0
        %v3683 = vmax.f32 %v3679, 0.0
        %v3684 = vmax.f32 %v3680, 0.0
        %v3685 = vpack.c.bf16 %v3681, %v3681
        %v3686 = vpack.c.bf16 %v3682, %v3682
        %v3687 = vpack.c.bf16 %v3683, %v3683
        %v3688 = vpack.c.bf16 %v3684, %v3684
        %vm3689 = vcmask 655360
        %vm3690 = vmand %vm3689, %vm332
        %v3691 = vld [vmem:[#allocation2] sm:$0x1]
        %v3692 = vsel %vm3690, %v3685, %v3691
        %3693 = vst [vmem:[#allocation2] sm:$0x1] %v3692
        %v3695 = vrot.slane %v3685, 3
        %vm3696 = vcmask 1040384
        %v3699 = vsel %vm3696, %v3685, %v3695
        %v3700 = vshrl.u32 %v3699, 16
        %v3702 = vrot.slane %v3700, 7
        %v3703 = vrot.slane %v3702, 1
        %v3705 = vld [vmem:[#allocation2 + $0x1] sm:$0x1]
        %v3706 = vsel %vm3690, %v3703, %v3705
        %3707 = vst [vmem:[#allocation2 + $0x1] sm:$0x1] %v3706
        %3708 = vst [vmem:[#allocation1] sm:$0xff] %v3685
        %s3709 = scalar_lea.vmem [#allocation1], 1
        %v3710 = vld [vmem:[%s3709] ss:$4 sm:$0xff]
        %v3712 = vld [vmem:[#allocation2 + $0x2] sm:$0x1]
        %v3713 = vsel %vm3690, %v3710, %v3712
        %3714 = vst [vmem:[#allocation2 + $0x2] sm:$0x1] %v3713
        %3715 = vst [vmem:[#allocation1] sm:$0xff] %v3685
        %s3716 = scalar_lea.vmem [#allocation1], 1
        %v3717 = vld [vmem:[%s3716] ss:$4 sm:$0xff]
        %v3718 = vshrl.u32 %v3717, 16
        %v3720 = vrot.slane %v3718, 7
        %v3721 = vrot.slane %v3720, 1
        %v3723 = vld [vmem:[#allocation2 + $0x3] sm:$0x1]
        %v3724 = vsel %vm3690, %v3721, %v3723
        %3725 = vst [vmem:[#allocation2 + $0x3] sm:$0x1] %v3724
        %3726 = vst [vmem:[#allocation1] sm:$0xff] %v3685
        %s3727 = scalar_lea.vmem [#allocation1], 2
        %v3728 = vld [vmem:[%s3727] ss:$4 sm:$0xff]
        %v3730 = vld [vmem:[#allocation2 + $0x4] sm:$0x1]
        %v3731 = vsel %vm3690, %v3728, %v3730
        %3732 = vst [vmem:[#allocation2 + $0x4] sm:$0x1] %v3731
        %3733 = vst [vmem:[#allocation1] sm:$0xff] %v3685
        %s3734 = scalar_lea.vmem [#allocation1], 2
        %v3735 = vld [vmem:[%s3734] ss:$4 sm:$0xff]
        %v3736 = vshrl.u32 %v3735, 16
        %v3738 = vrot.slane %v3736, 7
        %v3739 = vrot.slane %v3738, 1
        %v3741 = vld [vmem:[#allocation2 + $0x5] sm:$0x1]
        %v3742 = vsel %vm3690, %v3739, %v3741
        %3743 = vst [vmem:[#allocation2 + $0x5] sm:$0x1] %v3742
        %3744 = vst [vmem:[#allocation1] sm:$0xff] %v3685
        %s3745 = scalar_lea.vmem [#allocation1], 3
        %v3746 = vld [vmem:[%s3745] ss:$4 sm:$0xff]
        %v3748 = vld [vmem:[#allocation2 + $0x6] sm:$0x1]
        %v3749 = vsel %vm3690, %v3746, %v3748
        %3750 = vst [vmem:[#allocation2 + $0x6] sm:$0x1] %v3749
        %3751 = vst [vmem:[#allocation1] sm:$0xff] %v3685
        %s3752 = scalar_lea.vmem [#allocation1], 3
        %v3753 = vld [vmem:[%s3752] ss:$4 sm:$0xff]
        %v3754 = vshrl.u32 %v3753, 16
        %v3756 = vrot.slane %v3754, 7
        %v3757 = vrot.slane %v3756, 1
        %v3759 = vld [vmem:[#allocation2 + $0x7] sm:$0x1]
        %v3760 = vsel %vm3690, %v3757, %v3759
        %3761 = vst [vmem:[#allocation2 + $0x7] sm:$0x1] %v3760
        %v3762 = vld [vmem:[#allocation2 + $0x8] sm:$0x1]
        %v3763 = vsel %vm3690, %v3686, %v3762
        %3764 = vst [vmem:[#allocation2 + $0x8] sm:$0x1] %v3763
        %v3766 = vrot.slane %v3686, 3
        %v3769 = vsel %vm3696, %v3686, %v3766
        %v3770 = vshrl.u32 %v3769, 16
        %v3772 = vrot.slane %v3770, 7
        %v3773 = vrot.slane %v3772, 1
        %v3775 = vld [vmem:[#allocation2 + $0x9] sm:$0x1]
        %v3776 = vsel %vm3690, %v3773, %v3775
        %3777 = vst [vmem:[#allocation2 + $0x9] sm:$0x1] %v3776
        %3778 = vst [vmem:[#allocation1] sm:$0xff] %v3686
        %s3779 = scalar_lea.vmem [#allocation1], 1
        %v3780 = vld [vmem:[%s3779] ss:$4 sm:$0xff]
        %v3782 = vld [vmem:[#allocation2 + $0xa] sm:$0x1]
        %v3783 = vsel %vm3690, %v3780, %v3782
        %3784 = vst [vmem:[#allocation2 + $0xa] sm:$0x1] %v3783
        %3785 = vst [vmem:[#allocation1] sm:$0xff] %v3686
        %s3786 = scalar_lea.vmem [#allocation1], 1
        %v3787 = vld [vmem:[%s3786] ss:$4 sm:$0xff]
        %v3788 = vshrl.u32 %v3787, 16
        %v3790 = vrot.slane %v3788, 7
        %v3791 = vrot.slane %v3790, 1
        %v3793 = vld [vmem:[#allocation2 + $0xb] sm:$0x1]
        %v3794 = vsel %vm3690, %v3791, %v3793
        %3795 = vst [vmem:[#allocation2 + $0xb] sm:$0x1] %v3794
        %3796 = vst [vmem:[#allocation1] sm:$0xff] %v3686
        %s3797 = scalar_lea.vmem [#allocation1], 2
        %v3798 = vld [vmem:[%s3797] ss:$4 sm:$0xff]
        %v3800 = vld [vmem:[#allocation2 + $0xc] sm:$0x1]
        %v3801 = vsel %vm3690, %v3798, %v3800
        %3802 = vst [vmem:[#allocation2 + $0xc] sm:$0x1] %v3801
        %3803 = vst [vmem:[#allocation1] sm:$0xff] %v3686
        %s3804 = scalar_lea.vmem [#allocation1], 2
        %v3805 = vld [vmem:[%s3804] ss:$4 sm:$0xff]
        %v3806 = vshrl.u32 %v3805, 16
        %v3808 = vrot.slane %v3806, 7
        %v3809 = vrot.slane %v3808, 1
        %v3811 = vld [vmem:[#allocation2 + $0xd] sm:$0x1]
        %v3812 = vsel %vm3690, %v3809, %v3811
        %3813 = vst [vmem:[#allocation2 + $0xd] sm:$0x1] %v3812
        %3814 = vst [vmem:[#allocation1] sm:$0xff] %v3686
        %s3815 = scalar_lea.vmem [#allocation1], 3
        %v3816 = vld [vmem:[%s3815] ss:$4 sm:$0xff]
        %v3818 = vld [vmem:[#allocation2 + $0xe] sm:$0x1]
        %v3819 = vsel %vm3690, %v3816, %v3818
        %3820 = vst [vmem:[#allocation2 + $0xe] sm:$0x1] %v3819
        %3821 = vst [vmem:[#allocation1] sm:$0xff] %v3686
        %s3822 = scalar_lea.vmem [#allocation1], 3
        %v3823 = vld [vmem:[%s3822] ss:$4 sm:$0xff]
        %v3824 = vshrl.u32 %v3823, 16
        %v3826 = vrot.slane %v3824, 7
        %v3827 = vrot.slane %v3826, 1
        %v3829 = vld [vmem:[#allocation2 + $0xf] sm:$0x1]
        %v3830 = vsel %vm3690, %v3827, %v3829
        %3831 = vst [vmem:[#allocation2 + $0xf] sm:$0x1] %v3830
        %v3832 = vld [vmem:[#allocation2 + $0x10] sm:$0x1]
        %v3833 = vsel %vm3690, %v3687, %v3832
        %3834 = vst [vmem:[#allocation2 + $0x10] sm:$0x1] %v3833
        %v3836 = vrot.slane %v3687, 3
        %v3839 = vsel %vm3696, %v3687, %v3836
        %v3840 = vshrl.u32 %v3839, 16
        %v3842 = vrot.slane %v3840, 7
        %v3843 = vrot.slane %v3842, 1
        %v3845 = vld [vmem:[#allocation2 + $0x11] sm:$0x1]
        %v3846 = vsel %vm3690, %v3843, %v3845
        %3847 = vst [vmem:[#allocation2 + $0x11] sm:$0x1] %v3846
        %3848 = vst [vmem:[#allocation1] sm:$0xff] %v3687
        %s3849 = scalar_lea.vmem [#allocation1], 1
        %v3850 = vld [vmem:[%s3849] ss:$4 sm:$0xff]
        %v3852 = vld [vmem:[#allocation2 + $0x12] sm:$0x1]
        %v3853 = vsel %vm3690, %v3850, %v3852
        %3854 = vst [vmem:[#allocation2 + $0x12] sm:$0x1] %v3853
        %3855 = vst [vmem:[#allocation1] sm:$0xff] %v3687
        %s3856 = scalar_lea.vmem [#allocation1], 1
        %v3857 = vld [vmem:[%s3856] ss:$4 sm:$0xff]
        %v3858 = vshrl.u32 %v3857, 16
        %v3860 = vrot.slane %v3858, 7
        %v3861 = vrot.slane %v3860, 1
        %v3863 = vld [vmem:[#allocation2 + $0x13] sm:$0x1]
        %v3864 = vsel %vm3690, %v3861, %v3863
        %3865 = vst [vmem:[#allocation2 + $0x13] sm:$0x1] %v3864
        %3866 = vst [vmem:[#allocation1] sm:$0xff] %v3687
        %s3867 = scalar_lea.vmem [#allocation1], 2
        %v3868 = vld [vmem:[%s3867] ss:$4 sm:$0xff]
        %v3870 = vld [vmem:[#allocation2 + $0x14] sm:$0x1]
        %v3871 = vsel %vm3690, %v3868, %v3870
        %3872 = vst [vmem:[#allocation2 + $0x14] sm:$0x1] %v3871
        %3873 = vst [vmem:[#allocation1] sm:$0xff] %v3687
        %s3874 = scalar_lea.vmem [#allocation1], 2
        %v3875 = vld [vmem:[%s3874] ss:$4 sm:$0xff]
        %v3876 = vshrl.u32 %v3875, 16
        %v3878 = vrot.slane %v3876, 7
        %v3879 = vrot.slane %v3878, 1
        %v3881 = vld [vmem:[#allocation2 + $0x15] sm:$0x1]
        %v3882 = vsel %vm3690, %v3879, %v3881
        %3883 = vst [vmem:[#allocation2 + $0x15] sm:$0x1] %v3882
        %3884 = vst [vmem:[#allocation1] sm:$0xff] %v3687
        %s3885 = scalar_lea.vmem [#allocation1], 3
        %v3886 = vld [vmem:[%s3885] ss:$4 sm:$0xff]
        %v3888 = vld [vmem:[#allocation2 + $0x16] sm:$0x1]
        %v3889 = vsel %vm3690, %v3886, %v3888
        %3890 = vst [vmem:[#allocation2 + $0x16] sm:$0x1] %v3889
        %3891 = vst [vmem:[#allocation1] sm:$0xff] %v3687
        %s3892 = scalar_lea.vmem [#allocation1], 3
        %v3893 = vld [vmem:[%s3892] ss:$4 sm:$0xff]
        %v3894 = vshrl.u32 %v3893, 16
        %v3896 = vrot.slane %v3894, 7
        %v3897 = vrot.slane %v3896, 1
        %v3899 = vld [vmem:[#allocation2 + $0x17] sm:$0x1]
        %v3900 = vsel %vm3690, %v3897, %v3899
        %3901 = vst [vmem:[#allocation2 + $0x17] sm:$0x1] %v3900
        %v3902 = vld [vmem:[#allocation2 + $0x18] sm:$0x1]
        %v3903 = vsel %vm3690, %v3688, %v3902
        %3904 = vst [vmem:[#allocation2 + $0x18] sm:$0x1] %v3903
        %v3906 = vrot.slane %v3688, 3
        %v3909 = vsel %vm3696, %v3688, %v3906
        %v3910 = vshrl.u32 %v3909, 16
        %v3912 = vrot.slane %v3910, 7
        %v3913 = vrot.slane %v3912, 1
        %v3915 = vld [vmem:[#allocation2 + $0x19] sm:$0x1]
        %v3916 = vsel %vm3690, %v3913, %v3915
        %3917 = vst [vmem:[#allocation2 + $0x19] sm:$0x1] %v3916
        %3918 = vst [vmem:[#allocation1] sm:$0xff] %v3688
        %s3919 = scalar_lea.vmem [#allocation1], 1
        %v3920 = vld [vmem:[%s3919] ss:$4 sm:$0xff]
        %v3922 = vld [vmem:[#allocation2 + $0x1a] sm:$0x1]
        %v3923 = vsel %vm3690, %v3920, %v3922
        %3924 = vst [vmem:[#allocation2 + $0x1a] sm:$0x1] %v3923
        %3925 = vst [vmem:[#allocation1] sm:$0xff] %v3688
        %s3926 = scalar_lea.vmem [#allocation1], 1
        %v3927 = vld [vmem:[%s3926] ss:$4 sm:$0xff]
        %v3928 = vshrl.u32 %v3927, 16
        %v3930 = vrot.slane %v3928, 7
        %v3931 = vrot.slane %v3930, 1
        %v3933 = vld [vmem:[#allocation2 + $0x1b] sm:$0x1]
        %v3934 = vsel %vm3690, %v3931, %v3933
        %3935 = vst [vmem:[#allocation2 + $0x1b] sm:$0x1] %v3934
        %3936 = vst [vmem:[#allocation1] sm:$0xff] %v3688
        %s3937 = scalar_lea.vmem [#allocation1], 2
        %v3938 = vld [vmem:[%s3937] ss:$4 sm:$0xff]
        %v3940 = vld [vmem:[#allocation2 + $0x1c] sm:$0x1]
        %v3941 = vsel %vm3690, %v3938, %v3940
        %3942 = vst [vmem:[#allocation2 + $0x1c] sm:$0x1] %v3941
        %3943 = vst [vmem:[#allocation1] sm:$0xff] %v3688
        %s3944 = scalar_lea.vmem [#allocation1], 2
        %v3945 = vld [vmem:[%s3944] ss:$4 sm:$0xff]
        %v3946 = vshrl.u32 %v3945, 16
        %v3948 = vrot.slane %v3946, 7
        %v3949 = vrot.slane %v3948, 1
        %v3951 = vld [vmem:[#allocation2 + $0x1d] sm:$0x1]
        %v3952 = vsel %vm3690, %v3949, %v3951
        %3953 = vst [vmem:[#allocation2 + $0x1d] sm:$0x1] %v3952
        %3954 = vst [vmem:[#allocation1] sm:$0xff] %v3688
        %s3955 = scalar_lea.vmem [#allocation1], 3
        %v3956 = vld [vmem:[%s3955] ss:$4 sm:$0xff]
        %v3958 = vld [vmem:[#allocation2 + $0x1e] sm:$0x1]
        %v3959 = vsel %vm3690, %v3956, %v3958
        %3960 = vst [vmem:[#allocation2 + $0x1e] sm:$0x1] %v3959
        %3961 = vst [vmem:[#allocation1] sm:$0xff] %v3688
        %s3962 = scalar_lea.vmem [#allocation1], 3
        %v3963 = vld [vmem:[%s3962] ss:$4 sm:$0xff]
        %v3964 = vshrl.u32 %v3963, 16
        %v3966 = vrot.slane %v3964, 7
        %v3967 = vrot.slane %v3966, 1
        %v3969 = vld [vmem:[#allocation2 + $0x1f] sm:$0x1]
        %v3970 = vsel %vm3690, %v3967, %v3969
        %3971 = vst [vmem:[#allocation2 + $0x1f] sm:$0x1] %v3970
        %v3972 = vld [vmem:[#allocation2] sm:$0xff]
        %v3973 = vld [vmem:[#allocation2 + $0x8] sm:$0xff]
        %v3974 = vld [vmem:[#allocation2 + $0x10] sm:$0xff]
        %v3975 = vld [vmem:[#allocation2 + $0x18] sm:$0xff]
        %v3976 = vld [vmem:[%s5] sm:$0xff]
        %v3977 = vld [vmem:[%s5 + $0x8] sm:$0xff]
        %v3978 = vld [vmem:[%s5 + $0x10] sm:$0xff]
        %v3979 = vld [vmem:[%s5 + $0x18] sm:$0xff]
        %v3980 = vld [vmem:[%s5 + $0x20] sm:$0xff]
        %v3981 = vld [vmem:[%s5 + $0x28] sm:$0xff]
        %v3982 = vld [vmem:[%s5 + $0x30] sm:$0xff]
        %v3983 = vld [vmem:[%s5 + $0x38] sm:$0xff]
        %v3984 = vld [vmem:[%s5 + $0x40] sm:$0xff]
        %v3985 = vld [vmem:[%s5 + $0x48] sm:$0xff]
        %v3986 = vld [vmem:[%s5 + $0x50] sm:$0xff]
        %v3987 = vld [vmem:[%s5 + $0x58] sm:$0xff]
        %v3988 = vld [vmem:[%s5 + $0x60] sm:$0xff]
        %v3989 = vld [vmem:[%s5 + $0x68] sm:$0xff]
        %v3990 = vld [vmem:[%s5 + $0x70] sm:$0xff]
        %v3991 = vld [vmem:[%s5 + $0x78] sm:$0xff]
        %v3992 = vld [vmem:[%s5 + $0x80] sm:$0xff]
        %v3993 = vld [vmem:[%s5 + $0x88] sm:$0xff]
        %v3994 = vld [vmem:[%s5 + $0x90] sm:$0xff]
        %v3995 = vld [vmem:[%s5 + $0x98] sm:$0xff]
        %v3996 = vld [vmem:[%s5 + $0xa0] sm:$0xff]
        %v3997 = vld [vmem:[%s5 + $0xa8] sm:$0xff]
        %v3998 = vld [vmem:[%s5 + $0xb0] sm:$0xff]
        %v3999 = vld [vmem:[%s5 + $0xb8] sm:$0xff]
        %v4000 = vld [vmem:[%s5 + $0xc0] sm:$0xff]
        %v4001 = vld [vmem:[%s5 + $0xc8] sm:$0xff]
        %v4002 = vld [vmem:[%s5 + $0xd0] sm:$0xff]
        %v4003 = vld [vmem:[%s5 + $0xd8] sm:$0xff]
        %v4004 = vld [vmem:[%s5 + $0xe0] sm:$0xff]
        %v4005 = vld [vmem:[%s5 + $0xe8] sm:$0xff]
        %v4006 = vld [vmem:[%s5 + $0xf0] sm:$0xff]
        %v4007 = vld [vmem:[%s5 + $0xf8] sm:$0xff]
        %v4008 = vld [vmem:[%s5 + $0x100] sm:$0xff]
        %v4009 = vld [vmem:[%s5 + $0x108] sm:$0xff]
        %v4010 = vld [vmem:[%s5 + $0x110] sm:$0xff]
        %v4011 = vld [vmem:[%s5 + $0x118] sm:$0xff]
        %v4012 = vld [vmem:[%s5 + $0x120] sm:$0xff]
        %v4013 = vld [vmem:[%s5 + $0x128] sm:$0xff]
        %v4014 = vld [vmem:[%s5 + $0x130] sm:$0xff]
        %v4015 = vld [vmem:[%s5 + $0x138] sm:$0xff]
        %v4016 = vld [vmem:[%s5 + $0x140] sm:$0xff]
        %v4017 = vld [vmem:[%s5 + $0x148] sm:$0xff]
        %v4018 = vld [vmem:[%s5 + $0x150] sm:$0xff]
        %v4019 = vld [vmem:[%s5 + $0x158] sm:$0xff]
        %v4020 = vld [vmem:[%s5 + $0x160] sm:$0xff]
        %v4021 = vld [vmem:[%s5 + $0x168] sm:$0xff]
        %v4022 = vld [vmem:[%s5 + $0x170] sm:$0xff]
        %v4023 = vld [vmem:[%s5 + $0x178] sm:$0xff]
        %v4024 = vld [vmem:[%s5 + $0x180] sm:$0xff]
        %v4025 = vld [vmem:[%s5 + $0x188] sm:$0xff]
        %v4026 = vld [vmem:[%s5 + $0x190] sm:$0xff]
        %v4027 = vld [vmem:[%s5 + $0x198] sm:$0xff]
        %v4028 = vld [vmem:[%s5 + $0x1a0] sm:$0xff]
        %v4029 = vld [vmem:[%s5 + $0x1a8] sm:$0xff]
        %v4030 = vld [vmem:[%s5 + $0x1b0] sm:$0xff]
        %v4031 = vld [vmem:[%s5 + $0x1b8] sm:$0xff]
        %v4032 = vld [vmem:[%s5 + $0x1c0] sm:$0xff]
        %v4033 = vld [vmem:[%s5 + $0x1c8] sm:$0xff]
        %v4034 = vld [vmem:[%s5 + $0x1d0] sm:$0xff]
        %v4035 = vld [vmem:[%s5 + $0x1d8] sm:$0xff]
        %v4036 = vld [vmem:[%s5 + $0x1e0] sm:$0xff]
        %v4037 = vld [vmem:[%s5 + $0x1e8] sm:$0xff]
        %v4038 = vld [vmem:[%s5 + $0x1f0] sm:$0xff]
        %v4039 = vld [vmem:[%s5 + $0x1f8] sm:$0xff]
        %v4040 = vld [vmem:[%s5 + $0x200] sm:$0xff]
        %v4041 = vld [vmem:[%s5 + $0x208] sm:$0xff]
        %v4042 = vld [vmem:[%s5 + $0x210] sm:$0xff]
        %v4043 = vld [vmem:[%s5 + $0x218] sm:$0xff]
        %v4044 = vld [vmem:[%s5 + $0x220] sm:$0xff]
        %v4045 = vld [vmem:[%s5 + $0x228] sm:$0xff]
        %v4046 = vld [vmem:[%s5 + $0x230] sm:$0xff]
        %v4047 = vld [vmem:[%s5 + $0x238] sm:$0xff]
        %v4048 = vld [vmem:[%s5 + $0x240] sm:$0xff]
        %v4049 = vld [vmem:[%s5 + $0x248] sm:$0xff]
        %v4050 = vld [vmem:[%s5 + $0x250] sm:$0xff]
        %v4051 = vld [vmem:[%s5 + $0x258] sm:$0xff]
        %v4052 = vld [vmem:[%s5 + $0x260] sm:$0xff]
        %v4053 = vld [vmem:[%s5 + $0x268] sm:$0xff]
        %v4054 = vld [vmem:[%s5 + $0x270] sm:$0xff]
        %v4055 = vld [vmem:[%s5 + $0x278] sm:$0xff]
        %v4056 = vld [vmem:[%s5 + $0x280] sm:$0xff]
        %v4057 = vld [vmem:[%s5 + $0x288] sm:$0xff]
        %v4058 = vld [vmem:[%s5 + $0x290] sm:$0xff]
        %v4059 = vld [vmem:[%s5 + $0x298] sm:$0xff]
        %v4060 = vld [vmem:[%s5 + $0x2a0] sm:$0xff]
        %v4061 = vld [vmem:[%s5 + $0x2a8] sm:$0xff]
        %v4062 = vld [vmem:[%s5 + $0x2b0] sm:$0xff]
        %v4063 = vld [vmem:[%s5 + $0x2b8] sm:$0xff]
        %v4064 = vld [vmem:[%s5 + $0x2c0] sm:$0xff]
        %v4065 = vld [vmem:[%s5 + $0x2c8] sm:$0xff]
        %v4066 = vld [vmem:[%s5 + $0x2d0] sm:$0xff]
        %v4067 = vld [vmem:[%s5 + $0x2d8] sm:$0xff]
        %v4068 = vld [vmem:[%s5 + $0x2e0] sm:$0xff]
        %v4069 = vld [vmem:[%s5 + $0x2e8] sm:$0xff]
        %v4070 = vld [vmem:[%s5 + $0x2f0] sm:$0xff]
        %v4071 = vld [vmem:[%s5 + $0x2f8] sm:$0xff]
        %v4072 = vld [vmem:[%s5 + $0x300] sm:$0xff]
        %v4073 = vld [vmem:[%s5 + $0x308] sm:$0xff]
        %v4074 = vld [vmem:[%s5 + $0x310] sm:$0xff]
        %v4075 = vld [vmem:[%s5 + $0x318] sm:$0xff]
        %v4076 = vld [vmem:[%s5 + $0x320] sm:$0xff]
        %v4077 = vld [vmem:[%s5 + $0x328] sm:$0xff]
        %v4078 = vld [vmem:[%s5 + $0x330] sm:$0xff]
        %v4079 = vld [vmem:[%s5 + $0x338] sm:$0xff]
        %v4080 = vld [vmem:[%s5 + $0x340] sm:$0xff]
        %v4081 = vld [vmem:[%s5 + $0x348] sm:$0xff]
        %v4082 = vld [vmem:[%s5 + $0x350] sm:$0xff]
        %v4083 = vld [vmem:[%s5 + $0x358] sm:$0xff]
        %v4084 = vld [vmem:[%s5 + $0x360] sm:$0xff]
        %v4085 = vld [vmem:[%s5 + $0x368] sm:$0xff]
        %v4086 = vld [vmem:[%s5 + $0x370] sm:$0xff]
        %v4087 = vld [vmem:[%s5 + $0x378] sm:$0xff]
        %v4088 = vld [vmem:[%s5 + $0x380] sm:$0xff]
        %v4089 = vld [vmem:[%s5 + $0x388] sm:$0xff]
        %v4090 = vld [vmem:[%s5 + $0x390] sm:$0xff]
        %v4091 = vld [vmem:[%s5 + $0x398] sm:$0xff]
        %v4092 = vld [vmem:[%s5 + $0x3a0] sm:$0xff]
        %v4093 = vld [vmem:[%s5 + $0x3a8] sm:$0xff]
        %v4094 = vld [vmem:[%s5 + $0x3b0] sm:$0xff]
        %v4095 = vld [vmem:[%s5 + $0x3b8] sm:$0xff]
        %v4096 = vld [vmem:[%s5 + $0x3c0] sm:$0xff]
        %v4097 = vld [vmem:[%s5 + $0x3c8] sm:$0xff]
        %v4098 = vld [vmem:[%s5 + $0x3d0] sm:$0xff]
        %v4099 = vld [vmem:[%s5 + $0x3d8] sm:$0xff]
        %v4100 = vld [vmem:[%s5 + $0x3e0] sm:$0xff]
        %v4101 = vld [vmem:[%s5 + $0x3e8] sm:$0xff]
        %v4102 = vld [vmem:[%s5 + $0x3f0] sm:$0xff]
        %v4103 = vld [vmem:[%s5 + $0x3f8] sm:$0xff]
        %v4104 = vld [vmem:[%s5 + $0x400] sm:$0xff]
        %v4105 = vld [vmem:[%s5 + $0x408] sm:$0xff]
        %v4106 = vld [vmem:[%s5 + $0x410] sm:$0xff]
        %v4107 = vld [vmem:[%s5 + $0x418] sm:$0xff]
        %v4108 = vld [vmem:[%s5 + $0x420] sm:$0xff]
        %v4109 = vld [vmem:[%s5 + $0x428] sm:$0xff]
        %v4110 = vld [vmem:[%s5 + $0x430] sm:$0xff]
        %v4111 = vld [vmem:[%s5 + $0x438] sm:$0xff]
        %v4112 = vld [vmem:[%s5 + $0x440] sm:$0xff]
        %v4113 = vld [vmem:[%s5 + $0x448] sm:$0xff]
        %v4114 = vld [vmem:[%s5 + $0x450] sm:$0xff]
        %v4115 = vld [vmem:[%s5 + $0x458] sm:$0xff]
        %v4116 = vld [vmem:[%s5 + $0x460] sm:$0xff]
        %v4117 = vld [vmem:[%s5 + $0x468] sm:$0xff]
        %v4118 = vld [vmem:[%s5 + $0x470] sm:$0xff]
        %v4119 = vld [vmem:[%s5 + $0x478] sm:$0xff]
        %v4120 = vld [vmem:[%s5 + $0x480] sm:$0xff]
        %v4121 = vld [vmem:[%s5 + $0x488] sm:$0xff]
        %v4122 = vld [vmem:[%s5 + $0x490] sm:$0xff]
        %v4123 = vld [vmem:[%s5 + $0x498] sm:$0xff]
        %v4124 = vld [vmem:[%s5 + $0x4a0] sm:$0xff]
        %v4125 = vld [vmem:[%s5 + $0x4a8] sm:$0xff]
        %v4126 = vld [vmem:[%s5 + $0x4b0] sm:$0xff]
        %v4127 = vld [vmem:[%s5 + $0x4b8] sm:$0xff]
        %v4128 = vld [vmem:[%s5 + $0x4c0] sm:$0xff]
        %v4129 = vld [vmem:[%s5 + $0x4c8] sm:$0xff]
        %v4130 = vld [vmem:[%s5 + $0x4d0] sm:$0xff]
        %v4131 = vld [vmem:[%s5 + $0x4d8] sm:$0xff]
        %v4132 = vld [vmem:[%s5 + $0x4e0] sm:$0xff]
        %v4133 = vld [vmem:[%s5 + $0x4e8] sm:$0xff]
        %v4134 = vld [vmem:[%s5 + $0x4f0] sm:$0xff]
        %v4135 = vld [vmem:[%s5 + $0x4f8] sm:$0xff]
        %v4136 = vld [vmem:[%s5 + $0x500] sm:$0xff]
        %v4137 = vld [vmem:[%s5 + $0x508] sm:$0xff]
        %v4138 = vld [vmem:[%s5 + $0x510] sm:$0xff]
        %v4139 = vld [vmem:[%s5 + $0x518] sm:$0xff]
        %v4140 = vld [vmem:[%s5 + $0x520] sm:$0xff]
        %v4141 = vld [vmem:[%s5 + $0x528] sm:$0xff]
        %v4142 = vld [vmem:[%s5 + $0x530] sm:$0xff]
        %v4143 = vld [vmem:[%s5 + $0x538] sm:$0xff]
        %v4144 = vld [vmem:[%s5 + $0x540] sm:$0xff]
        %v4145 = vld [vmem:[%s5 + $0x548] sm:$0xff]
        %v4146 = vld [vmem:[%s5 + $0x550] sm:$0xff]
        %v4147 = vld [vmem:[%s5 + $0x558] sm:$0xff]
        %v4148 = vld [vmem:[%s5 + $0x560] sm:$0xff]
        %v4149 = vld [vmem:[%s5 + $0x568] sm:$0xff]
        %v4150 = vld [vmem:[%s5 + $0x570] sm:$0xff]
        %v4151 = vld [vmem:[%s5 + $0x578] sm:$0xff]
        %v4152 = vld [vmem:[%s5 + $0x580] sm:$0xff]
        %v4153 = vld [vmem:[%s5 + $0x588] sm:$0xff]
        %v4154 = vld [vmem:[%s5 + $0x590] sm:$0xff]
        %v4155 = vld [vmem:[%s5 + $0x598] sm:$0xff]
        %v4156 = vld [vmem:[%s5 + $0x5a0] sm:$0xff]
        %v4157 = vld [vmem:[%s5 + $0x5a8] sm:$0xff]
        %v4158 = vld [vmem:[%s5 + $0x5b0] sm:$0xff]
        %v4159 = vld [vmem:[%s5 + $0x5b8] sm:$0xff]
        %v4160 = vld [vmem:[%s5 + $0x5c0] sm:$0xff]
        %v4161 = vld [vmem:[%s5 + $0x5c8] sm:$0xff]
        %v4162 = vld [vmem:[%s5 + $0x5d0] sm:$0xff]
        %v4163 = vld [vmem:[%s5 + $0x5d8] sm:$0xff]
        %v4164 = vld [vmem:[%s5 + $0x5e0] sm:$0xff]
        %v4165 = vld [vmem:[%s5 + $0x5e8] sm:$0xff]
        %v4166 = vld [vmem:[%s5 + $0x5f0] sm:$0xff]
        %v4167 = vld [vmem:[%s5 + $0x5f8] sm:$0xff]
        %v4168 = vld [vmem:[%s5 + $0x600] sm:$0xff]
        %v4169 = vld [vmem:[%s5 + $0x608] sm:$0xff]
        %v4170 = vld [vmem:[%s5 + $0x610] sm:$0xff]
        %v4171 = vld [vmem:[%s5 + $0x618] sm:$0xff]
        %v4172 = vld [vmem:[%s5 + $0x620] sm:$0xff]
        %v4173 = vld [vmem:[%s5 + $0x628] sm:$0xff]
        %v4174 = vld [vmem:[%s5 + $0x630] sm:$0xff]
        %v4175 = vld [vmem:[%s5 + $0x638] sm:$0xff]
        %v4176 = vld [vmem:[%s5 + $0x640] sm:$0xff]
        %v4177 = vld [vmem:[%s5 + $0x648] sm:$0xff]
        %v4178 = vld [vmem:[%s5 + $0x650] sm:$0xff]
        %v4179 = vld [vmem:[%s5 + $0x658] sm:$0xff]
        %v4180 = vld [vmem:[%s5 + $0x660] sm:$0xff]
        %v4181 = vld [vmem:[%s5 + $0x668] sm:$0xff]
        %v4182 = vld [vmem:[%s5 + $0x670] sm:$0xff]
        %v4183 = vld [vmem:[%s5 + $0x678] sm:$0xff]
        %v4184 = vld [vmem:[%s5 + $0x680] sm:$0xff]
        %v4185 = vld [vmem:[%s5 + $0x688] sm:$0xff]
        %v4186 = vld [vmem:[%s5 + $0x690] sm:$0xff]
        %v4187 = vld [vmem:[%s5 + $0x698] sm:$0xff]
        %v4188 = vld [vmem:[%s5 + $0x6a0] sm:$0xff]
        %v4189 = vld [vmem:[%s5 + $0x6a8] sm:$0xff]
        %v4190 = vld [vmem:[%s5 + $0x6b0] sm:$0xff]
        %v4191 = vld [vmem:[%s5 + $0x6b8] sm:$0xff]
        %v4192 = vld [vmem:[%s5 + $0x6c0] sm:$0xff]
        %v4193 = vld [vmem:[%s5 + $0x6c8] sm:$0xff]
        %v4194 = vld [vmem:[%s5 + $0x6d0] sm:$0xff]
        %v4195 = vld [vmem:[%s5 + $0x6d8] sm:$0xff]
        %v4196 = vld [vmem:[%s5 + $0x6e0] sm:$0xff]
        %v4197 = vld [vmem:[%s5 + $0x6e8] sm:$0xff]
        %v4198 = vld [vmem:[%s5 + $0x6f0] sm:$0xff]
        %v4199 = vld [vmem:[%s5 + $0x6f8] sm:$0xff]
        %v4200 = vld [vmem:[%s5 + $0x700] sm:$0xff]
        %v4201 = vld [vmem:[%s5 + $0x708] sm:$0xff]
        %v4202 = vld [vmem:[%s5 + $0x710] sm:$0xff]
        %v4203 = vld [vmem:[%s5 + $0x718] sm:$0xff]
        %v4204 = vld [vmem:[%s5 + $0x720] sm:$0xff]
        %v4205 = vld [vmem:[%s5 + $0x728] sm:$0xff]
        %v4206 = vld [vmem:[%s5 + $0x730] sm:$0xff]
        %v4207 = vld [vmem:[%s5 + $0x738] sm:$0xff]
        %v4208 = vld [vmem:[%s5 + $0x740] sm:$0xff]
        %v4209 = vld [vmem:[%s5 + $0x748] sm:$0xff]
        %v4210 = vld [vmem:[%s5 + $0x750] sm:$0xff]
        %v4211 = vld [vmem:[%s5 + $0x758] sm:$0xff]
        %v4212 = vld [vmem:[%s5 + $0x760] sm:$0xff]
        %v4213 = vld [vmem:[%s5 + $0x768] sm:$0xff]
        %v4214 = vld [vmem:[%s5 + $0x770] sm:$0xff]
        %v4215 = vld [vmem:[%s5 + $0x778] sm:$0xff]
        %v4216 = vld [vmem:[%s5 + $0x780] sm:$0xff]
        %v4217 = vld [vmem:[%s5 + $0x788] sm:$0xff]
        %v4218 = vld [vmem:[%s5 + $0x790] sm:$0xff]
        %v4219 = vld [vmem:[%s5 + $0x798] sm:$0xff]
        %v4220 = vld [vmem:[%s5 + $0x7a0] sm:$0xff]
        %v4221 = vld [vmem:[%s5 + $0x7a8] sm:$0xff]
        %v4222 = vld [vmem:[%s5 + $0x7b0] sm:$0xff]
        %v4223 = vld [vmem:[%s5 + $0x7b8] sm:$0xff]
        %v4224 = vld [vmem:[%s5 + $0x7c0] sm:$0xff]
        %v4225 = vld [vmem:[%s5 + $0x7c8] sm:$0xff]
        %v4226 = vld [vmem:[%s5 + $0x7d0] sm:$0xff]
        %v4227 = vld [vmem:[%s5 + $0x7d8] sm:$0xff]
        %v4228 = vld [vmem:[%s5 + $0x7e0] sm:$0xff]
        %v4229 = vld [vmem:[%s5 + $0x7e8] sm:$0xff]
        %v4230 = vld [vmem:[%s5 + $0x7f0] sm:$0xff]
        %v4231 = vld [vmem:[%s5 + $0x7f8] sm:$0xff]
        %v4232 = vld [vmem:[%s5 + $0x800] sm:$0xff]
        %v4233 = vld [vmem:[%s5 + $0x808] sm:$0xff]
        %v4234 = vld [vmem:[%s5 + $0x810] sm:$0xff]
        %v4235 = vld [vmem:[%s5 + $0x818] sm:$0xff]
        %v4236 = vld [vmem:[%s5 + $0x820] sm:$0xff]
        %v4237 = vld [vmem:[%s5 + $0x828] sm:$0xff]
        %v4238 = vld [vmem:[%s5 + $0x830] sm:$0xff]
        %v4239 = vld [vmem:[%s5 + $0x838] sm:$0xff]
        %v4240 = vld [vmem:[%s5 + $0x840] sm:$0xff]
        %v4241 = vld [vmem:[%s5 + $0x848] sm:$0xff]
        %v4242 = vld [vmem:[%s5 + $0x850] sm:$0xff]
        %v4243 = vld [vmem:[%s5 + $0x858] sm:$0xff]
        %v4244 = vld [vmem:[%s5 + $0x860] sm:$0xff]
        %v4245 = vld [vmem:[%s5 + $0x868] sm:$0xff]
        %v4246 = vld [vmem:[%s5 + $0x870] sm:$0xff]
        %v4247 = vld [vmem:[%s5 + $0x878] sm:$0xff]
        %v4248 = vld [vmem:[%s5 + $0x880] sm:$0xff]
        %v4249 = vld [vmem:[%s5 + $0x888] sm:$0xff]
        %v4250 = vld [vmem:[%s5 + $0x890] sm:$0xff]
        %v4251 = vld [vmem:[%s5 + $0x898] sm:$0xff]
        %v4252 = vld [vmem:[%s5 + $0x8a0] sm:$0xff]
        %v4253 = vld [vmem:[%s5 + $0x8a8] sm:$0xff]
        %v4254 = vld [vmem:[%s5 + $0x8b0] sm:$0xff]
        %v4255 = vld [vmem:[%s5 + $0x8b8] sm:$0xff]
        %v4256 = vld [vmem:[%s5 + $0x8c0] sm:$0xff]
        %v4257 = vld [vmem:[%s5 + $0x8c8] sm:$0xff]
        %v4258 = vld [vmem:[%s5 + $0x8d0] sm:$0xff]
        %v4259 = vld [vmem:[%s5 + $0x8d8] sm:$0xff]
        %v4260 = vld [vmem:[%s5 + $0x8e0] sm:$0xff]
        %v4261 = vld [vmem:[%s5 + $0x8e8] sm:$0xff]
        %v4262 = vld [vmem:[%s5 + $0x8f0] sm:$0xff]
        %v4263 = vld [vmem:[%s5 + $0x8f8] sm:$0xff]
        %v4264 = vld [vmem:[%s5 + $0x900] sm:$0xff]
        %v4265 = vld [vmem:[%s5 + $0x908] sm:$0xff]
        %v4266 = vld [vmem:[%s5 + $0x910] sm:$0xff]
        %v4267 = vld [vmem:[%s5 + $0x918] sm:$0xff]
        %v4268 = vld [vmem:[%s5 + $0x920] sm:$0xff]
        %v4269 = vld [vmem:[%s5 + $0x928] sm:$0xff]
        %v4270 = vld [vmem:[%s5 + $0x930] sm:$0xff]
        %v4271 = vld [vmem:[%s5 + $0x938] sm:$0xff]
        %v4272 = vld [vmem:[%s5 + $0x940] sm:$0xff]
        %v4273 = vld [vmem:[%s5 + $0x948] sm:$0xff]
        %v4274 = vld [vmem:[%s5 + $0x950] sm:$0xff]
        %v4275 = vld [vmem:[%s5 + $0x958] sm:$0xff]
        %v4276 = vld [vmem:[%s5 + $0x960] sm:$0xff]
        %v4277 = vld [vmem:[%s5 + $0x968] sm:$0xff]
        %v4278 = vld [vmem:[%s5 + $0x970] sm:$0xff]
        %v4279 = vld [vmem:[%s5 + $0x978] sm:$0xff]
        %v4280 = vld [vmem:[%s5 + $0x980] sm:$0xff]
        %v4281 = vld [vmem:[%s5 + $0x988] sm:$0xff]
        %v4282 = vld [vmem:[%s5 + $0x990] sm:$0xff]
        %v4283 = vld [vmem:[%s5 + $0x998] sm:$0xff]
        %v4284 = vld [vmem:[%s5 + $0x9a0] sm:$0xff]
        %v4285 = vld [vmem:[%s5 + $0x9a8] sm:$0xff]
        %v4286 = vld [vmem:[%s5 + $0x9b0] sm:$0xff]
        %v4287 = vld [vmem:[%s5 + $0x9b8] sm:$0xff]
        %v4288 = vld [vmem:[%s5 + $0x9c0] sm:$0xff]
        %v4289 = vld [vmem:[%s5 + $0x9c8] sm:$0xff]
        %v4290 = vld [vmem:[%s5 + $0x9d0] sm:$0xff]
        %v4291 = vld [vmem:[%s5 + $0x9d8] sm:$0xff]
        %v4292 = vld [vmem:[%s5 + $0x9e0] sm:$0xff]
        %v4293 = vld [vmem:[%s5 + $0x9e8] sm:$0xff]
        %v4294 = vld [vmem:[%s5 + $0x9f0] sm:$0xff]
        %v4295 = vld [vmem:[%s5 + $0x9f8] sm:$0xff]
        %v4296 = vld [vmem:[%s5 + $0xa00] sm:$0xff]
        %v4297 = vld [vmem:[%s5 + $0xa08] sm:$0xff]
        %v4298 = vld [vmem:[%s5 + $0xa10] sm:$0xff]
        %v4299 = vld [vmem:[%s5 + $0xa18] sm:$0xff]
        %v4300 = vld [vmem:[%s5 + $0xa20] sm:$0xff]
        %v4301 = vld [vmem:[%s5 + $0xa28] sm:$0xff]
        %v4302 = vld [vmem:[%s5 + $0xa30] sm:$0xff]
        %v4303 = vld [vmem:[%s5 + $0xa38] sm:$0xff]
        %v4304 = vld [vmem:[%s5 + $0xa40] sm:$0xff]
        %v4305 = vld [vmem:[%s5 + $0xa48] sm:$0xff]
        %v4306 = vld [vmem:[%s5 + $0xa50] sm:$0xff]
        %v4307 = vld [vmem:[%s5 + $0xa58] sm:$0xff]
        %v4308 = vld [vmem:[%s5 + $0xa60] sm:$0xff]
        %v4309 = vld [vmem:[%s5 + $0xa68] sm:$0xff]
        %v4310 = vld [vmem:[%s5 + $0xa70] sm:$0xff]
        %v4311 = vld [vmem:[%s5 + $0xa78] sm:$0xff]
        %v4312 = vld [vmem:[%s5 + $0xa80] sm:$0xff]
        %v4313 = vld [vmem:[%s5 + $0xa88] sm:$0xff]
        %v4314 = vld [vmem:[%s5 + $0xa90] sm:$0xff]
        %v4315 = vld [vmem:[%s5 + $0xa98] sm:$0xff]
        %v4316 = vld [vmem:[%s5 + $0xaa0] sm:$0xff]
        %v4317 = vld [vmem:[%s5 + $0xaa8] sm:$0xff]
        %v4318 = vld [vmem:[%s5 + $0xab0] sm:$0xff]
        %v4319 = vld [vmem:[%s5 + $0xab8] sm:$0xff]
        %v4320 = vld [vmem:[%s5 + $0xac0] sm:$0xff]
        %v4321 = vld [vmem:[%s5 + $0xac8] sm:$0xff]
        %v4322 = vld [vmem:[%s5 + $0xad0] sm:$0xff]
        %v4323 = vld [vmem:[%s5 + $0xad8] sm:$0xff]
        %v4324 = vld [vmem:[%s5 + $0xae0] sm:$0xff]
        %v4325 = vld [vmem:[%s5 + $0xae8] sm:$0xff]
        %v4326 = vld [vmem:[%s5 + $0xaf0] sm:$0xff]
        %v4327 = vld [vmem:[%s5 + $0xaf8] sm:$0xff]
        %v4328 = vld [vmem:[%s5 + $0xb00] sm:$0xff]
        %v4329 = vld [vmem:[%s5 + $0xb08] sm:$0xff]
        %v4330 = vld [vmem:[%s5 + $0xb10] sm:$0xff]
        %v4331 = vld [vmem:[%s5 + $0xb18] sm:$0xff]
        %v4332 = vld [vmem:[%s5 + $0xb20] sm:$0xff]
        %v4333 = vld [vmem:[%s5 + $0xb28] sm:$0xff]
        %v4334 = vld [vmem:[%s5 + $0xb30] sm:$0xff]
        %v4335 = vld [vmem:[%s5 + $0xb38] sm:$0xff]
        %v4336 = vld [vmem:[%s5 + $0xb40] sm:$0xff]
        %v4337 = vld [vmem:[%s5 + $0xb48] sm:$0xff]
        %v4338 = vld [vmem:[%s5 + $0xb50] sm:$0xff]
        %v4339 = vld [vmem:[%s5 + $0xb58] sm:$0xff]
        %v4340 = vld [vmem:[%s5 + $0xb60] sm:$0xff]
        %v4341 = vld [vmem:[%s5 + $0xb68] sm:$0xff]
        %v4342 = vld [vmem:[%s5 + $0xb70] sm:$0xff]
        %v4343 = vld [vmem:[%s5 + $0xb78] sm:$0xff]
        %v4344 = vld [vmem:[%s5 + $0xb80] sm:$0xff]
        %v4345 = vld [vmem:[%s5 + $0xb88] sm:$0xff]
        %v4346 = vld [vmem:[%s5 + $0xb90] sm:$0xff]
        %v4347 = vld [vmem:[%s5 + $0xb98] sm:$0xff]
        %v4348 = vld [vmem:[%s5 + $0xba0] sm:$0xff]
        %v4349 = vld [vmem:[%s5 + $0xba8] sm:$0xff]
        %v4350 = vld [vmem:[%s5 + $0xbb0] sm:$0xff]
        %v4351 = vld [vmem:[%s5 + $0xbb8] sm:$0xff]
        %v4352 = vld [vmem:[%s5 + $0xbc0] sm:$0xff]
        %v4353 = vld [vmem:[%s5 + $0xbc8] sm:$0xff]
        %v4354 = vld [vmem:[%s5 + $0xbd0] sm:$0xff]
        %v4355 = vld [vmem:[%s5 + $0xbd8] sm:$0xff]
        %v4356 = vld [vmem:[%s5 + $0xbe0] sm:$0xff]
        %v4357 = vld [vmem:[%s5 + $0xbe8] sm:$0xff]
        %v4358 = vld [vmem:[%s5 + $0xbf0] sm:$0xff]
        %v4359 = vld [vmem:[%s5 + $0xbf8] sm:$0xff]
        %v4360 = vld [vmem:[%s5 + $0xc00] sm:$0xff]
        %v4361 = vld [vmem:[%s5 + $0xc08] sm:$0xff]
        %v4362 = vld [vmem:[%s5 + $0xc10] sm:$0xff]
        %v4363 = vld [vmem:[%s5 + $0xc18] sm:$0xff]
        %v4364 = vld [vmem:[%s5 + $0xc20] sm:$0xff]
        %v4365 = vld [vmem:[%s5 + $0xc28] sm:$0xff]
        %v4366 = vld [vmem:[%s5 + $0xc30] sm:$0xff]
        %v4367 = vld [vmem:[%s5 + $0xc38] sm:$0xff]
        %v4368 = vld [vmem:[%s5 + $0xc40] sm:$0xff]
        %v4369 = vld [vmem:[%s5 + $0xc48] sm:$0xff]
        %v4370 = vld [vmem:[%s5 + $0xc50] sm:$0xff]
        %v4371 = vld [vmem:[%s5 + $0xc58] sm:$0xff]
        %v4372 = vld [vmem:[%s5 + $0xc60] sm:$0xff]
        %v4373 = vld [vmem:[%s5 + $0xc68] sm:$0xff]
        %v4374 = vld [vmem:[%s5 + $0xc70] sm:$0xff]
        %v4375 = vld [vmem:[%s5 + $0xc78] sm:$0xff]
        %v4376 = vld [vmem:[%s5 + $0xc80] sm:$0xff]
        %v4377 = vld [vmem:[%s5 + $0xc88] sm:$0xff]
        %v4378 = vld [vmem:[%s5 + $0xc90] sm:$0xff]
        %v4379 = vld [vmem:[%s5 + $0xc98] sm:$0xff]
        %v4380 = vld [vmem:[%s5 + $0xca0] sm:$0xff]
        %v4381 = vld [vmem:[%s5 + $0xca8] sm:$0xff]
        %v4382 = vld [vmem:[%s5 + $0xcb0] sm:$0xff]
        %v4383 = vld [vmem:[%s5 + $0xcb8] sm:$0xff]
        %v4384 = vld [vmem:[%s5 + $0xcc0] sm:$0xff]
        %v4385 = vld [vmem:[%s5 + $0xcc8] sm:$0xff]
        %v4386 = vld [vmem:[%s5 + $0xcd0] sm:$0xff]
        %v4387 = vld [vmem:[%s5 + $0xcd8] sm:$0xff]
        %v4388 = vld [vmem:[%s5 + $0xce0] sm:$0xff]
        %v4389 = vld [vmem:[%s5 + $0xce8] sm:$0xff]
        %v4390 = vld [vmem:[%s5 + $0xcf0] sm:$0xff]
        %v4391 = vld [vmem:[%s5 + $0xcf8] sm:$0xff]
        %v4392 = vld [vmem:[%s5 + $0xd00] sm:$0xff]
        %v4393 = vld [vmem:[%s5 + $0xd08] sm:$0xff]
        %v4394 = vld [vmem:[%s5 + $0xd10] sm:$0xff]
        %v4395 = vld [vmem:[%s5 + $0xd18] sm:$0xff]
        %v4396 = vld [vmem:[%s5 + $0xd20] sm:$0xff]
        %v4397 = vld [vmem:[%s5 + $0xd28] sm:$0xff]
        %v4398 = vld [vmem:[%s5 + $0xd30] sm:$0xff]
        %v4399 = vld [vmem:[%s5 + $0xd38] sm:$0xff]
        %v4400 = vld [vmem:[%s5 + $0xd40] sm:$0xff]
        %v4401 = vld [vmem:[%s5 + $0xd48] sm:$0xff]
        %v4402 = vld [vmem:[%s5 + $0xd50] sm:$0xff]
        %v4403 = vld [vmem:[%s5 + $0xd58] sm:$0xff]
        %v4404 = vld [vmem:[%s5 + $0xd60] sm:$0xff]
        %v4405 = vld [vmem:[%s5 + $0xd68] sm:$0xff]
        %v4406 = vld [vmem:[%s5 + $0xd70] sm:$0xff]
        %v4407 = vld [vmem:[%s5 + $0xd78] sm:$0xff]
        %v4408 = vld [vmem:[%s5 + $0xd80] sm:$0xff]
        %v4409 = vld [vmem:[%s5 + $0xd88] sm:$0xff]
        %v4410 = vld [vmem:[%s5 + $0xd90] sm:$0xff]
        %v4411 = vld [vmem:[%s5 + $0xd98] sm:$0xff]
        %v4412 = vld [vmem:[%s5 + $0xda0] sm:$0xff]
        %v4413 = vld [vmem:[%s5 + $0xda8] sm:$0xff]
        %v4414 = vld [vmem:[%s5 + $0xdb0] sm:$0xff]
        %v4415 = vld [vmem:[%s5 + $0xdb8] sm:$0xff]
        %v4416 = vld [vmem:[%s5 + $0xdc0] sm:$0xff]
        %v4417 = vld [vmem:[%s5 + $0xdc8] sm:$0xff]
        %v4418 = vld [vmem:[%s5 + $0xdd0] sm:$0xff]
        %v4419 = vld [vmem:[%s5 + $0xdd8] sm:$0xff]
        %v4420 = vld [vmem:[%s5 + $0xde0] sm:$0xff]
        %v4421 = vld [vmem:[%s5 + $0xde8] sm:$0xff]
        %v4422 = vld [vmem:[%s5 + $0xdf0] sm:$0xff]
        %v4423 = vld [vmem:[%s5 + $0xdf8] sm:$0xff]
        %v4424 = vld [vmem:[%s5 + $0xe00] sm:$0xff]
        %v4425 = vld [vmem:[%s5 + $0xe08] sm:$0xff]
        %v4426 = vld [vmem:[%s5 + $0xe10] sm:$0xff]
        %v4427 = vld [vmem:[%s5 + $0xe18] sm:$0xff]
        %v4428 = vld [vmem:[%s5 + $0xe20] sm:$0xff]
        %v4429 = vld [vmem:[%s5 + $0xe28] sm:$0xff]
        %v4430 = vld [vmem:[%s5 + $0xe30] sm:$0xff]
        %v4431 = vld [vmem:[%s5 + $0xe38] sm:$0xff]
        %v4432 = vld [vmem:[%s5 + $0xe40] sm:$0xff]
        %v4433 = vld [vmem:[%s5 + $0xe48] sm:$0xff]
        %v4434 = vld [vmem:[%s5 + $0xe50] sm:$0xff]
        %v4435 = vld [vmem:[%s5 + $0xe58] sm:$0xff]
        %v4436 = vld [vmem:[%s5 + $0xe60] sm:$0xff]
        %v4437 = vld [vmem:[%s5 + $0xe68] sm:$0xff]
        %v4438 = vld [vmem:[%s5 + $0xe70] sm:$0xff]
        %v4439 = vld [vmem:[%s5 + $0xe78] sm:$0xff]
        %v4440 = vld [vmem:[%s5 + $0xe80] sm:$0xff]
        %v4441 = vld [vmem:[%s5 + $0xe88] sm:$0xff]
        %v4442 = vld [vmem:[%s5 + $0xe90] sm:$0xff]
        %v4443 = vld [vmem:[%s5 + $0xe98] sm:$0xff]
        %v4444 = vld [vmem:[%s5 + $0xea0] sm:$0xff]
        %v4445 = vld [vmem:[%s5 + $0xea8] sm:$0xff]
        %v4446 = vld [vmem:[%s5 + $0xeb0] sm:$0xff]
        %v4447 = vld [vmem:[%s5 + $0xeb8] sm:$0xff]
        %v4448 = vld [vmem:[%s5 + $0xec0] sm:$0xff]
        %v4449 = vld [vmem:[%s5 + $0xec8] sm:$0xff]
        %v4450 = vld [vmem:[%s5 + $0xed0] sm:$0xff]
        %v4451 = vld [vmem:[%s5 + $0xed8] sm:$0xff]
        %v4452 = vld [vmem:[%s5 + $0xee0] sm:$0xff]
        %v4453 = vld [vmem:[%s5 + $0xee8] sm:$0xff]
        %v4454 = vld [vmem:[%s5 + $0xef0] sm:$0xff]
        %v4455 = vld [vmem:[%s5 + $0xef8] sm:$0xff]
        %v4456 = vld [vmem:[%s5 + $0xf00] sm:$0xff]
        %v4457 = vld [vmem:[%s5 + $0xf08] sm:$0xff]
        %v4458 = vld [vmem:[%s5 + $0xf10] sm:$0xff]
        %v4459 = vld [vmem:[%s5 + $0xf18] sm:$0xff]
        %v4460 = vld [vmem:[%s5 + $0xf20] sm:$0xff]
        %v4461 = vld [vmem:[%s5 + $0xf28] sm:$0xff]
        %v4462 = vld [vmem:[%s5 + $0xf30] sm:$0xff]
        %v4463 = vld [vmem:[%s5 + $0xf38] sm:$0xff]
        %v4464 = vld [vmem:[%s5 + $0xf40] sm:$0xff]
        %v4465 = vld [vmem:[%s5 + $0xf48] sm:$0xff]
        %v4466 = vld [vmem:[%s5 + $0xf50] sm:$0xff]
        %v4467 = vld [vmem:[%s5 + $0xf58] sm:$0xff]
        %v4468 = vld [vmem:[%s5 + $0xf60] sm:$0xff]
        %v4469 = vld [vmem:[%s5 + $0xf68] sm:$0xff]
        %v4470 = vld [vmem:[%s5 + $0xf70] sm:$0xff]
        %v4471 = vld [vmem:[%s5 + $0xf78] sm:$0xff]
        %v4472 = vld [vmem:[%s5 + $0xf80] sm:$0xff]
        %v4473 = vld [vmem:[%s5 + $0xf88] sm:$0xff]
        %v4474 = vld [vmem:[%s5 + $0xf90] sm:$0xff]
        %v4475 = vld [vmem:[%s5 + $0xf98] sm:$0xff]
        %v4476 = vld [vmem:[%s5 + $0xfa0] sm:$0xff]
        %v4477 = vld [vmem:[%s5 + $0xfa8] sm:$0xff]
        %v4478 = vld [vmem:[%s5 + $0xfb0] sm:$0xff]
        %v4479 = vld [vmem:[%s5 + $0xfb8] sm:$0xff]
        %v4480 = vld [vmem:[%s5 + $0xfc0] sm:$0xff]
        %v4481 = vld [vmem:[%s5 + $0xfc8] sm:$0xff]
        %v4482 = vld [vmem:[%s5 + $0xfd0] sm:$0xff]
        %v4483 = vld [vmem:[%s5 + $0xfd8] sm:$0xff]
        %v4484 = vld [vmem:[%s5 + $0xfe0] sm:$0xff]
        %v4485 = vld [vmem:[%s5 + $0xfe8] sm:$0xff]
        %v4486 = vld [vmem:[%s5 + $0xff0] sm:$0xff]
        %v4487 = vld [vmem:[%s5 + $0xff8] sm:$0xff]
        %v4488 = vld [vmem:[%s6] sm:$0x3]
        %4490 = vst [vmem:[#allocation1] ss:$9 sm:$0xff] %v3972
        %v4491 = vld [vmem:[#allocation1] sm:$0xff]
        %v4492 = vld [vmem:[#allocation1 + $0x9] sm:$0xff]
        %v4493 = vld [vmem:[#allocation1 + $0x12] sm:$0xff]
        %v4494 = vld [vmem:[#allocation1 + $0x1b] sm:$0xff]
        %v4495 = vld [vmem:[#allocation1 + $0x24] sm:$0xff]
        %v4496 = vld [vmem:[#allocation1 + $0x2d] sm:$0xff]
        %v4497 = vld [vmem:[#allocation1 + $0x36] sm:$0xff]
        %v4498 = vld [vmem:[#allocation1 + $0x3f] sm:$0xff]
        %4500 = vst [vmem:[#allocation1] ss:$9 sm:$0xff] %v3973
        %v4501 = vld [vmem:[#allocation1] sm:$0xff]
        %v4502 = vld [vmem:[#allocation1 + $0x9] sm:$0xff]
        %v4503 = vld [vmem:[#allocation1 + $0x12] sm:$0xff]
        %v4504 = vld [vmem:[#allocation1 + $0x1b] sm:$0xff]
        %v4505 = vld [vmem:[#allocation1 + $0x24] sm:$0xff]
        %v4506 = vld [vmem:[#allocation1 + $0x2d] sm:$0xff]
        %v4507 = vld [vmem:[#allocation1 + $0x36] sm:$0xff]
        %v4508 = vld [vmem:[#allocation1 + $0x3f] sm:$0xff]
        %4510 = vst [vmem:[#allocation1] ss:$9 sm:$0xff] %v3974
        %v4511 = vld [vmem:[#allocation1] sm:$0xff]
        %v4512 = vld [vmem:[#allocation1 + $0x9] sm:$0xff]
        %v4513 = vld [vmem:[#allocation1 + $0x12] sm:$0xff]
        %v4514 = vld [vmem:[#allocation1 + $0x1b] sm:$0xff]
        %v4515 = vld [vmem:[#allocation1 + $0x24] sm:$0xff]
        %v4516 = vld [vmem:[#allocation1 + $0x2d] sm:$0xff]
        %v4517 = vld [vmem:[#allocation1 + $0x36] sm:$0xff]
        %v4518 = vld [vmem:[#allocation1 + $0x3f] sm:$0xff]
        %4520 = vst [vmem:[#allocation1] ss:$9 sm:$0xff] %v3975
        %v4521 = vld [vmem:[#allocation1] sm:$0xff]
        %v4522 = vld [vmem:[#allocation1 + $0x9] sm:$0xff]
        %v4523 = vld [vmem:[#allocation1 + $0x12] sm:$0xff]
        %v4524 = vld [vmem:[#allocation1 + $0x1b] sm:$0xff]
        %v4525 = vld [vmem:[#allocation1 + $0x24] sm:$0xff]
        %v4526 = vld [vmem:[#allocation1 + $0x2d] sm:$0xff]
        %v4527 = vld [vmem:[#allocation1 + $0x36] sm:$0xff]
        %v4528 = vld [vmem:[#allocation1 + $0x3f] sm:$0xff]
        %v5073 = vunpack.c.l.b16 %v3976
        %v5074 = vunpack.c.h.b16 %v3976
        %v5075 = vunpack.c.l.b16 %v3977
        %v5076 = vunpack.c.h.b16 %v3977
        %v5077 = vunpack.c.l.b16 %v3978
        %v5078 = vunpack.c.h.b16 %v3978
        %v5079 = vunpack.c.l.b16 %v3979
        %v5080 = vunpack.c.h.b16 %v3979
        %v5081 = vunpack.c.l.b16 %v3980
        %v5082 = vunpack.c.h.b16 %v3980
        %v5083 = vunpack.c.l.b16 %v3981
        %v5084 = vunpack.c.h.b16 %v3981
        %v5085 = vunpack.c.l.b16 %v3982
        %v5086 = vunpack.c.h.b16 %v3982
        %v5087 = vunpack.c.l.b16 %v3983
        %v5088 = vunpack.c.h.b16 %v3983
        %v5089 = vunpack.c.l.b16 %v3984
        %v5090 = vunpack.c.h.b16 %v3984
        %v5091 = vunpack.c.l.b16 %v3985
        %v5092 = vunpack.c.h.b16 %v3985
        %v5093 = vunpack.c.l.b16 %v3986
        %v5094 = vunpack.c.h.b16 %v3986
        %v5095 = vunpack.c.l.b16 %v3987
        %v5096 = vunpack.c.h.b16 %v3987
        %v5097 = vunpack.c.l.b16 %v3988
        %v5098 = vunpack.c.h.b16 %v3988
        %v5099 = vunpack.c.l.b16 %v3989
        %v5100 = vunpack.c.h.b16 %v3989
        %v5101 = vunpack.c.l.b16 %v3990
        %v5102 = vunpack.c.h.b16 %v3990
        %v5103 = vunpack.c.l.b16 %v3991
        %v5104 = vunpack.c.h.b16 %v3991
        %v5105 = vunpack.c.l.b16 %v3992
        %v5106 = vunpack.c.h.b16 %v3992
        %v5107 = vunpack.c.l.b16 %v3993
        %v5108 = vunpack.c.h.b16 %v3993
        %v5109 = vunpack.c.l.b16 %v3994
        %v5110 = vunpack.c.h.b16 %v3994
        %v5111 = vunpack.c.l.b16 %v3995
        %v5112 = vunpack.c.h.b16 %v3995
        %v5113 = vunpack.c.l.b16 %v3996
        %v5114 = vunpack.c.h.b16 %v3996
        %v5115 = vunpack.c.l.b16 %v3997
        %v5116 = vunpack.c.h.b16 %v3997
        %v5117 = vunpack.c.l.b16 %v3998
        %v5118 = vunpack.c.h.b16 %v3998
        %v5119 = vunpack.c.l.b16 %v3999
        %v5120 = vunpack.c.h.b16 %v3999
        %v5121 = vunpack.c.l.b16 %v4000
        %v5122 = vunpack.c.h.b16 %v4000
        %v5123 = vunpack.c.l.b16 %v4001
        %v5124 = vunpack.c.h.b16 %v4001
        %v5125 = vunpack.c.l.b16 %v4002
        %v5126 = vunpack.c.h.b16 %v4002
        %v5127 = vunpack.c.l.b16 %v4003
        %v5128 = vunpack.c.h.b16 %v4003
        %v5129 = vunpack.c.l.b16 %v4004
        %v5130 = vunpack.c.h.b16 %v4004
        %v5131 = vunpack.c.l.b16 %v4005
        %v5132 = vunpack.c.h.b16 %v4005
        %v5133 = vunpack.c.l.b16 %v4006
        %v5134 = vunpack.c.h.b16 %v4006
        %v5135 = vunpack.c.l.b16 %v4007
        %v5136 = vunpack.c.h.b16 %v4007
        %v5137 = vunpack.c.l.b16 %v4008
        %v5138 = vunpack.c.h.b16 %v4008
        %v5139 = vunpack.c.l.b16 %v4009
        %v5140 = vunpack.c.h.b16 %v4009
        %v5141 = vunpack.c.l.b16 %v4010
        %v5142 = vunpack.c.h.b16 %v4010
        %v5143 = vunpack.c.l.b16 %v4011
        %v5144 = vunpack.c.h.b16 %v4011
        %v5145 = vunpack.c.l.b16 %v4012
        %v5146 = vunpack.c.h.b16 %v4012
        %v5147 = vunpack.c.l.b16 %v4013
        %v5148 = vunpack.c.h.b16 %v4013
        %v5149 = vunpack.c.l.b16 %v4014
        %v5150 = vunpack.c.h.b16 %v4014
        %v5151 = vunpack.c.l.b16 %v4015
        %v5152 = vunpack.c.h.b16 %v4015
        %v5153 = vunpack.c.l.b16 %v4016
        %v5154 = vunpack.c.h.b16 %v4016
        %v5155 = vunpack.c.l.b16 %v4017
        %v5156 = vunpack.c.h.b16 %v4017
        %v5157 = vunpack.c.l.b16 %v4018
        %v5158 = vunpack.c.h.b16 %v4018
        %v5159 = vunpack.c.l.b16 %v4019
        %v5160 = vunpack.c.h.b16 %v4019
        %v5161 = vunpack.c.l.b16 %v4020
        %v5162 = vunpack.c.h.b16 %v4020
        %v5163 = vunpack.c.l.b16 %v4021
        %v5164 = vunpack.c.h.b16 %v4021
        %v5165 = vunpack.c.l.b16 %v4022
        %v5166 = vunpack.c.h.b16 %v4022
        %v5167 = vunpack.c.l.b16 %v4023
        %v5168 = vunpack.c.h.b16 %v4023
        %v5169 = vunpack.c.l.b16 %v4024
        %v5170 = vunpack.c.h.b16 %v4024
        %v5171 = vunpack.c.l.b16 %v4025
        %v5172 = vunpack.c.h.b16 %v4025
        %v5173 = vunpack.c.l.b16 %v4026
        %v5174 = vunpack.c.h.b16 %v4026
        %v5175 = vunpack.c.l.b16 %v4027
        %v5176 = vunpack.c.h.b16 %v4027
        %v5177 = vunpack.c.l.b16 %v4028
        %v5178 = vunpack.c.h.b16 %v4028
        %v5179 = vunpack.c.l.b16 %v4029
        %v5180 = vunpack.c.h.b16 %v4029
        %v5181 = vunpack.c.l.b16 %v4030
        %v5182 = vunpack.c.h.b16 %v4030
        %v5183 = vunpack.c.l.b16 %v4031
        %v5184 = vunpack.c.h.b16 %v4031
        %v5185 = vunpack.c.l.b16 %v4032
        %v5186 = vunpack.c.h.b16 %v4032
        %v5187 = vunpack.c.l.b16 %v4033
        %v5188 = vunpack.c.h.b16 %v4033
        %v5189 = vunpack.c.l.b16 %v4034
        %v5190 = vunpack.c.h.b16 %v4034
        %v5191 = vunpack.c.l.b16 %v4035
        %v5192 = vunpack.c.h.b16 %v4035
        %v5193 = vunpack.c.l.b16 %v4036
        %v5194 = vunpack.c.h.b16 %v4036
        %v5195 = vunpack.c.l.b16 %v4037
        %v5196 = vunpack.c.h.b16 %v4037
        %v5197 = vunpack.c.l.b16 %v4038
        %v5198 = vunpack.c.h.b16 %v4038
        %v5199 = vunpack.c.l.b16 %v4039
        %v5200 = vunpack.c.h.b16 %v4039
        %v5201 = vunpack.c.l.b16 %v4040
        %v5202 = vunpack.c.h.b16 %v4040
        %v5203 = vunpack.c.l.b16 %v4041
        %v5204 = vunpack.c.h.b16 %v4041
        %v5205 = vunpack.c.l.b16 %v4042
        %v5206 = vunpack.c.h.b16 %v4042
        %v5207 = vunpack.c.l.b16 %v4043
        %v5208 = vunpack.c.h.b16 %v4043
        %v5209 = vunpack.c.l.b16 %v4044
        %v5210 = vunpack.c.h.b16 %v4044
        %v5211 = vunpack.c.l.b16 %v4045
        %v5212 = vunpack.c.h.b16 %v4045
        %v5213 = vunpack.c.l.b16 %v4046
        %v5214 = vunpack.c.h.b16 %v4046
        %v5215 = vunpack.c.l.b16 %v4047
        %v5216 = vunpack.c.h.b16 %v4047
        %v5217 = vunpack.c.l.b16 %v4048
        %v5218 = vunpack.c.h.b16 %v4048
        %v5219 = vunpack.c.l.b16 %v4049
        %v5220 = vunpack.c.h.b16 %v4049
        %v5221 = vunpack.c.l.b16 %v4050
        %v5222 = vunpack.c.h.b16 %v4050
        %v5223 = vunpack.c.l.b16 %v4051
        %v5224 = vunpack.c.h.b16 %v4051
        %v5225 = vunpack.c.l.b16 %v4052
        %v5226 = vunpack.c.h.b16 %v4052
        %v5227 = vunpack.c.l.b16 %v4053
        %v5228 = vunpack.c.h.b16 %v4053
        %v5229 = vunpack.c.l.b16 %v4054
        %v5230 = vunpack.c.h.b16 %v4054
        %v5231 = vunpack.c.l.b16 %v4055
        %v5232 = vunpack.c.h.b16 %v4055
        %v5233 = vunpack.c.l.b16 %v4056
        %v5234 = vunpack.c.h.b16 %v4056
        %v5235 = vunpack.c.l.b16 %v4057
        %v5236 = vunpack.c.h.b16 %v4057
        %v5237 = vunpack.c.l.b16 %v4058
        %v5238 = vunpack.c.h.b16 %v4058
        %v5239 = vunpack.c.l.b16 %v4059
        %v5240 = vunpack.c.h.b16 %v4059
        %v5241 = vunpack.c.l.b16 %v4060
        %v5242 = vunpack.c.h.b16 %v4060
        %v5243 = vunpack.c.l.b16 %v4061
        %v5244 = vunpack.c.h.b16 %v4061
        %v5245 = vunpack.c.l.b16 %v4062
        %v5246 = vunpack.c.h.b16 %v4062
        %v5247 = vunpack.c.l.b16 %v4063
        %v5248 = vunpack.c.h.b16 %v4063
        %v5249 = vunpack.c.l.b16 %v4064
        %v5250 = vunpack.c.h.b16 %v4064
        %v5251 = vunpack.c.l.b16 %v4065
        %v5252 = vunpack.c.h.b16 %v4065
        %v5253 = vunpack.c.l.b16 %v4066
        %v5254 = vunpack.c.h.b16 %v4066
        %v5255 = vunpack.c.l.b16 %v4067
        %v5256 = vunpack.c.h.b16 %v4067
        %v5257 = vunpack.c.l.b16 %v4068
        %v5258 = vunpack.c.h.b16 %v4068
        %v5259 = vunpack.c.l.b16 %v4069
        %v5260 = vunpack.c.h.b16 %v4069
        %v5261 = vunpack.c.l.b16 %v4070
        %v5262 = vunpack.c.h.b16 %v4070
        %v5263 = vunpack.c.l.b16 %v4071
        %v5264 = vunpack.c.h.b16 %v4071
        %v5265 = vunpack.c.l.b16 %v4072
        %v5266 = vunpack.c.h.b16 %v4072
        %v5267 = vunpack.c.l.b16 %v4073
        %v5268 = vunpack.c.h.b16 %v4073
        %v5269 = vunpack.c.l.b16 %v4074
        %v5270 = vunpack.c.h.b16 %v4074
        %v5271 = vunpack.c.l.b16 %v4075
        %v5272 = vunpack.c.h.b16 %v4075
        %v5273 = vunpack.c.l.b16 %v4076
        %v5274 = vunpack.c.h.b16 %v4076
        %v5275 = vunpack.c.l.b16 %v4077
        %v5276 = vunpack.c.h.b16 %v4077
        %v5277 = vunpack.c.l.b16 %v4078
        %v5278 = vunpack.c.h.b16 %v4078
        %v5279 = vunpack.c.l.b16 %v4079
        %v5280 = vunpack.c.h.b16 %v4079
        %v5281 = vunpack.c.l.b16 %v4080
        %v5282 = vunpack.c.h.b16 %v4080
        %v5283 = vunpack.c.l.b16 %v4081
        %v5284 = vunpack.c.h.b16 %v4081
        %v5285 = vunpack.c.l.b16 %v4082
        %v5286 = vunpack.c.h.b16 %v4082
        %v5287 = vunpack.c.l.b16 %v4083
        %v5288 = vunpack.c.h.b16 %v4083
        %v5289 = vunpack.c.l.b16 %v4084
        %v5290 = vunpack.c.h.b16 %v4084
        %v5291 = vunpack.c.l.b16 %v4085
        %v5292 = vunpack.c.h.b16 %v4085
        %v5293 = vunpack.c.l.b16 %v4086
        %v5294 = vunpack.c.h.b16 %v4086
        %v5295 = vunpack.c.l.b16 %v4087
        %v5296 = vunpack.c.h.b16 %v4087
        %v5297 = vunpack.c.l.b16 %v4088
        %v5298 = vunpack.c.h.b16 %v4088
        %v5299 = vunpack.c.l.b16 %v4089
        %v5300 = vunpack.c.h.b16 %v4089
        %v5301 = vunpack.c.l.b16 %v4090
        %v5302 = vunpack.c.h.b16 %v4090
        %v5303 = vunpack.c.l.b16 %v4091
        %v5304 = vunpack.c.h.b16 %v4091
        %v5305 = vunpack.c.l.b16 %v4092
        %v5306 = vunpack.c.h.b16 %v4092
        %v5307 = vunpack.c.l.b16 %v4093
        %v5308 = vunpack.c.h.b16 %v4093
        %v5309 = vunpack.c.l.b16 %v4094
        %v5310 = vunpack.c.h.b16 %v4094
        %v5311 = vunpack.c.l.b16 %v4095
        %v5312 = vunpack.c.h.b16 %v4095
        %v5313 = vunpack.c.l.b16 %v4096
        %v5314 = vunpack.c.h.b16 %v4096
        %v5315 = vunpack.c.l.b16 %v4097
        %v5316 = vunpack.c.h.b16 %v4097
        %v5317 = vunpack.c.l.b16 %v4098
        %v5318 = vunpack.c.h.b16 %v4098
        %v5319 = vunpack.c.l.b16 %v4099
        %v5320 = vunpack.c.h.b16 %v4099
        %v5321 = vunpack.c.l.b16 %v4100
        %v5322 = vunpack.c.h.b16 %v4100
        %v5323 = vunpack.c.l.b16 %v4101
        %v5324 = vunpack.c.h.b16 %v4101
        %v5325 = vunpack.c.l.b16 %v4102
        %v5326 = vunpack.c.h.b16 %v4102
        %v5327 = vunpack.c.l.b16 %v4103
        %v5328 = vunpack.c.h.b16 %v4103
        %v5329 = vunpack.c.l.b16 %v4104
        %v5330 = vunpack.c.h.b16 %v4104
        %v5331 = vunpack.c.l.b16 %v4105
        %v5332 = vunpack.c.h.b16 %v4105
        %v5333 = vunpack.c.l.b16 %v4106
        %v5334 = vunpack.c.h.b16 %v4106
        %v5335 = vunpack.c.l.b16 %v4107
        %v5336 = vunpack.c.h.b16 %v4107
        %v5337 = vunpack.c.l.b16 %v4108
        %v5338 = vunpack.c.h.b16 %v4108
        %v5339 = vunpack.c.l.b16 %v4109
        %v5340 = vunpack.c.h.b16 %v4109
        %v5341 = vunpack.c.l.b16 %v4110
        %v5342 = vunpack.c.h.b16 %v4110
        %v5343 = vunpack.c.l.b16 %v4111
        %v5344 = vunpack.c.h.b16 %v4111
        %v5345 = vunpack.c.l.b16 %v4112
        %v5346 = vunpack.c.h.b16 %v4112
        %v5347 = vunpack.c.l.b16 %v4113
        %v5348 = vunpack.c.h.b16 %v4113
        %v5349 = vunpack.c.l.b16 %v4114
        %v5350 = vunpack.c.h.b16 %v4114
        %v5351 = vunpack.c.l.b16 %v4115
        %v5352 = vunpack.c.h.b16 %v4115
        %v5353 = vunpack.c.l.b16 %v4116
        %v5354 = vunpack.c.h.b16 %v4116
        %v5355 = vunpack.c.l.b16 %v4117
        %v5356 = vunpack.c.h.b16 %v4117
        %v5357 = vunpack.c.l.b16 %v4118
        %v5358 = vunpack.c.h.b16 %v4118
        %v5359 = vunpack.c.l.b16 %v4119
        %v5360 = vunpack.c.h.b16 %v4119
        %v5361 = vunpack.c.l.b16 %v4120
        %v5362 = vunpack.c.h.b16 %v4120
        %v5363 = vunpack.c.l.b16 %v4121
        %v5364 = vunpack.c.h.b16 %v4121
        %v5365 = vunpack.c.l.b16 %v4122
        %v5366 = vunpack.c.h.b16 %v4122
        %v5367 = vunpack.c.l.b16 %v4123
        %v5368 = vunpack.c.h.b16 %v4123
        %v5369 = vunpack.c.l.b16 %v4124
        %v5370 = vunpack.c.h.b16 %v4124
        %v5371 = vunpack.c.l.b16 %v4125
        %v5372 = vunpack.c.h.b16 %v4125
        %v5373 = vunpack.c.l.b16 %v4126
        %v5374 = vunpack.c.h.b16 %v4126
        %v5375 = vunpack.c.l.b16 %v4127
        %v5376 = vunpack.c.h.b16 %v4127
        %v5377 = vunpack.c.l.b16 %v4128
        %v5378 = vunpack.c.h.b16 %v4128
        %v5379 = vunpack.c.l.b16 %v4129
        %v5380 = vunpack.c.h.b16 %v4129
        %v5381 = vunpack.c.l.b16 %v4130
        %v5382 = vunpack.c.h.b16 %v4130
        %v5383 = vunpack.c.l.b16 %v4131
        %v5384 = vunpack.c.h.b16 %v4131
        %v5385 = vunpack.c.l.b16 %v4132
        %v5386 = vunpack.c.h.b16 %v4132
        %v5387 = vunpack.c.l.b16 %v4133
        %v5388 = vunpack.c.h.b16 %v4133
        %v5389 = vunpack.c.l.b16 %v4134
        %v5390 = vunpack.c.h.b16 %v4134
        %v5391 = vunpack.c.l.b16 %v4135
        %v5392 = vunpack.c.h.b16 %v4135
        %v5393 = vunpack.c.l.b16 %v4136
        %v5394 = vunpack.c.h.b16 %v4136
        %v5395 = vunpack.c.l.b16 %v4137
        %v5396 = vunpack.c.h.b16 %v4137
        %v5397 = vunpack.c.l.b16 %v4138
        %v5398 = vunpack.c.h.b16 %v4138
        %v5399 = vunpack.c.l.b16 %v4139
        %v5400 = vunpack.c.h.b16 %v4139
        %v5401 = vunpack.c.l.b16 %v4140
        %v5402 = vunpack.c.h.b16 %v4140
        %v5403 = vunpack.c.l.b16 %v4141
        %v5404 = vunpack.c.h.b16 %v4141
        %v5405 = vunpack.c.l.b16 %v4142
        %v5406 = vunpack.c.h.b16 %v4142
        %v5407 = vunpack.c.l.b16 %v4143
        %v5408 = vunpack.c.h.b16 %v4143
        %v5409 = vunpack.c.l.b16 %v4144
        %v5410 = vunpack.c.h.b16 %v4144
        %v5411 = vunpack.c.l.b16 %v4145
        %v5412 = vunpack.c.h.b16 %v4145
        %v5413 = vunpack.c.l.b16 %v4146
        %v5414 = vunpack.c.h.b16 %v4146
        %v5415 = vunpack.c.l.b16 %v4147
        %v5416 = vunpack.c.h.b16 %v4147
        %v5417 = vunpack.c.l.b16 %v4148
        %v5418 = vunpack.c.h.b16 %v4148
        %v5419 = vunpack.c.l.b16 %v4149
        %v5420 = vunpack.c.h.b16 %v4149
        %v5421 = vunpack.c.l.b16 %v4150
        %v5422 = vunpack.c.h.b16 %v4150
        %v5423 = vunpack.c.l.b16 %v4151
        %v5424 = vunpack.c.h.b16 %v4151
        %v5425 = vunpack.c.l.b16 %v4152
        %v5426 = vunpack.c.h.b16 %v4152
        %v5427 = vunpack.c.l.b16 %v4153
        %v5428 = vunpack.c.h.b16 %v4153
        %v5429 = vunpack.c.l.b16 %v4154
        %v5430 = vunpack.c.h.b16 %v4154
        %v5431 = vunpack.c.l.b16 %v4155
        %v5432 = vunpack.c.h.b16 %v4155
        %v5433 = vunpack.c.l.b16 %v4156
        %v5434 = vunpack.c.h.b16 %v4156
        %v5435 = vunpack.c.l.b16 %v4157
        %v5436 = vunpack.c.h.b16 %v4157
        %v5437 = vunpack.c.l.b16 %v4158
        %v5438 = vunpack.c.h.b16 %v4158
        %v5439 = vunpack.c.l.b16 %v4159
        %v5440 = vunpack.c.h.b16 %v4159
        %v5441 = vunpack.c.l.b16 %v4160
        %v5442 = vunpack.c.h.b16 %v4160
        %v5443 = vunpack.c.l.b16 %v4161
        %v5444 = vunpack.c.h.b16 %v4161
        %v5445 = vunpack.c.l.b16 %v4162
        %v5446 = vunpack.c.h.b16 %v4162
        %v5447 = vunpack.c.l.b16 %v4163
        %v5448 = vunpack.c.h.b16 %v4163
        %v5449 = vunpack.c.l.b16 %v4164
        %v5450 = vunpack.c.h.b16 %v4164
        %v5451 = vunpack.c.l.b16 %v4165
        %v5452 = vunpack.c.h.b16 %v4165
        %v5453 = vunpack.c.l.b16 %v4166
        %v5454 = vunpack.c.h.b16 %v4166
        %v5455 = vunpack.c.l.b16 %v4167
        %v5456 = vunpack.c.h.b16 %v4167
        %v5457 = vunpack.c.l.b16 %v4168
        %v5458 = vunpack.c.h.b16 %v4168
        %v5459 = vunpack.c.l.b16 %v4169
        %v5460 = vunpack.c.h.b16 %v4169
        %v5461 = vunpack.c.l.b16 %v4170
        %v5462 = vunpack.c.h.b16 %v4170
        %v5463 = vunpack.c.l.b16 %v4171
        %v5464 = vunpack.c.h.b16 %v4171
        %v5465 = vunpack.c.l.b16 %v4172
        %v5466 = vunpack.c.h.b16 %v4172
        %v5467 = vunpack.c.l.b16 %v4173
        %v5468 = vunpack.c.h.b16 %v4173
        %v5469 = vunpack.c.l.b16 %v4174
        %v5470 = vunpack.c.h.b16 %v4174
        %v5471 = vunpack.c.l.b16 %v4175
        %v5472 = vunpack.c.h.b16 %v4175
        %v5473 = vunpack.c.l.b16 %v4176
        %v5474 = vunpack.c.h.b16 %v4176
        %v5475 = vunpack.c.l.b16 %v4177
        %v5476 = vunpack.c.h.b16 %v4177
        %v5477 = vunpack.c.l.b16 %v4178
        %v5478 = vunpack.c.h.b16 %v4178
        %v5479 = vunpack.c.l.b16 %v4179
        %v5480 = vunpack.c.h.b16 %v4179
        %v5481 = vunpack.c.l.b16 %v4180
        %v5482 = vunpack.c.h.b16 %v4180
        %v5483 = vunpack.c.l.b16 %v4181
        %v5484 = vunpack.c.h.b16 %v4181
        %v5485 = vunpack.c.l.b16 %v4182
        %v5486 = vunpack.c.h.b16 %v4182
        %v5487 = vunpack.c.l.b16 %v4183
        %v5488 = vunpack.c.h.b16 %v4183
        %v5489 = vunpack.c.l.b16 %v4184
        %v5490 = vunpack.c.h.b16 %v4184
        %v5491 = vunpack.c.l.b16 %v4185
        %v5492 = vunpack.c.h.b16 %v4185
        %v5493 = vunpack.c.l.b16 %v4186
        %v5494 = vunpack.c.h.b16 %v4186
        %v5495 = vunpack.c.l.b16 %v4187
        %v5496 = vunpack.c.h.b16 %v4187
        %v5497 = vunpack.c.l.b16 %v4188
        %v5498 = vunpack.c.h.b16 %v4188
        %v5499 = vunpack.c.l.b16 %v4189
        %v5500 = vunpack.c.h.b16 %v4189
        %v5501 = vunpack.c.l.b16 %v4190
        %v5502 = vunpack.c.h.b16 %v4190
        %v5503 = vunpack.c.l.b16 %v4191
        %v5504 = vunpack.c.h.b16 %v4191
        %v5505 = vunpack.c.l.b16 %v4192
        %v5506 = vunpack.c.h.b16 %v4192
        %v5507 = vunpack.c.l.b16 %v4193
        %v5508 = vunpack.c.h.b16 %v4193
        %v5509 = vunpack.c.l.b16 %v4194
        %v5510 = vunpack.c.h.b16 %v4194
        %v5511 = vunpack.c.l.b16 %v4195
        %v5512 = vunpack.c.h.b16 %v4195
        %v5513 = vunpack.c.l.b16 %v4196
        %v5514 = vunpack.c.h.b16 %v4196
        %v5515 = vunpack.c.l.b16 %v4197
        %v5516 = vunpack.c.h.b16 %v4197
        %v5517 = vunpack.c.l.b16 %v4198
        %v5518 = vunpack.c.h.b16 %v4198
        %v5519 = vunpack.c.l.b16 %v4199
        %v5520 = vunpack.c.h.b16 %v4199
        %v5521 = vunpack.c.l.b16 %v4200
        %v5522 = vunpack.c.h.b16 %v4200
        %v5523 = vunpack.c.l.b16 %v4201
        %v5524 = vunpack.c.h.b16 %v4201
        %v5525 = vunpack.c.l.b16 %v4202
        %v5526 = vunpack.c.h.b16 %v4202
        %v5527 = vunpack.c.l.b16 %v4203
        %v5528 = vunpack.c.h.b16 %v4203
        %v5529 = vunpack.c.l.b16 %v4204
        %v5530 = vunpack.c.h.b16 %v4204
        %v5531 = vunpack.c.l.b16 %v4205
        %v5532 = vunpack.c.h.b16 %v4205
        %v5533 = vunpack.c.l.b16 %v4206
        %v5534 = vunpack.c.h.b16 %v4206
        %v5535 = vunpack.c.l.b16 %v4207
        %v5536 = vunpack.c.h.b16 %v4207
        %v5537 = vunpack.c.l.b16 %v4208
        %v5538 = vunpack.c.h.b16 %v4208
        %v5539 = vunpack.c.l.b16 %v4209
        %v5540 = vunpack.c.h.b16 %v4209
        %v5541 = vunpack.c.l.b16 %v4210
        %v5542 = vunpack.c.h.b16 %v4210
        %v5543 = vunpack.c.l.b16 %v4211
        %v5544 = vunpack.c.h.b16 %v4211
        %v5545 = vunpack.c.l.b16 %v4212
        %v5546 = vunpack.c.h.b16 %v4212
        %v5547 = vunpack.c.l.b16 %v4213
        %v5548 = vunpack.c.h.b16 %v4213
        %v5549 = vunpack.c.l.b16 %v4214
        %v5550 = vunpack.c.h.b16 %v4214
        %v5551 = vunpack.c.l.b16 %v4215
        %v5552 = vunpack.c.h.b16 %v4215
        %v5553 = vunpack.c.l.b16 %v4216
        %v5554 = vunpack.c.h.b16 %v4216
        %v5555 = vunpack.c.l.b16 %v4217
        %v5556 = vunpack.c.h.b16 %v4217
        %v5557 = vunpack.c.l.b16 %v4218
        %v5558 = vunpack.c.h.b16 %v4218
        %v5559 = vunpack.c.l.b16 %v4219
        %v5560 = vunpack.c.h.b16 %v4219
        %v5561 = vunpack.c.l.b16 %v4220
        %v5562 = vunpack.c.h.b16 %v4220
        %v5563 = vunpack.c.l.b16 %v4221
        %v5564 = vunpack.c.h.b16 %v4221
        %v5565 = vunpack.c.l.b16 %v4222
        %v5566 = vunpack.c.h.b16 %v4222
        %v5567 = vunpack.c.l.b16 %v4223
        %v5568 = vunpack.c.h.b16 %v4223
        %v5569 = vunpack.c.l.b16 %v4224
        %v5570 = vunpack.c.h.b16 %v4224
        %v5571 = vunpack.c.l.b16 %v4225
        %v5572 = vunpack.c.h.b16 %v4225
        %v5573 = vunpack.c.l.b16 %v4226
        %v5574 = vunpack.c.h.b16 %v4226
        %v5575 = vunpack.c.l.b16 %v4227
        %v5576 = vunpack.c.h.b16 %v4227
        %v5577 = vunpack.c.l.b16 %v4228
        %v5578 = vunpack.c.h.b16 %v4228
        %v5579 = vunpack.c.l.b16 %v4229
        %v5580 = vunpack.c.h.b16 %v4229
        %v5581 = vunpack.c.l.b16 %v4230
        %v5582 = vunpack.c.h.b16 %v4230
        %v5583 = vunpack.c.l.b16 %v4231
        %v5584 = vunpack.c.h.b16 %v4231
        %v5585 = vunpack.c.l.b16 %v4232
        %v5586 = vunpack.c.h.b16 %v4232
        %v5587 = vunpack.c.l.b16 %v4233
        %v5588 = vunpack.c.h.b16 %v4233
        %v5589 = vunpack.c.l.b16 %v4234
        %v5590 = vunpack.c.h.b16 %v4234
        %v5591 = vunpack.c.l.b16 %v4235
        %v5592 = vunpack.c.h.b16 %v4235
        %v5593 = vunpack.c.l.b16 %v4236
        %v5594 = vunpack.c.h.b16 %v4236
        %v5595 = vunpack.c.l.b16 %v4237
        %v5596 = vunpack.c.h.b16 %v4237
        %v5597 = vunpack.c.l.b16 %v4238
        %v5598 = vunpack.c.h.b16 %v4238
        %v5599 = vunpack.c.l.b16 %v4239
        %v5600 = vunpack.c.h.b16 %v4239
        %v5601 = vunpack.c.l.b16 %v4240
        %v5602 = vunpack.c.h.b16 %v4240
        %v5603 = vunpack.c.l.b16 %v4241
        %v5604 = vunpack.c.h.b16 %v4241
        %v5605 = vunpack.c.l.b16 %v4242
        %v5606 = vunpack.c.h.b16 %v4242
        %v5607 = vunpack.c.l.b16 %v4243
        %v5608 = vunpack.c.h.b16 %v4243
        %v5609 = vunpack.c.l.b16 %v4244
        %v5610 = vunpack.c.h.b16 %v4244
        %v5611 = vunpack.c.l.b16 %v4245
        %v5612 = vunpack.c.h.b16 %v4245
        %v5613 = vunpack.c.l.b16 %v4246
        %v5614 = vunpack.c.h.b16 %v4246
        %v5615 = vunpack.c.l.b16 %v4247
        %v5616 = vunpack.c.h.b16 %v4247
        %v5617 = vunpack.c.l.b16 %v4248
        %v5618 = vunpack.c.h.b16 %v4248
        %v5619 = vunpack.c.l.b16 %v4249
        %v5620 = vunpack.c.h.b16 %v4249
        %v5621 = vunpack.c.l.b16 %v4250
        %v5622 = vunpack.c.h.b16 %v4250
        %v5623 = vunpack.c.l.b16 %v4251
        %v5624 = vunpack.c.h.b16 %v4251
        %v5625 = vunpack.c.l.b16 %v4252
        %v5626 = vunpack.c.h.b16 %v4252
        %v5627 = vunpack.c.l.b16 %v4253
        %v5628 = vunpack.c.h.b16 %v4253
        %v5629 = vunpack.c.l.b16 %v4254
        %v5630 = vunpack.c.h.b16 %v4254
        %v5631 = vunpack.c.l.b16 %v4255
        %v5632 = vunpack.c.h.b16 %v4255
        %v5633 = vunpack.c.l.b16 %v4256
        %v5634 = vunpack.c.h.b16 %v4256
        %v5635 = vunpack.c.l.b16 %v4257
        %v5636 = vunpack.c.h.b16 %v4257
        %v5637 = vunpack.c.l.b16 %v4258
        %v5638 = vunpack.c.h.b16 %v4258
        %v5639 = vunpack.c.l.b16 %v4259
        %v5640 = vunpack.c.h.b16 %v4259
        %v5641 = vunpack.c.l.b16 %v4260
        %v5642 = vunpack.c.h.b16 %v4260
        %v5643 = vunpack.c.l.b16 %v4261
        %v5644 = vunpack.c.h.b16 %v4261
        %v5645 = vunpack.c.l.b16 %v4262
        %v5646 = vunpack.c.h.b16 %v4262
        %v5647 = vunpack.c.l.b16 %v4263
        %v5648 = vunpack.c.h.b16 %v4263
        %v5649 = vunpack.c.l.b16 %v4264
        %v5650 = vunpack.c.h.b16 %v4264
        %v5651 = vunpack.c.l.b16 %v4265
        %v5652 = vunpack.c.h.b16 %v4265
        %v5653 = vunpack.c.l.b16 %v4266
        %v5654 = vunpack.c.h.b16 %v4266
        %v5655 = vunpack.c.l.b16 %v4267
        %v5656 = vunpack.c.h.b16 %v4267
        %v5657 = vunpack.c.l.b16 %v4268
        %v5658 = vunpack.c.h.b16 %v4268
        %v5659 = vunpack.c.l.b16 %v4269
        %v5660 = vunpack.c.h.b16 %v4269
        %v5661 = vunpack.c.l.b16 %v4270
        %v5662 = vunpack.c.h.b16 %v4270
        %v5663 = vunpack.c.l.b16 %v4271
        %v5664 = vunpack.c.h.b16 %v4271
        %v5665 = vunpack.c.l.b16 %v4272
        %v5666 = vunpack.c.h.b16 %v4272
        %v5667 = vunpack.c.l.b16 %v4273
        %v5668 = vunpack.c.h.b16 %v4273
        %v5669 = vunpack.c.l.b16 %v4274
        %v5670 = vunpack.c.h.b16 %v4274
        %v5671 = vunpack.c.l.b16 %v4275
        %v5672 = vunpack.c.h.b16 %v4275
        %v5673 = vunpack.c.l.b16 %v4276
        %v5674 = vunpack.c.h.b16 %v4276
        %v5675 = vunpack.c.l.b16 %v4277
        %v5676 = vunpack.c.h.b16 %v4277
        %v5677 = vunpack.c.l.b16 %v4278
        %v5678 = vunpack.c.h.b16 %v4278
        %v5679 = vunpack.c.l.b16 %v4279
        %v5680 = vunpack.c.h.b16 %v4279
        %v5681 = vunpack.c.l.b16 %v4280
        %v5682 = vunpack.c.h.b16 %v4280
        %v5683 = vunpack.c.l.b16 %v4281
        %v5684 = vunpack.c.h.b16 %v4281
        %v5685 = vunpack.c.l.b16 %v4282
        %v5686 = vunpack.c.h.b16 %v4282
        %v5687 = vunpack.c.l.b16 %v4283
        %v5688 = vunpack.c.h.b16 %v4283
        %v5689 = vunpack.c.l.b16 %v4284
        %v5690 = vunpack.c.h.b16 %v4284
        %v5691 = vunpack.c.l.b16 %v4285
        %v5692 = vunpack.c.h.b16 %v4285
        %v5693 = vunpack.c.l.b16 %v4286
        %v5694 = vunpack.c.h.b16 %v4286
        %v5695 = vunpack.c.l.b16 %v4287
        %v5696 = vunpack.c.h.b16 %v4287
        %v5697 = vunpack.c.l.b16 %v4288
        %v5698 = vunpack.c.h.b16 %v4288
        %v5699 = vunpack.c.l.b16 %v4289
        %v5700 = vunpack.c.h.b16 %v4289
        %v5701 = vunpack.c.l.b16 %v4290
        %v5702 = vunpack.c.h.b16 %v4290
        %v5703 = vunpack.c.l.b16 %v4291
        %v5704 = vunpack.c.h.b16 %v4291
        %v5705 = vunpack.c.l.b16 %v4292
        %v5706 = vunpack.c.h.b16 %v4292
        %v5707 = vunpack.c.l.b16 %v4293
        %v5708 = vunpack.c.h.b16 %v4293
        %v5709 = vunpack.c.l.b16 %v4294
        %v5710 = vunpack.c.h.b16 %v4294
        %v5711 = vunpack.c.l.b16 %v4295
        %v5712 = vunpack.c.h.b16 %v4295
        %v5713 = vunpack.c.l.b16 %v4296
        %v5714 = vunpack.c.h.b16 %v4296
        %v5715 = vunpack.c.l.b16 %v4297
        %v5716 = vunpack.c.h.b16 %v4297
        %v5717 = vunpack.c.l.b16 %v4298
        %v5718 = vunpack.c.h.b16 %v4298
        %v5719 = vunpack.c.l.b16 %v4299
        %v5720 = vunpack.c.h.b16 %v4299
        %v5721 = vunpack.c.l.b16 %v4300
        %v5722 = vunpack.c.h.b16 %v4300
        %v5723 = vunpack.c.l.b16 %v4301
        %v5724 = vunpack.c.h.b16 %v4301
        %v5725 = vunpack.c.l.b16 %v4302
        %v5726 = vunpack.c.h.b16 %v4302
        %v5727 = vunpack.c.l.b16 %v4303
        %v5728 = vunpack.c.h.b16 %v4303
        %v5729 = vunpack.c.l.b16 %v4304
        %v5730 = vunpack.c.h.b16 %v4304
        %v5731 = vunpack.c.l.b16 %v4305
        %v5732 = vunpack.c.h.b16 %v4305
        %v5733 = vunpack.c.l.b16 %v4306
        %v5734 = vunpack.c.h.b16 %v4306
        %v5735 = vunpack.c.l.b16 %v4307
        %v5736 = vunpack.c.h.b16 %v4307
        %v5737 = vunpack.c.l.b16 %v4308
        %v5738 = vunpack.c.h.b16 %v4308
        %v5739 = vunpack.c.l.b16 %v4309
        %v5740 = vunpack.c.h.b16 %v4309
        %v5741 = vunpack.c.l.b16 %v4310
        %v5742 = vunpack.c.h.b16 %v4310
        %v5743 = vunpack.c.l.b16 %v4311
        %v5744 = vunpack.c.h.b16 %v4311
        %v5745 = vunpack.c.l.b16 %v4312
        %v5746 = vunpack.c.h.b16 %v4312
        %v5747 = vunpack.c.l.b16 %v4313
        %v5748 = vunpack.c.h.b16 %v4313
        %v5749 = vunpack.c.l.b16 %v4314
        %v5750 = vunpack.c.h.b16 %v4314
        %v5751 = vunpack.c.l.b16 %v4315
        %v5752 = vunpack.c.h.b16 %v4315
        %v5753 = vunpack.c.l.b16 %v4316
        %v5754 = vunpack.c.h.b16 %v4316
        %v5755 = vunpack.c.l.b16 %v4317
        %v5756 = vunpack.c.h.b16 %v4317
        %v5757 = vunpack.c.l.b16 %v4318
        %v5758 = vunpack.c.h.b16 %v4318
        %v5759 = vunpack.c.l.b16 %v4319
        %v5760 = vunpack.c.h.b16 %v4319
        %v5761 = vunpack.c.l.b16 %v4320
        %v5762 = vunpack.c.h.b16 %v4320
        %v5763 = vunpack.c.l.b16 %v4321
        %v5764 = vunpack.c.h.b16 %v4321
        %v5765 = vunpack.c.l.b16 %v4322
        %v5766 = vunpack.c.h.b16 %v4322
        %v5767 = vunpack.c.l.b16 %v4323
        %v5768 = vunpack.c.h.b16 %v4323
        %v5769 = vunpack.c.l.b16 %v4324
        %v5770 = vunpack.c.h.b16 %v4324
        %v5771 = vunpack.c.l.b16 %v4325
        %v5772 = vunpack.c.h.b16 %v4325
        %v5773 = vunpack.c.l.b16 %v4326
        %v5774 = vunpack.c.h.b16 %v4326
        %v5775 = vunpack.c.l.b16 %v4327
        %v5776 = vunpack.c.h.b16 %v4327
        %v5777 = vunpack.c.l.b16 %v4328
        %v5778 = vunpack.c.h.b16 %v4328
        %v5779 = vunpack.c.l.b16 %v4329
        %v5780 = vunpack.c.h.b16 %v4329
        %v5781 = vunpack.c.l.b16 %v4330
        %v5782 = vunpack.c.h.b16 %v4330
        %v5783 = vunpack.c.l.b16 %v4331
        %v5784 = vunpack.c.h.b16 %v4331
        %v5785 = vunpack.c.l.b16 %v4332
        %v5786 = vunpack.c.h.b16 %v4332
        %v5787 = vunpack.c.l.b16 %v4333
        %v5788 = vunpack.c.h.b16 %v4333
        %v5789 = vunpack.c.l.b16 %v4334
        %v5790 = vunpack.c.h.b16 %v4334
        %v5791 = vunpack.c.l.b16 %v4335
        %v5792 = vunpack.c.h.b16 %v4335
        %v5793 = vunpack.c.l.b16 %v4336
        %v5794 = vunpack.c.h.b16 %v4336
        %v5795 = vunpack.c.l.b16 %v4337
        %v5796 = vunpack.c.h.b16 %v4337
        %v5797 = vunpack.c.l.b16 %v4338
        %v5798 = vunpack.c.h.b16 %v4338
        %v5799 = vunpack.c.l.b16 %v4339
        %v5800 = vunpack.c.h.b16 %v4339
        %v5801 = vunpack.c.l.b16 %v4340
        %v5802 = vunpack.c.h.b16 %v4340
        %v5803 = vunpack.c.l.b16 %v4341
        %v5804 = vunpack.c.h.b16 %v4341
        %v5805 = vunpack.c.l.b16 %v4342
        %v5806 = vunpack.c.h.b16 %v4342
        %v5807 = vunpack.c.l.b16 %v4343
        %v5808 = vunpack.c.h.b16 %v4343
        %v5809 = vunpack.c.l.b16 %v4344
        %v5810 = vunpack.c.h.b16 %v4344
        %v5811 = vunpack.c.l.b16 %v4345
        %v5812 = vunpack.c.h.b16 %v4345
        %v5813 = vunpack.c.l.b16 %v4346
        %v5814 = vunpack.c.h.b16 %v4346
        %v5815 = vunpack.c.l.b16 %v4347
        %v5816 = vunpack.c.h.b16 %v4347
        %v5817 = vunpack.c.l.b16 %v4348
        %v5818 = vunpack.c.h.b16 %v4348
        %v5819 = vunpack.c.l.b16 %v4349
        %v5820 = vunpack.c.h.b16 %v4349
        %v5821 = vunpack.c.l.b16 %v4350
        %v5822 = vunpack.c.h.b16 %v4350
        %v5823 = vunpack.c.l.b16 %v4351
        %v5824 = vunpack.c.h.b16 %v4351
        %v5825 = vunpack.c.l.b16 %v4352
        %v5826 = vunpack.c.h.b16 %v4352
        %v5827 = vunpack.c.l.b16 %v4353
        %v5828 = vunpack.c.h.b16 %v4353
        %v5829 = vunpack.c.l.b16 %v4354
        %v5830 = vunpack.c.h.b16 %v4354
        %v5831 = vunpack.c.l.b16 %v4355
        %v5832 = vunpack.c.h.b16 %v4355
        %v5833 = vunpack.c.l.b16 %v4356
        %v5834 = vunpack.c.h.b16 %v4356
        %v5835 = vunpack.c.l.b16 %v4357
        %v5836 = vunpack.c.h.b16 %v4357
        %v5837 = vunpack.c.l.b16 %v4358
        %v5838 = vunpack.c.h.b16 %v4358
        %v5839 = vunpack.c.l.b16 %v4359
        %v5840 = vunpack.c.h.b16 %v4359
        %v5841 = vunpack.c.l.b16 %v4360
        %v5842 = vunpack.c.h.b16 %v4360
        %v5843 = vunpack.c.l.b16 %v4361
        %v5844 = vunpack.c.h.b16 %v4361
        %v5845 = vunpack.c.l.b16 %v4362
        %v5846 = vunpack.c.h.b16 %v4362
        %v5847 = vunpack.c.l.b16 %v4363
        %v5848 = vunpack.c.h.b16 %v4363
        %v5849 = vunpack.c.l.b16 %v4364
        %v5850 = vunpack.c.h.b16 %v4364
        %v5851 = vunpack.c.l.b16 %v4365
        %v5852 = vunpack.c.h.b16 %v4365
        %v5853 = vunpack.c.l.b16 %v4366
        %v5854 = vunpack.c.h.b16 %v4366
        %v5855 = vunpack.c.l.b16 %v4367
        %v5856 = vunpack.c.h.b16 %v4367
        %v5857 = vunpack.c.l.b16 %v4368
        %v5858 = vunpack.c.h.b16 %v4368
        %v5859 = vunpack.c.l.b16 %v4369
        %v5860 = vunpack.c.h.b16 %v4369
        %v5861 = vunpack.c.l.b16 %v4370
        %v5862 = vunpack.c.h.b16 %v4370
        %v5863 = vunpack.c.l.b16 %v4371
        %v5864 = vunpack.c.h.b16 %v4371
        %v5865 = vunpack.c.l.b16 %v4372
        %v5866 = vunpack.c.h.b16 %v4372
        %v5867 = vunpack.c.l.b16 %v4373
        %v5868 = vunpack.c.h.b16 %v4373
        %v5869 = vunpack.c.l.b16 %v4374
        %v5870 = vunpack.c.h.b16 %v4374
        %v5871 = vunpack.c.l.b16 %v4375
        %v5872 = vunpack.c.h.b16 %v4375
        %v5873 = vunpack.c.l.b16 %v4376
        %v5874 = vunpack.c.h.b16 %v4376
        %v5875 = vunpack.c.l.b16 %v4377
        %v5876 = vunpack.c.h.b16 %v4377
        %v5877 = vunpack.c.l.b16 %v4378
        %v5878 = vunpack.c.h.b16 %v4378
        %v5879 = vunpack.c.l.b16 %v4379
        %v5880 = vunpack.c.h.b16 %v4379
        %v5881 = vunpack.c.l.b16 %v4380
        %v5882 = vunpack.c.h.b16 %v4380
        %v5883 = vunpack.c.l.b16 %v4381
        %v5884 = vunpack.c.h.b16 %v4381
        %v5885 = vunpack.c.l.b16 %v4382
        %v5886 = vunpack.c.h.b16 %v4382
        %v5887 = vunpack.c.l.b16 %v4383
        %v5888 = vunpack.c.h.b16 %v4383
        %v5889 = vunpack.c.l.b16 %v4384
        %v5890 = vunpack.c.h.b16 %v4384
        %v5891 = vunpack.c.l.b16 %v4385
        %v5892 = vunpack.c.h.b16 %v4385
        %v5893 = vunpack.c.l.b16 %v4386
        %v5894 = vunpack.c.h.b16 %v4386
        %v5895 = vunpack.c.l.b16 %v4387
        %v5896 = vunpack.c.h.b16 %v4387
        %v5897 = vunpack.c.l.b16 %v4388
        %v5898 = vunpack.c.h.b16 %v4388
        %v5899 = vunpack.c.l.b16 %v4389
        %v5900 = vunpack.c.h.b16 %v4389
        %v5901 = vunpack.c.l.b16 %v4390
        %v5902 = vunpack.c.h.b16 %v4390
        %v5903 = vunpack.c.l.b16 %v4391
        %v5904 = vunpack.c.h.b16 %v4391
        %v5905 = vunpack.c.l.b16 %v4392
        %v5906 = vunpack.c.h.b16 %v4392
        %v5907 = vunpack.c.l.b16 %v4393
        %v5908 = vunpack.c.h.b16 %v4393
        %v5909 = vunpack.c.l.b16 %v4394
        %v5910 = vunpack.c.h.b16 %v4394
        %v5911 = vunpack.c.l.b16 %v4395
        %v5912 = vunpack.c.h.b16 %v4395
        %v5913 = vunpack.c.l.b16 %v4396
        %v5914 = vunpack.c.h.b16 %v4396
        %v5915 = vunpack.c.l.b16 %v4397
        %v5916 = vunpack.c.h.b16 %v4397
        %v5917 = vunpack.c.l.b16 %v4398
        %v5918 = vunpack.c.h.b16 %v4398
        %v5919 = vunpack.c.l.b16 %v4399
        %v5920 = vunpack.c.h.b16 %v4399
        %v5921 = vunpack.c.l.b16 %v4400
        %v5922 = vunpack.c.h.b16 %v4400
        %v5923 = vunpack.c.l.b16 %v4401
        %v5924 = vunpack.c.h.b16 %v4401
        %v5925 = vunpack.c.l.b16 %v4402
        %v5926 = vunpack.c.h.b16 %v4402
        %v5927 = vunpack.c.l.b16 %v4403
        %v5928 = vunpack.c.h.b16 %v4403
        %v5929 = vunpack.c.l.b16 %v4404
        %v5930 = vunpack.c.h.b16 %v4404
        %v5931 = vunpack.c.l.b16 %v4405
        %v5932 = vunpack.c.h.b16 %v4405
        %v5933 = vunpack.c.l.b16 %v4406
        %v5934 = vunpack.c.h.b16 %v4406
        %v5935 = vunpack.c.l.b16 %v4407
        %v5936 = vunpack.c.h.b16 %v4407
        %v5937 = vunpack.c.l.b16 %v4408
        %v5938 = vunpack.c.h.b16 %v4408
        %v5939 = vunpack.c.l.b16 %v4409
        %v5940 = vunpack.c.h.b16 %v4409
        %v5941 = vunpack.c.l.b16 %v4410
        %v5942 = vunpack.c.h.b16 %v4410
        %v5943 = vunpack.c.l.b16 %v4411
        %v5944 = vunpack.c.h.b16 %v4411
        %v5945 = vunpack.c.l.b16 %v4412
        %v5946 = vunpack.c.h.b16 %v4412
        %v5947 = vunpack.c.l.b16 %v4413
        %v5948 = vunpack.c.h.b16 %v4413
        %v5949 = vunpack.c.l.b16 %v4414
        %v5950 = vunpack.c.h.b16 %v4414
        %v5951 = vunpack.c.l.b16 %v4415
        %v5952 = vunpack.c.h.b16 %v4415
        %v5953 = vunpack.c.l.b16 %v4416
        %v5954 = vunpack.c.h.b16 %v4416
        %v5955 = vunpack.c.l.b16 %v4417
        %v5956 = vunpack.c.h.b16 %v4417
        %v5957 = vunpack.c.l.b16 %v4418
        %v5958 = vunpack.c.h.b16 %v4418
        %v5959 = vunpack.c.l.b16 %v4419
        %v5960 = vunpack.c.h.b16 %v4419
        %v5961 = vunpack.c.l.b16 %v4420
        %v5962 = vunpack.c.h.b16 %v4420
        %v5963 = vunpack.c.l.b16 %v4421
        %v5964 = vunpack.c.h.b16 %v4421
        %v5965 = vunpack.c.l.b16 %v4422
        %v5966 = vunpack.c.h.b16 %v4422
        %v5967 = vunpack.c.l.b16 %v4423
        %v5968 = vunpack.c.h.b16 %v4423
        %v5969 = vunpack.c.l.b16 %v4424
        %v5970 = vunpack.c.h.b16 %v4424
        %v5971 = vunpack.c.l.b16 %v4425
        %v5972 = vunpack.c.h.b16 %v4425
        %v5973 = vunpack.c.l.b16 %v4426
        %v5974 = vunpack.c.h.b16 %v4426
        %v5975 = vunpack.c.l.b16 %v4427
        %v5976 = vunpack.c.h.b16 %v4427
        %v5977 = vunpack.c.l.b16 %v4428
        %v5978 = vunpack.c.h.b16 %v4428
        %v5979 = vunpack.c.l.b16 %v4429
        %v5980 = vunpack.c.h.b16 %v4429
        %v5981 = vunpack.c.l.b16 %v4430
        %v5982 = vunpack.c.h.b16 %v4430
        %v5983 = vunpack.c.l.b16 %v4431
        %v5984 = vunpack.c.h.b16 %v4431
        %v5985 = vunpack.c.l.b16 %v4432
        %v5986 = vunpack.c.h.b16 %v4432
        %v5987 = vunpack.c.l.b16 %v4433
        %v5988 = vunpack.c.h.b16 %v4433
        %v5989 = vunpack.c.l.b16 %v4434
        %v5990 = vunpack.c.h.b16 %v4434
        %v5991 = vunpack.c.l.b16 %v4435
        %v5992 = vunpack.c.h.b16 %v4435
        %v5993 = vunpack.c.l.b16 %v4436
        %v5994 = vunpack.c.h.b16 %v4436
        %v5995 = vunpack.c.l.b16 %v4437
        %v5996 = vunpack.c.h.b16 %v4437
        %v5997 = vunpack.c.l.b16 %v4438
        %v5998 = vunpack.c.h.b16 %v4438
        %v5999 = vunpack.c.l.b16 %v4439
        %v6000 = vunpack.c.h.b16 %v4439
        %v6001 = vunpack.c.l.b16 %v4440
        %v6002 = vunpack.c.h.b16 %v4440
        %v6003 = vunpack.c.l.b16 %v4441
        %v6004 = vunpack.c.h.b16 %v4441
        %v6005 = vunpack.c.l.b16 %v4442
        %v6006 = vunpack.c.h.b16 %v4442
        %v6007 = vunpack.c.l.b16 %v4443
        %v6008 = vunpack.c.h.b16 %v4443
        %v6009 = vunpack.c.l.b16 %v4444
        %v6010 = vunpack.c.h.b16 %v4444
        %v6011 = vunpack.c.l.b16 %v4445
        %v6012 = vunpack.c.h.b16 %v4445
        %v6013 = vunpack.c.l.b16 %v4446
        %v6014 = vunpack.c.h.b16 %v4446
        %v6015 = vunpack.c.l.b16 %v4447
        %v6016 = vunpack.c.h.b16 %v4447
        %v6017 = vunpack.c.l.b16 %v4448
        %v6018 = vunpack.c.h.b16 %v4448
        %v6019 = vunpack.c.l.b16 %v4449
        %v6020 = vunpack.c.h.b16 %v4449
        %v6021 = vunpack.c.l.b16 %v4450
        %v6022 = vunpack.c.h.b16 %v4450
        %v6023 = vunpack.c.l.b16 %v4451
        %v6024 = vunpack.c.h.b16 %v4451
        %v6025 = vunpack.c.l.b16 %v4452
        %v6026 = vunpack.c.h.b16 %v4452
        %v6027 = vunpack.c.l.b16 %v4453
        %v6028 = vunpack.c.h.b16 %v4453
        %v6029 = vunpack.c.l.b16 %v4454
        %v6030 = vunpack.c.h.b16 %v4454
        %v6031 = vunpack.c.l.b16 %v4455
        %v6032 = vunpack.c.h.b16 %v4455
        %v6033 = vunpack.c.l.b16 %v4456
        %v6034 = vunpack.c.h.b16 %v4456
        %v6035 = vunpack.c.l.b16 %v4457
        %v6036 = vunpack.c.h.b16 %v4457
        %v6037 = vunpack.c.l.b16 %v4458
        %v6038 = vunpack.c.h.b16 %v4458
        %v6039 = vunpack.c.l.b16 %v4459
        %v6040 = vunpack.c.h.b16 %v4459
        %v6041 = vunpack.c.l.b16 %v4460
        %v6042 = vunpack.c.h.b16 %v4460
        %v6043 = vunpack.c.l.b16 %v4461
        %v6044 = vunpack.c.h.b16 %v4461
        %v6045 = vunpack.c.l.b16 %v4462
        %v6046 = vunpack.c.h.b16 %v4462
        %v6047 = vunpack.c.l.b16 %v4463
        %v6048 = vunpack.c.h.b16 %v4463
        %v6049 = vunpack.c.l.b16 %v4464
        %v6050 = vunpack.c.h.b16 %v4464
        %v6051 = vunpack.c.l.b16 %v4465
        %v6052 = vunpack.c.h.b16 %v4465
        %v6053 = vunpack.c.l.b16 %v4466
        %v6054 = vunpack.c.h.b16 %v4466
        %v6055 = vunpack.c.l.b16 %v4467
        %v6056 = vunpack.c.h.b16 %v4467
        %v6057 = vunpack.c.l.b16 %v4468
        %v6058 = vunpack.c.h.b16 %v4468
        %v6059 = vunpack.c.l.b16 %v4469
        %v6060 = vunpack.c.h.b16 %v4469
        %v6061 = vunpack.c.l.b16 %v4470
        %v6062 = vunpack.c.h.b16 %v4470
        %v6063 = vunpack.c.l.b16 %v4471
        %v6064 = vunpack.c.h.b16 %v4471
        %v6065 = vunpack.c.l.b16 %v4472
        %v6066 = vunpack.c.h.b16 %v4472
        %v6067 = vunpack.c.l.b16 %v4473
        %v6068 = vunpack.c.h.b16 %v4473
        %v6069 = vunpack.c.l.b16 %v4474
        %v6070 = vunpack.c.h.b16 %v4474
        %v6071 = vunpack.c.l.b16 %v4475
        %v6072 = vunpack.c.h.b16 %v4475
        %v6073 = vunpack.c.l.b16 %v4476
        %v6074 = vunpack.c.h.b16 %v4476
        %v6075 = vunpack.c.l.b16 %v4477
        %v6076 = vunpack.c.h.b16 %v4477
        %v6077 = vunpack.c.l.b16 %v4478
        %v6078 = vunpack.c.h.b16 %v4478
        %v6079 = vunpack.c.l.b16 %v4479
        %v6080 = vunpack.c.h.b16 %v4479
        %v6081 = vunpack.c.l.b16 %v4480
        %v6082 = vunpack.c.h.b16 %v4480
        %v6083 = vunpack.c.l.b16 %v4481
        %v6084 = vunpack.c.h.b16 %v4481
        %v6085 = vunpack.c.l.b16 %v4482
        %v6086 = vunpack.c.h.b16 %v4482
        %v6087 = vunpack.c.l.b16 %v4483
        %v6088 = vunpack.c.h.b16 %v4483
        %v6089 = vunpack.c.l.b16 %v4484
        %v6090 = vunpack.c.h.b16 %v4484
        %v6091 = vunpack.c.l.b16 %v4485
        %v6092 = vunpack.c.h.b16 %v4485
        %v6093 = vunpack.c.l.b16 %v4486
        %v6094 = vunpack.c.h.b16 %v4486
        %v6095 = vunpack.c.l.b16 %v4487
        %v6096 = vunpack.c.h.b16 %v4487
        %v6097 = vpack.c.b16 %v5075, %v5073
        %v6098 = vpack.c.b16 %v5076, %v5074
        %v6099 = vpack.c.b16 %v5079, %v5077
        %v6100 = vpack.c.b16 %v5080, %v5078
        %v6101 = vpack.c.b16 %v5083, %v5081
        %v6102 = vpack.c.b16 %v5084, %v5082
        %v6103 = vpack.c.b16 %v5087, %v5085
        %v6104 = vpack.c.b16 %v5088, %v5086
        %v6105 = vpack.c.b16 %v5091, %v5089
        %v6106 = vpack.c.b16 %v5092, %v5090
        %v6107 = vpack.c.b16 %v5095, %v5093
        %v6108 = vpack.c.b16 %v5096, %v5094
        %v6109 = vpack.c.b16 %v5099, %v5097
        %v6110 = vpack.c.b16 %v5100, %v5098
        %v6111 = vpack.c.b16 %v5103, %v5101
        %v6112 = vpack.c.b16 %v5104, %v5102
        %v6113 = vpack.c.b16 %v5107, %v5105
        %v6114 = vpack.c.b16 %v5108, %v5106
        %v6115 = vpack.c.b16 %v5111, %v5109
        %v6116 = vpack.c.b16 %v5112, %v5110
        %v6117 = vpack.c.b16 %v5115, %v5113
        %v6118 = vpack.c.b16 %v5116, %v5114
        %v6119 = vpack.c.b16 %v5119, %v5117
        %v6120 = vpack.c.b16 %v5120, %v5118
        %v6121 = vpack.c.b16 %v5123, %v5121
        %v6122 = vpack.c.b16 %v5124, %v5122
        %v6123 = vpack.c.b16 %v5127, %v5125
        %v6124 = vpack.c.b16 %v5128, %v5126
        %v6125 = vpack.c.b16 %v5131, %v5129
        %v6126 = vpack.c.b16 %v5132, %v5130
        %v6127 = vpack.c.b16 %v5135, %v5133
        %v6128 = vpack.c.b16 %v5136, %v5134
        %v6129 = vpack.c.b16 %v5139, %v5137
        %v6130 = vpack.c.b16 %v5140, %v5138
        %v6131 = vpack.c.b16 %v5143, %v5141
        %v6132 = vpack.c.b16 %v5144, %v5142
        %v6133 = vpack.c.b16 %v5147, %v5145
        %v6134 = vpack.c.b16 %v5148, %v5146
        %v6135 = vpack.c.b16 %v5151, %v5149
        %v6136 = vpack.c.b16 %v5152, %v5150
        %v6137 = vpack.c.b16 %v5155, %v5153
        %v6138 = vpack.c.b16 %v5156, %v5154
        %v6139 = vpack.c.b16 %v5159, %v5157
        %v6140 = vpack.c.b16 %v5160, %v5158
        %v6141 = vpack.c.b16 %v5163, %v5161
        %v6142 = vpack.c.b16 %v5164, %v5162
        %v6143 = vpack.c.b16 %v5167, %v5165
        %v6144 = vpack.c.b16 %v5168, %v5166
        %v6145 = vpack.c.b16 %v5171, %v5169
        %v6146 = vpack.c.b16 %v5172, %v5170
        %v6147 = vpack.c.b16 %v5175, %v5173
        %v6148 = vpack.c.b16 %v5176, %v5174
        %v6149 = vpack.c.b16 %v5179, %v5177
        %v6150 = vpack.c.b16 %v5180, %v5178
        %v6151 = vpack.c.b16 %v5183, %v5181
        %v6152 = vpack.c.b16 %v5184, %v5182
        %v6153 = vpack.c.b16 %v5187, %v5185
        %v6154 = vpack.c.b16 %v5188, %v5186
        %v6155 = vpack.c.b16 %v5191, %v5189
        %v6156 = vpack.c.b16 %v5192, %v5190
        %v6157 = vpack.c.b16 %v5195, %v5193
        %v6158 = vpack.c.b16 %v5196, %v5194
        %v6159 = vpack.c.b16 %v5199, %v5197
        %v6160 = vpack.c.b16 %v5200, %v5198
        %v6161 = vpack.c.b16 %v5203, %v5201
        %v6162 = vpack.c.b16 %v5204, %v5202
        %v6163 = vpack.c.b16 %v5207, %v5205
        %v6164 = vpack.c.b16 %v5208, %v5206
        %v6165 = vpack.c.b16 %v5211, %v5209
        %v6166 = vpack.c.b16 %v5212, %v5210
        %v6167 = vpack.c.b16 %v5215, %v5213
        %v6168 = vpack.c.b16 %v5216, %v5214
        %v6169 = vpack.c.b16 %v5219, %v5217
        %v6170 = vpack.c.b16 %v5220, %v5218
        %v6171 = vpack.c.b16 %v5223, %v5221
        %v6172 = vpack.c.b16 %v5224, %v5222
        %v6173 = vpack.c.b16 %v5227, %v5225
        %v6174 = vpack.c.b16 %v5228, %v5226
        %v6175 = vpack.c.b16 %v5231, %v5229
        %v6176 = vpack.c.b16 %v5232, %v5230
        %v6177 = vpack.c.b16 %v5235, %v5233
        %v6178 = vpack.c.b16 %v5236, %v5234
        %v6179 = vpack.c.b16 %v5239, %v5237
        %v6180 = vpack.c.b16 %v5240, %v5238
        %v6181 = vpack.c.b16 %v5243, %v5241
        %v6182 = vpack.c.b16 %v5244, %v5242
        %v6183 = vpack.c.b16 %v5247, %v5245
        %v6184 = vpack.c.b16 %v5248, %v5246
        %v6185 = vpack.c.b16 %v5251, %v5249
        %v6186 = vpack.c.b16 %v5252, %v5250
        %v6187 = vpack.c.b16 %v5255, %v5253
        %v6188 = vpack.c.b16 %v5256, %v5254
        %v6189 = vpack.c.b16 %v5259, %v5257
        %v6190 = vpack.c.b16 %v5260, %v5258
        %v6191 = vpack.c.b16 %v5263, %v5261
        %v6192 = vpack.c.b16 %v5264, %v5262
        %v6193 = vpack.c.b16 %v5267, %v5265
        %v6194 = vpack.c.b16 %v5268, %v5266
        %v6195 = vpack.c.b16 %v5271, %v5269
        %v6196 = vpack.c.b16 %v5272, %v5270
        %v6197 = vpack.c.b16 %v5275, %v5273
        %v6198 = vpack.c.b16 %v5276, %v5274
        %v6199 = vpack.c.b16 %v5279, %v5277
        %v6200 = vpack.c.b16 %v5280, %v5278
        %v6201 = vpack.c.b16 %v5283, %v5281
        %v6202 = vpack.c.b16 %v5284, %v5282
        %v6203 = vpack.c.b16 %v5287, %v5285
        %v6204 = vpack.c.b16 %v5288, %v5286
        %v6205 = vpack.c.b16 %v5291, %v5289
        %v6206 = vpack.c.b16 %v5292, %v5290
        %v6207 = vpack.c.b16 %v5295, %v5293
        %v6208 = vpack.c.b16 %v5296, %v5294
        %v6209 = vpack.c.b16 %v5299, %v5297
        %v6210 = vpack.c.b16 %v5300, %v5298
        %v6211 = vpack.c.b16 %v5303, %v5301
        %v6212 = vpack.c.b16 %v5304, %v5302
        %v6213 = vpack.c.b16 %v5307, %v5305
        %v6214 = vpack.c.b16 %v5308, %v5306
        %v6215 = vpack.c.b16 %v5311, %v5309
        %v6216 = vpack.c.b16 %v5312, %v5310
        %v6217 = vpack.c.b16 %v5315, %v5313
        %v6218 = vpack.c.b16 %v5316, %v5314
        %v6219 = vpack.c.b16 %v5319, %v5317
        %v6220 = vpack.c.b16 %v5320, %v5318
        %v6221 = vpack.c.b16 %v5323, %v5321
        %v6222 = vpack.c.b16 %v5324, %v5322
        %v6223 = vpack.c.b16 %v5327, %v5325
        %v6224 = vpack.c.b16 %v5328, %v5326
        %v6225 = vpack.c.b16 %v5331, %v5329
        %v6226 = vpack.c.b16 %v5332, %v5330
        %v6227 = vpack.c.b16 %v5335, %v5333
        %v6228 = vpack.c.b16 %v5336, %v5334
        %v6229 = vpack.c.b16 %v5339, %v5337
        %v6230 = vpack.c.b16 %v5340, %v5338
        %v6231 = vpack.c.b16 %v5343, %v5341
        %v6232 = vpack.c.b16 %v5344, %v5342
        %v6233 = vpack.c.b16 %v5347, %v5345
        %v6234 = vpack.c.b16 %v5348, %v5346
        %v6235 = vpack.c.b16 %v5351, %v5349
        %v6236 = vpack.c.b16 %v5352, %v5350
        %v6237 = vpack.c.b16 %v5355, %v5353
        %v6238 = vpack.c.b16 %v5356, %v5354
        %v6239 = vpack.c.b16 %v5359, %v5357
        %v6240 = vpack.c.b16 %v5360, %v5358
        %v6241 = vpack.c.b16 %v5363, %v5361
        %v6242 = vpack.c.b16 %v5364, %v5362
        %v6243 = vpack.c.b16 %v5367, %v5365
        %v6244 = vpack.c.b16 %v5368, %v5366
        %v6245 = vpack.c.b16 %v5371, %v5369
        %v6246 = vpack.c.b16 %v5372, %v5370
        %v6247 = vpack.c.b16 %v5375, %v5373
        %v6248 = vpack.c.b16 %v5376, %v5374
        %v6249 = vpack.c.b16 %v5379, %v5377
        %v6250 = vpack.c.b16 %v5380, %v5378
        %v6251 = vpack.c.b16 %v5383, %v5381
        %v6252 = vpack.c.b16 %v5384, %v5382
        %v6253 = vpack.c.b16 %v5387, %v5385
        %v6254 = vpack.c.b16 %v5388, %v5386
        %v6255 = vpack.c.b16 %v5391, %v5389
        %v6256 = vpack.c.b16 %v5392, %v5390
        %v6257 = vpack.c.b16 %v5395, %v5393
        %v6258 = vpack.c.b16 %v5396, %v5394
        %v6259 = vpack.c.b16 %v5399, %v5397
        %v6260 = vpack.c.b16 %v5400, %v5398
        %v6261 = vpack.c.b16 %v5403, %v5401
        %v6262 = vpack.c.b16 %v5404, %v5402
        %v6263 = vpack.c.b16 %v5407, %v5405
        %v6264 = vpack.c.b16 %v5408, %v5406
        %v6265 = vpack.c.b16 %v5411, %v5409
        %v6266 = vpack.c.b16 %v5412, %v5410
        %v6267 = vpack.c.b16 %v5415, %v5413
        %v6268 = vpack.c.b16 %v5416, %v5414
        %v6269 = vpack.c.b16 %v5419, %v5417
        %v6270 = vpack.c.b16 %v5420, %v5418
        %v6271 = vpack.c.b16 %v5423, %v5421
        %v6272 = vpack.c.b16 %v5424, %v5422
        %v6273 = vpack.c.b16 %v5427, %v5425
        %v6274 = vpack.c.b16 %v5428, %v5426
        %v6275 = vpack.c.b16 %v5431, %v5429
        %v6276 = vpack.c.b16 %v5432, %v5430
        %v6277 = vpack.c.b16 %v5435, %v5433
        %v6278 = vpack.c.b16 %v5436, %v5434
        %v6279 = vpack.c.b16 %v5439, %v5437
        %v6280 = vpack.c.b16 %v5440, %v5438
        %v6281 = vpack.c.b16 %v5443, %v5441
        %v6282 = vpack.c.b16 %v5444, %v5442
        %v6283 = vpack.c.b16 %v5447, %v5445
        %v6284 = vpack.c.b16 %v5448, %v5446
        %v6285 = vpack.c.b16 %v5451, %v5449
        %v6286 = vpack.c.b16 %v5452, %v5450
        %v6287 = vpack.c.b16 %v5455, %v5453
        %v6288 = vpack.c.b16 %v5456, %v5454
        %v6289 = vpack.c.b16 %v5459, %v5457
        %v6290 = vpack.c.b16 %v5460, %v5458
        %v6291 = vpack.c.b16 %v5463, %v5461
        %v6292 = vpack.c.b16 %v5464, %v5462
        %v6293 = vpack.c.b16 %v5467, %v5465
        %v6294 = vpack.c.b16 %v5468, %v5466
        %v6295 = vpack.c.b16 %v5471, %v5469
        %v6296 = vpack.c.b16 %v5472, %v5470
        %v6297 = vpack.c.b16 %v5475, %v5473
        %v6298 = vpack.c.b16 %v5476, %v5474
        %v6299 = vpack.c.b16 %v5479, %v5477
        %v6300 = vpack.c.b16 %v5480, %v5478
        %v6301 = vpack.c.b16 %v5483, %v5481
        %v6302 = vpack.c.b16 %v5484, %v5482
        %v6303 = vpack.c.b16 %v5487, %v5485
        %v6304 = vpack.c.b16 %v5488, %v5486
        %v6305 = vpack.c.b16 %v5491, %v5489
        %v6306 = vpack.c.b16 %v5492, %v5490
        %v6307 = vpack.c.b16 %v5495, %v5493
        %v6308 = vpack.c.b16 %v5496, %v5494
        %v6309 = vpack.c.b16 %v5499, %v5497
        %v6310 = vpack.c.b16 %v5500, %v5498
        %v6311 = vpack.c.b16 %v5503, %v5501
        %v6312 = vpack.c.b16 %v5504, %v5502
        %v6313 = vpack.c.b16 %v5507, %v5505
        %v6314 = vpack.c.b16 %v5508, %v5506
        %v6315 = vpack.c.b16 %v5511, %v5509
        %v6316 = vpack.c.b16 %v5512, %v5510
        %v6317 = vpack.c.b16 %v5515, %v5513
        %v6318 = vpack.c.b16 %v5516, %v5514
        %v6319 = vpack.c.b16 %v5519, %v5517
        %v6320 = vpack.c.b16 %v5520, %v5518
        %v6321 = vpack.c.b16 %v5523, %v5521
        %v6322 = vpack.c.b16 %v5524, %v5522
        %v6323 = vpack.c.b16 %v5527, %v5525
        %v6324 = vpack.c.b16 %v5528, %v5526
        %v6325 = vpack.c.b16 %v5531, %v5529
        %v6326 = vpack.c.b16 %v5532, %v5530
        %v6327 = vpack.c.b16 %v5535, %v5533
        %v6328 = vpack.c.b16 %v5536, %v5534
        %v6329 = vpack.c.b16 %v5539, %v5537
        %v6330 = vpack.c.b16 %v5540, %v5538
        %v6331 = vpack.c.b16 %v5543, %v5541
        %v6332 = vpack.c.b16 %v5544, %v5542
        %v6333 = vpack.c.b16 %v5547, %v5545
        %v6334 = vpack.c.b16 %v5548, %v5546
        %v6335 = vpack.c.b16 %v5551, %v5549
        %v6336 = vpack.c.b16 %v5552, %v5550
        %v6337 = vpack.c.b16 %v5555, %v5553
        %v6338 = vpack.c.b16 %v5556, %v5554
        %v6339 = vpack.c.b16 %v5559, %v5557
        %v6340 = vpack.c.b16 %v5560, %v5558
        %v6341 = vpack.c.b16 %v5563, %v5561
        %v6342 = vpack.c.b16 %v5564, %v5562
        %v6343 = vpack.c.b16 %v5567, %v5565
        %v6344 = vpack.c.b16 %v5568, %v5566
        %v6345 = vpack.c.b16 %v5571, %v5569
        %v6346 = vpack.c.b16 %v5572, %v5570
        %v6347 = vpack.c.b16 %v5575, %v5573
        %v6348 = vpack.c.b16 %v5576, %v5574
        %v6349 = vpack.c.b16 %v5579, %v5577
        %v6350 = vpack.c.b16 %v5580, %v5578
        %v6351 = vpack.c.b16 %v5583, %v5581
        %v6352 = vpack.c.b16 %v5584, %v5582
        %v6353 = vpack.c.b16 %v5587, %v5585
        %v6354 = vpack.c.b16 %v5588, %v5586
        %v6355 = vpack.c.b16 %v5591, %v5589
        %v6356 = vpack.c.b16 %v5592, %v5590
        %v6357 = vpack.c.b16 %v5595, %v5593
        %v6358 = vpack.c.b16 %v5596, %v5594
        %v6359 = vpack.c.b16 %v5599, %v5597
        %v6360 = vpack.c.b16 %v5600, %v5598
        %v6361 = vpack.c.b16 %v5603, %v5601
        %v6362 = vpack.c.b16 %v5604, %v5602
        %v6363 = vpack.c.b16 %v5607, %v5605
        %v6364 = vpack.c.b16 %v5608, %v5606
        %v6365 = vpack.c.b16 %v5611, %v5609
        %v6366 = vpack.c.b16 %v5612, %v5610
        %v6367 = vpack.c.b16 %v5615, %v5613
        %v6368 = vpack.c.b16 %v5616, %v5614
        %v6369 = vpack.c.b16 %v5619, %v5617
        %v6370 = vpack.c.b16 %v5620, %v5618
        %v6371 = vpack.c.b16 %v5623, %v5621
        %v6372 = vpack.c.b16 %v5624, %v5622
        %v6373 = vpack.c.b16 %v5627, %v5625
        %v6374 = vpack.c.b16 %v5628, %v5626
        %v6375 = vpack.c.b16 %v5631, %v5629
        %v6376 = vpack.c.b16 %v5632, %v5630
        %v6377 = vpack.c.b16 %v5635, %v5633
        %v6378 = vpack.c.b16 %v5636, %v5634
        %v6379 = vpack.c.b16 %v5639, %v5637
        %v6380 = vpack.c.b16 %v5640, %v5638
        %v6381 = vpack.c.b16 %v5643, %v5641
        %v6382 = vpack.c.b16 %v5644, %v5642
        %v6383 = vpack.c.b16 %v5647, %v5645
        %v6384 = vpack.c.b16 %v5648, %v5646
        %v6385 = vpack.c.b16 %v5651, %v5649
        %v6386 = vpack.c.b16 %v5652, %v5650
        %v6387 = vpack.c.b16 %v5655, %v5653
        %v6388 = vpack.c.b16 %v5656, %v5654
        %v6389 = vpack.c.b16 %v5659, %v5657
        %v6390 = vpack.c.b16 %v5660, %v5658
        %v6391 = vpack.c.b16 %v5663, %v5661
        %v6392 = vpack.c.b16 %v5664, %v5662
        %v6393 = vpack.c.b16 %v5667, %v5665
        %v6394 = vpack.c.b16 %v5668, %v5666
        %v6395 = vpack.c.b16 %v5671, %v5669
        %v6396 = vpack.c.b16 %v5672, %v5670
        %v6397 = vpack.c.b16 %v5675, %v5673
        %v6398 = vpack.c.b16 %v5676, %v5674
        %v6399 = vpack.c.b16 %v5679, %v5677
        %v6400 = vpack.c.b16 %v5680, %v5678
        %v6401 = vpack.c.b16 %v5683, %v5681
        %v6402 = vpack.c.b16 %v5684, %v5682
        %v6403 = vpack.c.b16 %v5687, %v5685
        %v6404 = vpack.c.b16 %v5688, %v5686
        %v6405 = vpack.c.b16 %v5691, %v5689
        %v6406 = vpack.c.b16 %v5692, %v5690
        %v6407 = vpack.c.b16 %v5695, %v5693
        %v6408 = vpack.c.b16 %v5696, %v5694
        %v6409 = vpack.c.b16 %v5699, %v5697
        %v6410 = vpack.c.b16 %v5700, %v5698
        %v6411 = vpack.c.b16 %v5703, %v5701
        %v6412 = vpack.c.b16 %v5704, %v5702
        %v6413 = vpack.c.b16 %v5707, %v5705
        %v6414 = vpack.c.b16 %v5708, %v5706
        %v6415 = vpack.c.b16 %v5711, %v5709
        %v6416 = vpack.c.b16 %v5712, %v5710
        %v6417 = vpack.c.b16 %v5715, %v5713
        %v6418 = vpack.c.b16 %v5716, %v5714
        %v6419 = vpack.c.b16 %v5719, %v5717
        %v6420 = vpack.c.b16 %v5720, %v5718
        %v6421 = vpack.c.b16 %v5723, %v5721
        %v6422 = vpack.c.b16 %v5724, %v5722
        %v6423 = vpack.c.b16 %v5727, %v5725
        %v6424 = vpack.c.b16 %v5728, %v5726
        %v6425 = vpack.c.b16 %v5731, %v5729
        %v6426 = vpack.c.b16 %v5732, %v5730
        %v6427 = vpack.c.b16 %v5735, %v5733
        %v6428 = vpack.c.b16 %v5736, %v5734
        %v6429 = vpack.c.b16 %v5739, %v5737
        %v6430 = vpack.c.b16 %v5740, %v5738
        %v6431 = vpack.c.b16 %v5743, %v5741
        %v6432 = vpack.c.b16 %v5744, %v5742
        %v6433 = vpack.c.b16 %v5747, %v5745
        %v6434 = vpack.c.b16 %v5748, %v5746
        %v6435 = vpack.c.b16 %v5751, %v5749
        %v6436 = vpack.c.b16 %v5752, %v5750
        %v6437 = vpack.c.b16 %v5755, %v5753
        %v6438 = vpack.c.b16 %v5756, %v5754
        %v6439 = vpack.c.b16 %v5759, %v5757
        %v6440 = vpack.c.b16 %v5760, %v5758
        %v6441 = vpack.c.b16 %v5763, %v5761
        %v6442 = vpack.c.b16 %v5764, %v5762
        %v6443 = vpack.c.b16 %v5767, %v5765
        %v6444 = vpack.c.b16 %v5768, %v5766
        %v6445 = vpack.c.b16 %v5771, %v5769
        %v6446 = vpack.c.b16 %v5772, %v5770
        %v6447 = vpack.c.b16 %v5775, %v5773
        %v6448 = vpack.c.b16 %v5776, %v5774
        %v6449 = vpack.c.b16 %v5779, %v5777
        %v6450 = vpack.c.b16 %v5780, %v5778
        %v6451 = vpack.c.b16 %v5783, %v5781
        %v6452 = vpack.c.b16 %v5784, %v5782
        %v6453 = vpack.c.b16 %v5787, %v5785
        %v6454 = vpack.c.b16 %v5788, %v5786
        %v6455 = vpack.c.b16 %v5791, %v5789
        %v6456 = vpack.c.b16 %v5792, %v5790
        %v6457 = vpack.c.b16 %v5795, %v5793
        %v6458 = vpack.c.b16 %v5796, %v5794
        %v6459 = vpack.c.b16 %v5799, %v5797
        %v6460 = vpack.c.b16 %v5800, %v5798
        %v6461 = vpack.c.b16 %v5803, %v5801
        %v6462 = vpack.c.b16 %v5804, %v5802
        %v6463 = vpack.c.b16 %v5807, %v5805
        %v6464 = vpack.c.b16 %v5808, %v5806
        %v6465 = vpack.c.b16 %v5811, %v5809
        %v6466 = vpack.c.b16 %v5812, %v5810
        %v6467 = vpack.c.b16 %v5815, %v5813
        %v6468 = vpack.c.b16 %v5816, %v5814
        %v6469 = vpack.c.b16 %v5819, %v5817
        %v6470 = vpack.c.b16 %v5820, %v5818
        %v6471 = vpack.c.b16 %v5823, %v5821
        %v6472 = vpack.c.b16 %v5824, %v5822
        %v6473 = vpack.c.b16 %v5827, %v5825
        %v6474 = vpack.c.b16 %v5828, %v5826
        %v6475 = vpack.c.b16 %v5831, %v5829
        %v6476 = vpack.c.b16 %v5832, %v5830
        %v6477 = vpack.c.b16 %v5835, %v5833
        %v6478 = vpack.c.b16 %v5836, %v5834
        %v6479 = vpack.c.b16 %v5839, %v5837
        %v6480 = vpack.c.b16 %v5840, %v5838
        %v6481 = vpack.c.b16 %v5843, %v5841
        %v6482 = vpack.c.b16 %v5844, %v5842
        %v6483 = vpack.c.b16 %v5847, %v5845
        %v6484 = vpack.c.b16 %v5848, %v5846
        %v6485 = vpack.c.b16 %v5851, %v5849
        %v6486 = vpack.c.b16 %v5852, %v5850
        %v6487 = vpack.c.b16 %v5855, %v5853
        %v6488 = vpack.c.b16 %v5856, %v5854
        %v6489 = vpack.c.b16 %v5859, %v5857
        %v6490 = vpack.c.b16 %v5860, %v5858
        %v6491 = vpack.c.b16 %v5863, %v5861
        %v6492 = vpack.c.b16 %v5864, %v5862
        %v6493 = vpack.c.b16 %v5867, %v5865
        %v6494 = vpack.c.b16 %v5868, %v5866
        %v6495 = vpack.c.b16 %v5871, %v5869
        %v6496 = vpack.c.b16 %v5872, %v5870
        %v6497 = vpack.c.b16 %v5875, %v5873
        %v6498 = vpack.c.b16 %v5876, %v5874
        %v6499 = vpack.c.b16 %v5879, %v5877
        %v6500 = vpack.c.b16 %v5880, %v5878
        %v6501 = vpack.c.b16 %v5883, %v5881
        %v6502 = vpack.c.b16 %v5884, %v5882
        %v6503 = vpack.c.b16 %v5887, %v5885
        %v6504 = vpack.c.b16 %v5888, %v5886
        %v6505 = vpack.c.b16 %v5891, %v5889
        %v6506 = vpack.c.b16 %v5892, %v5890
        %v6507 = vpack.c.b16 %v5895, %v5893
        %v6508 = vpack.c.b16 %v5896, %v5894
        %v6509 = vpack.c.b16 %v5899, %v5897
        %v6510 = vpack.c.b16 %v5900, %v5898
        %v6511 = vpack.c.b16 %v5903, %v5901
        %v6512 = vpack.c.b16 %v5904, %v5902
        %v6513 = vpack.c.b16 %v5907, %v5905
        %v6514 = vpack.c.b16 %v5908, %v5906
        %v6515 = vpack.c.b16 %v5911, %v5909
        %v6516 = vpack.c.b16 %v5912, %v5910
        %v6517 = vpack.c.b16 %v5915, %v5913
        %v6518 = vpack.c.b16 %v5916, %v5914
        %v6519 = vpack.c.b16 %v5919, %v5917
        %v6520 = vpack.c.b16 %v5920, %v5918
        %v6521 = vpack.c.b16 %v5923, %v5921
        %v6522 = vpack.c.b16 %v5924, %v5922
        %v6523 = vpack.c.b16 %v5927, %v5925
        %v6524 = vpack.c.b16 %v5928, %v5926
        %v6525 = vpack.c.b16 %v5931, %v5929
        %v6526 = vpack.c.b16 %v5932, %v5930
        %v6527 = vpack.c.b16 %v5935, %v5933
        %v6528 = vpack.c.b16 %v5936, %v5934
        %v6529 = vpack.c.b16 %v5939, %v5937
        %v6530 = vpack.c.b16 %v5940, %v5938
        %v6531 = vpack.c.b16 %v5943, %v5941
        %v6532 = vpack.c.b16 %v5944, %v5942
        %v6533 = vpack.c.b16 %v5947, %v5945
        %v6534 = vpack.c.b16 %v5948, %v5946
        %v6535 = vpack.c.b16 %v5951, %v5949
        %v6536 = vpack.c.b16 %v5952, %v5950
        %v6537 = vpack.c.b16 %v5955, %v5953
        %v6538 = vpack.c.b16 %v5956, %v5954
        %v6539 = vpack.c.b16 %v5959, %v5957
        %v6540 = vpack.c.b16 %v5960, %v5958
        %v6541 = vpack.c.b16 %v5963, %v5961
        %v6542 = vpack.c.b16 %v5964, %v5962
        %v6543 = vpack.c.b16 %v5967, %v5965
        %v6544 = vpack.c.b16 %v5968, %v5966
        %v6545 = vpack.c.b16 %v5971, %v5969
        %v6546 = vpack.c.b16 %v5972, %v5970
        %v6547 = vpack.c.b16 %v5975, %v5973
        %v6548 = vpack.c.b16 %v5976, %v5974
        %v6549 = vpack.c.b16 %v5979, %v5977
        %v6550 = vpack.c.b16 %v5980, %v5978
        %v6551 = vpack.c.b16 %v5983, %v5981
        %v6552 = vpack.c.b16 %v5984, %v5982
        %v6553 = vpack.c.b16 %v5987, %v5985
        %v6554 = vpack.c.b16 %v5988, %v5986
        %v6555 = vpack.c.b16 %v5991, %v5989
        %v6556 = vpack.c.b16 %v5992, %v5990
        %v6557 = vpack.c.b16 %v5995, %v5993
        %v6558 = vpack.c.b16 %v5996, %v5994
        %v6559 = vpack.c.b16 %v5999, %v5997
        %v6560 = vpack.c.b16 %v6000, %v5998
        %v6561 = vpack.c.b16 %v6003, %v6001
        %v6562 = vpack.c.b16 %v6004, %v6002
        %v6563 = vpack.c.b16 %v6007, %v6005
        %v6564 = vpack.c.b16 %v6008, %v6006
        %v6565 = vpack.c.b16 %v6011, %v6009
        %v6566 = vpack.c.b16 %v6012, %v6010
        %v6567 = vpack.c.b16 %v6015, %v6013
        %v6568 = vpack.c.b16 %v6016, %v6014
        %v6569 = vpack.c.b16 %v6019, %v6017
        %v6570 = vpack.c.b16 %v6020, %v6018
        %v6571 = vpack.c.b16 %v6023, %v6021
        %v6572 = vpack.c.b16 %v6024, %v6022
        %v6573 = vpack.c.b16 %v6027, %v6025
        %v6574 = vpack.c.b16 %v6028, %v6026
        %v6575 = vpack.c.b16 %v6031, %v6029
        %v6576 = vpack.c.b16 %v6032, %v6030
        %v6577 = vpack.c.b16 %v6035, %v6033
        %v6578 = vpack.c.b16 %v6036, %v6034
        %v6579 = vpack.c.b16 %v6039, %v6037
        %v6580 = vpack.c.b16 %v6040, %v6038
        %v6581 = vpack.c.b16 %v6043, %v6041
        %v6582 = vpack.c.b16 %v6044, %v6042
        %v6583 = vpack.c.b16 %v6047, %v6045
        %v6584 = vpack.c.b16 %v6048, %v6046
        %v6585 = vpack.c.b16 %v6051, %v6049
        %v6586 = vpack.c.b16 %v6052, %v6050
        %v6587 = vpack.c.b16 %v6055, %v6053
        %v6588 = vpack.c.b16 %v6056, %v6054
        %v6589 = vpack.c.b16 %v6059, %v6057
        %v6590 = vpack.c.b16 %v6060, %v6058
        %v6591 = vpack.c.b16 %v6063, %v6061
        %v6592 = vpack.c.b16 %v6064, %v6062
        %v6593 = vpack.c.b16 %v6067, %v6065
        %v6594 = vpack.c.b16 %v6068, %v6066
        %v6595 = vpack.c.b16 %v6071, %v6069
        %v6596 = vpack.c.b16 %v6072, %v6070
        %v6597 = vpack.c.b16 %v6075, %v6073
        %v6598 = vpack.c.b16 %v6076, %v6074
        %v6599 = vpack.c.b16 %v6079, %v6077
        %v6600 = vpack.c.b16 %v6080, %v6078
        %v6601 = vpack.c.b16 %v6083, %v6081
        %v6602 = vpack.c.b16 %v6084, %v6082
        %v6603 = vpack.c.b16 %v6087, %v6085
        %v6604 = vpack.c.b16 %v6088, %v6086
        %v6605 = vpack.c.b16 %v6091, %v6089
        %v6606 = vpack.c.b16 %v6092, %v6090
        %v6607 = vpack.c.b16 %v6095, %v6093
        %v6608 = vpack.c.b16 %v6096, %v6094
        %v7122 = vperm.slane %v4488, 0
        %v7123 = vperm.slane %v4488, 1
        %7126 = vmatpush.bf16.msra.mxu0 %v6111
        %7127 = vmatpush.bf16.msra.mxu0 %v6109
        %7128 = vmatpush.bf16.msra.mxu0 %v6107
        %7129 = vmatpush.bf16.msra.mxu0 %v6105
        %7130 = vmatpush.bf16.msra.mxu0 %v6103
        %7131 = vmatpush.bf16.msra.mxu0 %v6101
        %7132 = vmatpush.bf16.msra.mxu0 %v6099
        %7133 = vmatpush.bf16.msra.mxu0 %v6097
        %7134 = vmatmul.bf16.gmra.mxu0 %v4491
        %v7135 = vpop.f32.mrf.mxu0
        %v7136 = vadd.f32 %v7122, %v7135
        %v7137 = vpop.f32.mrf.mxu0
        %7138 = vdwg.mxu0
        %7139 = vmatpush.bf16.msra.mxu0 %v6127
        %7140 = vmatpush.bf16.msra.mxu0 %v6125
        %7141 = vmatpush.bf16.msra.mxu0 %v6123
        %7142 = vmatpush.bf16.msra.mxu0 %v6121
        %7143 = vmatpush.bf16.msra.mxu0 %v6119
        %7144 = vmatpush.bf16.msra.mxu0 %v6117
        %7145 = vmatpush.bf16.msra.mxu0 %v6115
        %7146 = vmatpush.bf16.msra.mxu0 %v6113
        %7147 = vmatmul.bf16.gmra.mxu0 %v4492
        %v7148 = vpop.f32.mrf.mxu0
        %v7149 = vadd.f32 %v7136, %v7148
        %v7150 = vpop.f32.mrf.mxu0
        %7151 = vdwg.mxu0
        %7152 = vmatpush.bf16.msra.mxu0 %v6143
        %7153 = vmatpush.bf16.msra.mxu0 %v6141
        %7154 = vmatpush.bf16.msra.mxu0 %v6139
        %7155 = vmatpush.bf16.msra.mxu0 %v6137
        %7156 = vmatpush.bf16.msra.mxu0 %v6135
        %7157 = vmatpush.bf16.msra.mxu0 %v6133
        %7158 = vmatpush.bf16.msra.mxu0 %v6131
        %7159 = vmatpush.bf16.msra.mxu0 %v6129
        %7160 = vmatmul.bf16.gmra.mxu0 %v4493
        %v7161 = vpop.f32.mrf.mxu0
        %v7162 = vadd.f32 %v7149, %v7161
        %v7163 = vpop.f32.mrf.mxu0
        %7164 = vdwg.mxu0
        %7165 = vmatpush.bf16.msra.mxu0 %v6159
        %7166 = vmatpush.bf16.msra.mxu0 %v6157
        %7167 = vmatpush.bf16.msra.mxu0 %v6155
        %7168 = vmatpush.bf16.msra.mxu0 %v6153
        %7169 = vmatpush.bf16.msra.mxu0 %v6151
        %7170 = vmatpush.bf16.msra.mxu0 %v6149
        %7171 = vmatpush.bf16.msra.mxu0 %v6147
        %7172 = vmatpush.bf16.msra.mxu0 %v6145
        %7173 = vmatmul.bf16.gmra.mxu0 %v4494
        %v7174 = vpop.f32.mrf.mxu0
        %v7175 = vadd.f32 %v7162, %v7174
        %v7176 = vpop.f32.mrf.mxu0
        %7177 = vdwg.mxu0
        %7178 = vmatpush.bf16.msra.mxu0 %v6175
        %7179 = vmatpush.bf16.msra.mxu0 %v6173
        %7180 = vmatpush.bf16.msra.mxu0 %v6171
        %7181 = vmatpush.bf16.msra.mxu0 %v6169
        %7182 = vmatpush.bf16.msra.mxu0 %v6167
        %7183 = vmatpush.bf16.msra.mxu0 %v6165
        %7184 = vmatpush.bf16.msra.mxu0 %v6163
        %7185 = vmatpush.bf16.msra.mxu0 %v6161
        %7186 = vmatmul.bf16.gmra.mxu0 %v4495
        %v7187 = vpop.f32.mrf.mxu0
        %v7188 = vadd.f32 %v7175, %v7187
        %v7189 = vpop.f32.mrf.mxu0
        %7190 = vdwg.mxu0
        %7191 = vmatpush.bf16.msra.mxu0 %v6191
        %7192 = vmatpush.bf16.msra.mxu0 %v6189
        %7193 = vmatpush.bf16.msra.mxu0 %v6187
        %7194 = vmatpush.bf16.msra.mxu0 %v6185
        %7195 = vmatpush.bf16.msra.mxu0 %v6183
        %7196 = vmatpush.bf16.msra.mxu0 %v6181
        %7197 = vmatpush.bf16.msra.mxu0 %v6179
        %7198 = vmatpush.bf16.msra.mxu0 %v6177
        %7199 = vmatmul.bf16.gmra.mxu0 %v4496
        %v7200 = vpop.f32.mrf.mxu0
        %v7201 = vadd.f32 %v7188, %v7200
        %v7202 = vpop.f32.mrf.mxu0
        %7203 = vdwg.mxu0
        %7204 = vmatpush.bf16.msra.mxu0 %v6207
        %7205 = vmatpush.bf16.msra.mxu0 %v6205
        %7206 = vmatpush.bf16.msra.mxu0 %v6203
        %7207 = vmatpush.bf16.msra.mxu0 %v6201
        %7208 = vmatpush.bf16.msra.mxu0 %v6199
        %7209 = vmatpush.bf16.msra.mxu0 %v6197
        %7210 = vmatpush.bf16.msra.mxu0 %v6195
        %7211 = vmatpush.bf16.msra.mxu0 %v6193
        %7212 = vmatmul.bf16.gmra.mxu0 %v4497
        %v7213 = vpop.f32.mrf.mxu0
        %v7214 = vadd.f32 %v7201, %v7213
        %v7215 = vpop.f32.mrf.mxu0
        %7216 = vdwg.mxu0
        %7217 = vmatpush.bf16.msra.mxu0 %v6223
        %7218 = vmatpush.bf16.msra.mxu0 %v6221
        %7219 = vmatpush.bf16.msra.mxu0 %v6219
        %7220 = vmatpush.bf16.msra.mxu0 %v6217
        %7221 = vmatpush.bf16.msra.mxu0 %v6215
        %7222 = vmatpush.bf16.msra.mxu0 %v6213
        %7223 = vmatpush.bf16.msra.mxu0 %v6211
        %7224 = vmatpush.bf16.msra.mxu0 %v6209
        %7225 = vmatmul.bf16.gmra.mxu0 %v4498
        %v7226 = vpop.f32.mrf.mxu0
        %v7227 = vadd.f32 %v7214, %v7226
        %v7228 = vpop.f32.mrf.mxu0
        %7229 = vdwg.mxu0
        %7230 = vmatpush.bf16.msra.mxu0 %v6239
        %7231 = vmatpush.bf16.msra.mxu0 %v6237
        %7232 = vmatpush.bf16.msra.mxu0 %v6235
        %7233 = vmatpush.bf16.msra.mxu0 %v6233
        %7234 = vmatpush.bf16.msra.mxu0 %v6231
        %7235 = vmatpush.bf16.msra.mxu0 %v6229
        %7236 = vmatpush.bf16.msra.mxu0 %v6227
        %7237 = vmatpush.bf16.msra.mxu0 %v6225
        %7238 = vmatmul.bf16.gmra.mxu0 %v4501
        %v7239 = vpop.f32.mrf.mxu0
        %v7240 = vadd.f32 %v7227, %v7239
        %v7241 = vpop.f32.mrf.mxu0
        %7242 = vdwg.mxu0
        %7243 = vmatpush.bf16.msra.mxu0 %v6255
        %7244 = vmatpush.bf16.msra.mxu0 %v6253
        %7245 = vmatpush.bf16.msra.mxu0 %v6251
        %7246 = vmatpush.bf16.msra.mxu0 %v6249
        %7247 = vmatpush.bf16.msra.mxu0 %v6247
        %7248 = vmatpush.bf16.msra.mxu0 %v6245
        %7249 = vmatpush.bf16.msra.mxu0 %v6243
        %7250 = vmatpush.bf16.msra.mxu0 %v6241
        %7251 = vmatmul.bf16.gmra.mxu0 %v4502
        %v7252 = vpop.f32.mrf.mxu0
        %v7253 = vadd.f32 %v7240, %v7252
        %v7254 = vpop.f32.mrf.mxu0
        %7255 = vdwg.mxu0
        %7256 = vmatpush.bf16.msra.mxu0 %v6271
        %7257 = vmatpush.bf16.msra.mxu0 %v6269
        %7258 = vmatpush.bf16.msra.mxu0 %v6267
        %7259 = vmatpush.bf16.msra.mxu0 %v6265
        %7260 = vmatpush.bf16.msra.mxu0 %v6263
        %7261 = vmatpush.bf16.msra.mxu0 %v6261
        %7262 = vmatpush.bf16.msra.mxu0 %v6259
        %7263 = vmatpush.bf16.msra.mxu0 %v6257
        %7264 = vmatmul.bf16.gmra.mxu0 %v4503
        %v7265 = vpop.f32.mrf.mxu0
        %v7266 = vadd.f32 %v7253, %v7265
        %v7267 = vpop.f32.mrf.mxu0
        %7268 = vdwg.mxu0
        %7269 = vmatpush.bf16.msra.mxu0 %v6287
        %7270 = vmatpush.bf16.msra.mxu0 %v6285
        %7271 = vmatpush.bf16.msra.mxu0 %v6283
        %7272 = vmatpush.bf16.msra.mxu0 %v6281
        %7273 = vmatpush.bf16.msra.mxu0 %v6279
        %7274 = vmatpush.bf16.msra.mxu0 %v6277
        %7275 = vmatpush.bf16.msra.mxu0 %v6275
        %7276 = vmatpush.bf16.msra.mxu0 %v6273
        %7277 = vmatmul.bf16.gmra.mxu0 %v4504
        %v7278 = vpop.f32.mrf.mxu0
        %v7279 = vadd.f32 %v7266, %v7278
        %v7280 = vpop.f32.mrf.mxu0
        %7281 = vdwg.mxu0
        %7282 = vmatpush.bf16.msra.mxu0 %v6303
        %7283 = vmatpush.bf16.msra.mxu0 %v6301
        %7284 = vmatpush.bf16.msra.mxu0 %v6299
        %7285 = vmatpush.bf16.msra.mxu0 %v6297
        %7286 = vmatpush.bf16.msra.mxu0 %v6295
        %7287 = vmatpush.bf16.msra.mxu0 %v6293
        %7288 = vmatpush.bf16.msra.mxu0 %v6291
        %7289 = vmatpush.bf16.msra.mxu0 %v6289
        %7290 = vmatmul.bf16.gmra.mxu0 %v4505
        %v7291 = vpop.f32.mrf.mxu0
        %v7292 = vadd.f32 %v7279, %v7291
        %v7293 = vpop.f32.mrf.mxu0
        %7294 = vdwg.mxu0
        %7295 = vmatpush.bf16.msra.mxu0 %v6319
        %7296 = vmatpush.bf16.msra.mxu0 %v6317
        %7297 = vmatpush.bf16.msra.mxu0 %v6315
        %7298 = vmatpush.bf16.msra.mxu0 %v6313
        %7299 = vmatpush.bf16.msra.mxu0 %v6311
        %7300 = vmatpush.bf16.msra.mxu0 %v6309
        %7301 = vmatpush.bf16.msra.mxu0 %v6307
        %7302 = vmatpush.bf16.msra.mxu0 %v6305
        %7303 = vmatmul.bf16.gmra.mxu0 %v4506
        %v7304 = vpop.f32.mrf.mxu0
        %v7305 = vadd.f32 %v7292, %v7304
        %v7306 = vpop.f32.mrf.mxu0
        %7307 = vdwg.mxu0
        %7308 = vmatpush.bf16.msra.mxu0 %v6335
        %7309 = vmatpush.bf16.msra.mxu0 %v6333
        %7310 = vmatpush.bf16.msra.mxu0 %v6331
        %7311 = vmatpush.bf16.msra.mxu0 %v6329
        %7312 = vmatpush.bf16.msra.mxu0 %v6327
        %7313 = vmatpush.bf16.msra.mxu0 %v6325
        %7314 = vmatpush.bf16.msra.mxu0 %v6323
        %7315 = vmatpush.bf16.msra.mxu0 %v6321
        %7316 = vmatmul.bf16.gmra.mxu0 %v4507
        %v7317 = vpop.f32.mrf.mxu0
        %v7318 = vadd.f32 %v7305, %v7317
        %v7319 = vpop.f32.mrf.mxu0
        %7320 = vdwg.mxu0
        %7321 = vmatpush.bf16.msra.mxu0 %v6351
        %7322 = vmatpush.bf16.msra.mxu0 %v6349
        %7323 = vmatpush.bf16.msra.mxu0 %v6347
        %7324 = vmatpush.bf16.msra.mxu0 %v6345
        %7325 = vmatpush.bf16.msra.mxu0 %v6343
        %7326 = vmatpush.bf16.msra.mxu0 %v6341
        %7327 = vmatpush.bf16.msra.mxu0 %v6339
        %7328 = vmatpush.bf16.msra.mxu0 %v6337
        %7329 = vmatmul.bf16.gmra.mxu0 %v4508
        %v7330 = vpop.f32.mrf.mxu0
        %v7331 = vadd.f32 %v7318, %v7330
        %v7332 = vpop.f32.mrf.mxu0
        %7333 = vdwg.mxu0
        %7334 = vmatpush.bf16.msra.mxu0 %v6367
        %7335 = vmatpush.bf16.msra.mxu0 %v6365
        %7336 = vmatpush.bf16.msra.mxu0 %v6363
        %7337 = vmatpush.bf16.msra.mxu0 %v6361
        %7338 = vmatpush.bf16.msra.mxu0 %v6359
        %7339 = vmatpush.bf16.msra.mxu0 %v6357
        %7340 = vmatpush.bf16.msra.mxu0 %v6355
        %7341 = vmatpush.bf16.msra.mxu0 %v6353
        %7342 = vmatmul.bf16.gmra.mxu0 %v4511
        %v7343 = vpop.f32.mrf.mxu0
        %v7344 = vadd.f32 %v7331, %v7343
        %v7345 = vpop.f32.mrf.mxu0
        %7346 = vdwg.mxu0
        %7347 = vmatpush.bf16.msra.mxu0 %v6383
        %7348 = vmatpush.bf16.msra.mxu0 %v6381
        %7349 = vmatpush.bf16.msra.mxu0 %v6379
        %7350 = vmatpush.bf16.msra.mxu0 %v6377
        %7351 = vmatpush.bf16.msra.mxu0 %v6375
        %7352 = vmatpush.bf16.msra.mxu0 %v6373
        %7353 = vmatpush.bf16.msra.mxu0 %v6371
        %7354 = vmatpush.bf16.msra.mxu0 %v6369
        %7355 = vmatmul.bf16.gmra.mxu0 %v4512
        %v7356 = vpop.f32.mrf.mxu0
        %v7357 = vadd.f32 %v7344, %v7356
        %v7358 = vpop.f32.mrf.mxu0
        %7359 = vdwg.mxu0
        %7360 = vmatpush.bf16.msra.mxu0 %v6399
        %7361 = vmatpush.bf16.msra.mxu0 %v6397
        %7362 = vmatpush.bf16.msra.mxu0 %v6395
        %7363 = vmatpush.bf16.msra.mxu0 %v6393
        %7364 = vmatpush.bf16.msra.mxu0 %v6391
        %7365 = vmatpush.bf16.msra.mxu0 %v6389
        %7366 = vmatpush.bf16.msra.mxu0 %v6387
        %7367 = vmatpush.bf16.msra.mxu0 %v6385
        %7368 = vmatmul.bf16.gmra.mxu0 %v4513
        %v7369 = vpop.f32.mrf.mxu0
        %v7370 = vadd.f32 %v7357, %v7369
        %v7371 = vpop.f32.mrf.mxu0
        %7372 = vdwg.mxu0
        %7373 = vmatpush.bf16.msra.mxu0 %v6415
        %7374 = vmatpush.bf16.msra.mxu0 %v6413
        %7375 = vmatpush.bf16.msra.mxu0 %v6411
        %7376 = vmatpush.bf16.msra.mxu0 %v6409
        %7377 = vmatpush.bf16.msra.mxu0 %v6407
        %7378 = vmatpush.bf16.msra.mxu0 %v6405
        %7379 = vmatpush.bf16.msra.mxu0 %v6403
        %7380 = vmatpush.bf16.msra.mxu0 %v6401
        %7381 = vmatmul.bf16.gmra.mxu0 %v4514
        %v7382 = vpop.f32.mrf.mxu0
        %v7383 = vadd.f32 %v7370, %v7382
        %v7384 = vpop.f32.mrf.mxu0
        %7385 = vdwg.mxu0
        %7386 = vmatpush.bf16.msra.mxu0 %v6431
        %7387 = vmatpush.bf16.msra.mxu0 %v6429
        %7388 = vmatpush.bf16.msra.mxu0 %v6427
        %7389 = vmatpush.bf16.msra.mxu0 %v6425
        %7390 = vmatpush.bf16.msra.mxu0 %v6423
        %7391 = vmatpush.bf16.msra.mxu0 %v6421
        %7392 = vmatpush.bf16.msra.mxu0 %v6419
        %7393 = vmatpush.bf16.msra.mxu0 %v6417
        %7394 = vmatmul.bf16.gmra.mxu0 %v4515
        %v7395 = vpop.f32.mrf.mxu0
        %v7396 = vadd.f32 %v7383, %v7395
        %v7397 = vpop.f32.mrf.mxu0
        %7398 = vdwg.mxu0
        %7399 = vmatpush.bf16.msra.mxu0 %v6447
        %7400 = vmatpush.bf16.msra.mxu0 %v6445
        %7401 = vmatpush.bf16.msra.mxu0 %v6443
        %7402 = vmatpush.bf16.msra.mxu0 %v6441
        %7403 = vmatpush.bf16.msra.mxu0 %v6439
        %7404 = vmatpush.bf16.msra.mxu0 %v6437
        %7405 = vmatpush.bf16.msra.mxu0 %v6435
        %7406 = vmatpush.bf16.msra.mxu0 %v6433
        %7407 = vmatmul.bf16.gmra.mxu0 %v4516
        %v7408 = vpop.f32.mrf.mxu0
        %v7409 = vadd.f32 %v7396, %v7408
        %v7410 = vpop.f32.mrf.mxu0
        %7411 = vdwg.mxu0
        %7412 = vmatpush.bf16.msra.mxu0 %v6463
        %7413 = vmatpush.bf16.msra.mxu0 %v6461
        %7414 = vmatpush.bf16.msra.mxu0 %v6459
        %7415 = vmatpush.bf16.msra.mxu0 %v6457
        %7416 = vmatpush.bf16.msra.mxu0 %v6455
        %7417 = vmatpush.bf16.msra.mxu0 %v6453
        %7418 = vmatpush.bf16.msra.mxu0 %v6451
        %7419 = vmatpush.bf16.msra.mxu0 %v6449
        %7420 = vmatmul.bf16.gmra.mxu0 %v4517
        %v7421 = vpop.f32.mrf.mxu0
        %v7422 = vadd.f32 %v7409, %v7421
        %v7423 = vpop.f32.mrf.mxu0
        %7424 = vdwg.mxu0
        %7425 = vmatpush.bf16.msra.mxu0 %v6479
        %7426 = vmatpush.bf16.msra.mxu0 %v6477
        %7427 = vmatpush.bf16.msra.mxu0 %v6475
        %7428 = vmatpush.bf16.msra.mxu0 %v6473
        %7429 = vmatpush.bf16.msra.mxu0 %v6471
        %7430 = vmatpush.bf16.msra.mxu0 %v6469
        %7431 = vmatpush.bf16.msra.mxu0 %v6467
        %7432 = vmatpush.bf16.msra.mxu0 %v6465
        %7433 = vmatmul.bf16.gmra.mxu0 %v4518
        %v7434 = vpop.f32.mrf.mxu0
        %v7435 = vadd.f32 %v7422, %v7434
        %v7436 = vpop.f32.mrf.mxu0
        %7437 = vdwg.mxu0
        %7438 = vmatpush.bf16.msra.mxu0 %v6495
        %7439 = vmatpush.bf16.msra.mxu0 %v6493
        %7440 = vmatpush.bf16.msra.mxu0 %v6491
        %7441 = vmatpush.bf16.msra.mxu0 %v6489
        %7442 = vmatpush.bf16.msra.mxu0 %v6487
        %7443 = vmatpush.bf16.msra.mxu0 %v6485
        %7444 = vmatpush.bf16.msra.mxu0 %v6483
        %7445 = vmatpush.bf16.msra.mxu0 %v6481
        %7446 = vmatmul.bf16.gmra.mxu0 %v4521
        %v7447 = vpop.f32.mrf.mxu0
        %v7448 = vadd.f32 %v7435, %v7447
        %v7449 = vpop.f32.mrf.mxu0
        %7450 = vdwg.mxu0
        %7451 = vmatpush.bf16.msra.mxu0 %v6511
        %7452 = vmatpush.bf16.msra.mxu0 %v6509
        %7453 = vmatpush.bf16.msra.mxu0 %v6507
        %7454 = vmatpush.bf16.msra.mxu0 %v6505
        %7455 = vmatpush.bf16.msra.mxu0 %v6503
        %7456 = vmatpush.bf16.msra.mxu0 %v6501
        %7457 = vmatpush.bf16.msra.mxu0 %v6499
        %7458 = vmatpush.bf16.msra.mxu0 %v6497
        %7459 = vmatmul.bf16.gmra.mxu0 %v4522
        %v7460 = vpop.f32.mrf.mxu0
        %v7461 = vadd.f32 %v7448, %v7460
        %v7462 = vpop.f32.mrf.mxu0
        %7463 = vdwg.mxu0
        %7464 = vmatpush.bf16.msra.mxu0 %v6527
        %7465 = vmatpush.bf16.msra.mxu0 %v6525
        %7466 = vmatpush.bf16.msra.mxu0 %v6523
        %7467 = vmatpush.bf16.msra.mxu0 %v6521
        %7468 = vmatpush.bf16.msra.mxu0 %v6519
        %7469 = vmatpush.bf16.msra.mxu0 %v6517
        %7470 = vmatpush.bf16.msra.mxu0 %v6515
        %7471 = vmatpush.bf16.msra.mxu0 %v6513
        %7472 = vmatmul.bf16.gmra.mxu0 %v4523
        %v7473 = vpop.f32.mrf.mxu0
        %v7474 = vadd.f32 %v7461, %v7473
        %v7475 = vpop.f32.mrf.mxu0
        %7476 = vdwg.mxu0
        %7477 = vmatpush.bf16.msra.mxu0 %v6543
        %7478 = vmatpush.bf16.msra.mxu0 %v6541
        %7479 = vmatpush.bf16.msra.mxu0 %v6539
        %7480 = vmatpush.bf16.msra.mxu0 %v6537
        %7481 = vmatpush.bf16.msra.mxu0 %v6535
        %7482 = vmatpush.bf16.msra.mxu0 %v6533
        %7483 = vmatpush.bf16.msra.mxu0 %v6531
        %7484 = vmatpush.bf16.msra.mxu0 %v6529
        %7485 = vmatmul.bf16.gmra.mxu0 %v4524
        %v7486 = vpop.f32.mrf.mxu0
        %v7487 = vadd.f32 %v7474, %v7486
        %v7488 = vpop.f32.mrf.mxu0
        %7489 = vdwg.mxu0
        %7490 = vmatpush.bf16.msra.mxu0 %v6559
        %7491 = vmatpush.bf16.msra.mxu0 %v6557
        %7492 = vmatpush.bf16.msra.mxu0 %v6555
        %7493 = vmatpush.bf16.msra.mxu0 %v6553
        %7494 = vmatpush.bf16.msra.mxu0 %v6551
        %7495 = vmatpush.bf16.msra.mxu0 %v6549
        %7496 = vmatpush.bf16.msra.mxu0 %v6547
        %7497 = vmatpush.bf16.msra.mxu0 %v6545
        %7498 = vmatmul.bf16.gmra.mxu0 %v4525
        %v7499 = vpop.f32.mrf.mxu0
        %v7500 = vadd.f32 %v7487, %v7499
        %v7501 = vpop.f32.mrf.mxu0
        %7502 = vdwg.mxu0
        %7503 = vmatpush.bf16.msra.mxu0 %v6575
        %7504 = vmatpush.bf16.msra.mxu0 %v6573
        %7505 = vmatpush.bf16.msra.mxu0 %v6571
        %7506 = vmatpush.bf16.msra.mxu0 %v6569
        %7507 = vmatpush.bf16.msra.mxu0 %v6567
        %7508 = vmatpush.bf16.msra.mxu0 %v6565
        %7509 = vmatpush.bf16.msra.mxu0 %v6563
        %7510 = vmatpush.bf16.msra.mxu0 %v6561
        %7511 = vmatmul.bf16.gmra.mxu0 %v4526
        %v7512 = vpop.f32.mrf.mxu0
        %v7513 = vadd.f32 %v7500, %v7512
        %v7514 = vpop.f32.mrf.mxu0
        %7515 = vdwg.mxu0
        %7516 = vmatpush.bf16.msra.mxu0 %v6591
        %7517 = vmatpush.bf16.msra.mxu0 %v6589
        %7518 = vmatpush.bf16.msra.mxu0 %v6587
        %7519 = vmatpush.bf16.msra.mxu0 %v6585
        %7520 = vmatpush.bf16.msra.mxu0 %v6583
        %7521 = vmatpush.bf16.msra.mxu0 %v6581
        %7522 = vmatpush.bf16.msra.mxu0 %v6579
        %7523 = vmatpush.bf16.msra.mxu0 %v6577
        %7524 = vmatmul.bf16.gmra.mxu0 %v4527
        %v7525 = vpop.f32.mrf.mxu0
        %v7526 = vadd.f32 %v7513, %v7525
        %v7527 = vpop.f32.mrf.mxu0
        %7528 = vdwg.mxu0
        %7529 = vmatpush.bf16.msra.mxu0 %v6607
        %7530 = vmatpush.bf16.msra.mxu0 %v6605
        %7531 = vmatpush.bf16.msra.mxu0 %v6603
        %7532 = vmatpush.bf16.msra.mxu0 %v6601
        %7533 = vmatpush.bf16.msra.mxu0 %v6599
        %7534 = vmatpush.bf16.msra.mxu0 %v6597
        %7535 = vmatpush.bf16.msra.mxu0 %v6595
        %7536 = vmatpush.bf16.msra.mxu0 %v6593
        %7537 = vmatmul.bf16.gmra.mxu0 %v4528
        %v7538 = vpop.f32.mrf.mxu0
        %v7539 = vadd.f32 %v7526, %v7538
        %v7540 = vpop.f32.mrf.mxu0
        %7541 = vdwg.mxu0
        %7542 = vmatpush.bf16.msra.mxu0 %v6112
        %7543 = vmatpush.bf16.msra.mxu0 %v6110
        %7544 = vmatpush.bf16.msra.mxu0 %v6108
        %7545 = vmatpush.bf16.msra.mxu0 %v6106
        %7546 = vmatpush.bf16.msra.mxu0 %v6104
        %7547 = vmatpush.bf16.msra.mxu0 %v6102
        %7548 = vmatpush.bf16.msra.mxu0 %v6100
        %7549 = vmatpush.bf16.msra.mxu0 %v6098
        %7550 = vmatmul.bf16.gmra.mxu0 %v4491
        %v7551 = vpop.f32.mrf.mxu0
        %v7552 = vadd.f32 %v7123, %v7551
        %v7553 = vpop.f32.mrf.mxu0
        %7554 = vdwg.mxu0
        %7555 = vmatpush.bf16.msra.mxu0 %v6128
        %7556 = vmatpush.bf16.msra.mxu0 %v6126
        %7557 = vmatpush.bf16.msra.mxu0 %v6124
        %7558 = vmatpush.bf16.msra.mxu0 %v6122
        %7559 = vmatpush.bf16.msra.mxu0 %v6120
        %7560 = vmatpush.bf16.msra.mxu0 %v6118
        %7561 = vmatpush.bf16.msra.mxu0 %v6116
        %7562 = vmatpush.bf16.msra.mxu0 %v6114
        %7563 = vmatmul.bf16.gmra.mxu0 %v4492
        %v7564 = vpop.f32.mrf.mxu0
        %v7565 = vadd.f32 %v7552, %v7564
        %v7566 = vpop.f32.mrf.mxu0
        %7567 = vdwg.mxu0
        %7568 = vmatpush.bf16.msra.mxu0 %v6144
        %7569 = vmatpush.bf16.msra.mxu0 %v6142
        %7570 = vmatpush.bf16.msra.mxu0 %v6140
        %7571 = vmatpush.bf16.msra.mxu0 %v6138
        %7572 = vmatpush.bf16.msra.mxu0 %v6136
        %7573 = vmatpush.bf16.msra.mxu0 %v6134
        %7574 = vmatpush.bf16.msra.mxu0 %v6132
        %7575 = vmatpush.bf16.msra.mxu0 %v6130
        %7576 = vmatmul.bf16.gmra.mxu0 %v4493
        %v7577 = vpop.f32.mrf.mxu0
        %v7578 = vadd.f32 %v7565, %v7577
        %v7579 = vpop.f32.mrf.mxu0
        %7580 = vdwg.mxu0
        %7581 = vmatpush.bf16.msra.mxu0 %v6160
        %7582 = vmatpush.bf16.msra.mxu0 %v6158
        %7583 = vmatpush.bf16.msra.mxu0 %v6156
        %7584 = vmatpush.bf16.msra.mxu0 %v6154
        %7585 = vmatpush.bf16.msra.mxu0 %v6152
        %7586 = vmatpush.bf16.msra.mxu0 %v6150
        %7587 = vmatpush.bf16.msra.mxu0 %v6148
        %7588 = vmatpush.bf16.msra.mxu0 %v6146
        %7589 = vmatmul.bf16.gmra.mxu0 %v4494
        %v7590 = vpop.f32.mrf.mxu0
        %v7591 = vadd.f32 %v7578, %v7590
        %v7592 = vpop.f32.mrf.mxu0
        %7593 = vdwg.mxu0
        %7594 = vmatpush.bf16.msra.mxu0 %v6176
        %7595 = vmatpush.bf16.msra.mxu0 %v6174
        %7596 = vmatpush.bf16.msra.mxu0 %v6172
        %7597 = vmatpush.bf16.msra.mxu0 %v6170
        %7598 = vmatpush.bf16.msra.mxu0 %v6168
        %7599 = vmatpush.bf16.msra.mxu0 %v6166
        %7600 = vmatpush.bf16.msra.mxu0 %v6164
        %7601 = vmatpush.bf16.msra.mxu0 %v6162
        %7602 = vmatmul.bf16.gmra.mxu0 %v4495
        %v7603 = vpop.f32.mrf.mxu0
        %v7604 = vadd.f32 %v7591, %v7603
        %v7605 = vpop.f32.mrf.mxu0
        %7606 = vdwg.mxu0
        %7607 = vmatpush.bf16.msra.mxu0 %v6192
        %7608 = vmatpush.bf16.msra.mxu0 %v6190
        %7609 = vmatpush.bf16.msra.mxu0 %v6188
        %7610 = vmatpush.bf16.msra.mxu0 %v6186
        %7611 = vmatpush.bf16.msra.mxu0 %v6184
        %7612 = vmatpush.bf16.msra.mxu0 %v6182
        %7613 = vmatpush.bf16.msra.mxu0 %v6180
        %7614 = vmatpush.bf16.msra.mxu0 %v6178
        %7615 = vmatmul.bf16.gmra.mxu0 %v4496
        %v7616 = vpop.f32.mrf.mxu0
        %v7617 = vadd.f32 %v7604, %v7616
        %v7618 = vpop.f32.mrf.mxu0
        %7619 = vdwg.mxu0
        %7620 = vmatpush.bf16.msra.mxu0 %v6208
        %7621 = vmatpush.bf16.msra.mxu0 %v6206
        %7622 = vmatpush.bf16.msra.mxu0 %v6204
        %7623 = vmatpush.bf16.msra.mxu0 %v6202
        %7624 = vmatpush.bf16.msra.mxu0 %v6200
        %7625 = vmatpush.bf16.msra.mxu0 %v6198
        %7626 = vmatpush.bf16.msra.mxu0 %v6196
        %7627 = vmatpush.bf16.msra.mxu0 %v6194
        %7628 = vmatmul.bf16.gmra.mxu0 %v4497
        %v7629 = vpop.f32.mrf.mxu0
        %v7630 = vadd.f32 %v7617, %v7629
        %v7631 = vpop.f32.mrf.mxu0
        %7632 = vdwg.mxu0
        %7633 = vmatpush.bf16.msra.mxu0 %v6224
        %7634 = vmatpush.bf16.msra.mxu0 %v6222
        %7635 = vmatpush.bf16.msra.mxu0 %v6220
        %7636 = vmatpush.bf16.msra.mxu0 %v6218
        %7637 = vmatpush.bf16.msra.mxu0 %v6216
        %7638 = vmatpush.bf16.msra.mxu0 %v6214
        %7639 = vmatpush.bf16.msra.mxu0 %v6212
        %7640 = vmatpush.bf16.msra.mxu0 %v6210
        %7641 = vmatmul.bf16.gmra.mxu0 %v4498
        %v7642 = vpop.f32.mrf.mxu0
        %v7643 = vadd.f32 %v7630, %v7642
        %v7644 = vpop.f32.mrf.mxu0
        %7645 = vdwg.mxu0
        %7646 = vmatpush.bf16.msra.mxu0 %v6240
        %7647 = vmatpush.bf16.msra.mxu0 %v6238
        %7648 = vmatpush.bf16.msra.mxu0 %v6236
        %7649 = vmatpush.bf16.msra.mxu0 %v6234
        %7650 = vmatpush.bf16.msra.mxu0 %v6232
        %7651 = vmatpush.bf16.msra.mxu0 %v6230
        %7652 = vmatpush.bf16.msra.mxu0 %v6228
        %7653 = vmatpush.bf16.msra.mxu0 %v6226
        %7654 = vmatmul.bf16.gmra.mxu0 %v4501
        %v7655 = vpop.f32.mrf.mxu0
        %v7656 = vadd.f32 %v7643, %v7655
        %v7657 = vpop.f32.mrf.mxu0
        %7658 = vdwg.mxu0
        %7659 = vmatpush.bf16.msra.mxu0 %v6256
        %7660 = vmatpush.bf16.msra.mxu0 %v6254
        %7661 = vmatpush.bf16.msra.mxu0 %v6252
        %7662 = vmatpush.bf16.msra.mxu0 %v6250
        %7663 = vmatpush.bf16.msra.mxu0 %v6248
        %7664 = vmatpush.bf16.msra.mxu0 %v6246
        %7665 = vmatpush.bf16.msra.mxu0 %v6244
        %7666 = vmatpush.bf16.msra.mxu0 %v6242
        %7667 = vmatmul.bf16.gmra.mxu0 %v4502
        %v7668 = vpop.f32.mrf.mxu0
        %v7669 = vadd.f32 %v7656, %v7668
        %v7670 = vpop.f32.mrf.mxu0
        %7671 = vdwg.mxu0
        %7672 = vmatpush.bf16.msra.mxu0 %v6272
        %7673 = vmatpush.bf16.msra.mxu0 %v6270
        %7674 = vmatpush.bf16.msra.mxu0 %v6268
        %7675 = vmatpush.bf16.msra.mxu0 %v6266
        %7676 = vmatpush.bf16.msra.mxu0 %v6264
        %7677 = vmatpush.bf16.msra.mxu0 %v6262
        %7678 = vmatpush.bf16.msra.mxu0 %v6260
        %7679 = vmatpush.bf16.msra.mxu0 %v6258
        %7680 = vmatmul.bf16.gmra.mxu0 %v4503
        %v7681 = vpop.f32.mrf.mxu0
        %v7682 = vadd.f32 %v7669, %v7681
        %v7683 = vpop.f32.mrf.mxu0
        %7684 = vdwg.mxu0
        %7685 = vmatpush.bf16.msra.mxu0 %v6288
        %7686 = vmatpush.bf16.msra.mxu0 %v6286
        %7687 = vmatpush.bf16.msra.mxu0 %v6284
        %7688 = vmatpush.bf16.msra.mxu0 %v6282
        %7689 = vmatpush.bf16.msra.mxu0 %v6280
        %7690 = vmatpush.bf16.msra.mxu0 %v6278
        %7691 = vmatpush.bf16.msra.mxu0 %v6276
        %7692 = vmatpush.bf16.msra.mxu0 %v6274
        %7693 = vmatmul.bf16.gmra.mxu0 %v4504
        %v7694 = vpop.f32.mrf.mxu0
        %v7695 = vadd.f32 %v7682, %v7694
        %v7696 = vpop.f32.mrf.mxu0
        %7697 = vdwg.mxu0
        %7698 = vmatpush.bf16.msra.mxu0 %v6304
        %7699 = vmatpush.bf16.msra.mxu0 %v6302
        %7700 = vmatpush.bf16.msra.mxu0 %v6300
        %7701 = vmatpush.bf16.msra.mxu0 %v6298
        %7702 = vmatpush.bf16.msra.mxu0 %v6296
        %7703 = vmatpush.bf16.msra.mxu0 %v6294
        %7704 = vmatpush.bf16.msra.mxu0 %v6292
        %7705 = vmatpush.bf16.msra.mxu0 %v6290
        %7706 = vmatmul.bf16.gmra.mxu0 %v4505
        %v7707 = vpop.f32.mrf.mxu0
        %v7708 = vadd.f32 %v7695, %v7707
        %v7709 = vpop.f32.mrf.mxu0
        %7710 = vdwg.mxu0
        %7711 = vmatpush.bf16.msra.mxu0 %v6320
        %7712 = vmatpush.bf16.msra.mxu0 %v6318
        %7713 = vmatpush.bf16.msra.mxu0 %v6316
        %7714 = vmatpush.bf16.msra.mxu0 %v6314
        %7715 = vmatpush.bf16.msra.mxu0 %v6312
        %7716 = vmatpush.bf16.msra.mxu0 %v6310
        %7717 = vmatpush.bf16.msra.mxu0 %v6308
        %7718 = vmatpush.bf16.msra.mxu0 %v6306
        %7719 = vmatmul.bf16.gmra.mxu0 %v4506
        %v7720 = vpop.f32.mrf.mxu0
        %v7721 = vadd.f32 %v7708, %v7720
        %v7722 = vpop.f32.mrf.mxu0
        %7723 = vdwg.mxu0
        %7724 = vmatpush.bf16.msra.mxu0 %v6336
        %7725 = vmatpush.bf16.msra.mxu0 %v6334
        %7726 = vmatpush.bf16.msra.mxu0 %v6332
        %7727 = vmatpush.bf16.msra.mxu0 %v6330
        %7728 = vmatpush.bf16.msra.mxu0 %v6328
        %7729 = vmatpush.bf16.msra.mxu0 %v6326
        %7730 = vmatpush.bf16.msra.mxu0 %v6324
        %7731 = vmatpush.bf16.msra.mxu0 %v6322
        %7732 = vmatmul.bf16.gmra.mxu0 %v4507
        %v7733 = vpop.f32.mrf.mxu0
        %v7734 = vadd.f32 %v7721, %v7733
        %v7735 = vpop.f32.mrf.mxu0
        %7736 = vdwg.mxu0
        %7737 = vmatpush.bf16.msra.mxu0 %v6352
        %7738 = vmatpush.bf16.msra.mxu0 %v6350
        %7739 = vmatpush.bf16.msra.mxu0 %v6348
        %7740 = vmatpush.bf16.msra.mxu0 %v6346
        %7741 = vmatpush.bf16.msra.mxu0 %v6344
        %7742 = vmatpush.bf16.msra.mxu0 %v6342
        %7743 = vmatpush.bf16.msra.mxu0 %v6340
        %7744 = vmatpush.bf16.msra.mxu0 %v6338
        %7745 = vmatmul.bf16.gmra.mxu0 %v4508
        %v7746 = vpop.f32.mrf.mxu0
        %v7747 = vadd.f32 %v7734, %v7746
        %v7748 = vpop.f32.mrf.mxu0
        %7749 = vdwg.mxu0
        %7750 = vmatpush.bf16.msra.mxu0 %v6368
        %7751 = vmatpush.bf16.msra.mxu0 %v6366
        %7752 = vmatpush.bf16.msra.mxu0 %v6364
        %7753 = vmatpush.bf16.msra.mxu0 %v6362
        %7754 = vmatpush.bf16.msra.mxu0 %v6360
        %7755 = vmatpush.bf16.msra.mxu0 %v6358
        %7756 = vmatpush.bf16.msra.mxu0 %v6356
        %7757 = vmatpush.bf16.msra.mxu0 %v6354
        %7758 = vmatmul.bf16.gmra.mxu0 %v4511
        %v7759 = vpop.f32.mrf.mxu0
        %v7760 = vadd.f32 %v7747, %v7759
        %v7761 = vpop.f32.mrf.mxu0
        %7762 = vdwg.mxu0
        %7763 = vmatpush.bf16.msra.mxu0 %v6384
        %7764 = vmatpush.bf16.msra.mxu0 %v6382
        %7765 = vmatpush.bf16.msra.mxu0 %v6380
        %7766 = vmatpush.bf16.msra.mxu0 %v6378
        %7767 = vmatpush.bf16.msra.mxu0 %v6376
        %7768 = vmatpush.bf16.msra.mxu0 %v6374
        %7769 = vmatpush.bf16.msra.mxu0 %v6372
        %7770 = vmatpush.bf16.msra.mxu0 %v6370
        %7771 = vmatmul.bf16.gmra.mxu0 %v4512
        %v7772 = vpop.f32.mrf.mxu0
        %v7773 = vadd.f32 %v7760, %v7772
        %v7774 = vpop.f32.mrf.mxu0
        %7775 = vdwg.mxu0
        %7776 = vmatpush.bf16.msra.mxu0 %v6400
        %7777 = vmatpush.bf16.msra.mxu0 %v6398
        %7778 = vmatpush.bf16.msra.mxu0 %v6396
        %7779 = vmatpush.bf16.msra.mxu0 %v6394
        %7780 = vmatpush.bf16.msra.mxu0 %v6392
        %7781 = vmatpush.bf16.msra.mxu0 %v6390
        %7782 = vmatpush.bf16.msra.mxu0 %v6388
        %7783 = vmatpush.bf16.msra.mxu0 %v6386
        %7784 = vmatmul.bf16.gmra.mxu0 %v4513
        %v7785 = vpop.f32.mrf.mxu0
        %v7786 = vadd.f32 %v7773, %v7785
        %v7787 = vpop.f32.mrf.mxu0
        %7788 = vdwg.mxu0
        %7789 = vmatpush.bf16.msra.mxu0 %v6416
        %7790 = vmatpush.bf16.msra.mxu0 %v6414
        %7791 = vmatpush.bf16.msra.mxu0 %v6412
        %7792 = vmatpush.bf16.msra.mxu0 %v6410
        %7793 = vmatpush.bf16.msra.mxu0 %v6408
        %7794 = vmatpush.bf16.msra.mxu0 %v6406
        %7795 = vmatpush.bf16.msra.mxu0 %v6404
        %7796 = vmatpush.bf16.msra.mxu0 %v6402
        %7797 = vmatmul.bf16.gmra.mxu0 %v4514
        %v7798 = vpop.f32.mrf.mxu0
        %v7799 = vadd.f32 %v7786, %v7798
        %v7800 = vpop.f32.mrf.mxu0
        %7801 = vdwg.mxu0
        %7802 = vmatpush.bf16.msra.mxu0 %v6432
        %7803 = vmatpush.bf16.msra.mxu0 %v6430
        %7804 = vmatpush.bf16.msra.mxu0 %v6428
        %7805 = vmatpush.bf16.msra.mxu0 %v6426
        %7806 = vmatpush.bf16.msra.mxu0 %v6424
        %7807 = vmatpush.bf16.msra.mxu0 %v6422
        %7808 = vmatpush.bf16.msra.mxu0 %v6420
        %7809 = vmatpush.bf16.msra.mxu0 %v6418
        %7810 = vmatmul.bf16.gmra.mxu0 %v4515
        %v7811 = vpop.f32.mrf.mxu0
        %v7812 = vadd.f32 %v7799, %v7811
        %v7813 = vpop.f32.mrf.mxu0
        %7814 = vdwg.mxu0
        %7815 = vmatpush.bf16.msra.mxu0 %v6448
        %7816 = vmatpush.bf16.msra.mxu0 %v6446
        %7817 = vmatpush.bf16.msra.mxu0 %v6444
        %7818 = vmatpush.bf16.msra.mxu0 %v6442
        %7819 = vmatpush.bf16.msra.mxu0 %v6440
        %7820 = vmatpush.bf16.msra.mxu0 %v6438
        %7821 = vmatpush.bf16.msra.mxu0 %v6436
        %7822 = vmatpush.bf16.msra.mxu0 %v6434
        %7823 = vmatmul.bf16.gmra.mxu0 %v4516
        %v7824 = vpop.f32.mrf.mxu0
        %v7825 = vadd.f32 %v7812, %v7824
        %v7826 = vpop.f32.mrf.mxu0
        %7827 = vdwg.mxu0
        %7828 = vmatpush.bf16.msra.mxu0 %v6464
        %7829 = vmatpush.bf16.msra.mxu0 %v6462
        %7830 = vmatpush.bf16.msra.mxu0 %v6460
        %7831 = vmatpush.bf16.msra.mxu0 %v6458
        %7832 = vmatpush.bf16.msra.mxu0 %v6456
        %7833 = vmatpush.bf16.msra.mxu0 %v6454
        %7834 = vmatpush.bf16.msra.mxu0 %v6452
        %7835 = vmatpush.bf16.msra.mxu0 %v6450
        %7836 = vmatmul.bf16.gmra.mxu0 %v4517
        %v7837 = vpop.f32.mrf.mxu0
        %v7838 = vadd.f32 %v7825, %v7837
        %v7839 = vpop.f32.mrf.mxu0
        %7840 = vdwg.mxu0
        %7841 = vmatpush.bf16.msra.mxu0 %v6480
        %7842 = vmatpush.bf16.msra.mxu0 %v6478
        %7843 = vmatpush.bf16.msra.mxu0 %v6476
        %7844 = vmatpush.bf16.msra.mxu0 %v6474
        %7845 = vmatpush.bf16.msra.mxu0 %v6472
        %7846 = vmatpush.bf16.msra.mxu0 %v6470
        %7847 = vmatpush.bf16.msra.mxu0 %v6468
        %7848 = vmatpush.bf16.msra.mxu0 %v6466
        %7849 = vmatmul.bf16.gmra.mxu0 %v4518
        %v7850 = vpop.f32.mrf.mxu0
        %v7851 = vadd.f32 %v7838, %v7850
        %v7852 = vpop.f32.mrf.mxu0
        %7853 = vdwg.mxu0
        %7854 = vmatpush.bf16.msra.mxu0 %v6496
        %7855 = vmatpush.bf16.msra.mxu0 %v6494
        %7856 = vmatpush.bf16.msra.mxu0 %v6492
        %7857 = vmatpush.bf16.msra.mxu0 %v6490
        %7858 = vmatpush.bf16.msra.mxu0 %v6488
        %7859 = vmatpush.bf16.msra.mxu0 %v6486
        %7860 = vmatpush.bf16.msra.mxu0 %v6484
        %7861 = vmatpush.bf16.msra.mxu0 %v6482
        %7862 = vmatmul.bf16.gmra.mxu0 %v4521
        %v7863 = vpop.f32.mrf.mxu0
        %v7864 = vadd.f32 %v7851, %v7863
        %v7865 = vpop.f32.mrf.mxu0
        %7866 = vdwg.mxu0
        %7867 = vmatpush.bf16.msra.mxu0 %v6512
        %7868 = vmatpush.bf16.msra.mxu0 %v6510
        %7869 = vmatpush.bf16.msra.mxu0 %v6508
        %7870 = vmatpush.bf16.msra.mxu0 %v6506
        %7871 = vmatpush.bf16.msra.mxu0 %v6504
        %7872 = vmatpush.bf16.msra.mxu0 %v6502
        %7873 = vmatpush.bf16.msra.mxu0 %v6500
        %7874 = vmatpush.bf16.msra.mxu0 %v6498
        %7875 = vmatmul.bf16.gmra.mxu0 %v4522
        %v7876 = vpop.f32.mrf.mxu0
        %v7877 = vadd.f32 %v7864, %v7876
        %v7878 = vpop.f32.mrf.mxu0
        %7879 = vdwg.mxu0
        %7880 = vmatpush.bf16.msra.mxu0 %v6528
        %7881 = vmatpush.bf16.msra.mxu0 %v6526
        %7882 = vmatpush.bf16.msra.mxu0 %v6524
        %7883 = vmatpush.bf16.msra.mxu0 %v6522
        %7884 = vmatpush.bf16.msra.mxu0 %v6520
        %7885 = vmatpush.bf16.msra.mxu0 %v6518
        %7886 = vmatpush.bf16.msra.mxu0 %v6516
        %7887 = vmatpush.bf16.msra.mxu0 %v6514
        %7888 = vmatmul.bf16.gmra.mxu0 %v4523
        %v7889 = vpop.f32.mrf.mxu0
        %v7890 = vadd.f32 %v7877, %v7889
        %v7891 = vpop.f32.mrf.mxu0
        %7892 = vdwg.mxu0
        %7893 = vmatpush.bf16.msra.mxu0 %v6544
        %7894 = vmatpush.bf16.msra.mxu0 %v6542
        %7895 = vmatpush.bf16.msra.mxu0 %v6540
        %7896 = vmatpush.bf16.msra.mxu0 %v6538
        %7897 = vmatpush.bf16.msra.mxu0 %v6536
        %7898 = vmatpush.bf16.msra.mxu0 %v6534
        %7899 = vmatpush.bf16.msra.mxu0 %v6532
        %7900 = vmatpush.bf16.msra.mxu0 %v6530
        %7901 = vmatmul.bf16.gmra.mxu0 %v4524
        %v7902 = vpop.f32.mrf.mxu0
        %v7903 = vadd.f32 %v7890, %v7902
        %v7904 = vpop.f32.mrf.mxu0
        %7905 = vdwg.mxu0
        %7906 = vmatpush.bf16.msra.mxu0 %v6560
        %7907 = vmatpush.bf16.msra.mxu0 %v6558
        %7908 = vmatpush.bf16.msra.mxu0 %v6556
        %7909 = vmatpush.bf16.msra.mxu0 %v6554
        %7910 = vmatpush.bf16.msra.mxu0 %v6552
        %7911 = vmatpush.bf16.msra.mxu0 %v6550
        %7912 = vmatpush.bf16.msra.mxu0 %v6548
        %7913 = vmatpush.bf16.msra.mxu0 %v6546
        %7914 = vmatmul.bf16.gmra.mxu0 %v4525
        %v7915 = vpop.f32.mrf.mxu0
        %v7916 = vadd.f32 %v7903, %v7915
        %v7917 = vpop.f32.mrf.mxu0
        %7918 = vdwg.mxu0
        %7919 = vmatpush.bf16.msra.mxu0 %v6576
        %7920 = vmatpush.bf16.msra.mxu0 %v6574
        %7921 = vmatpush.bf16.msra.mxu0 %v6572
        %7922 = vmatpush.bf16.msra.mxu0 %v6570
        %7923 = vmatpush.bf16.msra.mxu0 %v6568
        %7924 = vmatpush.bf16.msra.mxu0 %v6566
        %7925 = vmatpush.bf16.msra.mxu0 %v6564
        %7926 = vmatpush.bf16.msra.mxu0 %v6562
        %7927 = vmatmul.bf16.gmra.mxu0 %v4526
        %v7928 = vpop.f32.mrf.mxu0
        %v7929 = vadd.f32 %v7916, %v7928
        %v7930 = vpop.f32.mrf.mxu0
        %7931 = vdwg.mxu0
        %7932 = vmatpush.bf16.msra.mxu0 %v6592
        %7933 = vmatpush.bf16.msra.mxu0 %v6590
        %7934 = vmatpush.bf16.msra.mxu0 %v6588
        %7935 = vmatpush.bf16.msra.mxu0 %v6586
        %7936 = vmatpush.bf16.msra.mxu0 %v6584
        %7937 = vmatpush.bf16.msra.mxu0 %v6582
        %7938 = vmatpush.bf16.msra.mxu0 %v6580
        %7939 = vmatpush.bf16.msra.mxu0 %v6578
        %7940 = vmatmul.bf16.gmra.mxu0 %v4527
        %v7941 = vpop.f32.mrf.mxu0
        %v7942 = vadd.f32 %v7929, %v7941
        %v7943 = vpop.f32.mrf.mxu0
        %7944 = vdwg.mxu0
        %7945 = vmatpush.bf16.msra.mxu0 %v6608
        %7946 = vmatpush.bf16.msra.mxu0 %v6606
        %7947 = vmatpush.bf16.msra.mxu0 %v6604
        %7948 = vmatpush.bf16.msra.mxu0 %v6602
        %7949 = vmatpush.bf16.msra.mxu0 %v6600
        %7950 = vmatpush.bf16.msra.mxu0 %v6598
        %7951 = vmatpush.bf16.msra.mxu0 %v6596
        %7952 = vmatpush.bf16.msra.mxu0 %v6594
        %7953 = vmatmul.bf16.gmra.mxu0 %v4528
        %v7954 = vpop.f32.mrf.mxu0
        %v7955 = vadd.f32 %v7942, %v7954
        %v7956 = vpop.f32.mrf.mxu0
        %7957 = vdwg.mxu0
        %v7958 = vmax.f32 %v7539, 0.0
        %v7959 = vmax.f32 %v7955, 0.0
        %v7960 = vpack.c.bf16 %v7958, %v7958
        %v7961 = vpack.c.bf16 %v7959, %v7959
        %v7962 = vld [vmem:[%s7] sm:$0xf]
        %v7963 = vld [vmem:[%s7 + $0x4] sm:$0xf]
        %v7964 = vld [vmem:[%s7 + $0x8] sm:$0xf]
        %v7965 = vld [vmem:[%s7 + $0xc] sm:$0xf]
        %v7966 = vld [vmem:[%s7 + $0x10] sm:$0xf]
        %v7967 = vld [vmem:[%s7 + $0x14] sm:$0xf]
        %v7968 = vld [vmem:[%s7 + $0x18] sm:$0xf]
        %v7969 = vld [vmem:[%s7 + $0x1c] sm:$0xf]
        %v7970 = vld [vmem:[%s7 + $0x20] sm:$0xf]
        %v7971 = vld [vmem:[%s7 + $0x24] sm:$0xf]
        %v7972 = vld [vmem:[%s7 + $0x28] sm:$0xf]
        %v7973 = vld [vmem:[%s7 + $0x2c] sm:$0xf]
        %v7974 = vld [vmem:[%s7 + $0x30] sm:$0xf]
        %v7975 = vld [vmem:[%s7 + $0x34] sm:$0xf]
        %v7976 = vld [vmem:[%s7 + $0x38] sm:$0xf]
        %v7977 = vld [vmem:[%s7 + $0x3c] sm:$0xf]
        %v7978 = vld [vmem:[%s7 + $0x40] sm:$0xf]
        %v7979 = vld [vmem:[%s7 + $0x44] sm:$0xf]
        %v7980 = vld [vmem:[%s7 + $0x48] sm:$0xf]
        %v7981 = vld [vmem:[%s7 + $0x4c] sm:$0xf]
        %v7982 = vld [vmem:[%s7 + $0x50] sm:$0xf]
        %v7983 = vld [vmem:[%s7 + $0x54] sm:$0xf]
        %v7984 = vld [vmem:[%s7 + $0x58] sm:$0xf]
        %v7985 = vld [vmem:[%s7 + $0x5c] sm:$0xf]
        %v7986 = vld [vmem:[%s7 + $0x60] sm:$0xf]
        %v7987 = vld [vmem:[%s7 + $0x64] sm:$0xf]
        %v7988 = vld [vmem:[%s7 + $0x68] sm:$0xf]
        %v7989 = vld [vmem:[%s7 + $0x6c] sm:$0xf]
        %v7990 = vld [vmem:[%s7 + $0x70] sm:$0xf]
        %v7991 = vld [vmem:[%s7 + $0x74] sm:$0xf]
        %v7992 = vld [vmem:[%s7 + $0x78] sm:$0xf]
        %v7993 = vld [vmem:[%s7 + $0x7c] sm:$0xf]
        %v7994 = vld [vmem:[%s8] sm:$0x1]
        %v8027 = vunpack.c.l.b16 %v7962
        %v8028 = vunpack.c.l.b16 %v7963
        %v8029 = vunpack.c.l.b16 %v7964
        %v8030 = vunpack.c.l.b16 %v7965
        %v8031 = vunpack.c.l.b16 %v7966
        %v8032 = vunpack.c.l.b16 %v7967
        %v8033 = vunpack.c.l.b16 %v7968
        %v8034 = vunpack.c.l.b16 %v7969
        %v8035 = vunpack.c.l.b16 %v7970
        %v8036 = vunpack.c.l.b16 %v7971
        %v8037 = vunpack.c.l.b16 %v7972
        %v8038 = vunpack.c.l.b16 %v7973
        %v8039 = vunpack.c.l.b16 %v7974
        %v8040 = vunpack.c.l.b16 %v7975
        %v8041 = vunpack.c.l.b16 %v7976
        %v8042 = vunpack.c.l.b16 %v7977
        %v8043 = vunpack.c.l.b16 %v7978
        %v8044 = vunpack.c.l.b16 %v7979
        %v8045 = vunpack.c.l.b16 %v7980
        %v8046 = vunpack.c.l.b16 %v7981
        %v8047 = vunpack.c.l.b16 %v7982
        %v8048 = vunpack.c.l.b16 %v7983
        %v8049 = vunpack.c.l.b16 %v7984
        %v8050 = vunpack.c.l.b16 %v7985
        %v8051 = vunpack.c.l.b16 %v7986
        %v8052 = vunpack.c.l.b16 %v7987
        %v8053 = vunpack.c.l.b16 %v7988
        %v8054 = vunpack.c.l.b16 %v7989
        %v8055 = vunpack.c.l.b16 %v7990
        %v8056 = vunpack.c.l.b16 %v7991
        %v8057 = vunpack.c.l.b16 %v7992
        %v8058 = vunpack.c.l.b16 %v7993
        %v8059 = vpack.c.b16 %v8028, %v8027
        %v8060 = vpack.c.b16 %v8030, %v8029
        %v8061 = vpack.c.b16 %v8032, %v8031
        %v8062 = vpack.c.b16 %v8034, %v8033
        %v8063 = vpack.c.b16 %v8036, %v8035
        %v8064 = vpack.c.b16 %v8038, %v8037
        %v8065 = vpack.c.b16 %v8040, %v8039
        %v8066 = vpack.c.b16 %v8042, %v8041
        %v8067 = vpack.c.b16 %v8044, %v8043
        %v8068 = vpack.c.b16 %v8046, %v8045
        %v8069 = vpack.c.b16 %v8048, %v8047
        %v8070 = vpack.c.b16 %v8050, %v8049
        %v8071 = vpack.c.b16 %v8052, %v8051
        %v8072 = vpack.c.b16 %v8054, %v8053
        %v8073 = vpack.c.b16 %v8056, %v8055
        %v8074 = vpack.c.b16 %v8058, %v8057
        %8091 = vmatpush.bf16.msra.mxu0 %v8066
        %8092 = vmatpush.bf16.msra.mxu0 %v8065
        %8093 = vmatpush.bf16.msra.mxu0 %v8064
        %8094 = vmatpush.bf16.msra.mxu0 %v8063
        %8095 = vmatpush.bf16.msra.mxu0 %v8062
        %8096 = vmatpush.bf16.msra.mxu0 %v8061
        %8097 = vmatpush.bf16.msra.mxu0 %v8060
        %8098 = vmatpush.bf16.msra.mxu0 %v8059
        %8099 = vmatmul.bf16.gmra.mxu0 %v7960
        %v8100 = vpop.f32.mrf.mxu0
        %v8101 = vadd.f32 %v7994, %v8100
        %v8102 = vpop.f32.mrf.mxu0
        %8103 = vdwg.mxu0
        %8104 = vmatpush.bf16.msra.mxu0 %v8074
        %8105 = vmatpush.bf16.msra.mxu0 %v8073
        %8106 = vmatpush.bf16.msra.mxu0 %v8072
        %8107 = vmatpush.bf16.msra.mxu0 %v8071
        %8108 = vmatpush.bf16.msra.mxu0 %v8070
        %8109 = vmatpush.bf16.msra.mxu0 %v8069
        %8110 = vmatpush.bf16.msra.mxu0 %v8068
        %8111 = vmatpush.bf16.msra.mxu0 %v8067
        %8112 = vmatmul.bf16.gmra.mxu0 %v7961
        %v8113 = vpop.f32.mrf.mxu0
        %v8114 = vadd.f32 %v8101, %v8113
        %v8115 = vpop.f32.mrf.mxu0
        %8116 = vdwg.mxu0
        %8117 = vst [vmem:[%s324] sm:$0x1] %v8114
        %s8118 = sand.u32 %s225, 1
        %s8119 = scalar_lea.sflag [#allocation4], %s8118
        %s8120 = sand.u32 %s225, 1
        %s8121 = scalar_lea.vmem [#allocation3], %s8120
        // Predicated region
        $region57: #{qnetwork_forward.1} parent=55 // pred_check
          %p8122 = pneg %p235
        $region58: #{qnetwork_forward.1} parent=55 // pred_check_branch
          %8124 = sbr.rel (%p8122) target = $region60
        $region59: #{qnetwork_forward.1} parent=55 // pred_region
          %8126 = vsyncadd %s8119, 0
          %s8127 = scalar_lea.hbm %s9, %s23
          %s8129 = sshll.u32 %s8121, 4
          %s8130 = int_to_ptr.vmem [resolvable:$true] %s8129
          %s8131 = sshll.u32 %s8127, 4
          %s8132 = int_to_ptr.hbm [resolvable:$true] %s8131
          %8134 = dma.vmem_to_hbm [thread:$0]  %s8130, 16, %s8132, %s8119
        $region60: #{qnetwork_forward.1} parent=55 // pred_fallthru
          _
      $region56: #{qnetwork_forward.1} parent=5 // pred_fallthru
        _
      %p8135 = scmp.le.s32.totalorder 2, %s18
      // Predicated region
      $region61: #{qnetwork_forward.1} parent=5 // pred_check
        %p8136 = pneg %p8135
      $region62: #{qnetwork_forward.1} parent=5 // pred_check_branch
        %8138 = sbr.rel (%p8136) target = $region64
      $region63: #{qnetwork_forward.1} parent=5 // pred_region
        %s8139 = ssub.s32 %s18, 2
        // Predicated region
        $region65: #{qnetwork_forward.1} parent=63 // pred_check
          %p8140 = pneg %p241
        $region66: #{qnetwork_forward.1} parent=63 // pred_check_branch
          %8142 = sbr.rel (%p8140) target = $region68
        $region67: #{qnetwork_forward.1} parent=63 // pred_region
          %s8143 = sand.u32 %s226, 1
          %s8144 = scalar_lea.sflag [#allocation4], %s8143
          %s8145 = sand.u32 %s226, 1
          %s8146 = scalar_lea.vmem [#allocation3], %s8145
          %8148 = dma.done %s8144, 16
        $region68: #{qnetwork_forward.1} parent=63 // pred_fallthru
          _
      $region64: #{qnetwork_forward.1} parent=5 // pred_fallthru
        _
    $region6: #{qnetwork_forward.1} parent=1 // loop_footer
      %s22 = sadd.s32 1, %s18
    $region7: #{qnetwork_forward.1} parent=1 // loop_footer_branch
      %17 = sbr.rel target = $region3
    $region8: #{qnetwork_forward.1} parent=1 // loop_exit
      _
    %8149 = vsyncpa [#allocation4], 1
    %s8150 = scalar_lea.sflag [#allocation4], 1
    %8151 = vsyncpa %s8150, 1

</llo_original>
